<compile_context>
chip_gen: v7x
topology: tpu7x:2x2x1
jax: 0.10.0
libtpu: 0.0.40
codegen_flags: <defaults>
</compile_context>

<pallas_src>
import math

import jax
import jax.numpy as jnp
from jax.experimental import pallas as pl
from jax.experimental.pallas import tpu as pltpu

# ----------------------------- configuration --------------------------------
EMB_SIZE = 32          # emb_size
NUM_BLOCKS = 2         # num_blocks
NUM_BILINEAR = 8       # num_bilinear
NUM_SPHERICAL = 4      # num_spherical
NUM_RADIAL = 8         # num_radial
CUTOFF = 5.0
ENV_EXPONENT = 5
NUM_BEFORE_SKIP = 1
NUM_AFTER_SKIP = 2
NUM_DENSE_OUT = 3
NUM_TARGETS = 12
N_ATOMS = 8
NUM_MOL = 8            # molecules per batch (demo: shared complete-graph topology)

_COMPILER_PARAMS = pltpu.CompilerParams(dimension_semantics=("parallel",))


def _swish(x):
    return x * jax.nn.sigmoid(x)


# ----------------------------- fused Pallas kernel ---------------------------
def _fused_forward_kernel(rbf_ref, sbf_ref, h_ref,
                          src_oh_ref, dst_oh_ref, aggT_ref,
                          lg_gather_ref, lg_scatT_ref, sum_oh_ref,
                          w_rbf_ref, b_rbf_ref, w_sbf_exp_ref,
                          emb_wd_ref, emb_bd_ref,
                          w32_ref, b32_ref,
                          w_jikj_ref, b_jikj_ref, w_bilin_ref, w_fin_ref,
                          p_ref):
    f32, bf16 = jnp.float32, jnp.bfloat16
    H, B = EMB_SIZE, NUM_BILINEAR
    BH = B * H

    rbf = rbf_ref[0]                 # [E, R]      bf16
    sbf = sbf_ref[0]                 # [E_lg, S*R] bf16
    h = h_ref[0]                     # [N, H]      bf16
    src_oh = src_oh_ref[...]         # [E, N]      bf16 (0/1)
    dst_oh = dst_oh_ref[...]         # [E, N]      bf16 (0/1)
    aggT = aggT_ref[...]             # [N, E]      bf16 (scatter edge -> dst node)
    lg_gather = lg_gather_ref[...]   # [E_lg, E]   bf16 (gather g-edge -> lg src)
    lg_scatT = lg_scatT_ref[...]     # [E, E_lg]   bf16 (scatter lg edge -> dst g-edge)
    sum_oh = sum_oh_ref[...]         # [B*H, H]    bf16 (tile(eye(H), (B,1)))

    def bdot(a, b):
        # bf16 MXU operands, f32 accumulation.
        return jnp.dot(a.astype(bf16), b.astype(bf16), preferred_element_type=f32)

    # ---- all 6 RBF projections in one lane-dense bf16 GEMM: [E, 6H] ----
    rbf_all = bdot(rbf, w_rbf_ref[...]) + b_rbf_ref[...]
    rbf_emb = rbf_all[:, 0:H]
    rbf_out = [rbf_all[:, (1 + k) * H:(2 + k) * H] for k in range(NUM_BLOCKS + 1)]
    rbf_int = [rbf_all[:, (2 + NUM_BLOCKS + k) * H:(3 + NUM_BLOCKS + k) * H]
               for k in range(NUM_BLOCKS)]

    # ---- lane-expanded SBF projection for both blocks: [E_lg, 2*B*H] ----
    # column (blk*B*H + j*H + i) = dense_sbf_blk(sbf)[w, j]   (independent of i)
    sbf_exp_all = bdot(sbf, w_sbf_exp_ref[...])

    # ---- Embedding block: m = swish(h_src@W1 + h_dst@W2 + rbf_emb@W3 + b) ----
    h_src = bdot(src_oh, h)                                            # [E, H]
    h_dst = bdot(dst_oh, h)                                            # [E, H]
    m = (bdot(h_src, emb_wd_ref[0:H, :])
         + bdot(h_dst, emb_wd_ref[H:2 * H, :])
         + bdot(rbf_emb, emb_wd_ref[2 * H:3 * H, :])
         + emb_bd_ref[...])
    m = _swish(m)

    # Stacked [H,H] dense weights/biases consumed in forward-execution order.
    counter = [0]

    def next_wb():
        i = counter[0]
        counter[0] += 1
        return w32_ref[i], b32_ref[i]

    def output_block(m_e, blk):
        t = bdot(aggT, m_e * rbf_out[blk])                             # [N, H]
        for _ in range(NUM_DENSE_OUT):
            W, b = next_wb()
            t = _swish(bdot(t, W) + b)
        # reduce over atoms BEFORE the (bias-free, linear) final projection
        return jnp.sum(t, axis=0, keepdims=True)                       # [1, H]

    def interaction_block(m_e, blk):
        xjk = _swish(bdot(m_e, w_jikj_ref[blk]) + b_jikj_ref[blk])     # [E, 2H]
        x_ji = xjk[:, 0:H]
        x_kj = xjk[:, H:2 * H]

        # bilinear: einsum("wj,wl,jli->wi", sbf_proj, x_kj[lg_src], W_bilin)
        xk = x_kj * rbf_int[blk]                                       # [E, H]
        xs = bdot(lg_gather, xk)                                       # [E_lg, H]
        y = bdot(xs, w_bilin_ref[blk])                                 # [E_lg, B*H] (N=256)
        sp_exp = sbf_exp_all[:, blk * BH:(blk + 1) * BH]               # vreg-aligned slice
        acc = bdot(y * sp_exp, sum_oh)                                 # [E_lg, H]
        m_upd = bdot(lg_scatT, acc) + x_ji                             # [E, H]

        for _ in range(NUM_BEFORE_SKIP):
            W1, b1 = next_wb()
            W2, b2 = next_wb()
            r = _swish(bdot(m_upd, W1) + b1)
            r = _swish(bdot(r, W2) + b2)
            m_upd = m_upd + r
        Wf, bf_ = next_wb()
        m_upd = _swish(bdot(m_upd, Wf) + bf_)
        m_new = m_e + m_upd                                            # skip connection
        for _ in range(NUM_AFTER_SKIP):
            W1, b1 = next_wb()
            W2, b2 = next_wb()
            r = _swish(bdot(m_new, W1) + b1)
            r = _swish(bdot(r, W2) + b2)
            m_new = m_new + r
        return m_new

    tsums = [output_block(m, 0)]
    m_cur = m
    for blk in range(NUM_BLOCKS):
        m_cur = interaction_block(m_cur, blk)
        tsums.append(output_block(m_cur, blk + 1))

    # P = sum_k tsum_k @ W_final_k   (no lane concat; three tiny f32 dots)
    p = jnp.zeros((1, NUM_TARGETS), f32)
    for k in range(NUM_BLOCKS + 1):
        p = p + jnp.dot(tsums[k], w_fin_ref[k], preferred_element_type=f32)
    p_ref[0] = p


# ----------------------------- basis functions (glue) ------------------------
def envelope(x, exponent=ENV_EXPONENT):
    p = exponent + 1
    a = -(p + 1) * (p + 2) / 2.0
    b = p * (p + 2)
    c = -p * (p + 1) / 2.0
    return 1.0 / x + a * x ** (p - 1) + b * x ** p + c * x ** (p + 1)


def spherical_bessel_jl(l, x):
    s, c = jnp.sin(x), jnp.cos(x)
    if l == 0:
        return s / x
    if l == 1:
        return s / x ** 2 - c / x
    if l == 2:
        return (3.0 / x ** 3 - 1.0 / x) * s - (3.0 / x ** 2) * c
    if l == 3:
        return (15.0 / x ** 4 - 6.0 / x ** 2) * s - (15.0 / x ** 3 - 1.0 / x) * c
    raise NotImplementedError


def zonal_sph_harm(l, theta):
    ct = jnp.cos(theta)
    if l == 0:
        return jnp.full_like(theta, 0.5 * math.sqrt(1.0 / math.pi))
    if l == 1:
        return 0.5 * math.sqrt(3.0 / math.pi) * ct
    if l == 2:
        return 0.25 * math.sqrt(5.0 / math.pi) * (3.0 * ct ** 2 - 1.0)
    if l == 3:
        return 0.25 * math.sqrt(7.0 / math.pi) * (5.0 * ct ** 3 - 3.0 * ct)
    raise NotImplementedError


# ----------------------------- parameters ------------------------------------
def init_params(key):
    keys = iter(jax.random.split(key, 256))
    H, R, S, B, T = EMB_SIZE, NUM_RADIAL, NUM_SPHERICAL, NUM_BILINEAR, NUM_TARGETS

    def nrm(shape, scale=None):
        k = next(keys)
        if scale is None:
            scale = 1.0 / math.sqrt(shape[0])
        return (scale * jax.random.normal(k, shape)).astype(jnp.float32)

    params = {}
    params['rbf_freq'] = jnp.arange(1, R + 1, dtype=jnp.float32) * math.pi
    params['emb_table'] = jax.random.uniform(
        next(keys), (16, H), minval=-math.sqrt(3.0), maxval=math.sqrt(3.0)).astype(jnp.float32)
    params['emb_W_rbf'] = nrm((R, H))
    params['emb_b_rbf'] = jnp.zeros((H,), jnp.float32)
    params['emb_W_dense'] = nrm((3 * H, H))
    params['emb_b_dense'] = jnp.zeros((H,), jnp.float32)

    out_blocks = []
    for _ in range(NUM_BLOCKS + 1):
        out_blocks.append({
            'W_rbf': nrm((R, H)),
            'dense': [(nrm((H, H)), jnp.zeros((H,), jnp.float32))
                      for _ in range(NUM_DENSE_OUT)],
            # NOTE: module default output_init=zeros_ would make P identically 0;
            # a small deterministic init is used so the full pipeline is exercised.
            'W_final': nrm((H, T), scale=0.1),
        })
    params['output_blocks'] = out_blocks

    int_blocks = []
    for _ in range(NUM_BLOCKS):
        int_blocks.append({
            'W_rbf': nrm((R, H)),
            'W_sbf': nrm((S * R, B)),
            'W_ji': nrm((H, H)), 'b_ji': jnp.zeros((H,), jnp.float32),
            'W_kj': nrm((H, H)), 'b_kj': jnp.zeros((H,), jnp.float32),
            # stored as [B, H, H]; W_bilin[j, l, i] == torch W_bilin[i, j, l]
            'W_bilin': ((2.0 / H) * jax.random.normal(next(keys), (B, H, H))).astype(jnp.float32),
            'before_skip': [(nrm((H, H)), jnp.zeros((H,), jnp.float32),
                             nrm((H, H)), jnp.zeros((H,), jnp.float32))
                            for _ in range(NUM_BEFORE_SKIP)],
            'W_fbs': nrm((H, H)), 'b_fbs': jnp.zeros((H,), jnp.float32),
            'after_skip': [(nrm((H, H)), jnp.zeros((H,), jnp.float32),
                            nrm((H, H)), jnp.zeros((H,), jnp.float32))
                           for _ in range(NUM_AFTER_SKIP)],
        })
    params['interaction_blocks'] = int_blocks
    return params


def pack_params(params):
    """Pack weights into a few bf16, lane-dense / stacked arrays (hoisted, once)."""
    H, B = EMB_SIZE, NUM_BILINEAR
    bf16 = jnp.bfloat16
    ob = params['output_blocks']
    ib = params['interaction_blocks']

    # RBF projections: [emb | out0 out1 out2 | int0 int1] along lanes.
    W_rbf_all = jnp.concatenate(
        [params['emb_W_rbf']] + [o['W_rbf'] for o in ob] + [b['W_rbf'] for b in ib],
        axis=1).astype(bf16)                                            # [R, 6H]
    b_rbf_all = jnp.concatenate(
        [params['emb_b_rbf']] + [jnp.zeros((H,), jnp.float32)] * (len(ob) + len(ib))
    ).reshape(1, -1)                                                    # [1, 6H] f32

    # Lane-expanded SBF weights: column (blk*B*H + j*H + i) = W_sbf_blk[r, j]
    # for every i, so  sbf_raw @ W_sbf_exp  yields the bilinear gate already
    # broadcast across the H output lanes (kills the 8-way concat in-kernel).
    W_sbf_exp = jnp.concatenate(
        [jnp.repeat(b['W_sbf'], H, axis=1) for b in ib], axis=1).astype(bf16)  # [S*R, 2*B*H]

    emb_Wd = params['emb_W_dense'].astype(bf16)                         # [3H, H]
    emb_bd = params['emb_b_dense'].reshape(1, H)                        # [1, H] f32

    # All [H,H] dense weights, stacked in exact kernel-consumption order.
    w32, b32 = [], []

    def add(W, b):
        w32.append(W)
        b32.append(b.reshape(1, H))

    def add_output(o):
        for (W, b) in o['dense']:
            add(W, b)

    add_output(ob[0])
    for k in range(NUM_BLOCKS):
        blk = ib[k]
        for (W1, b1, W2, b2) in blk['before_skip']:
            add(W1, b1)
            add(W2, b2)
        add(blk['W_fbs'], blk['b_fbs'])
        for (W1, b1, W2, b2) in blk['after_skip']:
            add(W1, b1)
            add(W2, b2)
        add_output(ob[k + 1])

    W32 = jnp.stack(w32).astype(bf16)                                   # [23, H, H]
    B32 = jnp.stack(b32)                                                # [23, 1, H] f32

    W_jikj = jnp.stack([jnp.concatenate([b['W_ji'], b['W_kj']], axis=1)
                        for b in ib]).astype(bf16)                      # [2, H, 2H]
    b_jikj = jnp.stack([jnp.concatenate([b['b_ji'], b['b_kj']]).reshape(1, 2 * H)
                        for b in ib])                                   # [2, 1, 2H] f32
    # Swapped-GEMM bilinear weight: W_bilin2[l, j*H + i] = W_bilin[j, l, i]
    W_bilin2 = jnp.stack([jnp.transpose(b['W_bilin'], (1, 0, 2)).reshape(H, B * H)
                          for b in ib]).astype(bf16)                    # [2, H, B*H]
    Wfin = jnp.stack([o['W_final'] for o in ob])                        # [3, H, T] f32

    # Strided-sum matrix: sum_oh[j*H + l, i] = (l == i)   (0/1, exact in bf16)
    sum_oh = jnp.tile(jnp.eye(H, dtype=jnp.float32), (B, 1)).astype(bf16)  # [B*H, H]

    return dict(W_rbf_all=W_rbf_all, b_rbf_all=b_rbf_all, W_sbf_exp=W_sbf_exp,
                emb_Wd=emb_Wd, emb_bd=emb_bd, W32=W32, B32=B32,
                W_jikj=W_jikj, b_jikj=b_jikj, W_bilin2=W_bilin2, Wfin=Wfin,
                sum_oh=sum_oh)


def precompute_graph(edges_src, edges_dst, lg_src, lg_dst, n_nodes):
    """One-hot incidence matrices, bf16 (0/1 exact; portable v5e/v6e/v7x)."""
    E = edges_src.shape[0]
    bf16 = jnp.bfloat16
    src_oh = jax.nn.one_hot(edges_src, n_nodes, dtype=bf16)             # [E, N]
    dst_oh = jax.nn.one_hot(edges_dst, n_nodes, dtype=bf16)             # [E, N]
    aggT = dst_oh.T                                                     # [N, E]
    lg_gather = jax.nn.one_hot(lg_src, E, dtype=bf16)                   # [E_lg, E]
    lg_scatT = jax.nn.one_hot(lg_dst, E, dtype=bf16).T                  # [E, E_lg]
    return dict(src_oh=src_oh, dst_oh=dst_oh, aggT=aggT,
                lg_gather=lg_gather, lg_scatT=lg_scatT)


# ----------------------------- featurization (glue) ---------------------------
def _featurize_single(pos, Z, edges_src, edges_dst, lg_src, lg_dst,
                      rbf_freq, emb_table):
    R, S = NUM_RADIAL, NUM_SPHERICAL

    # ---- edge geometry (g.edata['o'], 'd') ----
    o = pos[edges_dst] - pos[edges_src]                                 # [E, 3]
    d = jnp.linalg.norm(o, axis=-1)                                     # [E]
    d_scaled = d / CUTOFF
    env = envelope(d_scaled)                                            # [E]

    # ---- RBFLayer ----
    rbf = env[:, None] * jnp.sin(rbf_freq[None, :] * d_scaled[:, None])  # [E, R]

    # ---- rbf_env for SBF (spherical-Bessel basis * envelope), [E, S*R] ----
    # TODO(synk): exact sympy-generated normalized spherical Bessel basis of
    # SBFLayer is approximated with closed-form j_l and root estimates
    # z_{l,n} ~= pi*(n + 1 + l/2); structure/shapes match, exact values do not.
    cols = []
    for l in range(S):
        for n in range(R):
            z_ln = math.pi * (n + 1 + 0.5 * l)
            cols.append(spherical_bessel_jl(l, z_ln * d_scaled))
    rbf_env = env[:, None] * jnp.stack(cols, axis=1)                    # [E, S*R]

    # ---- line-graph edge_init (angles -> cbf -> sbf) ----
    R1, R2 = o[lg_src], o[lg_dst]
    xang = jnp.sum(R1 * R2, axis=-1)
    yang = jnp.linalg.norm(jnp.cross(R1, R2), axis=-1)
    angle = jnp.arctan2(yang, xang)
    cbf = jnp.stack([zonal_sph_harm(l, angle) for l in range(S)], axis=1)  # [E_lg, S]
    cbf = jnp.repeat(cbf, R, axis=1)                                    # repeat_interleave
    sbf = rbf_env[lg_src] * cbf                                         # [E_lg, S*R]

    h = emb_table[Z]                                                    # [N, H]
    return rbf, sbf, h


# ----------------------------- forward pass ----------------------------------
def dime_predictor_forward(packed, graph, rbf_freq, emb_table,
                           pos, Z, edges_src, edges_dst, lg_src, lg_dst):
    M = pos.shape[0]
    feat = jax.vmap(_featurize_single,
                    in_axes=(0, 0, None, None, None, None, None, None))
    rbf, sbf, h = feat(pos, Z, edges_src, edges_dst, lg_src, lg_dst,
                       rbf_freq, emb_table)
    rbf = rbf.astype(jnp.bfloat16)                                      # [M, E, R]
    sbf = sbf.astype(jnp.bfloat16)                                      # [M, E_lg, S*R]
    h = h.astype(jnp.bfloat16)                                          # [M, N, H]

    def const_spec(x):
        nd = x.ndim
        return pl.BlockSpec(x.shape, lambda b, _n=nd: (0,) * _n)

    def batched_spec(x):
        nd = x.ndim
        return pl.BlockSpec((1,) + x.shape[1:],
                            lambda b, _n=nd: (b,) + (0,) * (_n - 1))

    per_mol = [rbf, sbf, h]
    consts = [graph['src_oh'], graph['dst_oh'], graph['aggT'],
              graph['lg_gather'], graph['lg_scatT'], packed['sum_oh'],
              packed['W_rbf_all'], packed['b_rbf_all'], packed['W_sbf_exp'],
              packed['emb_Wd'], packed['emb_bd'],
              packed['W32'], packed['B32'],
              packed['W_jikj'], packed['b_jikj'],
              packed['W_bilin2'], packed['Wfin']]
    inputs = per_mol + consts
    in_specs = [batched_spec(x) for x in per_mol] + [const_spec(x) for x in consts]

    out = pl.pallas_call(
        _fused_forward_kernel,
        grid=(M,),
        in_specs=in_specs,
        out_specs=pl.BlockSpec((1, 1, NUM_TARGETS), lambda b: (b, 0, 0)),
        out_shape=jax.ShapeDtypeStruct((M, 1, NUM_TARGETS), jnp.float32),
        compiler_params=_COMPILER_PARAMS,
    )(*inputs)
    return out.reshape(M, NUM_TARGETS)


# ----------------------------- main ------------------------------------------
if __name__ == "__main__":
    key = jax.random.PRNGKey(0)
    k_pos, k_z, k_params = jax.random.split(key, 3)

    # Batch of NUM_MOL small molecules: complete digraph on N_ATOMS atoms each
    # (shared topology so incidence matrices are a single VMEM-resident set).
    pos = jax.random.normal(k_pos, (NUM_MOL, N_ATOMS, 3), dtype=jnp.float32)
    dists = jnp.linalg.norm(pos[:, :, None, :] - pos[:, None, :, :], axis=-1)
    max_d = jnp.max(dists.reshape(NUM_MOL, -1), axis=1)
    pos = pos * (0.35 * CUTOFF / max_d)[:, None, None]   # keep distances < cutoff
    Z = jax.random.randint(k_z, (NUM_MOL, N_ATOMS), 1, 11)

    edges = [(i, j) for i in range(N_ATOMS) for j in range(N_ATOMS) if i != j]
    edges_src = jnp.asarray([e[0] for e in edges], dtype=jnp.int32)     # [56]
    edges_dst = jnp.asarray([e[1] for e in edges], dtype=jnp.int32)     # [56]

    # Non-backtracking line graph (dgl.line_graph(g, backtracking=False)):
    # edge a=(u->v) -> edge b=(v->w) with w != u.
    lg_s, lg_d = [], []
    for a, (u, v) in enumerate(edges):
        for b, (v2, w) in enumerate(edges):
            if v2 == v and w != u:
                lg_s.append(a)
                lg_d.append(b)
    lg_src = jnp.asarray(lg_s, dtype=jnp.int32)                         # [336]
    lg_dst = jnp.asarray(lg_d, dtype=jnp.int32)                         # [336]

    params = init_params(k_params)
    packed = pack_params(params)                 # weight packing hoisted (once)
    graph = precompute_graph(edges_src, edges_dst, lg_src, lg_dst, N_ATOMS)

    fwd = jax.jit(dime_predictor_forward)
    P = fwd(packed, graph, params['rbf_freq'], params['emb_table'],
            pos, Z, edges_src, edges_dst, lg_src, lg_dst)
    P = jax.block_until_ready(P)

    assert P.shape == (NUM_MOL, NUM_TARGETS), P.shape
    assert bool(jnp.all(jnp.isfinite(P)))
    print("KERNEL_OK")
</pallas_src>

<mosaic_0001>
module attributes {stable_mosaic.version = 11 : i64} {
  func.func @_fused_forward_kernel(%arg0: i32, %arg1: memref<1x56x8xbf16, #tpu.memory_space<vmem>>, %arg2: memref<1x336x32xbf16, #tpu.memory_space<vmem>>, %arg3: memref<1x8x32xbf16, #tpu.memory_space<vmem>>, %arg4: memref<56x8xbf16, #tpu.memory_space<vmem>>, %arg5: memref<56x8xbf16, #tpu.memory_space<vmem>>, %arg6: memref<8x56xbf16, #tpu.memory_space<vmem>>, %arg7: memref<336x56xbf16, #tpu.memory_space<vmem>>, %arg8: memref<56x336xbf16, #tpu.memory_space<vmem>>, %arg9: memref<256x32xbf16, #tpu.memory_space<vmem>>, %arg10: memref<8x192xbf16, #tpu.memory_space<vmem>>, %arg11: memref<1x192xf32, #tpu.memory_space<vmem>>, %arg12: memref<32x512xbf16, #tpu.memory_space<vmem>>, %arg13: memref<96x32xbf16, #tpu.memory_space<vmem>>, %arg14: memref<1x32xf32, #tpu.memory_space<vmem>>, %arg15: memref<23x32x32xbf16, #tpu.memory_space<vmem>>, %arg16: memref<23x1x32xf32, #tpu.memory_space<vmem>>, %arg17: memref<2x32x64xbf16, #tpu.memory_space<vmem>>, %arg18: memref<2x1x64xf32, #tpu.memory_space<vmem>>, %arg19: memref<2x32x256xbf16, #tpu.memory_space<vmem>>, %arg20: memref<3x32x12xf32, #tpu.memory_space<vmem>>, %arg21: memref<1x1x12xf32, #tpu.memory_space<vmem>>) attributes {dimension_semantics = [#tpu.dimension_semantics<parallel>], iteration_bounds = array<i64: 8>, scalar_prefetch = 0 : i64, scratch_operands = 0 : i64, tpu.core_type = #tpu.core_type<tc>, window_params = [{transform_indices = @transform_0, window_bounds = array<i64: 1, 56, 8>}, {transform_indices = @transform_1, window_bounds = array<i64: 1, 336, 32>}, {transform_indices = @transform_2, window_bounds = array<i64: 1, 8, 32>}, {pipeline_mode = #tpu.pipeline_mode<synchronous>, transform_indices = @transform_3, window_bounds = array<i64: 56, 8>}, {pipeline_mode = #tpu.pipeline_mode<synchronous>, transform_indices = @transform_4, window_bounds = array<i64: 56, 8>}, {pipeline_mode = #tpu.pipeline_mode<synchronous>, transform_indices = @transform_5, window_bounds = array<i64: 8, 56>}, {pipeline_mode = #tpu.pipeline_mode<synchronous>, transform_indices = @transform_6, window_bounds = array<i64: 336, 56>}, {pipeline_mode = #tpu.pipeline_mode<synchronous>, transform_indices = @transform_7, window_bounds = array<i64: 56, 336>}, {pipeline_mode = #tpu.pipeline_mode<synchronous>, transform_indices = @transform_8, window_bounds = array<i64: 256, 32>}, {pipeline_mode = #tpu.pipeline_mode<synchronous>, transform_indices = @transform_9, window_bounds = array<i64: 8, 192>}, {pipeline_mode = #tpu.pipeline_mode<synchronous>, transform_indices = @transform_10, window_bounds = array<i64: 1, 192>}, {pipeline_mode = #tpu.pipeline_mode<synchronous>, transform_indices = @transform_11, window_bounds = array<i64: 32, 512>}, {pipeline_mode = #tpu.pipeline_mode<synchronous>, transform_indices = @transform_12, window_bounds = array<i64: 96, 32>}, {pipeline_mode = #tpu.pipeline_mode<synchronous>, transform_indices = @transform_13, window_bounds = array<i64: 1, 32>}, {pipeline_mode = #tpu.pipeline_mode<synchronous>, transform_indices = @transform_14, window_bounds = array<i64: 23, 32, 32>}, {pipeline_mode = #tpu.pipeline_mode<synchronous>, transform_indices = @transform_15, window_bounds = array<i64: 23, 1, 32>}, {pipeline_mode = #tpu.pipeline_mode<synchronous>, transform_indices = @transform_16, window_bounds = array<i64: 2, 32, 64>}, {pipeline_mode = #tpu.pipeline_mode<synchronous>, transform_indices = @transform_17, window_bounds = array<i64: 2, 1, 64>}, {pipeline_mode = #tpu.pipeline_mode<synchronous>, transform_indices = @transform_18, window_bounds = array<i64: 2, 32, 256>}, {pipeline_mode = #tpu.pipeline_mode<synchronous>, transform_indices = @transform_19, window_bounds = array<i64: 3, 32, 12>}, {transform_indices = @transform_20, window_bounds = array<i64: 1, 1, 12>}]} {
    %c0 = arith.constant 0 : index
    %c0_0 = arith.constant 0 : index
    %c0_1 = arith.constant 0 : index
    %0 = vector.load %arg1[%c0, %c0_0, %c0_1] : memref<1x56x8xbf16, #tpu.memory_space<vmem>>, vector<1x56x8xbf16>
    %1 = vector.shape_cast %0 : vector<1x56x8xbf16> to vector<56x8xbf16>
    %c0_2 = arith.constant 0 : index
    %c0_3 = arith.constant 0 : index
    %c0_4 = arith.constant 0 : index
    %2 = vector.load %arg2[%c0_2, %c0_3, %c0_4] : memref<1x336x32xbf16, #tpu.memory_space<vmem>>, vector<1x336x32xbf16>
    %3 = vector.shape_cast %2 : vector<1x336x32xbf16> to vector<336x32xbf16>
    %c0_5 = arith.constant 0 : index
    %c0_6 = arith.constant 0 : index
    %c0_7 = arith.constant 0 : index
    %4 = vector.load %arg3[%c0_5, %c0_6, %c0_7] : memref<1x8x32xbf16, #tpu.memory_space<vmem>>, vector<1x8x32xbf16>
    %5 = vector.shape_cast %4 : vector<1x8x32xbf16> to vector<8x32xbf16>
    %c0_8 = arith.constant 0 : index
    %c0_9 = arith.constant 0 : index
    %6 = vector.load %arg4[%c0_8, %c0_9] : memref<56x8xbf16, #tpu.memory_space<vmem>>, vector<56x8xbf16>
    %c0_10 = arith.constant 0 : index
    %c0_11 = arith.constant 0 : index
    %7 = vector.load %arg5[%c0_10, %c0_11] : memref<56x8xbf16, #tpu.memory_space<vmem>>, vector<56x8xbf16>
    %c0_12 = arith.constant 0 : index
    %c0_13 = arith.constant 0 : index
    %8 = vector.load %arg6[%c0_12, %c0_13] : memref<8x56xbf16, #tpu.memory_space<vmem>>, vector<8x56xbf16>
    %c0_14 = arith.constant 0 : index
    %c0_15 = arith.constant 0 : index
    %9 = vector.load %arg7[%c0_14, %c0_15] : memref<336x56xbf16, #tpu.memory_space<vmem>>, vector<336x56xbf16>
    %c0_16 = arith.constant 0 : index
    %c0_17 = arith.constant 0 : index
    %10 = vector.load %arg8[%c0_16, %c0_17] : memref<56x336xbf16, #tpu.memory_space<vmem>>, vector<56x336xbf16>
    %c0_18 = arith.constant 0 : index
    %c0_19 = arith.constant 0 : index
    %11 = vector.load %arg9[%c0_18, %c0_19] : memref<256x32xbf16, #tpu.memory_space<vmem>>, vector<256x32xbf16>
    %c0_20 = arith.constant 0 : index
    %c0_21 = arith.constant 0 : index
    %12 = vector.load %arg10[%c0_20, %c0_21] : memref<8x192xbf16, #tpu.memory_space<vmem>>, vector<8x192xbf16>
    %cst = arith.constant dense<0.000000e+00> : vector<56x192xf32>
    %13 = tpu.matmul %1, %12, %cst {dimension_numbers = #tpu.dot_dimension_numbers<[1], [0], [0], [1], [0, 0, 1, 1], [], []>} : vector<56x8xbf16>, vector<8x192xbf16>, vector<56x192xf32> -> vector<56x192xf32>
    %c0_22 = arith.constant 0 : index
    %c0_23 = arith.constant 0 : index
    %14 = vector.load %arg11[%c0_22, %c0_23] : memref<1x192xf32, #tpu.memory_space<vmem>>, vector<1x192xf32>
    %15 = vector.broadcast %14 : vector<1x192xf32> to vector<56x192xf32>
    %16 = arith.addf %13, %15 : vector<56x192xf32>
    %17 = vector.extract_strided_slice %16 {offsets = [0, 0], sizes = [56, 32], strides = [1, 1]} : vector<56x192xf32> to vector<56x32xf32>
    %18 = vector.extract_strided_slice %16 {offsets = [0, 32], sizes = [56, 32], strides = [1, 1]} : vector<56x192xf32> to vector<56x32xf32>
    %19 = vector.extract_strided_slice %16 {offsets = [0, 64], sizes = [56, 32], strides = [1, 1]} : vector<56x192xf32> to vector<56x32xf32>
    %20 = vector.extract_strided_slice %16 {offsets = [0, 96], sizes = [56, 32], strides = [1, 1]} : vector<56x192xf32> to vector<56x32xf32>
    %21 = vector.extract_strided_slice %16 {offsets = [0, 128], sizes = [56, 32], strides = [1, 1]} : vector<56x192xf32> to vector<56x32xf32>
    %22 = vector.extract_strided_slice %16 {offsets = [0, 160], sizes = [56, 32], strides = [1, 1]} : vector<56x192xf32> to vector<56x32xf32>
    %c0_24 = arith.constant 0 : index
    %c0_25 = arith.constant 0 : index
    %23 = vector.load %arg12[%c0_24, %c0_25] : memref<32x512xbf16, #tpu.memory_space<vmem>>, vector<32x512xbf16>
    %cst_26 = arith.constant dense<0.000000e+00> : vector<336x512xf32>
    %24 = tpu.matmul %3, %23, %cst_26 {dimension_numbers = #tpu.dot_dimension_numbers<[1], [0], [0], [1], [0, 0, 1, 1], [], []>} : vector<336x32xbf16>, vector<32x512xbf16>, vector<336x512xf32> -> vector<336x512xf32>
    %cst_27 = arith.constant dense<0.000000e+00> : vector<56x32xf32>
    %25 = tpu.matmul %6, %5, %cst_27 {dimension_numbers = #tpu.dot_dimension_numbers<[1], [0], [0], [1], [0, 0, 1, 1], [], []>} : vector<56x8xbf16>, vector<8x32xbf16>, vector<56x32xf32> -> vector<56x32xf32>
    %cst_28 = arith.constant dense<0.000000e+00> : vector<56x32xf32>
    %26 = tpu.matmul %7, %5, %cst_28 {dimension_numbers = #tpu.dot_dimension_numbers<[1], [0], [0], [1], [0, 0, 1, 1], [], []>} : vector<56x8xbf16>, vector<8x32xbf16>, vector<56x32xf32> -> vector<56x32xf32>
    %c0_29 = arith.constant 0 : index
    %c0_30 = arith.constant 0 : index
    %27 = vector.load %arg13[%c0_29, %c0_30] : memref<96x32xbf16, #tpu.memory_space<vmem>>, vector<32x32xbf16>
    %28 = arith.truncf %25 : vector<56x32xf32> to vector<56x32xbf16>
    %cst_31 = arith.constant dense<0.000000e+00> : vector<56x32xf32>
    %29 = tpu.matmul %28, %27, %cst_31 {dimension_numbers = #tpu.dot_dimension_numbers<[1], [0], [0], [1], [0, 0, 1, 1], [], []>} : vector<56x32xbf16>, vector<32x32xbf16>, vector<56x32xf32> -> vector<56x32xf32>
    %c32 = arith.constant 32 : index
    %c0_32 = arith.constant 0 : index
    %30 = vector.load %arg13[%c32, %c0_32] : memref<96x32xbf16, #tpu.memory_space<vmem>>, vector<32x32xbf16>
    %31 = arith.truncf %26 : vector<56x32xf32> to vector<56x32xbf16>
    %cst_33 = arith.constant dense<0.000000e+00> : vector<56x32xf32>
    %32 = tpu.matmul %31, %30, %cst_33 {dimension_numbers = #tpu.dot_dimension_numbers<[1], [0], [0], [1], [0, 0, 1, 1], [], []>} : vector<56x32xbf16>, vector<32x32xbf16>, vector<56x32xf32> -> vector<56x32xf32>
    %33 = arith.addf %29, %32 : vector<56x32xf32>
    %c64 = arith.constant 64 : index
    %c0_34 = arith.constant 0 : index
    %34 = vector.load %arg13[%c64, %c0_34] : memref<96x32xbf16, #tpu.memory_space<vmem>>, vector<32x32xbf16>
    %35 = arith.truncf %17 : vector<56x32xf32> to vector<56x32xbf16>
    %cst_35 = arith.constant dense<0.000000e+00> : vector<56x32xf32>
    %36 = tpu.matmul %35, %34, %cst_35 {dimension_numbers = #tpu.dot_dimension_numbers<[1], [0], [0], [1], [0, 0, 1, 1], [], []>} : vector<56x32xbf16>, vector<32x32xbf16>, vector<56x32xf32> -> vector<56x32xf32>
    %37 = arith.addf %33, %36 : vector<56x32xf32>
    %c0_36 = arith.constant 0 : index
    %c0_37 = arith.constant 0 : index
    %38 = vector.load %arg14[%c0_36, %c0_37] : memref<1x32xf32, #tpu.memory_space<vmem>>, vector<1x32xf32>
    %39 = vector.broadcast %38 : vector<1x32xf32> to vector<56x32xf32>
    %40 = arith.addf %37, %39 : vector<56x32xf32>
    %41 = arith.negf %40 : vector<56x32xf32>
    %42 = math.exp %41 : vector<56x32xf32>
    %cst_38 = arith.constant 1.000000e+00 : f32
    %43 = vector.broadcast %cst_38 : f32 to vector<56x32xf32>
    %44 = arith.addf %43, %42 : vector<56x32xf32>
    %45 = arith.divf %43, %44 : vector<56x32xf32>
    %46 = arith.mulf %40, %45 : vector<56x32xf32>
    %47 = arith.mulf %46, %18 : vector<56x32xf32>
    %48 = arith.truncf %47 : vector<56x32xf32> to vector<56x32xbf16>
    %cst_39 = arith.constant dense<0.000000e+00> : vector<8x32xf32>
    %49 = tpu.matmul %8, %48, %cst_39 {dimension_numbers = #tpu.dot_dimension_numbers<[1], [0], [0], [1], [0, 0, 1, 1], [], []>} : vector<8x56xbf16>, vector<56x32xbf16>, vector<8x32xf32> -> vector<8x32xf32>
    %c0_40 = arith.constant 0 : index
    %c0_41 = arith.constant 0 : index
    %c0_42 = arith.constant 0 : index
    %50 = vector.load %arg15[%c0_40, %c0_41, %c0_42] : memref<23x32x32xbf16, #tpu.memory_space<vmem>>, vector<1x32x32xbf16>
    %51 = vector.shape_cast %50 : vector<1x32x32xbf16> to vector<32x32xbf16>
    %c0_43 = arith.constant 0 : index
    %c0_44 = arith.constant 0 : index
    %c0_45 = arith.constant 0 : index
    %52 = vector.load %arg16[%c0_43, %c0_44, %c0_45] : memref<23x1x32xf32, #tpu.memory_space<vmem>>, vector<1x1x32xf32>
    %53 = vector.shape_cast %52 : vector<1x1x32xf32> to vector<1x32xf32>
    %54 = arith.truncf %49 : vector<8x32xf32> to vector<8x32xbf16>
    %cst_46 = arith.constant dense<0.000000e+00> : vector<8x32xf32>
    %55 = tpu.matmul %54, %51, %cst_46 {dimension_numbers = #tpu.dot_dimension_numbers<[1], [0], [0], [1], [0, 0, 1, 1], [], []>} : vector<8x32xbf16>, vector<32x32xbf16>, vector<8x32xf32> -> vector<8x32xf32>
    %56 = vector.broadcast %53 : vector<1x32xf32> to vector<8x32xf32>
    %57 = arith.addf %55, %56 : vector<8x32xf32>
    %58 = arith.negf %57 : vector<8x32xf32>
    %59 = math.exp %58 : vector<8x32xf32>
    %cst_47 = arith.constant 1.000000e+00 : f32
    %60 = vector.broadcast %cst_47 : f32 to vector<8x32xf32>
    %61 = arith.addf %60, %59 : vector<8x32xf32>
    %62 = arith.divf %60, %61 : vector<8x32xf32>
    %63 = arith.mulf %57, %62 : vector<8x32xf32>
    %c1 = arith.constant 1 : index
    %c0_48 = arith.constant 0 : index
    %c0_49 = arith.constant 0 : index
    %64 = vector.load %arg15[%c1, %c0_48, %c0_49] : memref<23x32x32xbf16, #tpu.memory_space<vmem>>, vector<1x32x32xbf16>
    %65 = vector.shape_cast %64 : vector<1x32x32xbf16> to vector<32x32xbf16>
    %c1_50 = arith.constant 1 : index
    %c0_51 = arith.constant 0 : index
    %c0_52 = arith.constant 0 : index
    %66 = vector.load %arg16[%c1_50, %c0_51, %c0_52] : memref<23x1x32xf32, #tpu.memory_space<vmem>>, vector<1x1x32xf32>
    %67 = vector.shape_cast %66 : vector<1x1x32xf32> to vector<1x32xf32>
    %68 = arith.truncf %63 : vector<8x32xf32> to vector<8x32xbf16>
    %cst_53 = arith.constant dense<0.000000e+00> : vector<8x32xf32>
    %69 = tpu.matmul %68, %65, %cst_53 {dimension_numbers = #tpu.dot_dimension_numbers<[1], [0], [0], [1], [0, 0, 1, 1], [], []>} : vector<8x32xbf16>, vector<32x32xbf16>, vector<8x32xf32> -> vector<8x32xf32>
    %70 = vector.broadcast %67 : vector<1x32xf32> to vector<8x32xf32>
    %71 = arith.addf %69, %70 : vector<8x32xf32>
    %72 = arith.negf %71 : vector<8x32xf32>
    %73 = math.exp %72 : vector<8x32xf32>
    %cst_54 = arith.constant 1.000000e+00 : f32
    %74 = vector.broadcast %cst_54 : f32 to vector<8x32xf32>
    %75 = arith.addf %74, %73 : vector<8x32xf32>
    %76 = arith.divf %74, %75 : vector<8x32xf32>
    %77 = arith.mulf %71, %76 : vector<8x32xf32>
    %c2 = arith.constant 2 : index
    %c0_55 = arith.constant 0 : index
    %c0_56 = arith.constant 0 : index
    %78 = vector.load %arg15[%c2, %c0_55, %c0_56] : memref<23x32x32xbf16, #tpu.memory_space<vmem>>, vector<1x32x32xbf16>
    %79 = vector.shape_cast %78 : vector<1x32x32xbf16> to vector<32x32xbf16>
    %c2_57 = arith.constant 2 : index
    %c0_58 = arith.constant 0 : index
    %c0_59 = arith.constant 0 : index
    %80 = vector.load %arg16[%c2_57, %c0_58, %c0_59] : memref<23x1x32xf32, #tpu.memory_space<vmem>>, vector<1x1x32xf32>
    %81 = vector.shape_cast %80 : vector<1x1x32xf32> to vector<1x32xf32>
    %82 = arith.truncf %77 : vector<8x32xf32> to vector<8x32xbf16>
    %cst_60 = arith.constant dense<0.000000e+00> : vector<8x32xf32>
    %83 = tpu.matmul %82, %79, %cst_60 {dimension_numbers = #tpu.dot_dimension_numbers<[1], [0], [0], [1], [0, 0, 1, 1], [], []>} : vector<8x32xbf16>, vector<32x32xbf16>, vector<8x32xf32> -> vector<8x32xf32>
    %84 = vector.broadcast %81 : vector<1x32xf32> to vector<8x32xf32>
    %85 = arith.addf %83, %84 : vector<8x32xf32>
    %86 = arith.negf %85 : vector<8x32xf32>
    %87 = math.exp %86 : vector<8x32xf32>
    %cst_61 = arith.constant 1.000000e+00 : f32
    %88 = vector.broadcast %cst_61 : f32 to vector<8x32xf32>
    %89 = arith.addf %88, %87 : vector<8x32xf32>
    %90 = arith.divf %88, %89 : vector<8x32xf32>
    %91 = arith.mulf %85, %90 : vector<8x32xf32>
    %cst_62 = arith.constant dense<0.000000e+00> : vector<32xf32>
    %92 = vector.multi_reduction <add>, %91, %cst_62 [0] : vector<8x32xf32> to vector<32xf32>
    %93 = vector.shape_cast %92 : vector<32xf32> to vector<1x32xf32>
    %c0_63 = arith.constant 0 : index
    %c0_64 = arith.constant 0 : index
    %c0_65 = arith.constant 0 : index
    %94 = vector.load %arg17[%c0_63, %c0_64, %c0_65] : memref<2x32x64xbf16, #tpu.memory_space<vmem>>, vector<1x32x64xbf16>
    %95 = vector.shape_cast %94 : vector<1x32x64xbf16> to vector<32x64xbf16>
    %96 = arith.truncf %46 : vector<56x32xf32> to vector<56x32xbf16>
    %cst_66 = arith.constant dense<0.000000e+00> : vector<56x64xf32>
    %97 = tpu.matmul %96, %95, %cst_66 {dimension_numbers = #tpu.dot_dimension_numbers<[1], [0], [0], [1], [0, 0, 1, 1], [], []>} : vector<56x32xbf16>, vector<32x64xbf16>, vector<56x64xf32> -> vector<56x64xf32>
    %c0_67 = arith.constant 0 : index
    %c0_68 = arith.constant 0 : index
    %c0_69 = arith.constant 0 : index
    %98 = vector.load %arg18[%c0_67, %c0_68, %c0_69] : memref<2x1x64xf32, #tpu.memory_space<vmem>>, vector<1x1x64xf32>
    %99 = vector.shape_cast %98 : vector<1x1x64xf32> to vector<1x64xf32>
    %100 = vector.broadcast %99 : vector<1x64xf32> to vector<56x64xf32>
    %101 = arith.addf %97, %100 : vector<56x64xf32>
    %102 = arith.negf %101 : vector<56x64xf32>
    %103 = math.exp %102 : vector<56x64xf32>
    %cst_70 = arith.constant 1.000000e+00 : f32
    %104 = vector.broadcast %cst_70 : f32 to vector<56x64xf32>
    %105 = arith.addf %104, %103 : vector<56x64xf32>
    %106 = arith.divf %104, %105 : vector<56x64xf32>
    %107 = arith.mulf %101, %106 : vector<56x64xf32>
    %108 = vector.extract_strided_slice %107 {offsets = [0, 0], sizes = [56, 32], strides = [1, 1]} : vector<56x64xf32> to vector<56x32xf32>
    %109 = vector.extract_strided_slice %107 {offsets = [0, 32], sizes = [56, 32], strides = [1, 1]} : vector<56x64xf32> to vector<56x32xf32>
    %110 = arith.mulf %109, %21 : vector<56x32xf32>
    %111 = arith.truncf %110 : vector<56x32xf32> to vector<56x32xbf16>
    %cst_71 = arith.constant dense<0.000000e+00> : vector<336x32xf32>
    %112 = tpu.matmul %9, %111, %cst_71 {dimension_numbers = #tpu.dot_dimension_numbers<[1], [0], [0], [1], [0, 0, 1, 1], [], []>} : vector<336x56xbf16>, vector<56x32xbf16>, vector<336x32xf32> -> vector<336x32xf32>
    %c0_72 = arith.constant 0 : index
    %c0_73 = arith.constant 0 : index
    %c0_74 = arith.constant 0 : index
    %113 = vector.load %arg19[%c0_72, %c0_73, %c0_74] : memref<2x32x256xbf16, #tpu.memory_space<vmem>>, vector<1x32x256xbf16>
    %114 = vector.shape_cast %113 : vector<1x32x256xbf16> to vector<32x256xbf16>
    %115 = arith.truncf %112 : vector<336x32xf32> to vector<336x32xbf16>
    %cst_75 = arith.constant dense<0.000000e+00> : vector<336x256xf32>
    %116 = tpu.matmul %115, %114, %cst_75 {dimension_numbers = #tpu.dot_dimension_numbers<[1], [0], [0], [1], [0, 0, 1, 1], [], []>} : vector<336x32xbf16>, vector<32x256xbf16>, vector<336x256xf32> -> vector<336x256xf32>
    %117 = vector.extract_strided_slice %24 {offsets = [0, 0], sizes = [336, 256], strides = [1, 1]} : vector<336x512xf32> to vector<336x256xf32>
    %118 = arith.mulf %116, %117 : vector<336x256xf32>
    %119 = arith.truncf %118 : vector<336x256xf32> to vector<336x256xbf16>
    %cst_76 = arith.constant dense<0.000000e+00> : vector<336x32xf32>
    %120 = tpu.matmul %119, %11, %cst_76 {dimension_numbers = #tpu.dot_dimension_numbers<[1], [0], [0], [1], [0, 0, 1, 1], [], []>} : vector<336x256xbf16>, vector<256x32xbf16>, vector<336x32xf32> -> vector<336x32xf32>
    %121 = arith.truncf %120 : vector<336x32xf32> to vector<336x32xbf16>
    %cst_77 = arith.constant dense<0.000000e+00> : vector<56x32xf32>
    %122 = tpu.matmul %10, %121, %cst_77 {dimension_numbers = #tpu.dot_dimension_numbers<[1], [0], [0], [1], [0, 0, 1, 1], [], []>} : vector<56x336xbf16>, vector<336x32xbf16>, vector<56x32xf32> -> vector<56x32xf32>
    %123 = arith.addf %122, %108 : vector<56x32xf32>
    %c3 = arith.constant 3 : index
    %c0_78 = arith.constant 0 : index
    %c0_79 = arith.constant 0 : index
    %124 = vector.load %arg15[%c3, %c0_78, %c0_79] : memref<23x32x32xbf16, #tpu.memory_space<vmem>>, vector<1x32x32xbf16>
    %125 = vector.shape_cast %124 : vector<1x32x32xbf16> to vector<32x32xbf16>
    %c3_80 = arith.constant 3 : index
    %c0_81 = arith.constant 0 : index
    %c0_82 = arith.constant 0 : index
    %126 = vector.load %arg16[%c3_80, %c0_81, %c0_82] : memref<23x1x32xf32, #tpu.memory_space<vmem>>, vector<1x1x32xf32>
    %127 = vector.shape_cast %126 : vector<1x1x32xf32> to vector<1x32xf32>
    %c4 = arith.constant 4 : index
    %c0_83 = arith.constant 0 : index
    %c0_84 = arith.constant 0 : index
    %128 = vector.load %arg15[%c4, %c0_83, %c0_84] : memref<23x32x32xbf16, #tpu.memory_space<vmem>>, vector<1x32x32xbf16>
    %129 = vector.shape_cast %128 : vector<1x32x32xbf16> to vector<32x32xbf16>
    %c4_85 = arith.constant 4 : index
    %c0_86 = arith.constant 0 : index
    %c0_87 = arith.constant 0 : index
    %130 = vector.load %arg16[%c4_85, %c0_86, %c0_87] : memref<23x1x32xf32, #tpu.memory_space<vmem>>, vector<1x1x32xf32>
    %131 = vector.shape_cast %130 : vector<1x1x32xf32> to vector<1x32xf32>
    %132 = arith.truncf %123 : vector<56x32xf32> to vector<56x32xbf16>
    %cst_88 = arith.constant dense<0.000000e+00> : vector<56x32xf32>
    %133 = tpu.matmul %132, %125, %cst_88 {dimension_numbers = #tpu.dot_dimension_numbers<[1], [0], [0], [1], [0, 0, 1, 1], [], []>} : vector<56x32xbf16>, vector<32x32xbf16>, vector<56x32xf32> -> vector<56x32xf32>
    %134 = vector.broadcast %127 : vector<1x32xf32> to vector<56x32xf32>
    %135 = arith.addf %133, %134 : vector<56x32xf32>
    %136 = arith.negf %135 : vector<56x32xf32>
    %137 = math.exp %136 : vector<56x32xf32>
    %cst_89 = arith.constant 1.000000e+00 : f32
    %138 = vector.broadcast %cst_89 : f32 to vector<56x32xf32>
    %139 = arith.addf %138, %137 : vector<56x32xf32>
    %140 = arith.divf %138, %139 : vector<56x32xf32>
    %141 = arith.mulf %135, %140 : vector<56x32xf32>
    %142 = arith.truncf %141 : vector<56x32xf32> to vector<56x32xbf16>
    %cst_90 = arith.constant dense<0.000000e+00> : vector<56x32xf32>
    %143 = tpu.matmul %142, %129, %cst_90 {dimension_numbers = #tpu.dot_dimension_numbers<[1], [0], [0], [1], [0, 0, 1, 1], [], []>} : vector<56x32xbf16>, vector<32x32xbf16>, vector<56x32xf32> -> vector<56x32xf32>
    %144 = vector.broadcast %131 : vector<1x32xf32> to vector<56x32xf32>
    %145 = arith.addf %143, %144 : vector<56x32xf32>
    %146 = arith.negf %145 : vector<56x32xf32>
    %147 = math.exp %146 : vector<56x32xf32>
    %cst_91 = arith.constant 1.000000e+00 : f32
    %148 = vector.broadcast %cst_91 : f32 to vector<56x32xf32>
    %149 = arith.addf %148, %147 : vector<56x32xf32>
    %150 = arith.divf %148, %149 : vector<56x32xf32>
    %151 = arith.mulf %145, %150 : vector<56x32xf32>
    %152 = arith.addf %123, %151 : vector<56x32xf32>
    %c5 = arith.constant 5 : index
    %c0_92 = arith.constant 0 : index
    %c0_93 = arith.constant 0 : index
    %153 = vector.load %arg15[%c5, %c0_92, %c0_93] : memref<23x32x32xbf16, #tpu.memory_space<vmem>>, vector<1x32x32xbf16>
    %154 = vector.shape_cast %153 : vector<1x32x32xbf16> to vector<32x32xbf16>
    %c5_94 = arith.constant 5 : index
    %c0_95 = arith.constant 0 : index
    %c0_96 = arith.constant 0 : index
    %155 = vector.load %arg16[%c5_94, %c0_95, %c0_96] : memref<23x1x32xf32, #tpu.memory_space<vmem>>, vector<1x1x32xf32>
    %156 = vector.shape_cast %155 : vector<1x1x32xf32> to vector<1x32xf32>
    %157 = arith.truncf %152 : vector<56x32xf32> to vector<56x32xbf16>
    %cst_97 = arith.constant dense<0.000000e+00> : vector<56x32xf32>
    %158 = tpu.matmul %157, %154, %cst_97 {dimension_numbers = #tpu.dot_dimension_numbers<[1], [0], [0], [1], [0, 0, 1, 1], [], []>} : vector<56x32xbf16>, vector<32x32xbf16>, vector<56x32xf32> -> vector<56x32xf32>
    %159 = vector.broadcast %156 : vector<1x32xf32> to vector<56x32xf32>
    %160 = arith.addf %158, %159 : vector<56x32xf32>
    %161 = arith.negf %160 : vector<56x32xf32>
    %162 = math.exp %161 : vector<56x32xf32>
    %cst_98 = arith.constant 1.000000e+00 : f32
    %163 = vector.broadcast %cst_98 : f32 to vector<56x32xf32>
    %164 = arith.addf %163, %162 : vector<56x32xf32>
    %165 = arith.divf %163, %164 : vector<56x32xf32>
    %166 = arith.mulf %160, %165 : vector<56x32xf32>
    %167 = arith.addf %46, %166 : vector<56x32xf32>
    %c6 = arith.constant 6 : index
    %c0_99 = arith.constant 0 : index
    %c0_100 = arith.constant 0 : index
    %168 = vector.load %arg15[%c6, %c0_99, %c0_100] : memref<23x32x32xbf16, #tpu.memory_space<vmem>>, vector<1x32x32xbf16>
    %169 = vector.shape_cast %168 : vector<1x32x32xbf16> to vector<32x32xbf16>
    %c6_101 = arith.constant 6 : index
    %c0_102 = arith.constant 0 : index
    %c0_103 = arith.constant 0 : index
    %170 = vector.load %arg16[%c6_101, %c0_102, %c0_103] : memref<23x1x32xf32, #tpu.memory_space<vmem>>, vector<1x1x32xf32>
    %171 = vector.shape_cast %170 : vector<1x1x32xf32> to vector<1x32xf32>
    %c7 = arith.constant 7 : index
    %c0_104 = arith.constant 0 : index
    %c0_105 = arith.constant 0 : index
    %172 = vector.load %arg15[%c7, %c0_104, %c0_105] : memref<23x32x32xbf16, #tpu.memory_space<vmem>>, vector<1x32x32xbf16>
    %173 = vector.shape_cast %172 : vector<1x32x32xbf16> to vector<32x32xbf16>
    %c7_106 = arith.constant 7 : index
    %c0_107 = arith.constant 0 : index
    %c0_108 = arith.constant 0 : index
    %174 = vector.load %arg16[%c7_106, %c0_107, %c0_108] : memref<23x1x32xf32, #tpu.memory_space<vmem>>, vector<1x1x32xf32>
    %175 = vector.shape_cast %174 : vector<1x1x32xf32> to vector<1x32xf32>
    %176 = arith.truncf %167 : vector<56x32xf32> to vector<56x32xbf16>
    %cst_109 = arith.constant dense<0.000000e+00> : vector<56x32xf32>
    %177 = tpu.matmul %176, %169, %cst_109 {dimension_numbers = #tpu.dot_dimension_numbers<[1], [0], [0], [1], [0, 0, 1, 1], [], []>} : vector<56x32xbf16>, vector<32x32xbf16>, vector<56x32xf32> -> vector<56x32xf32>
    %178 = vector.broadcast %171 : vector<1x32xf32> to vector<56x32xf32>
    %179 = arith.addf %177, %178 : vector<56x32xf32>
    %180 = arith.negf %179 : vector<56x32xf32>
    %181 = math.exp %180 : vector<56x32xf32>
    %cst_110 = arith.constant 1.000000e+00 : f32
    %182 = vector.broadcast %cst_110 : f32 to vector<56x32xf32>
    %183 = arith.addf %182, %181 : vector<56x32xf32>
    %184 = arith.divf %182, %183 : vector<56x32xf32>
    %185 = arith.mulf %179, %184 : vector<56x32xf32>
    %186 = arith.truncf %185 : vector<56x32xf32> to vector<56x32xbf16>
    %cst_111 = arith.constant dense<0.000000e+00> : vector<56x32xf32>
    %187 = tpu.matmul %186, %173, %cst_111 {dimension_numbers = #tpu.dot_dimension_numbers<[1], [0], [0], [1], [0, 0, 1, 1], [], []>} : vector<56x32xbf16>, vector<32x32xbf16>, vector<56x32xf32> -> vector<56x32xf32>
    %188 = vector.broadcast %175 : vector<1x32xf32> to vector<56x32xf32>
    %189 = arith.addf %187, %188 : vector<56x32xf32>
    %190 = arith.negf %189 : vector<56x32xf32>
    %191 = math.exp %190 : vector<56x32xf32>
    %cst_112 = arith.constant 1.000000e+00 : f32
    %192 = vector.broadcast %cst_112 : f32 to vector<56x32xf32>
    %193 = arith.addf %192, %191 : vector<56x32xf32>
    %194 = arith.divf %192, %193 : vector<56x32xf32>
    %195 = arith.mulf %189, %194 : vector<56x32xf32>
    %196 = arith.addf %167, %195 : vector<56x32xf32>
    %c8 = arith.constant 8 : index
    %c0_113 = arith.constant 0 : index
    %c0_114 = arith.constant 0 : index
    %197 = vector.load %arg15[%c8, %c0_113, %c0_114] : memref<23x32x32xbf16, #tpu.memory_space<vmem>>, vector<1x32x32xbf16>
    %198 = vector.shape_cast %197 : vector<1x32x32xbf16> to vector<32x32xbf16>
    %c8_115 = arith.constant 8 : index
    %c0_116 = arith.constant 0 : index
    %c0_117 = arith.constant 0 : index
    %199 = vector.load %arg16[%c8_115, %c0_116, %c0_117] : memref<23x1x32xf32, #tpu.memory_space<vmem>>, vector<1x1x32xf32>
    %200 = vector.shape_cast %199 : vector<1x1x32xf32> to vector<1x32xf32>
    %c9 = arith.constant 9 : index
    %c0_118 = arith.constant 0 : index
    %c0_119 = arith.constant 0 : index
    %201 = vector.load %arg15[%c9, %c0_118, %c0_119] : memref<23x32x32xbf16, #tpu.memory_space<vmem>>, vector<1x32x32xbf16>
    %202 = vector.shape_cast %201 : vector<1x32x32xbf16> to vector<32x32xbf16>
    %c9_120 = arith.constant 9 : index
    %c0_121 = arith.constant 0 : index
    %c0_122 = arith.constant 0 : index
    %203 = vector.load %arg16[%c9_120, %c0_121, %c0_122] : memref<23x1x32xf32, #tpu.memory_space<vmem>>, vector<1x1x32xf32>
    %204 = vector.shape_cast %203 : vector<1x1x32xf32> to vector<1x32xf32>
    %205 = arith.truncf %196 : vector<56x32xf32> to vector<56x32xbf16>
    %cst_123 = arith.constant dense<0.000000e+00> : vector<56x32xf32>
    %206 = tpu.matmul %205, %198, %cst_123 {dimension_numbers = #tpu.dot_dimension_numbers<[1], [0], [0], [1], [0, 0, 1, 1], [], []>} : vector<56x32xbf16>, vector<32x32xbf16>, vector<56x32xf32> -> vector<56x32xf32>
    %207 = vector.broadcast %200 : vector<1x32xf32> to vector<56x32xf32>
    %208 = arith.addf %206, %207 : vector<56x32xf32>
    %209 = arith.negf %208 : vector<56x32xf32>
    %210 = math.exp %209 : vector<56x32xf32>
    %cst_124 = arith.constant 1.000000e+00 : f32
    %211 = vector.broadcast %cst_124 : f32 to vector<56x32xf32>
    %212 = arith.addf %211, %210 : vector<56x32xf32>
    %213 = arith.divf %211, %212 : vector<56x32xf32>
    %214 = arith.mulf %208, %213 : vector<56x32xf32>
    %215 = arith.truncf %214 : vector<56x32xf32> to vector<56x32xbf16>
    %cst_125 = arith.constant dense<0.000000e+00> : vector<56x32xf32>
    %216 = tpu.matmul %215, %202, %cst_125 {dimension_numbers = #tpu.dot_dimension_numbers<[1], [0], [0], [1], [0, 0, 1, 1], [], []>} : vector<56x32xbf16>, vector<32x32xbf16>, vector<56x32xf32> -> vector<56x32xf32>
    %217 = vector.broadcast %204 : vector<1x32xf32> to vector<56x32xf32>
    %218 = arith.addf %216, %217 : vector<56x32xf32>
    %219 = arith.negf %218 : vector<56x32xf32>
    %220 = math.exp %219 : vector<56x32xf32>
    %cst_126 = arith.constant 1.000000e+00 : f32
    %221 = vector.broadcast %cst_126 : f32 to vector<56x32xf32>
    %222 = arith.addf %221, %220 : vector<56x32xf32>
    %223 = arith.divf %221, %222 : vector<56x32xf32>
    %224 = arith.mulf %218, %223 : vector<56x32xf32>
    %225 = arith.addf %196, %224 : vector<56x32xf32>
    %226 = arith.mulf %225, %19 : vector<56x32xf32>
    %227 = arith.truncf %226 : vector<56x32xf32> to vector<56x32xbf16>
    %cst_127 = arith.constant dense<0.000000e+00> : vector<8x32xf32>
    %228 = tpu.matmul %8, %227, %cst_127 {dimension_numbers = #tpu.dot_dimension_numbers<[1], [0], [0], [1], [0, 0, 1, 1], [], []>} : vector<8x56xbf16>, vector<56x32xbf16>, vector<8x32xf32> -> vector<8x32xf32>
    %c10 = arith.constant 10 : index
    %c0_128 = arith.constant 0 : index
    %c0_129 = arith.constant 0 : index
    %229 = vector.load %arg15[%c10, %c0_128, %c0_129] : memref<23x32x32xbf16, #tpu.memory_space<vmem>>, vector<1x32x32xbf16>
    %230 = vector.shape_cast %229 : vector<1x32x32xbf16> to vector<32x32xbf16>
    %c10_130 = arith.constant 10 : index
    %c0_131 = arith.constant 0 : index
    %c0_132 = arith.constant 0 : index
    %231 = vector.load %arg16[%c10_130, %c0_131, %c0_132] : memref<23x1x32xf32, #tpu.memory_space<vmem>>, vector<1x1x32xf32>
    %232 = vector.shape_cast %231 : vector<1x1x32xf32> to vector<1x32xf32>
    %233 = arith.truncf %228 : vector<8x32xf32> to vector<8x32xbf16>
    %cst_133 = arith.constant dense<0.000000e+00> : vector<8x32xf32>
    %234 = tpu.matmul %233, %230, %cst_133 {dimension_numbers = #tpu.dot_dimension_numbers<[1], [0], [0], [1], [0, 0, 1, 1], [], []>} : vector<8x32xbf16>, vector<32x32xbf16>, vector<8x32xf32> -> vector<8x32xf32>
    %235 = vector.broadcast %232 : vector<1x32xf32> to vector<8x32xf32>
    %236 = arith.addf %234, %235 : vector<8x32xf32>
    %237 = arith.negf %236 : vector<8x32xf32>
    %238 = math.exp %237 : vector<8x32xf32>
    %cst_134 = arith.constant 1.000000e+00 : f32
    %239 = vector.broadcast %cst_134 : f32 to vector<8x32xf32>
    %240 = arith.addf %239, %238 : vector<8x32xf32>
    %241 = arith.divf %239, %240 : vector<8x32xf32>
    %242 = arith.mulf %236, %241 : vector<8x32xf32>
    %c11 = arith.constant 11 : index
    %c0_135 = arith.constant 0 : index
    %c0_136 = arith.constant 0 : index
    %243 = vector.load %arg15[%c11, %c0_135, %c0_136] : memref<23x32x32xbf16, #tpu.memory_space<vmem>>, vector<1x32x32xbf16>
    %244 = vector.shape_cast %243 : vector<1x32x32xbf16> to vector<32x32xbf16>
    %c11_137 = arith.constant 11 : index
    %c0_138 = arith.constant 0 : index
    %c0_139 = arith.constant 0 : index
    %245 = vector.load %arg16[%c11_137, %c0_138, %c0_139] : memref<23x1x32xf32, #tpu.memory_space<vmem>>, vector<1x1x32xf32>
    %246 = vector.shape_cast %245 : vector<1x1x32xf32> to vector<1x32xf32>
    %247 = arith.truncf %242 : vector<8x32xf32> to vector<8x32xbf16>
    %cst_140 = arith.constant dense<0.000000e+00> : vector<8x32xf32>
    %248 = tpu.matmul %247, %244, %cst_140 {dimension_numbers = #tpu.dot_dimension_numbers<[1], [0], [0], [1], [0, 0, 1, 1], [], []>} : vector<8x32xbf16>, vector<32x32xbf16>, vector<8x32xf32> -> vector<8x32xf32>
    %249 = vector.broadcast %246 : vector<1x32xf32> to vector<8x32xf32>
    %250 = arith.addf %248, %249 : vector<8x32xf32>
    %251 = arith.negf %250 : vector<8x32xf32>
    %252 = math.exp %251 : vector<8x32xf32>
    %cst_141 = arith.constant 1.000000e+00 : f32
    %253 = vector.broadcast %cst_141 : f32 to vector<8x32xf32>
    %254 = arith.addf %253, %252 : vector<8x32xf32>
    %255 = arith.divf %253, %254 : vector<8x32xf32>
    %256 = arith.mulf %250, %255 : vector<8x32xf32>
    %c12 = arith.constant 12 : index
    %c0_142 = arith.constant 0 : index
    %c0_143 = arith.constant 0 : index
    %257 = vector.load %arg15[%c12, %c0_142, %c0_143] : memref<23x32x32xbf16, #tpu.memory_space<vmem>>, vector<1x32x32xbf16>
    %258 = vector.shape_cast %257 : vector<1x32x32xbf16> to vector<32x32xbf16>
    %c12_144 = arith.constant 12 : index
    %c0_145 = arith.constant 0 : index
    %c0_146 = arith.constant 0 : index
    %259 = vector.load %arg16[%c12_144, %c0_145, %c0_146] : memref<23x1x32xf32, #tpu.memory_space<vmem>>, vector<1x1x32xf32>
    %260 = vector.shape_cast %259 : vector<1x1x32xf32> to vector<1x32xf32>
    %261 = arith.truncf %256 : vector<8x32xf32> to vector<8x32xbf16>
    %cst_147 = arith.constant dense<0.000000e+00> : vector<8x32xf32>
    %262 = tpu.matmul %261, %258, %cst_147 {dimension_numbers = #tpu.dot_dimension_numbers<[1], [0], [0], [1], [0, 0, 1, 1], [], []>} : vector<8x32xbf16>, vector<32x32xbf16>, vector<8x32xf32> -> vector<8x32xf32>
    %263 = vector.broadcast %260 : vector<1x32xf32> to vector<8x32xf32>
    %264 = arith.addf %262, %263 : vector<8x32xf32>
    %265 = arith.negf %264 : vector<8x32xf32>
    %266 = math.exp %265 : vector<8x32xf32>
    %cst_148 = arith.constant 1.000000e+00 : f32
    %267 = vector.broadcast %cst_148 : f32 to vector<8x32xf32>
    %268 = arith.addf %267, %266 : vector<8x32xf32>
    %269 = arith.divf %267, %268 : vector<8x32xf32>
    %270 = arith.mulf %264, %269 : vector<8x32xf32>
    %cst_149 = arith.constant dense<0.000000e+00> : vector<32xf32>
    %271 = vector.multi_reduction <add>, %270, %cst_149 [0] : vector<8x32xf32> to vector<32xf32>
    %272 = vector.shape_cast %271 : vector<32xf32> to vector<1x32xf32>
    %c1_150 = arith.constant 1 : index
    %c0_151 = arith.constant 0 : index
    %c0_152 = arith.constant 0 : index
    %273 = vector.load %arg17[%c1_150, %c0_151, %c0_152] : memref<2x32x64xbf16, #tpu.memory_space<vmem>>, vector<1x32x64xbf16>
    %274 = vector.shape_cast %273 : vector<1x32x64xbf16> to vector<32x64xbf16>
    %275 = arith.truncf %225 : vector<56x32xf32> to vector<56x32xbf16>
    %cst_153 = arith.constant dense<0.000000e+00> : vector<56x64xf32>
    %276 = tpu.matmul %275, %274, %cst_153 {dimension_numbers = #tpu.dot_dimension_numbers<[1], [0], [0], [1], [0, 0, 1, 1], [], []>} : vector<56x32xbf16>, vector<32x64xbf16>, vector<56x64xf32> -> vector<56x64xf32>
    %c1_154 = arith.constant 1 : index
    %c0_155 = arith.constant 0 : index
    %c0_156 = arith.constant 0 : index
    %277 = vector.load %arg18[%c1_154, %c0_155, %c0_156] : memref<2x1x64xf32, #tpu.memory_space<vmem>>, vector<1x1x64xf32>
    %278 = vector.shape_cast %277 : vector<1x1x64xf32> to vector<1x64xf32>
    %279 = vector.broadcast %278 : vector<1x64xf32> to vector<56x64xf32>
    %280 = arith.addf %276, %279 : vector<56x64xf32>
    %281 = arith.negf %280 : vector<56x64xf32>
    %282 = math.exp %281 : vector<56x64xf32>
    %cst_157 = arith.constant 1.000000e+00 : f32
    %283 = vector.broadcast %cst_157 : f32 to vector<56x64xf32>
    %284 = arith.addf %283, %282 : vector<56x64xf32>
    %285 = arith.divf %283, %284 : vector<56x64xf32>
    %286 = arith.mulf %280, %285 : vector<56x64xf32>
    %287 = vector.extract_strided_slice %286 {offsets = [0, 0], sizes = [56, 32], strides = [1, 1]} : vector<56x64xf32> to vector<56x32xf32>
    %288 = vector.extract_strided_slice %286 {offsets = [0, 32], sizes = [56, 32], strides = [1, 1]} : vector<56x64xf32> to vector<56x32xf32>
    %289 = arith.mulf %288, %22 : vector<56x32xf32>
    %290 = arith.truncf %289 : vector<56x32xf32> to vector<56x32xbf16>
    %cst_158 = arith.constant dense<0.000000e+00> : vector<336x32xf32>
    %291 = tpu.matmul %9, %290, %cst_158 {dimension_numbers = #tpu.dot_dimension_numbers<[1], [0], [0], [1], [0, 0, 1, 1], [], []>} : vector<336x56xbf16>, vector<56x32xbf16>, vector<336x32xf32> -> vector<336x32xf32>
    %c1_159 = arith.constant 1 : index
    %c0_160 = arith.constant 0 : index
    %c0_161 = arith.constant 0 : index
    %292 = vector.load %arg19[%c1_159, %c0_160, %c0_161] : memref<2x32x256xbf16, #tpu.memory_space<vmem>>, vector<1x32x256xbf16>
    %293 = vector.shape_cast %292 : vector<1x32x256xbf16> to vector<32x256xbf16>
    %294 = arith.truncf %291 : vector<336x32xf32> to vector<336x32xbf16>
    %cst_162 = arith.constant dense<0.000000e+00> : vector<336x256xf32>
    %295 = tpu.matmul %294, %293, %cst_162 {dimension_numbers = #tpu.dot_dimension_numbers<[1], [0], [0], [1], [0, 0, 1, 1], [], []>} : vector<336x32xbf16>, vector<32x256xbf16>, vector<336x256xf32> -> vector<336x256xf32>
    %296 = vector.extract_strided_slice %24 {offsets = [0, 256], sizes = [336, 256], strides = [1, 1]} : vector<336x512xf32> to vector<336x256xf32>
    %297 = arith.mulf %295, %296 : vector<336x256xf32>
    %298 = arith.truncf %297 : vector<336x256xf32> to vector<336x256xbf16>
    %cst_163 = arith.constant dense<0.000000e+00> : vector<336x32xf32>
    %299 = tpu.matmul %298, %11, %cst_163 {dimension_numbers = #tpu.dot_dimension_numbers<[1], [0], [0], [1], [0, 0, 1, 1], [], []>} : vector<336x256xbf16>, vector<256x32xbf16>, vector<336x32xf32> -> vector<336x32xf32>
    %300 = arith.truncf %299 : vector<336x32xf32> to vector<336x32xbf16>
    %cst_164 = arith.constant dense<0.000000e+00> : vector<56x32xf32>
    %301 = tpu.matmul %10, %300, %cst_164 {dimension_numbers = #tpu.dot_dimension_numbers<[1], [0], [0], [1], [0, 0, 1, 1], [], []>} : vector<56x336xbf16>, vector<336x32xbf16>, vector<56x32xf32> -> vector<56x32xf32>
    %302 = arith.addf %301, %287 : vector<56x32xf32>
    %c13 = arith.constant 13 : index
    %c0_165 = arith.constant 0 : index
    %c0_166 = arith.constant 0 : index
    %303 = vector.load %arg15[%c13, %c0_165, %c0_166] : memref<23x32x32xbf16, #tpu.memory_space<vmem>>, vector<1x32x32xbf16>
    %304 = vector.shape_cast %303 : vector<1x32x32xbf16> to vector<32x32xbf16>
    %c13_167 = arith.constant 13 : index
    %c0_168 = arith.constant 0 : index
    %c0_169 = arith.constant 0 : index
    %305 = vector.load %arg16[%c13_167, %c0_168, %c0_169] : memref<23x1x32xf32, #tpu.memory_space<vmem>>, vector<1x1x32xf32>
    %306 = vector.shape_cast %305 : vector<1x1x32xf32> to vector<1x32xf32>
    %c14 = arith.constant 14 : index
    %c0_170 = arith.constant 0 : index
    %c0_171 = arith.constant 0 : index
    %307 = vector.load %arg15[%c14, %c0_170, %c0_171] : memref<23x32x32xbf16, #tpu.memory_space<vmem>>, vector<1x32x32xbf16>
    %308 = vector.shape_cast %307 : vector<1x32x32xbf16> to vector<32x32xbf16>
    %c14_172 = arith.constant 14 : index
    %c0_173 = arith.constant 0 : index
    %c0_174 = arith.constant 0 : index
    %309 = vector.load %arg16[%c14_172, %c0_173, %c0_174] : memref<23x1x32xf32, #tpu.memory_space<vmem>>, vector<1x1x32xf32>
    %310 = vector.shape_cast %309 : vector<1x1x32xf32> to vector<1x32xf32>
    %311 = arith.truncf %302 : vector<56x32xf32> to vector<56x32xbf16>
    %cst_175 = arith.constant dense<0.000000e+00> : vector<56x32xf32>
    %312 = tpu.matmul %311, %304, %cst_175 {dimension_numbers = #tpu.dot_dimension_numbers<[1], [0], [0], [1], [0, 0, 1, 1], [], []>} : vector<56x32xbf16>, vector<32x32xbf16>, vector<56x32xf32> -> vector<56x32xf32>
    %313 = vector.broadcast %306 : vector<1x32xf32> to vector<56x32xf32>
    %314 = arith.addf %312, %313 : vector<56x32xf32>
    %315 = arith.negf %314 : vector<56x32xf32>
    %316 = math.exp %315 : vector<56x32xf32>
    %cst_176 = arith.constant 1.000000e+00 : f32
    %317 = vector.broadcast %cst_176 : f32 to vector<56x32xf32>
    %318 = arith.addf %317, %316 : vector<56x32xf32>
    %319 = arith.divf %317, %318 : vector<56x32xf32>
    %320 = arith.mulf %314, %319 : vector<56x32xf32>
    %321 = arith.truncf %320 : vector<56x32xf32> to vector<56x32xbf16>
    %cst_177 = arith.constant dense<0.000000e+00> : vector<56x32xf32>
    %322 = tpu.matmul %321, %308, %cst_177 {dimension_numbers = #tpu.dot_dimension_numbers<[1], [0], [0], [1], [0, 0, 1, 1], [], []>} : vector<56x32xbf16>, vector<32x32xbf16>, vector<56x32xf32> -> vector<56x32xf32>
    %323 = vector.broadcast %310 : vector<1x32xf32> to vector<56x32xf32>
    %324 = arith.addf %322, %323 : vector<56x32xf32>
    %325 = arith.negf %324 : vector<56x32xf32>
    %326 = math.exp %325 : vector<56x32xf32>
    %cst_178 = arith.constant 1.000000e+00 : f32
    %327 = vector.broadcast %cst_178 : f32 to vector<56x32xf32>
    %328 = arith.addf %327, %326 : vector<56x32xf32>
    %329 = arith.divf %327, %328 : vector<56x32xf32>
    %330 = arith.mulf %324, %329 : vector<56x32xf32>
    %331 = arith.addf %302, %330 : vector<56x32xf32>
    %c15 = arith.constant 15 : index
    %c0_179 = arith.constant 0 : index
    %c0_180 = arith.constant 0 : index
    %332 = vector.load %arg15[%c15, %c0_179, %c0_180] : memref<23x32x32xbf16, #tpu.memory_space<vmem>>, vector<1x32x32xbf16>
    %333 = vector.shape_cast %332 : vector<1x32x32xbf16> to vector<32x32xbf16>
    %c15_181 = arith.constant 15 : index
    %c0_182 = arith.constant 0 : index
    %c0_183 = arith.constant 0 : index
    %334 = vector.load %arg16[%c15_181, %c0_182, %c0_183] : memref<23x1x32xf32, #tpu.memory_space<vmem>>, vector<1x1x32xf32>
    %335 = vector.shape_cast %334 : vector<1x1x32xf32> to vector<1x32xf32>
    %336 = arith.truncf %331 : vector<56x32xf32> to vector<56x32xbf16>
    %cst_184 = arith.constant dense<0.000000e+00> : vector<56x32xf32>
    %337 = tpu.matmul %336, %333, %cst_184 {dimension_numbers = #tpu.dot_dimension_numbers<[1], [0], [0], [1], [0, 0, 1, 1], [], []>} : vector<56x32xbf16>, vector<32x32xbf16>, vector<56x32xf32> -> vector<56x32xf32>
    %338 = vector.broadcast %335 : vector<1x32xf32> to vector<56x32xf32>
    %339 = arith.addf %337, %338 : vector<56x32xf32>
    %340 = arith.negf %339 : vector<56x32xf32>
    %341 = math.exp %340 : vector<56x32xf32>
    %cst_185 = arith.constant 1.000000e+00 : f32
    %342 = vector.broadcast %cst_185 : f32 to vector<56x32xf32>
    %343 = arith.addf %342, %341 : vector<56x32xf32>
    %344 = arith.divf %342, %343 : vector<56x32xf32>
    %345 = arith.mulf %339, %344 : vector<56x32xf32>
    %346 = arith.addf %225, %345 : vector<56x32xf32>
    %c16 = arith.constant 16 : index
    %c0_186 = arith.constant 0 : index
    %c0_187 = arith.constant 0 : index
    %347 = vector.load %arg15[%c16, %c0_186, %c0_187] : memref<23x32x32xbf16, #tpu.memory_space<vmem>>, vector<1x32x32xbf16>
    %348 = vector.shape_cast %347 : vector<1x32x32xbf16> to vector<32x32xbf16>
    %c16_188 = arith.constant 16 : index
    %c0_189 = arith.constant 0 : index
    %c0_190 = arith.constant 0 : index
    %349 = vector.load %arg16[%c16_188, %c0_189, %c0_190] : memref<23x1x32xf32, #tpu.memory_space<vmem>>, vector<1x1x32xf32>
    %350 = vector.shape_cast %349 : vector<1x1x32xf32> to vector<1x32xf32>
    %c17 = arith.constant 17 : index
    %c0_191 = arith.constant 0 : index
    %c0_192 = arith.constant 0 : index
    %351 = vector.load %arg15[%c17, %c0_191, %c0_192] : memref<23x32x32xbf16, #tpu.memory_space<vmem>>, vector<1x32x32xbf16>
    %352 = vector.shape_cast %351 : vector<1x32x32xbf16> to vector<32x32xbf16>
    %c17_193 = arith.constant 17 : index
    %c0_194 = arith.constant 0 : index
    %c0_195 = arith.constant 0 : index
    %353 = vector.load %arg16[%c17_193, %c0_194, %c0_195] : memref<23x1x32xf32, #tpu.memory_space<vmem>>, vector<1x1x32xf32>
    %354 = vector.shape_cast %353 : vector<1x1x32xf32> to vector<1x32xf32>
    %355 = arith.truncf %346 : vector<56x32xf32> to vector<56x32xbf16>
    %cst_196 = arith.constant dense<0.000000e+00> : vector<56x32xf32>
    %356 = tpu.matmul %355, %348, %cst_196 {dimension_numbers = #tpu.dot_dimension_numbers<[1], [0], [0], [1], [0, 0, 1, 1], [], []>} : vector<56x32xbf16>, vector<32x32xbf16>, vector<56x32xf32> -> vector<56x32xf32>
    %357 = vector.broadcast %350 : vector<1x32xf32> to vector<56x32xf32>
    %358 = arith.addf %356, %357 : vector<56x32xf32>
    %359 = arith.negf %358 : vector<56x32xf32>
    %360 = math.exp %359 : vector<56x32xf32>
    %cst_197 = arith.constant 1.000000e+00 : f32
    %361 = vector.broadcast %cst_197 : f32 to vector<56x32xf32>
    %362 = arith.addf %361, %360 : vector<56x32xf32>
    %363 = arith.divf %361, %362 : vector<56x32xf32>
    %364 = arith.mulf %358, %363 : vector<56x32xf32>
    %365 = arith.truncf %364 : vector<56x32xf32> to vector<56x32xbf16>
    %cst_198 = arith.constant dense<0.000000e+00> : vector<56x32xf32>
    %366 = tpu.matmul %365, %352, %cst_198 {dimension_numbers = #tpu.dot_dimension_numbers<[1], [0], [0], [1], [0, 0, 1, 1], [], []>} : vector<56x32xbf16>, vector<32x32xbf16>, vector<56x32xf32> -> vector<56x32xf32>
    %367 = vector.broadcast %354 : vector<1x32xf32> to vector<56x32xf32>
    %368 = arith.addf %366, %367 : vector<56x32xf32>
    %369 = arith.negf %368 : vector<56x32xf32>
    %370 = math.exp %369 : vector<56x32xf32>
    %cst_199 = arith.constant 1.000000e+00 : f32
    %371 = vector.broadcast %cst_199 : f32 to vector<56x32xf32>
    %372 = arith.addf %371, %370 : vector<56x32xf32>
    %373 = arith.divf %371, %372 : vector<56x32xf32>
    %374 = arith.mulf %368, %373 : vector<56x32xf32>
    %375 = arith.addf %346, %374 : vector<56x32xf32>
    %c18 = arith.constant 18 : index
    %c0_200 = arith.constant 0 : index
    %c0_201 = arith.constant 0 : index
    %376 = vector.load %arg15[%c18, %c0_200, %c0_201] : memref<23x32x32xbf16, #tpu.memory_space<vmem>>, vector<1x32x32xbf16>
    %377 = vector.shape_cast %376 : vector<1x32x32xbf16> to vector<32x32xbf16>
    %c18_202 = arith.constant 18 : index
    %c0_203 = arith.constant 0 : index
    %c0_204 = arith.constant 0 : index
    %378 = vector.load %arg16[%c18_202, %c0_203, %c0_204] : memref<23x1x32xf32, #tpu.memory_space<vmem>>, vector<1x1x32xf32>
    %379 = vector.shape_cast %378 : vector<1x1x32xf32> to vector<1x32xf32>
    %c19 = arith.constant 19 : index
    %c0_205 = arith.constant 0 : index
    %c0_206 = arith.constant 0 : index
    %380 = vector.load %arg15[%c19, %c0_205, %c0_206] : memref<23x32x32xbf16, #tpu.memory_space<vmem>>, vector<1x32x32xbf16>
    %381 = vector.shape_cast %380 : vector<1x32x32xbf16> to vector<32x32xbf16>
    %c19_207 = arith.constant 19 : index
    %c0_208 = arith.constant 0 : index
    %c0_209 = arith.constant 0 : index
    %382 = vector.load %arg16[%c19_207, %c0_208, %c0_209] : memref<23x1x32xf32, #tpu.memory_space<vmem>>, vector<1x1x32xf32>
    %383 = vector.shape_cast %382 : vector<1x1x32xf32> to vector<1x32xf32>
    %384 = arith.truncf %375 : vector<56x32xf32> to vector<56x32xbf16>
    %cst_210 = arith.constant dense<0.000000e+00> : vector<56x32xf32>
    %385 = tpu.matmul %384, %377, %cst_210 {dimension_numbers = #tpu.dot_dimension_numbers<[1], [0], [0], [1], [0, 0, 1, 1], [], []>} : vector<56x32xbf16>, vector<32x32xbf16>, vector<56x32xf32> -> vector<56x32xf32>
    %386 = vector.broadcast %379 : vector<1x32xf32> to vector<56x32xf32>
    %387 = arith.addf %385, %386 : vector<56x32xf32>
    %388 = arith.negf %387 : vector<56x32xf32>
    %389 = math.exp %388 : vector<56x32xf32>
    %cst_211 = arith.constant 1.000000e+00 : f32
    %390 = vector.broadcast %cst_211 : f32 to vector<56x32xf32>
    %391 = arith.addf %390, %389 : vector<56x32xf32>
    %392 = arith.divf %390, %391 : vector<56x32xf32>
    %393 = arith.mulf %387, %392 : vector<56x32xf32>
    %394 = arith.truncf %393 : vector<56x32xf32> to vector<56x32xbf16>
    %cst_212 = arith.constant dense<0.000000e+00> : vector<56x32xf32>
    %395 = tpu.matmul %394, %381, %cst_212 {dimension_numbers = #tpu.dot_dimension_numbers<[1], [0], [0], [1], [0, 0, 1, 1], [], []>} : vector<56x32xbf16>, vector<32x32xbf16>, vector<56x32xf32> -> vector<56x32xf32>
    %396 = vector.broadcast %383 : vector<1x32xf32> to vector<56x32xf32>
    %397 = arith.addf %395, %396 : vector<56x32xf32>
    %398 = arith.negf %397 : vector<56x32xf32>
    %399 = math.exp %398 : vector<56x32xf32>
    %cst_213 = arith.constant 1.000000e+00 : f32
    %400 = vector.broadcast %cst_213 : f32 to vector<56x32xf32>
    %401 = arith.addf %400, %399 : vector<56x32xf32>
    %402 = arith.divf %400, %401 : vector<56x32xf32>
    %403 = arith.mulf %397, %402 : vector<56x32xf32>
    %404 = arith.addf %375, %403 : vector<56x32xf32>
    %405 = arith.mulf %404, %20 : vector<56x32xf32>
    %406 = arith.truncf %405 : vector<56x32xf32> to vector<56x32xbf16>
    %cst_214 = arith.constant dense<0.000000e+00> : vector<8x32xf32>
    %407 = tpu.matmul %8, %406, %cst_214 {dimension_numbers = #tpu.dot_dimension_numbers<[1], [0], [0], [1], [0, 0, 1, 1], [], []>} : vector<8x56xbf16>, vector<56x32xbf16>, vector<8x32xf32> -> vector<8x32xf32>
    %c20 = arith.constant 20 : index
    %c0_215 = arith.constant 0 : index
    %c0_216 = arith.constant 0 : index
    %408 = vector.load %arg15[%c20, %c0_215, %c0_216] : memref<23x32x32xbf16, #tpu.memory_space<vmem>>, vector<1x32x32xbf16>
    %409 = vector.shape_cast %408 : vector<1x32x32xbf16> to vector<32x32xbf16>
    %c20_217 = arith.constant 20 : index
    %c0_218 = arith.constant 0 : index
    %c0_219 = arith.constant 0 : index
    %410 = vector.load %arg16[%c20_217, %c0_218, %c0_219] : memref<23x1x32xf32, #tpu.memory_space<vmem>>, vector<1x1x32xf32>
    %411 = vector.shape_cast %410 : vector<1x1x32xf32> to vector<1x32xf32>
    %412 = arith.truncf %407 : vector<8x32xf32> to vector<8x32xbf16>
    %cst_220 = arith.constant dense<0.000000e+00> : vector<8x32xf32>
    %413 = tpu.matmul %412, %409, %cst_220 {dimension_numbers = #tpu.dot_dimension_numbers<[1], [0], [0], [1], [0, 0, 1, 1], [], []>} : vector<8x32xbf16>, vector<32x32xbf16>, vector<8x32xf32> -> vector<8x32xf32>
    %414 = vector.broadcast %411 : vector<1x32xf32> to vector<8x32xf32>
    %415 = arith.addf %413, %414 : vector<8x32xf32>
    %416 = arith.negf %415 : vector<8x32xf32>
    %417 = math.exp %416 : vector<8x32xf32>
    %cst_221 = arith.constant 1.000000e+00 : f32
    %418 = vector.broadcast %cst_221 : f32 to vector<8x32xf32>
    %419 = arith.addf %418, %417 : vector<8x32xf32>
    %420 = arith.divf %418, %419 : vector<8x32xf32>
    %421 = arith.mulf %415, %420 : vector<8x32xf32>
    %c21 = arith.constant 21 : index
    %c0_222 = arith.constant 0 : index
    %c0_223 = arith.constant 0 : index
    %422 = vector.load %arg15[%c21, %c0_222, %c0_223] : memref<23x32x32xbf16, #tpu.memory_space<vmem>>, vector<1x32x32xbf16>
    %423 = vector.shape_cast %422 : vector<1x32x32xbf16> to vector<32x32xbf16>
    %c21_224 = arith.constant 21 : index
    %c0_225 = arith.constant 0 : index
    %c0_226 = arith.constant 0 : index
    %424 = vector.load %arg16[%c21_224, %c0_225, %c0_226] : memref<23x1x32xf32, #tpu.memory_space<vmem>>, vector<1x1x32xf32>
    %425 = vector.shape_cast %424 : vector<1x1x32xf32> to vector<1x32xf32>
    %426 = arith.truncf %421 : vector<8x32xf32> to vector<8x32xbf16>
    %cst_227 = arith.constant dense<0.000000e+00> : vector<8x32xf32>
    %427 = tpu.matmul %426, %423, %cst_227 {dimension_numbers = #tpu.dot_dimension_numbers<[1], [0], [0], [1], [0, 0, 1, 1], [], []>} : vector<8x32xbf16>, vector<32x32xbf16>, vector<8x32xf32> -> vector<8x32xf32>
    %428 = vector.broadcast %425 : vector<1x32xf32> to vector<8x32xf32>
    %429 = arith.addf %427, %428 : vector<8x32xf32>
    %430 = arith.negf %429 : vector<8x32xf32>
    %431 = math.exp %430 : vector<8x32xf32>
    %cst_228 = arith.constant 1.000000e+00 : f32
    %432 = vector.broadcast %cst_228 : f32 to vector<8x32xf32>
    %433 = arith.addf %432, %431 : vector<8x32xf32>
    %434 = arith.divf %432, %433 : vector<8x32xf32>
    %435 = arith.mulf %429, %434 : vector<8x32xf32>
    %c22 = arith.constant 22 : index
    %c0_229 = arith.constant 0 : index
    %c0_230 = arith.constant 0 : index
    %436 = vector.load %arg15[%c22, %c0_229, %c0_230] : memref<23x32x32xbf16, #tpu.memory_space<vmem>>, vector<1x32x32xbf16>
    %437 = vector.shape_cast %436 : vector<1x32x32xbf16> to vector<32x32xbf16>
    %c22_231 = arith.constant 22 : index
    %c0_232 = arith.constant 0 : index
    %c0_233 = arith.constant 0 : index
    %438 = vector.load %arg16[%c22_231, %c0_232, %c0_233] : memref<23x1x32xf32, #tpu.memory_space<vmem>>, vector<1x1x32xf32>
    %439 = vector.shape_cast %438 : vector<1x1x32xf32> to vector<1x32xf32>
    %440 = arith.truncf %435 : vector<8x32xf32> to vector<8x32xbf16>
    %cst_234 = arith.constant dense<0.000000e+00> : vector<8x32xf32>
    %441 = tpu.matmul %440, %437, %cst_234 {dimension_numbers = #tpu.dot_dimension_numbers<[1], [0], [0], [1], [0, 0, 1, 1], [], []>} : vector<8x32xbf16>, vector<32x32xbf16>, vector<8x32xf32> -> vector<8x32xf32>
    %442 = vector.broadcast %439 : vector<1x32xf32> to vector<8x32xf32>
    %443 = arith.addf %441, %442 : vector<8x32xf32>
    %444 = arith.negf %443 : vector<8x32xf32>
    %445 = math.exp %444 : vector<8x32xf32>
    %cst_235 = arith.constant 1.000000e+00 : f32
    %446 = vector.broadcast %cst_235 : f32 to vector<8x32xf32>
    %447 = arith.addf %446, %445 : vector<8x32xf32>
    %448 = arith.divf %446, %447 : vector<8x32xf32>
    %449 = arith.mulf %443, %448 : vector<8x32xf32>
    %cst_236 = arith.constant dense<0.000000e+00> : vector<32xf32>
    %450 = vector.multi_reduction <add>, %449, %cst_236 [0] : vector<8x32xf32> to vector<32xf32>
    %451 = vector.shape_cast %450 : vector<32xf32> to vector<1x32xf32>
    %cst_237 = arith.constant 0.000000e+00 : f32
    %452 = vector.broadcast %cst_237 : f32 to vector<1x12xf32>
    %c0_238 = arith.constant 0 : index
    %c0_239 = arith.constant 0 : index
    %c0_240 = arith.constant 0 : index
    %453 = vector.load %arg20[%c0_238, %c0_239, %c0_240] : memref<3x32x12xf32, #tpu.memory_space<vmem>>, vector<1x32x12xf32>
    %454 = vector.shape_cast %453 : vector<1x32x12xf32> to vector<32x12xf32>
    %cst_241 = arith.constant dense<0.000000e+00> : vector<1x12xf32>
    %455 = tpu.matmul %93, %454, %cst_241 {dimension_numbers = #tpu.dot_dimension_numbers<[1], [0], [0], [1], [0, 0, 1, 1], [], []>} : vector<1x32xf32>, vector<32x12xf32>, vector<1x12xf32> -> vector<1x12xf32>
    %456 = arith.addf %452, %455 : vector<1x12xf32>
    %c1_242 = arith.constant 1 : index
    %c0_243 = arith.constant 0 : index
    %c0_244 = arith.constant 0 : index
    %457 = vector.load %arg20[%c1_242, %c0_243, %c0_244] : memref<3x32x12xf32, #tpu.memory_space<vmem>>, vector<1x32x12xf32>
    %458 = vector.shape_cast %457 : vector<1x32x12xf32> to vector<32x12xf32>
    %cst_245 = arith.constant dense<0.000000e+00> : vector<1x12xf32>
    %459 = tpu.matmul %272, %458, %cst_245 {dimension_numbers = #tpu.dot_dimension_numbers<[1], [0], [0], [1], [0, 0, 1, 1], [], []>} : vector<1x32xf32>, vector<32x12xf32>, vector<1x12xf32> -> vector<1x12xf32>
    %460 = arith.addf %456, %459 : vector<1x12xf32>
    %c2_246 = arith.constant 2 : index
    %c0_247 = arith.constant 0 : index
    %c0_248 = arith.constant 0 : index
    %461 = vector.load %arg20[%c2_246, %c0_247, %c0_248] : memref<3x32x12xf32, #tpu.memory_space<vmem>>, vector<1x32x12xf32>
    %462 = vector.shape_cast %461 : vector<1x32x12xf32> to vector<32x12xf32>
    %cst_249 = arith.constant dense<0.000000e+00> : vector<1x12xf32>
    %463 = tpu.matmul %451, %462, %cst_249 {dimension_numbers = #tpu.dot_dimension_numbers<[1], [0], [0], [1], [0, 0, 1, 1], [], []>} : vector<1x32xf32>, vector<32x12xf32>, vector<1x12xf32> -> vector<1x12xf32>
    %464 = arith.addf %460, %463 : vector<1x12xf32>
    %c0_250 = arith.constant 0 : index
    %c0_251 = arith.constant 0 : index
    %c0_252 = arith.constant 0 : index
    %465 = vector.load %arg21[%c0_250, %c0_251, %c0_252] : memref<1x1x12xf32, #tpu.memory_space<vmem>>, vector<1x1x12xf32>
    %466 = vector.shape_cast %465 : vector<1x1x12xf32> to vector<1x12xf32>
    %467 = vector.shape_cast %464 : vector<1x12xf32> to vector<1x1x12xf32>
    tpu.vector_store %arg21[%c0_250, %c0_251, %c0_252], %467 {strides = array<i32>} : memref<1x1x12xf32, #tpu.memory_space<vmem>>, vector<1x1x12xf32>,
    return
  }
  func.func @transform_0(%arg0: i32) -> (i32, i32, i32) {
    %c0_i32 = arith.constant 0 : i32
    %c0_i32_0 = arith.constant 0 : i32
    %c0_i32_1 = arith.constant 0 : i32
    return %arg0, %c0_i32, %c0_i32_0 : i32, i32, i32
  }
  func.func @transform_1(%arg0: i32) -> (i32, i32, i32) {
    %c0_i32 = arith.constant 0 : i32
    %c0_i32_0 = arith.constant 0 : i32
    %c0_i32_1 = arith.constant 0 : i32
    return %arg0, %c0_i32, %c0_i32_0 : i32, i32, i32
  }
  func.func @transform_2(%arg0: i32) -> (i32, i32, i32) {
    %c0_i32 = arith.constant 0 : i32
    %c0_i32_0 = arith.constant 0 : i32
    %c0_i32_1 = arith.constant 0 : i32
    return %arg0, %c0_i32, %c0_i32_0 : i32, i32, i32
  }
  func.func @transform_3(%arg0: i32) -> (i32, i32) {
    %c0_i32 = arith.constant 0 : i32
    %c0_i32_0 = arith.constant 0 : i32
    %c0_i32_1 = arith.constant 0 : i32
    return %c0_i32, %c0_i32_0 : i32, i32
  }
  func.func @transform_4(%arg0: i32) -> (i32, i32) {
    %c0_i32 = arith.constant 0 : i32
    %c0_i32_0 = arith.constant 0 : i32
    %c0_i32_1 = arith.constant 0 : i32
    return %c0_i32, %c0_i32_0 : i32, i32
  }
  func.func @transform_5(%arg0: i32) -> (i32, i32) {
    %c0_i32 = arith.constant 0 : i32
    %c0_i32_0 = arith.constant 0 : i32
    %c0_i32_1 = arith.constant 0 : i32
    return %c0_i32, %c0_i32_0 : i32, i32
  }
  func.func @transform_6(%arg0: i32) -> (i32, i32) {
    %c0_i32 = arith.constant 0 : i32
    %c0_i32_0 = arith.constant 0 : i32
    %c0_i32_1 = arith.constant 0 : i32
    return %c0_i32, %c0_i32_0 : i32, i32
  }
  func.func @transform_7(%arg0: i32) -> (i32, i32) {
    %c0_i32 = arith.constant 0 : i32
    %c0_i32_0 = arith.constant 0 : i32
    %c0_i32_1 = arith.constant 0 : i32
    return %c0_i32, %c0_i32_0 : i32, i32
  }
  func.func @transform_8(%arg0: i32) -> (i32, i32) {
    %c0_i32 = arith.constant 0 : i32
    %c0_i32_0 = arith.constant 0 : i32
    %c0_i32_1 = arith.constant 0 : i32
    return %c0_i32, %c0_i32_0 : i32, i32
  }
  func.func @transform_9(%arg0: i32) -> (i32, i32) {
    %c0_i32 = arith.constant 0 : i32
    %c0_i32_0 = arith.constant 0 : i32
    %c0_i32_1 = arith.constant 0 : i32
    return %c0_i32, %c0_i32_0 : i32, i32
  }
  func.func @transform_10(%arg0: i32) -> (i32, i32) {
    %c0_i32 = arith.constant 0 : i32
    %c0_i32_0 = arith.constant 0 : i32
    %c0_i32_1 = arith.constant 0 : i32
    return %c0_i32, %c0_i32_0 : i32, i32
  }
  func.func @transform_11(%arg0: i32) -> (i32, i32) {
    %c0_i32 = arith.constant 0 : i32
    %c0_i32_0 = arith.constant 0 : i32
    %c0_i32_1 = arith.constant 0 : i32
    return %c0_i32, %c0_i32_0 : i32, i32
  }
  func.func @transform_12(%arg0: i32) -> (i32, i32) {
    %c0_i32 = arith.constant 0 : i32
    %c0_i32_0 = arith.constant 0 : i32
    %c0_i32_1 = arith.constant 0 : i32
    return %c0_i32, %c0_i32_0 : i32, i32
  }
  func.func @transform_13(%arg0: i32) -> (i32, i32) {
    %c0_i32 = arith.constant 0 : i32
    %c0_i32_0 = arith.constant 0 : i32
    %c0_i32_1 = arith.constant 0 : i32
    return %c0_i32, %c0_i32_0 : i32, i32
  }
  func.func @transform_14(%arg0: i32) -> (i32, i32, i32) {
    %c0_i32 = arith.constant 0 : i32
    %c0_i32_0 = arith.constant 0 : i32
    %c0_i32_1 = arith.constant 0 : i32
    %c0_i32_2 = arith.constant 0 : i32
    return %c0_i32, %c0_i32_0, %c0_i32_1 : i32, i32, i32
  }
  func.func @transform_15(%arg0: i32) -> (i32, i32, i32) {
    %c0_i32 = arith.constant 0 : i32
    %c0_i32_0 = arith.constant 0 : i32
    %c0_i32_1 = arith.constant 0 : i32
    %c0_i32_2 = arith.constant 0 : i32
    return %c0_i32, %c0_i32_0, %c0_i32_1 : i32, i32, i32
  }
  func.func @transform_16(%arg0: i32) -> (i32, i32, i32) {
    %c0_i32 = arith.constant 0 : i32
    %c0_i32_0 = arith.constant 0 : i32
    %c0_i32_1 = arith.constant 0 : i32
    %c0_i32_2 = arith.constant 0 : i32
    return %c0_i32, %c0_i32_0, %c0_i32_1 : i32, i32, i32
  }
  func.func @transform_17(%arg0: i32) -> (i32, i32, i32) {
    %c0_i32 = arith.constant 0 : i32
    %c0_i32_0 = arith.constant 0 : i32
    %c0_i32_1 = arith.constant 0 : i32
    %c0_i32_2 = arith.constant 0 : i32
    return %c0_i32, %c0_i32_0, %c0_i32_1 : i32, i32, i32
  }
  func.func @transform_18(%arg0: i32) -> (i32, i32, i32) {
    %c0_i32 = arith.constant 0 : i32
    %c0_i32_0 = arith.constant 0 : i32
    %c0_i32_1 = arith.constant 0 : i32
    %c0_i32_2 = arith.constant 0 : i32
    return %c0_i32, %c0_i32_0, %c0_i32_1 : i32, i32, i32
  }
  func.func @transform_19(%arg0: i32) -> (i32, i32, i32) {
    %c0_i32 = arith.constant 0 : i32
    %c0_i32_0 = arith.constant 0 : i32
    %c0_i32_1 = arith.constant 0 : i32
    %c0_i32_2 = arith.constant 0 : i32
    return %c0_i32, %c0_i32_0, %c0_i32_1 : i32, i32, i32
  }
  func.func @transform_20(%arg0: i32) -> (i32, i32, i32) {
    %c0_i32 = arith.constant 0 : i32
    %c0_i32_0 = arith.constant 0 : i32
    %c0_i32_1 = arith.constant 0 : i32
    return %arg0, %c0_i32, %c0_i32_0 : i32, i32, i32
  }
}

</mosaic_0001>

<llo_original>
// kernel: dime_predictor_forward.1
$region0: #{dime_predictor_forward.1}
  #allocation0 [shape = 'u32[]', space=smem, size = 0x4, offset = 0x4, fixed_abs, tag = 'smem constant byte address 0x4 - core index']
  #allocation1 [shape = 'u32[144,128]{1,0:T(1,128)}', space=vmem, size = 0x12000, scoped, tag = 'internal scratch']
  %s0 = inlined_call_operand.vmem [shape: bf16[8,56,8], index: 0, kind: input, shape index: {}]
  %s1 = inlined_call_operand.vmem [shape: bf16[8,336,32], index: 1, kind: input, shape index: {}]
  %s2 = inlined_call_operand.vmem [shape: bf16[8,8,32], index: 2, kind: input, shape index: {}]
  %s3 = inlined_call_operand.vmem [shape: bf16[56,8], index: 3, kind: input, shape index: {}]
  %s4 = inlined_call_operand.vmem [shape: bf16[56,8], index: 4, kind: input, shape index: {}]
  %s5 = inlined_call_operand.vmem [shape: bf16[8,56], index: 5, kind: input, shape index: {}]
  %s6 = inlined_call_operand.vmem [shape: bf16[336,56], index: 6, kind: input, shape index: {}]
  %s7 = inlined_call_operand.vmem [shape: bf16[56,336], index: 7, kind: input, shape index: {}]
  %s8 = inlined_call_operand.vmem [shape: bf16[256,32], index: 8, kind: input, shape index: {}]
  %s9 = inlined_call_operand.vmem [shape: bf16[8,192], index: 9, kind: input, shape index: {}]
  %s10 = inlined_call_operand.vmem [shape: f32[1,192], index: 10, kind: input, shape index: {}]
  %s11 = inlined_call_operand.vmem [shape: bf16[32,512], index: 11, kind: input, shape index: {}]
  %s12 = inlined_call_operand.vmem [shape: bf16[96,32], index: 12, kind: input, shape index: {}]
  %s13 = inlined_call_operand.vmem [shape: f32[1,32], index: 13, kind: input, shape index: {}]
  %s14 = inlined_call_operand.vmem [shape: bf16[23,32,32], index: 14, kind: input, shape index: {}]
  %s15 = inlined_call_operand.vmem [shape: f32[23,1,32], index: 15, kind: input, shape index: {}]
  %s16 = inlined_call_operand.vmem [shape: bf16[2,32,64], index: 16, kind: input, shape index: {}]
  %s17 = inlined_call_operand.vmem [shape: f32[2,1,64], index: 17, kind: input, shape index: {}]
  %s18 = inlined_call_operand.vmem [shape: bf16[2,32,256], index: 18, kind: input, shape index: {}]
  %s19 = inlined_call_operand.vmem [shape: f32[3,32,12], index: 19, kind: input, shape index: {}]
  %s20 = inlined_call_operand.hbm [shape: f32[8,1,12], index: 20, kind: output, shape index: {}]
  %s21 = sld [smem:[#allocation0]]
  $region113: #{dime_predictor_forward.1} parent=0
    _
  %s23 = ssub.s32 1, %s21
  %s24 = scalar_select 0, %s23, %s21
  $region1: #{dime_predictor_forward.1} parent=0
    #allocation2 [shape = 'u8[1024]{0}', space=vmem, size = 0x400, scoped, tag = 'output window, operand 0']
    #allocation3 [shape = 's32[2]{0}', space=sflag, size = 0x8, scoped, tag = 'scoped memory for dime_predictor_forward.1']
    %25 = vsyncpa [#allocation3], 0
    %s26 = scalar_lea.sflag [#allocation3], 1
    %27 = vsyncpa %s26, 0
    loop: start=0, step=1, limit=10
    $region2: #{dime_predictor_forward.1} parent=1 // loop_pre_header
      _
    $region3: #{dime_predictor_forward.1} parent=1 // loop_header
      %s29 = sphi 0, %s33
      %p30 = scmp.ge.s32.totalorder %s29, 10
      %s39 = sphi 0, %s41
      %s42 = sphi 0, %s39
      %s43 = sphi 0, %s42
      %s59 = sphi 0, %s43
      %s65 = sphi 0, %s67
      %s68 = sphi 0, %s65
      %s69 = sphi 0, %s68
      %s85 = sphi 0, %s69
      %s91 = sphi 0, %s93
      %s94 = sphi 0, %s91
      %s95 = sphi 0, %s94
      %s111 = sphi 0, %s95
      %s115 = sphi 0, %s115
      %s117 = sphi 0, %s115
      %s118 = sphi 0, %s117
      %s132 = sphi 0, %s118
      %s136 = sphi 0, %s136
      %s138 = sphi 0, %s136
      %s139 = sphi 0, %s138
      %s153 = sphi 0, %s139
      %s157 = sphi 0, %s157
      %s159 = sphi 0, %s157
      %s160 = sphi 0, %s159
      %s174 = sphi 0, %s160
      %s178 = sphi 0, %s178
      %s180 = sphi 0, %s178
      %s181 = sphi 0, %s180
      %s195 = sphi 0, %s181
      %s199 = sphi 0, %s199
      %s201 = sphi 0, %s199
      %s202 = sphi 0, %s201
      %s216 = sphi 0, %s202
      %s220 = sphi 0, %s220
      %s222 = sphi 0, %s220
      %s223 = sphi 0, %s222
      %s237 = sphi 0, %s223
      %s241 = sphi 0, %s241
      %s243 = sphi 0, %s241
      %s244 = sphi 0, %s243
      %s258 = sphi 0, %s244
      %s262 = sphi 0, %s262
      %s264 = sphi 0, %s262
      %s265 = sphi 0, %s264
      %s279 = sphi 0, %s265
      %s283 = sphi 0, %s283
      %s285 = sphi 0, %s283
      %s286 = sphi 0, %s285
      %s300 = sphi 0, %s286
      %s304 = sphi 0, %s304
      %s306 = sphi 0, %s304
      %s307 = sphi 0, %s306
      %s321 = sphi 0, %s307
      %s325 = sphi 0, %s325
      %s327 = sphi 0, %s325
      %s328 = sphi 0, %s327
      %s342 = sphi 0, %s328
      %s346 = sphi 0, %s346
      %s348 = sphi 0, %s346
      %s349 = sphi 0, %s348
      %s363 = sphi 0, %s349
      %s367 = sphi 0, %s367
      %s369 = sphi 0, %s367
      %s370 = sphi 0, %s369
      %s384 = sphi 0, %s370
      %s388 = sphi 0, %s388
      %s390 = sphi 0, %s388
      %s391 = sphi 0, %s390
      %s405 = sphi 0, %s391
      %s409 = sphi 0, %s409
      %s411 = sphi 0, %s409
      %s412 = sphi 0, %s411
      %s426 = sphi 0, %s412
      %s430 = sphi 0, %s430
      %s432 = sphi 0, %s430
      %s433 = sphi 0, %s432
      %s447 = sphi 0, %s433
      %s451 = sphi 0, %s451
      %s453 = sphi 0, %s451
      %s454 = sphi 0, %s453
      %s468 = sphi 0, %s454
      %s474 = sphi 0, %s476
      %s477 = sphi 0, %s474
      %s478 = sphi 0, %s477
      %s494 = sphi 0, %s478
    $region4: #{dime_predictor_forward.1} parent=1 // loop_header_branch
      %32 = sbr.rel (%p30) target = $region8
    $region5: #{dime_predictor_forward.1} parent=1 // loop_body
      %s34 = ssub.s32 %s29, 1
      %s35 = ssub.s32 %s29, 2
      %s36 = sadd.s32 %s29, 1
      %s37 = ssub.s32 %s29, %s36
      %p38 = scmp.eq.s32.totalorder %s37, 0
      %s40 = sadd.s32 %s39, 1
      %s41 = scalar_select %p38, %s39, %s40
      %p44 = pneg %p38
      %p45 = scmp.eq.s32.totalorder %s29, 7
      %p46 = por %p44, %p45
      %p47 = scmp.ne.s32.totalorder %s39, %s42
      %p48 = scmp.eq.s32.totalorder %s29, 0
      %p49 = por %p47, %p48
      %p50 = scmp.ne.s32.totalorder %s39, %s42
      %p51 = scmp.eq.s32.totalorder %s34, 7
      %p52 = por %p50, %p51
      %p53 = scmp.ne.s32.totalorder %s42, %s43
      %p54 = scmp.eq.s32.totalorder %s34, 0
      %p55 = por %p53, %p54
      %p56 = scmp.ne.s32.totalorder %s42, %s43
      %p57 = scmp.eq.s32.totalorder %s35, 7
      %p58 = por %p56, %p57
      %p60 = scmp.ne.s32.totalorder %s43, %s59
      %p61 = scmp.eq.s32.totalorder %s35, 0
      %p62 = por %p60, %p61
      %s63 = ssub.s32 %s29, %s36
      %p64 = scmp.eq.s32.totalorder %s63, 0
      %s66 = sadd.s32 %s65, 1
      %s67 = scalar_select %p64, %s65, %s66
      %p70 = pneg %p64
      %p71 = scmp.eq.s32.totalorder %s29, 7
      %p72 = por %p70, %p71
      %p73 = scmp.ne.s32.totalorder %s65, %s68
      %p74 = scmp.eq.s32.totalorder %s29, 0
      %p75 = por %p73, %p74
      %p76 = scmp.ne.s32.totalorder %s65, %s68
      %p77 = scmp.eq.s32.totalorder %s34, 7
      %p78 = por %p76, %p77
      %p79 = scmp.ne.s32.totalorder %s68, %s69
      %p80 = scmp.eq.s32.totalorder %s34, 0
      %p81 = por %p79, %p80
      %p82 = scmp.ne.s32.totalorder %s68, %s69
      %p83 = scmp.eq.s32.totalorder %s35, 7
      %p84 = por %p82, %p83
      %p86 = scmp.ne.s32.totalorder %s69, %s85
      %p87 = scmp.eq.s32.totalorder %s35, 0
      %p88 = por %p86, %p87
      %s89 = ssub.s32 %s29, %s36
      %p90 = scmp.eq.s32.totalorder %s89, 0
      %s92 = sadd.s32 %s91, 1
      %s93 = scalar_select %p90, %s91, %s92
      %p96 = pneg %p90
      %p97 = scmp.eq.s32.totalorder %s29, 7
      %p98 = por %p96, %p97
      %p99 = scmp.ne.s32.totalorder %s91, %s94
      %p100 = scmp.eq.s32.totalorder %s29, 0
      %p101 = por %p99, %p100
      %p102 = scmp.ne.s32.totalorder %s91, %s94
      %p103 = scmp.eq.s32.totalorder %s34, 7
      %p104 = por %p102, %p103
      %p105 = scmp.ne.s32.totalorder %s94, %s95
      %p106 = scmp.eq.s32.totalorder %s34, 0
      %p107 = por %p105, %p106
      %p108 = scmp.ne.s32.totalorder %s94, %s95
      %p109 = scmp.eq.s32.totalorder %s35, 7
      %p110 = por %p108, %p109
      %p112 = scmp.ne.s32.totalorder %s95, %s111
      %p113 = scmp.eq.s32.totalorder %s35, 0
      %p114 = por %p112, %p113
      %s116 = sadd.s32 %s115, 1
      %p119 = scmp.eq.s32.totalorder %s29, 7
      %p120 = scmp.ne.s32.totalorder %s115, %s117
      %p121 = scmp.eq.s32.totalorder %s29, 0
      %p122 = por %p120, %p121
      %p123 = scmp.ne.s32.totalorder %s115, %s117
      %p124 = scmp.eq.s32.totalorder %s34, 7
      %p125 = por %p123, %p124
      %p126 = scmp.ne.s32.totalorder %s117, %s118
      %p127 = scmp.eq.s32.totalorder %s34, 0
      %p128 = por %p126, %p127
      %p129 = scmp.ne.s32.totalorder %s117, %s118
      %p130 = scmp.eq.s32.totalorder %s35, 7
      %p131 = por %p129, %p130
      %p133 = scmp.ne.s32.totalorder %s118, %s132
      %p134 = scmp.eq.s32.totalorder %s35, 0
      %p135 = por %p133, %p134
      %s137 = sadd.s32 %s136, 1
      %p140 = scmp.eq.s32.totalorder %s29, 7
      %p141 = scmp.ne.s32.totalorder %s136, %s138
      %p142 = scmp.eq.s32.totalorder %s29, 0
      %p143 = por %p141, %p142
      %p144 = scmp.ne.s32.totalorder %s136, %s138
      %p145 = scmp.eq.s32.totalorder %s34, 7
      %p146 = por %p144, %p145
      %p147 = scmp.ne.s32.totalorder %s138, %s139
      %p148 = scmp.eq.s32.totalorder %s34, 0
      %p149 = por %p147, %p148
      %p150 = scmp.ne.s32.totalorder %s138, %s139
      %p151 = scmp.eq.s32.totalorder %s35, 7
      %p152 = por %p150, %p151
      %p154 = scmp.ne.s32.totalorder %s139, %s153
      %p155 = scmp.eq.s32.totalorder %s35, 0
      %p156 = por %p154, %p155
      %s158 = sadd.s32 %s157, 1
      %p161 = scmp.eq.s32.totalorder %s29, 7
      %p162 = scmp.ne.s32.totalorder %s157, %s159
      %p163 = scmp.eq.s32.totalorder %s29, 0
      %p164 = por %p162, %p163
      %p165 = scmp.ne.s32.totalorder %s157, %s159
      %p166 = scmp.eq.s32.totalorder %s34, 7
      %p167 = por %p165, %p166
      %p168 = scmp.ne.s32.totalorder %s159, %s160
      %p169 = scmp.eq.s32.totalorder %s34, 0
      %p170 = por %p168, %p169
      %p171 = scmp.ne.s32.totalorder %s159, %s160
      %p172 = scmp.eq.s32.totalorder %s35, 7
      %p173 = por %p171, %p172
      %p175 = scmp.ne.s32.totalorder %s160, %s174
      %p176 = scmp.eq.s32.totalorder %s35, 0
      %p177 = por %p175, %p176
      %s179 = sadd.s32 %s178, 1
      %p182 = scmp.eq.s32.totalorder %s29, 7
      %p183 = scmp.ne.s32.totalorder %s178, %s180
      %p184 = scmp.eq.s32.totalorder %s29, 0
      %p185 = por %p183, %p184
      %p186 = scmp.ne.s32.totalorder %s178, %s180
      %p187 = scmp.eq.s32.totalorder %s34, 7
      %p188 = por %p186, %p187
      %p189 = scmp.ne.s32.totalorder %s180, %s181
      %p190 = scmp.eq.s32.totalorder %s34, 0
      %p191 = por %p189, %p190
      %p192 = scmp.ne.s32.totalorder %s180, %s181
      %p193 = scmp.eq.s32.totalorder %s35, 7
      %p194 = por %p192, %p193
      %p196 = scmp.ne.s32.totalorder %s181, %s195
      %p197 = scmp.eq.s32.totalorder %s35, 0
      %p198 = por %p196, %p197
      %s200 = sadd.s32 %s199, 1
      %p203 = scmp.eq.s32.totalorder %s29, 7
      %p204 = scmp.ne.s32.totalorder %s199, %s201
      %p205 = scmp.eq.s32.totalorder %s29, 0
      %p206 = por %p204, %p205
      %p207 = scmp.ne.s32.totalorder %s199, %s201
      %p208 = scmp.eq.s32.totalorder %s34, 7
      %p209 = por %p207, %p208
      %p210 = scmp.ne.s32.totalorder %s201, %s202
      %p211 = scmp.eq.s32.totalorder %s34, 0
      %p212 = por %p210, %p211
      %p213 = scmp.ne.s32.totalorder %s201, %s202
      %p214 = scmp.eq.s32.totalorder %s35, 7
      %p215 = por %p213, %p214
      %p217 = scmp.ne.s32.totalorder %s202, %s216
      %p218 = scmp.eq.s32.totalorder %s35, 0
      %p219 = por %p217, %p218
      %s221 = sadd.s32 %s220, 1
      %p224 = scmp.eq.s32.totalorder %s29, 7
      %p225 = scmp.ne.s32.totalorder %s220, %s222
      %p226 = scmp.eq.s32.totalorder %s29, 0
      %p227 = por %p225, %p226
      %p228 = scmp.ne.s32.totalorder %s220, %s222
      %p229 = scmp.eq.s32.totalorder %s34, 7
      %p230 = por %p228, %p229
      %p231 = scmp.ne.s32.totalorder %s222, %s223
      %p232 = scmp.eq.s32.totalorder %s34, 0
      %p233 = por %p231, %p232
      %p234 = scmp.ne.s32.totalorder %s222, %s223
      %p235 = scmp.eq.s32.totalorder %s35, 7
      %p236 = por %p234, %p235
      %p238 = scmp.ne.s32.totalorder %s223, %s237
      %p239 = scmp.eq.s32.totalorder %s35, 0
      %p240 = por %p238, %p239
      %s242 = sadd.s32 %s241, 1
      %p245 = scmp.eq.s32.totalorder %s29, 7
      %p246 = scmp.ne.s32.totalorder %s241, %s243
      %p247 = scmp.eq.s32.totalorder %s29, 0
      %p248 = por %p246, %p247
      %p249 = scmp.ne.s32.totalorder %s241, %s243
      %p250 = scmp.eq.s32.totalorder %s34, 7
      %p251 = por %p249, %p250
      %p252 = scmp.ne.s32.totalorder %s243, %s244
      %p253 = scmp.eq.s32.totalorder %s34, 0
      %p254 = por %p252, %p253
      %p255 = scmp.ne.s32.totalorder %s243, %s244
      %p256 = scmp.eq.s32.totalorder %s35, 7
      %p257 = por %p255, %p256
      %p259 = scmp.ne.s32.totalorder %s244, %s258
      %p260 = scmp.eq.s32.totalorder %s35, 0
      %p261 = por %p259, %p260
      %s263 = sadd.s32 %s262, 1
      %p266 = scmp.eq.s32.totalorder %s29, 7
      %p267 = scmp.ne.s32.totalorder %s262, %s264
      %p268 = scmp.eq.s32.totalorder %s29, 0
      %p269 = por %p267, %p268
      %p270 = scmp.ne.s32.totalorder %s262, %s264
      %p271 = scmp.eq.s32.totalorder %s34, 7
      %p272 = por %p270, %p271
      %p273 = scmp.ne.s32.totalorder %s264, %s265
      %p274 = scmp.eq.s32.totalorder %s34, 0
      %p275 = por %p273, %p274
      %p276 = scmp.ne.s32.totalorder %s264, %s265
      %p277 = scmp.eq.s32.totalorder %s35, 7
      %p278 = por %p276, %p277
      %p280 = scmp.ne.s32.totalorder %s265, %s279
      %p281 = scmp.eq.s32.totalorder %s35, 0
      %p282 = por %p280, %p281
      %s284 = sadd.s32 %s283, 1
      %p287 = scmp.eq.s32.totalorder %s29, 7
      %p288 = scmp.ne.s32.totalorder %s283, %s285
      %p289 = scmp.eq.s32.totalorder %s29, 0
      %p290 = por %p288, %p289
      %p291 = scmp.ne.s32.totalorder %s283, %s285
      %p292 = scmp.eq.s32.totalorder %s34, 7
      %p293 = por %p291, %p292
      %p294 = scmp.ne.s32.totalorder %s285, %s286
      %p295 = scmp.eq.s32.totalorder %s34, 0
      %p296 = por %p294, %p295
      %p297 = scmp.ne.s32.totalorder %s285, %s286
      %p298 = scmp.eq.s32.totalorder %s35, 7
      %p299 = por %p297, %p298
      %p301 = scmp.ne.s32.totalorder %s286, %s300
      %p302 = scmp.eq.s32.totalorder %s35, 0
      %p303 = por %p301, %p302
      %s305 = sadd.s32 %s304, 1
      %p308 = scmp.eq.s32.totalorder %s29, 7
      %p309 = scmp.ne.s32.totalorder %s304, %s306
      %p310 = scmp.eq.s32.totalorder %s29, 0
      %p311 = por %p309, %p310
      %p312 = scmp.ne.s32.totalorder %s304, %s306
      %p313 = scmp.eq.s32.totalorder %s34, 7
      %p314 = por %p312, %p313
      %p315 = scmp.ne.s32.totalorder %s306, %s307
      %p316 = scmp.eq.s32.totalorder %s34, 0
      %p317 = por %p315, %p316
      %p318 = scmp.ne.s32.totalorder %s306, %s307
      %p319 = scmp.eq.s32.totalorder %s35, 7
      %p320 = por %p318, %p319
      %p322 = scmp.ne.s32.totalorder %s307, %s321
      %p323 = scmp.eq.s32.totalorder %s35, 0
      %p324 = por %p322, %p323
      %s326 = sadd.s32 %s325, 1
      %p329 = scmp.eq.s32.totalorder %s29, 7
      %p330 = scmp.ne.s32.totalorder %s325, %s327
      %p331 = scmp.eq.s32.totalorder %s29, 0
      %p332 = por %p330, %p331
      %p333 = scmp.ne.s32.totalorder %s325, %s327
      %p334 = scmp.eq.s32.totalorder %s34, 7
      %p335 = por %p333, %p334
      %p336 = scmp.ne.s32.totalorder %s327, %s328
      %p337 = scmp.eq.s32.totalorder %s34, 0
      %p338 = por %p336, %p337
      %p339 = scmp.ne.s32.totalorder %s327, %s328
      %p340 = scmp.eq.s32.totalorder %s35, 7
      %p341 = por %p339, %p340
      %p343 = scmp.ne.s32.totalorder %s328, %s342
      %p344 = scmp.eq.s32.totalorder %s35, 0
      %p345 = por %p343, %p344
      %s347 = sadd.s32 %s346, 1
      %p350 = scmp.eq.s32.totalorder %s29, 7
      %p351 = scmp.ne.s32.totalorder %s346, %s348
      %p352 = scmp.eq.s32.totalorder %s29, 0
      %p353 = por %p351, %p352
      %p354 = scmp.ne.s32.totalorder %s346, %s348
      %p355 = scmp.eq.s32.totalorder %s34, 7
      %p356 = por %p354, %p355
      %p357 = scmp.ne.s32.totalorder %s348, %s349
      %p358 = scmp.eq.s32.totalorder %s34, 0
      %p359 = por %p357, %p358
      %p360 = scmp.ne.s32.totalorder %s348, %s349
      %p361 = scmp.eq.s32.totalorder %s35, 7
      %p362 = por %p360, %p361
      %p364 = scmp.ne.s32.totalorder %s349, %s363
      %p365 = scmp.eq.s32.totalorder %s35, 0
      %p366 = por %p364, %p365
      %s368 = sadd.s32 %s367, 1
      %p371 = scmp.eq.s32.totalorder %s29, 7
      %p372 = scmp.ne.s32.totalorder %s367, %s369
      %p373 = scmp.eq.s32.totalorder %s29, 0
      %p374 = por %p372, %p373
      %p375 = scmp.ne.s32.totalorder %s367, %s369
      %p376 = scmp.eq.s32.totalorder %s34, 7
      %p377 = por %p375, %p376
      %p378 = scmp.ne.s32.totalorder %s369, %s370
      %p379 = scmp.eq.s32.totalorder %s34, 0
      %p380 = por %p378, %p379
      %p381 = scmp.ne.s32.totalorder %s369, %s370
      %p382 = scmp.eq.s32.totalorder %s35, 7
      %p383 = por %p381, %p382
      %p385 = scmp.ne.s32.totalorder %s370, %s384
      %p386 = scmp.eq.s32.totalorder %s35, 0
      %p387 = por %p385, %p386
      %s389 = sadd.s32 %s388, 1
      %p392 = scmp.eq.s32.totalorder %s29, 7
      %p393 = scmp.ne.s32.totalorder %s388, %s390
      %p394 = scmp.eq.s32.totalorder %s29, 0
      %p395 = por %p393, %p394
      %p396 = scmp.ne.s32.totalorder %s388, %s390
      %p397 = scmp.eq.s32.totalorder %s34, 7
      %p398 = por %p396, %p397
      %p399 = scmp.ne.s32.totalorder %s390, %s391
      %p400 = scmp.eq.s32.totalorder %s34, 0
      %p401 = por %p399, %p400
      %p402 = scmp.ne.s32.totalorder %s390, %s391
      %p403 = scmp.eq.s32.totalorder %s35, 7
      %p404 = por %p402, %p403
      %p406 = scmp.ne.s32.totalorder %s391, %s405
      %p407 = scmp.eq.s32.totalorder %s35, 0
      %p408 = por %p406, %p407
      %s410 = sadd.s32 %s409, 1
      %p413 = scmp.eq.s32.totalorder %s29, 7
      %p414 = scmp.ne.s32.totalorder %s409, %s411
      %p415 = scmp.eq.s32.totalorder %s29, 0
      %p416 = por %p414, %p415
      %p417 = scmp.ne.s32.totalorder %s409, %s411
      %p418 = scmp.eq.s32.totalorder %s34, 7
      %p419 = por %p417, %p418
      %p420 = scmp.ne.s32.totalorder %s411, %s412
      %p421 = scmp.eq.s32.totalorder %s34, 0
      %p422 = por %p420, %p421
      %p423 = scmp.ne.s32.totalorder %s411, %s412
      %p424 = scmp.eq.s32.totalorder %s35, 7
      %p425 = por %p423, %p424
      %p427 = scmp.ne.s32.totalorder %s412, %s426
      %p428 = scmp.eq.s32.totalorder %s35, 0
      %p429 = por %p427, %p428
      %s431 = sadd.s32 %s430, 1
      %p434 = scmp.eq.s32.totalorder %s29, 7
      %p435 = scmp.ne.s32.totalorder %s430, %s432
      %p436 = scmp.eq.s32.totalorder %s29, 0
      %p437 = por %p435, %p436
      %p438 = scmp.ne.s32.totalorder %s430, %s432
      %p439 = scmp.eq.s32.totalorder %s34, 7
      %p440 = por %p438, %p439
      %p441 = scmp.ne.s32.totalorder %s432, %s433
      %p442 = scmp.eq.s32.totalorder %s34, 0
      %p443 = por %p441, %p442
      %p444 = scmp.ne.s32.totalorder %s432, %s433
      %p445 = scmp.eq.s32.totalorder %s35, 7
      %p446 = por %p444, %p445
      %p448 = scmp.ne.s32.totalorder %s433, %s447
      %p449 = scmp.eq.s32.totalorder %s35, 0
      %p450 = por %p448, %p449
      %s452 = sadd.s32 %s451, 1
      %p455 = scmp.eq.s32.totalorder %s29, 7
      %p456 = scmp.ne.s32.totalorder %s451, %s453
      %p457 = scmp.eq.s32.totalorder %s29, 0
      %p458 = por %p456, %p457
      %p459 = scmp.ne.s32.totalorder %s451, %s453
      %p460 = scmp.eq.s32.totalorder %s34, 7
      %p461 = por %p459, %p460
      %p462 = scmp.ne.s32.totalorder %s453, %s454
      %p463 = scmp.eq.s32.totalorder %s34, 0
      %p464 = por %p462, %p463
      %p465 = scmp.ne.s32.totalorder %s453, %s454
      %p466 = scmp.eq.s32.totalorder %s35, 7
      %p467 = por %p465, %p466
      %p469 = scmp.ne.s32.totalorder %s454, %s468
      %p470 = scmp.eq.s32.totalorder %s35, 0
      %p471 = por %p469, %p470
      %s472 = ssub.s32 %s29, %s36
      %p473 = scmp.eq.s32.totalorder %s472, 0
      %s475 = sadd.s32 %s474, 1
      %s476 = scalar_select %p473, %s474, %s475
      %p479 = pneg %p473
      %p480 = scmp.eq.s32.totalorder %s29, 7
      %p481 = por %p479, %p480
      %p482 = scmp.ne.s32.totalorder %s474, %s477
      %p483 = scmp.eq.s32.totalorder %s29, 0
      %p484 = por %p482, %p483
      %p485 = scmp.ne.s32.totalorder %s474, %s477
      %p486 = scmp.eq.s32.totalorder %s34, 7
      %p487 = por %p485, %p486
      %p488 = scmp.ne.s32.totalorder %s477, %s478
      %p489 = scmp.eq.s32.totalorder %s34, 0
      %p490 = por %p488, %p489
      %p491 = scmp.ne.s32.totalorder %s477, %s478
      %p492 = scmp.eq.s32.totalorder %s35, 7
      %p493 = por %p491, %p492
      %p495 = scmp.ne.s32.totalorder %s478, %s494
      %p496 = scmp.eq.s32.totalorder %s35, 0
      %p497 = por %p495, %p496
      %p498 = scmp.le.s32.totalorder 1, %s29
      %p499 = scmp.lt.s32.totalorder %s29, 9
      %p500 = pnand %p498, %p499
      %p501 = pneg %p500
      // Predicated region
      $region9: #{dime_predictor_forward.1} parent=5 // pred_check
        _
      $region10: #{dime_predictor_forward.1} parent=5 // pred_check_branch
        %503 = sbr.rel (%p500) target = $region12
      $region11: #{dime_predictor_forward.1} parent=5 // pred_region
        %s504 = ssub.s32 %s29, 1
        // Predicated region
        $region13: #{dime_predictor_forward.1} parent=11 // pred_check
          %p505 = pneg %p128
        $region14: #{dime_predictor_forward.1} parent=11 // pred_check_branch
          %507 = sbr.rel (%p505) target = $region16
        $region15: #{dime_predictor_forward.1} parent=11 // pred_region
          _
        $region16: #{dime_predictor_forward.1} parent=11 // pred_fallthru
          _
        // Predicated region
        $region17: #{dime_predictor_forward.1} parent=11 // pred_check
          %p508 = pneg %p149
        $region18: #{dime_predictor_forward.1} parent=11 // pred_check_branch
          %510 = sbr.rel (%p508) target = $region20
        $region19: #{dime_predictor_forward.1} parent=11 // pred_region
          _
        $region20: #{dime_predictor_forward.1} parent=11 // pred_fallthru
          _
        // Predicated region
        $region21: #{dime_predictor_forward.1} parent=11 // pred_check
          %p511 = pneg %p170
        $region22: #{dime_predictor_forward.1} parent=11 // pred_check_branch
          %513 = sbr.rel (%p511) target = $region24
        $region23: #{dime_predictor_forward.1} parent=11 // pred_region
          _
        $region24: #{dime_predictor_forward.1} parent=11 // pred_fallthru
          _
        // Predicated region
        $region25: #{dime_predictor_forward.1} parent=11 // pred_check
          %p514 = pneg %p191
        $region26: #{dime_predictor_forward.1} parent=11 // pred_check_branch
          %516 = sbr.rel (%p514) target = $region28
        $region27: #{dime_predictor_forward.1} parent=11 // pred_region
          _
        $region28: #{dime_predictor_forward.1} parent=11 // pred_fallthru
          _
        // Predicated region
        $region29: #{dime_predictor_forward.1} parent=11 // pred_check
          %p517 = pneg %p212
        $region30: #{dime_predictor_forward.1} parent=11 // pred_check_branch
          %519 = sbr.rel (%p517) target = $region32
        $region31: #{dime_predictor_forward.1} parent=11 // pred_region
          _
        $region32: #{dime_predictor_forward.1} parent=11 // pred_fallthru
          _
        // Predicated region
        $region33: #{dime_predictor_forward.1} parent=11 // pred_check
          %p520 = pneg %p233
        $region34: #{dime_predictor_forward.1} parent=11 // pred_check_branch
          %522 = sbr.rel (%p520) target = $region36
        $region35: #{dime_predictor_forward.1} parent=11 // pred_region
          _
        $region36: #{dime_predictor_forward.1} parent=11 // pred_fallthru
          _
        // Predicated region
        $region37: #{dime_predictor_forward.1} parent=11 // pred_check
          %p523 = pneg %p254
        $region38: #{dime_predictor_forward.1} parent=11 // pred_check_branch
          %525 = sbr.rel (%p523) target = $region40
        $region39: #{dime_predictor_forward.1} parent=11 // pred_region
          _
        $region40: #{dime_predictor_forward.1} parent=11 // pred_fallthru
          _
        // Predicated region
        $region41: #{dime_predictor_forward.1} parent=11 // pred_check
          %p526 = pneg %p275
        $region42: #{dime_predictor_forward.1} parent=11 // pred_check_branch
          %528 = sbr.rel (%p526) target = $region44
        $region43: #{dime_predictor_forward.1} parent=11 // pred_region
          _
        $region44: #{dime_predictor_forward.1} parent=11 // pred_fallthru
          _
        // Predicated region
        $region45: #{dime_predictor_forward.1} parent=11 // pred_check
          %p529 = pneg %p296
        $region46: #{dime_predictor_forward.1} parent=11 // pred_check_branch
          %531 = sbr.rel (%p529) target = $region48
        $region47: #{dime_predictor_forward.1} parent=11 // pred_region
          _
        $region48: #{dime_predictor_forward.1} parent=11 // pred_fallthru
          _
        // Predicated region
        $region49: #{dime_predictor_forward.1} parent=11 // pred_check
          %p532 = pneg %p317
        $region50: #{dime_predictor_forward.1} parent=11 // pred_check_branch
          %534 = sbr.rel (%p532) target = $region52
        $region51: #{dime_predictor_forward.1} parent=11 // pred_region
          _
        $region52: #{dime_predictor_forward.1} parent=11 // pred_fallthru
          _
        // Predicated region
        $region53: #{dime_predictor_forward.1} parent=11 // pred_check
          %p535 = pneg %p338
        $region54: #{dime_predictor_forward.1} parent=11 // pred_check_branch
          %537 = sbr.rel (%p535) target = $region56
        $region55: #{dime_predictor_forward.1} parent=11 // pred_region
          _
        $region56: #{dime_predictor_forward.1} parent=11 // pred_fallthru
          _
        // Predicated region
        $region57: #{dime_predictor_forward.1} parent=11 // pred_check
          %p538 = pneg %p359
        $region58: #{dime_predictor_forward.1} parent=11 // pred_check_branch
          %540 = sbr.rel (%p538) target = $region60
        $region59: #{dime_predictor_forward.1} parent=11 // pred_region
          _
        $region60: #{dime_predictor_forward.1} parent=11 // pred_fallthru
          _
        // Predicated region
        $region61: #{dime_predictor_forward.1} parent=11 // pred_check
          %p541 = pneg %p380
        $region62: #{dime_predictor_forward.1} parent=11 // pred_check_branch
          %543 = sbr.rel (%p541) target = $region64
        $region63: #{dime_predictor_forward.1} parent=11 // pred_region
          _
        $region64: #{dime_predictor_forward.1} parent=11 // pred_fallthru
          _
        // Predicated region
        $region65: #{dime_predictor_forward.1} parent=11 // pred_check
          %p544 = pneg %p401
        $region66: #{dime_predictor_forward.1} parent=11 // pred_check_branch
          %546 = sbr.rel (%p544) target = $region68
        $region67: #{dime_predictor_forward.1} parent=11 // pred_region
          _
        $region68: #{dime_predictor_forward.1} parent=11 // pred_fallthru
          _
        // Predicated region
        $region69: #{dime_predictor_forward.1} parent=11 // pred_check
          %p547 = pneg %p422
        $region70: #{dime_predictor_forward.1} parent=11 // pred_check_branch
          %549 = sbr.rel (%p547) target = $region72
        $region71: #{dime_predictor_forward.1} parent=11 // pred_region
          _
        $region72: #{dime_predictor_forward.1} parent=11 // pred_fallthru
          _
        // Predicated region
        $region73: #{dime_predictor_forward.1} parent=11 // pred_check
          %p550 = pneg %p443
        $region74: #{dime_predictor_forward.1} parent=11 // pred_check_branch
          %552 = sbr.rel (%p550) target = $region76
        $region75: #{dime_predictor_forward.1} parent=11 // pred_region
          _
        $region76: #{dime_predictor_forward.1} parent=11 // pred_fallthru
          _
        // Predicated region
        $region77: #{dime_predictor_forward.1} parent=11 // pred_check
          %p553 = pneg %p464
        $region78: #{dime_predictor_forward.1} parent=11 // pred_check_branch
          %555 = sbr.rel (%p553) target = $region80
        $region79: #{dime_predictor_forward.1} parent=11 // pred_region
          _
        $region80: #{dime_predictor_forward.1} parent=11 // pred_fallthru
          _
      $region12: #{dime_predictor_forward.1} parent=5 // pred_fallthru
        _
      %p556 = scmp.lt.s32.totalorder %s29, 8
      // Predicated region
      $region81: #{dime_predictor_forward.1} parent=5 // pred_check
        %p557 = pneg %p556
      $region82: #{dime_predictor_forward.1} parent=5 // pred_check_branch
        %559 = sbr.rel (%p557) target = $region84
      $region83: #{dime_predictor_forward.1} parent=5 // pred_region
        // Predicated region
        $region85: #{dime_predictor_forward.1} parent=83 // pred_check
          %p560 = pneg %p49
        $region86: #{dime_predictor_forward.1} parent=83 // pred_check_branch
          %562 = sbr.rel (%p560) target = $region88
        $region87: #{dime_predictor_forward.1} parent=83 // pred_region
          %p563 = scmp.lt.s32.totalorder %s29, 7
          %s564 = scalar_select %p563, %s29, 7
          %s565 = smul.addr %s564, 7
          %s566 = smul.addr %s565, 4
          %s567 = scalar_lea.vmem %s0, %s566
        $region88: #{dime_predictor_forward.1} parent=83 // pred_fallthru
          _
        // Predicated region
        $region89: #{dime_predictor_forward.1} parent=83 // pred_check
          %p568 = pneg %p75
        $region90: #{dime_predictor_forward.1} parent=83 // pred_check_branch
          %570 = sbr.rel (%p568) target = $region92
        $region91: #{dime_predictor_forward.1} parent=83 // pred_region
          %p571 = scmp.lt.s32.totalorder %s29, 7
          %s572 = scalar_select %p571, %s29, 7
          %s573 = smul.addr %s572, 42
          %s574 = smul.addr %s573, 4
          %s575 = scalar_lea.vmem %s1, %s574
        $region92: #{dime_predictor_forward.1} parent=83 // pred_fallthru
          _
        // Predicated region
        $region93: #{dime_predictor_forward.1} parent=83 // pred_check
          %p576 = pneg %p101
        $region94: #{dime_predictor_forward.1} parent=83 // pred_check_branch
          %578 = sbr.rel (%p576) target = $region96
        $region95: #{dime_predictor_forward.1} parent=83 // pred_region
          %p579 = scmp.lt.s32.totalorder %s29, 7
          %s580 = scalar_select %p579, %s29, 7
          %s581 = smul.addr %s580, 4
          %s582 = scalar_lea.vmem %s2, %s581
        $region96: #{dime_predictor_forward.1} parent=83 // pred_fallthru
          _
      $region84: #{dime_predictor_forward.1} parent=5 // pred_fallthru
        _
      %p583 = scmp.le.s32.totalorder 1, %s29
      %p584 = scmp.lt.s32.totalorder %s29, 9
      %p585 = pnand %p583, %p584
      %p586 = pneg %p585
      // Predicated region
      $region97: #{dime_predictor_forward.1} parent=5 // pred_check
        _
      $region98: #{dime_predictor_forward.1} parent=5 // pred_check_branch
        %588 = sbr.rel (%p585) target = $region100
      $region99: #{dime_predictor_forward.1} parent=5 // pred_region
        %s589 = ssub.s32 %s29, 1
        %p590 = scmp.lt.s32.totalorder %s34, 7
        %s591 = scalar_select %p590, %s34, 7
        %s592 = smul.addr %s591, 7
        %s593 = smul.addr %s592, 4
        %s594 = scalar_lea.vmem %s0, %s593
        %p595 = pneg %p55
        %p596 = pneg %p52
        %p597 = scmp.lt.s32.totalorder %s34, 7
        %s598 = scalar_select %p597, %s34, 7
        %s599 = smul.addr %s598, 42
        %s600 = smul.addr %s599, 4
        %s601 = scalar_lea.vmem %s1, %s600
        %p602 = pneg %p81
        %p603 = pneg %p78
        %p604 = scmp.lt.s32.totalorder %s34, 7
        %s605 = scalar_select %p604, %s34, 7
        %s606 = smul.addr %s605, 4
        %s607 = scalar_lea.vmem %s2, %s606
        %p608 = pneg %p107
        %p609 = pneg %p104
        %p610 = pneg %p128
        %p611 = pneg %p125
        %p612 = pneg %p149
        %p613 = pneg %p146
        %p614 = pneg %p170
        %p615 = pneg %p167
        %p616 = pneg %p191
        %p617 = pneg %p188
        %p618 = pneg %p212
        %p619 = pneg %p209
        %p620 = pneg %p233
        %p621 = pneg %p230
        %p622 = pneg %p254
        %p623 = pneg %p251
        %p624 = pneg %p275
        %p625 = pneg %p272
        %p626 = pneg %p296
        %p627 = pneg %p293
        %p628 = pneg %p317
        %p629 = pneg %p314
        %p630 = pneg %p338
        %p631 = pneg %p335
        %p632 = pneg %p359
        %p633 = pneg %p356
        %p634 = pneg %p380
        %p635 = pneg %p377
        %p636 = pneg %p401
        %p637 = pneg %p398
        %p638 = pneg %p422
        %p639 = pneg %p419
        %p640 = pneg %p443
        %p641 = pneg %p440
        %p642 = pneg %p464
        %p643 = pneg %p461
        %p644 = pneg %p490
        %p645 = pneg %p487
        %s646 = sand.u32 %s477, 1
        %s647 = scalar_lea.sflag [#allocation3], %s646
        %s648 = sand.u32 %s477, 1
        %s649 = scalar_lea.vmem [#allocation2], %s648
        %p650 = scmp.lt.s32.totalorder %s34, 7
        %s651 = scalar_select %p650, %s34, 7
        %s652 = smul.addr %s651, 7
        %s653 = smul.addr %s652, 4
        %s654 = scalar_lea.vmem %s0, %s653
        %p655 = scmp.lt.s32.totalorder %s34, 7
        %s656 = scalar_select %p655, %s34, 7
        %s657 = smul.addr %s656, 42
        %s658 = smul.addr %s657, 4
        %s659 = scalar_lea.vmem %s1, %s658
        %p660 = scmp.lt.s32.totalorder %s34, 7
        %s661 = scalar_select %p660, %s34, 7
        %s662 = smul.addr %s661, 4
        %s663 = scalar_lea.vmem %s2, %s662
        %v665 = vld [vmem:[%s654] sm:$0xf]
        %v666 = vld [vmem:[%s654 + $0x4] sm:$0xf]
        %v667 = vld [vmem:[%s654 + $0x8] sm:$0xf]
        %v668 = vld [vmem:[%s654 + $0xc] sm:$0xf]
        %v669 = vld [vmem:[%s654 + $0x10] sm:$0xf]
        %v670 = vld [vmem:[%s654 + $0x14] sm:$0xf]
        %v671 = vld [vmem:[%s654 + $0x18] sm:$0xf]
        %v672 = vld [vmem:[%s659] sm:$0xf]
        %v673 = vld [vmem:[%s659 + $0x4] sm:$0xf]
        %v674 = vld [vmem:[%s659 + $0x8] sm:$0xf]
        %v675 = vld [vmem:[%s659 + $0xc] sm:$0xf]
        %v676 = vld [vmem:[%s659 + $0x10] sm:$0xf]
        %v677 = vld [vmem:[%s659 + $0x14] sm:$0xf]
        %v678 = vld [vmem:[%s659 + $0x18] sm:$0xf]
        %v679 = vld [vmem:[%s659 + $0x1c] sm:$0xf]
        %v680 = vld [vmem:[%s659 + $0x20] sm:$0xf]
        %v681 = vld [vmem:[%s659 + $0x24] sm:$0xf]
        %v682 = vld [vmem:[%s659 + $0x28] sm:$0xf]
        %v683 = vld [vmem:[%s659 + $0x2c] sm:$0xf]
        %v684 = vld [vmem:[%s659 + $0x30] sm:$0xf]
        %v685 = vld [vmem:[%s659 + $0x34] sm:$0xf]
        %v686 = vld [vmem:[%s659 + $0x38] sm:$0xf]
        %v687 = vld [vmem:[%s659 + $0x3c] sm:$0xf]
        %v688 = vld [vmem:[%s659 + $0x40] sm:$0xf]
        %v689 = vld [vmem:[%s659 + $0x44] sm:$0xf]
        %v690 = vld [vmem:[%s659 + $0x48] sm:$0xf]
        %v691 = vld [vmem:[%s659 + $0x4c] sm:$0xf]
        %v692 = vld [vmem:[%s659 + $0x50] sm:$0xf]
        %v693 = vld [vmem:[%s659 + $0x54] sm:$0xf]
        %v694 = vld [vmem:[%s659 + $0x58] sm:$0xf]
        %v695 = vld [vmem:[%s659 + $0x5c] sm:$0xf]
        %v696 = vld [vmem:[%s659 + $0x60] sm:$0xf]
        %v697 = vld [vmem:[%s659 + $0x64] sm:$0xf]
        %v698 = vld [vmem:[%s659 + $0x68] sm:$0xf]
        %v699 = vld [vmem:[%s659 + $0x6c] sm:$0xf]
        %v700 = vld [vmem:[%s659 + $0x70] sm:$0xf]
        %v701 = vld [vmem:[%s659 + $0x74] sm:$0xf]
        %v702 = vld [vmem:[%s659 + $0x78] sm:$0xf]
        %v703 = vld [vmem:[%s659 + $0x7c] sm:$0xf]
        %v704 = vld [vmem:[%s659 + $0x80] sm:$0xf]
        %v705 = vld [vmem:[%s659 + $0x84] sm:$0xf]
        %v706 = vld [vmem:[%s659 + $0x88] sm:$0xf]
        %v707 = vld [vmem:[%s659 + $0x8c] sm:$0xf]
        %v708 = vld [vmem:[%s659 + $0x90] sm:$0xf]
        %v709 = vld [vmem:[%s659 + $0x94] sm:$0xf]
        %v710 = vld [vmem:[%s659 + $0x98] sm:$0xf]
        %v711 = vld [vmem:[%s659 + $0x9c] sm:$0xf]
        %v712 = vld [vmem:[%s659 + $0xa0] sm:$0xf]
        %v713 = vld [vmem:[%s659 + $0xa4] sm:$0xf]
        %v714 = vld [vmem:[%s663] sm:$0xf]
        %v715 = vld [vmem:[%s3] sm:$0xf]
        %v716 = vld [vmem:[%s3 + $0x4] sm:$0xf]
        %v717 = vld [vmem:[%s3 + $0x8] sm:$0xf]
        %v718 = vld [vmem:[%s3 + $0xc] sm:$0xf]
        %v719 = vld [vmem:[%s3 + $0x10] sm:$0xf]
        %v720 = vld [vmem:[%s3 + $0x14] sm:$0xf]
        %v721 = vld [vmem:[%s3 + $0x18] sm:$0xf]
        %v722 = vld [vmem:[%s4] sm:$0xf]
        %v723 = vld [vmem:[%s4 + $0x4] sm:$0xf]
        %v724 = vld [vmem:[%s4 + $0x8] sm:$0xf]
        %v725 = vld [vmem:[%s4 + $0xc] sm:$0xf]
        %v726 = vld [vmem:[%s4 + $0x10] sm:$0xf]
        %v727 = vld [vmem:[%s4 + $0x14] sm:$0xf]
        %v728 = vld [vmem:[%s4 + $0x18] sm:$0xf]
        %v729 = vld [vmem:[%s5] sm:$0xf]
        %v730 = vld [vmem:[%s6] sm:$0xf]
        %v731 = vld [vmem:[%s6 + $0x4] sm:$0xf]
        %v732 = vld [vmem:[%s6 + $0x8] sm:$0xf]
        %v733 = vld [vmem:[%s6 + $0xc] sm:$0xf]
        %v734 = vld [vmem:[%s6 + $0x10] sm:$0xf]
        %v735 = vld [vmem:[%s6 + $0x14] sm:$0xf]
        %v736 = vld [vmem:[%s6 + $0x18] sm:$0xf]
        %v737 = vld [vmem:[%s6 + $0x1c] sm:$0xf]
        %v738 = vld [vmem:[%s6 + $0x20] sm:$0xf]
        %v739 = vld [vmem:[%s6 + $0x24] sm:$0xf]
        %v740 = vld [vmem:[%s6 + $0x28] sm:$0xf]
        %v741 = vld [vmem:[%s6 + $0x2c] sm:$0xf]
        %v742 = vld [vmem:[%s6 + $0x30] sm:$0xf]
        %v743 = vld [vmem:[%s6 + $0x34] sm:$0xf]
        %v744 = vld [vmem:[%s6 + $0x38] sm:$0xf]
        %v745 = vld [vmem:[%s6 + $0x3c] sm:$0xf]
        %v746 = vld [vmem:[%s6 + $0x40] sm:$0xf]
        %v747 = vld [vmem:[%s6 + $0x44] sm:$0xf]
        %v748 = vld [vmem:[%s6 + $0x48] sm:$0xf]
        %v749 = vld [vmem:[%s6 + $0x4c] sm:$0xf]
        %v750 = vld [vmem:[%s6 + $0x50] sm:$0xf]
        %v751 = vld [vmem:[%s6 + $0x54] sm:$0xf]
        %v752 = vld [vmem:[%s6 + $0x58] sm:$0xf]
        %v753 = vld [vmem:[%s6 + $0x5c] sm:$0xf]
        %v754 = vld [vmem:[%s6 + $0x60] sm:$0xf]
        %v755 = vld [vmem:[%s6 + $0x64] sm:$0xf]
        %v756 = vld [vmem:[%s6 + $0x68] sm:$0xf]
        %v757 = vld [vmem:[%s6 + $0x6c] sm:$0xf]
        %v758 = vld [vmem:[%s6 + $0x70] sm:$0xf]
        %v759 = vld [vmem:[%s6 + $0x74] sm:$0xf]
        %v760 = vld [vmem:[%s6 + $0x78] sm:$0xf]
        %v761 = vld [vmem:[%s6 + $0x7c] sm:$0xf]
        %v762 = vld [vmem:[%s6 + $0x80] sm:$0xf]
        %v763 = vld [vmem:[%s6 + $0x84] sm:$0xf]
        %v764 = vld [vmem:[%s6 + $0x88] sm:$0xf]
        %v765 = vld [vmem:[%s6 + $0x8c] sm:$0xf]
        %v766 = vld [vmem:[%s6 + $0x90] sm:$0xf]
        %v767 = vld [vmem:[%s6 + $0x94] sm:$0xf]
        %v768 = vld [vmem:[%s6 + $0x98] sm:$0xf]
        %v769 = vld [vmem:[%s6 + $0x9c] sm:$0xf]
        %v770 = vld [vmem:[%s6 + $0xa0] sm:$0xf]
        %v771 = vld [vmem:[%s6 + $0xa4] sm:$0xf]
        %v772 = vld [vmem:[%s7] sm:$0xff]
        %v773 = vld [vmem:[%s7 + $0x8] sm:$0xf]
        %v774 = vld [vmem:[%s7 + $0xc] sm:$0xff]
        %v775 = vld [vmem:[%s7 + $0x14] sm:$0xf]
        %v776 = vld [vmem:[%s7 + $0x18] sm:$0xff]
        %v777 = vld [vmem:[%s7 + $0x20] sm:$0xf]
        %v778 = vld [vmem:[%s7 + $0x24] sm:$0xff]
        %v779 = vld [vmem:[%s7 + $0x2c] sm:$0xf]
        %v780 = vld [vmem:[%s7 + $0x30] sm:$0xff]
        %v781 = vld [vmem:[%s7 + $0x38] sm:$0xf]
        %v782 = vld [vmem:[%s7 + $0x3c] sm:$0xff]
        %v783 = vld [vmem:[%s7 + $0x44] sm:$0xf]
        %v784 = vld [vmem:[%s7 + $0x48] sm:$0xff]
        %v785 = vld [vmem:[%s7 + $0x50] sm:$0xf]
        %v786 = vld [vmem:[%s8] sm:$0xf]
        %v787 = vld [vmem:[%s8 + $0x4] sm:$0xf]
        %v788 = vld [vmem:[%s8 + $0x8] sm:$0xf]
        %v789 = vld [vmem:[%s8 + $0xc] sm:$0xf]
        %v790 = vld [vmem:[%s8 + $0x10] sm:$0xf]
        %v791 = vld [vmem:[%s8 + $0x14] sm:$0xf]
        %v792 = vld [vmem:[%s8 + $0x18] sm:$0xf]
        %v793 = vld [vmem:[%s8 + $0x1c] sm:$0xf]
        %v794 = vld [vmem:[%s8 + $0x20] sm:$0xf]
        %v795 = vld [vmem:[%s8 + $0x24] sm:$0xf]
        %v796 = vld [vmem:[%s8 + $0x28] sm:$0xf]
        %v797 = vld [vmem:[%s8 + $0x2c] sm:$0xf]
        %v798 = vld [vmem:[%s8 + $0x30] sm:$0xf]
        %v799 = vld [vmem:[%s8 + $0x34] sm:$0xf]
        %v800 = vld [vmem:[%s8 + $0x38] sm:$0xf]
        %v801 = vld [vmem:[%s8 + $0x3c] sm:$0xf]
        %v802 = vld [vmem:[%s8 + $0x40] sm:$0xf]
        %v803 = vld [vmem:[%s8 + $0x44] sm:$0xf]
        %v804 = vld [vmem:[%s8 + $0x48] sm:$0xf]
        %v805 = vld [vmem:[%s8 + $0x4c] sm:$0xf]
        %v806 = vld [vmem:[%s8 + $0x50] sm:$0xf]
        %v807 = vld [vmem:[%s8 + $0x54] sm:$0xf]
        %v808 = vld [vmem:[%s8 + $0x58] sm:$0xf]
        %v809 = vld [vmem:[%s8 + $0x5c] sm:$0xf]
        %v810 = vld [vmem:[%s8 + $0x60] sm:$0xf]
        %v811 = vld [vmem:[%s8 + $0x64] sm:$0xf]
        %v812 = vld [vmem:[%s8 + $0x68] sm:$0xf]
        %v813 = vld [vmem:[%s8 + $0x6c] sm:$0xf]
        %v814 = vld [vmem:[%s8 + $0x70] sm:$0xf]
        %v815 = vld [vmem:[%s8 + $0x74] sm:$0xf]
        %v816 = vld [vmem:[%s8 + $0x78] sm:$0xf]
        %v817 = vld [vmem:[%s8 + $0x7c] sm:$0xf]
        %v818 = vld [vmem:[%s9] sm:$0xff]
        %v819 = vld [vmem:[%s10] sm:$0x3]
        %v821 = vlaneseq
        %v822 = vshrl.u32 %v821, 7
        %v823 = vsub.s32 0, %v822
        %v824 = vrot.slane %v819, %v823
        %v825 = vlaneseq
        %v826 = vshrl.u32 %v825, 7
        %v827 = vsub.s32 1, %v826
        %v828 = vrot.slane %v819, %v827
        %v838 = vunpack.c.l.b16 %v665
        %v839 = vunpack.c.l.b16 %v666
        %v840 = vunpack.c.l.b16 %v667
        %v841 = vunpack.c.l.b16 %v668
        %v842 = vunpack.c.l.b16 %v669
        %v843 = vunpack.c.l.b16 %v670
        %v844 = vunpack.c.l.b16 %v671
        %v845 = vpack.c.b16 %v839, %v838
        %v846 = vpack.c.b16 %v841, %v840
        %v847 = vpack.c.b16 %v843, %v842
        %v848 = vpack.c.b16 %v844, %v844
        %v850 = vunpack.c.l.b16 %v818
        %v851 = vunpack.c.h.b16 %v818
        %v852 = vpack.c.b16 %v850, %v850
        %v853 = vpack.c.b16 %v851, %v851
        %vm854 = vcmask 64512
        %v856 = vsel %vm854, %v845, 0
        %v859 = vsel %vm854, %v846, 0
        %v862 = vsel %vm854, %v847, 0
        %v865 = vsel %vm854, %v848, 0
        %vm867 = vcmask 1043456
        %v869 = vsel %vm867, %v852, 0
        %v872 = vsel %vm867, %v853, 0
        %874 = vmatprep.subr.bf16.mxu0 %v872
        %875 = vmatpush1.bf16.msra.mxu0 %v869
        %876 = vmatprep.subr.bf16.mxu0 0
        %877 = vmatpush1.bf16.msra.mxu0 0
        %878 = vmatprep.subr.bf16.mxu0 0
        %879 = vmatpush1.bf16.msra.mxu0 0
        %880 = vmatprep.subr.bf16.mxu0 0
        %881 = vmatpush1.bf16.msra.mxu0 0
        %882 = vmatprep.subr.bf16.mxu0 0
        %883 = vmatpush1.bf16.msra.mxu0 0
        %884 = vmatprep.subr.bf16.mxu0 0
        %885 = vmatpush1.bf16.msra.mxu0 0
        %886 = vmatprep.subr.bf16.mxu0 0
        %887 = vmatpush1.bf16.msra.mxu0 0
        %888 = vmatprep.subr.bf16.mxu0 0
        %889 = vmatpush1.bf16.msra.mxu0 0
        %890 = vmatprep.subr.bf16.mxu0 0
        %891 = vmatpush1.bf16.msra.mxu0 0
        %892 = vmatprep.subr.bf16.mxu0 0
        %893 = vmatpush1.bf16.msra.mxu0 0
        %894 = vmatprep.subr.bf16.mxu0 0
        %895 = vmatpush1.bf16.msra.mxu0 0
        %896 = vmatprep.subr.bf16.mxu0 0
        %897 = vmatpush1.bf16.msra.mxu0 0
        %898 = vmatprep.subr.bf16.mxu0 0
        %899 = vmatpush1.bf16.msra.mxu0 0
        %900 = vmatprep.subr.bf16.mxu0 0
        %901 = vmatpush1.bf16.msra.mxu0 0
        %902 = vmatprep.subr.bf16.mxu0 0
        %903 = vmatpush1.bf16.msra.mxu0 0
        %904 = vmatprep.subr.bf16.mxu0 0
        %905 = vmatpush1.bf16.msra.mxu0 0
        %906 = vmatprep.mubr.bf16.mxu0 0
        %907 = vmatmul.mubr.bf16.gmra.mrb[0].mxu0 %v856
        %v908 = vpop.f32.mrb[0].mxu0
        %v909 = vadd.f32 %v824, %v908
        %v910 = vpop.f32.mrb[0].mxu0
        %v911 = vadd.f32 %v828, %v910
        %v912 = vpop.f32.mrb[0].mxu0
        %v913 = vadd.f32 %v824, %v912
        %v914 = vpop.f32.mrb[0].mxu0
        %v915 = vadd.f32 %v828, %v914
        %916 = vmatprep.mubr.bf16.mxu0 0
        %917 = vmatmul.mubr.bf16.gmra.mrb[0].mxu0 %v859
        %v918 = vpop.f32.mrb[0].mxu0
        %v919 = vadd.f32 %v824, %v918
        %v920 = vpop.f32.mrb[0].mxu0
        %v921 = vadd.f32 %v828, %v920
        %v922 = vpop.f32.mrb[0].mxu0
        %v923 = vadd.f32 %v824, %v922
        %v924 = vpop.f32.mrb[0].mxu0
        %v925 = vadd.f32 %v828, %v924
        %926 = vmatprep.mubr.bf16.mxu0 0
        %927 = vmatmul.mubr.bf16.gmra.mrb[0].mxu0 %v862
        %v928 = vpop.f32.mrb[0].mxu0
        %v929 = vadd.f32 %v824, %v928
        %v930 = vpop.f32.mrb[0].mxu0
        %v931 = vadd.f32 %v828, %v930
        %v932 = vpop.f32.mrb[0].mxu0
        %v933 = vadd.f32 %v824, %v932
        %v934 = vpop.f32.mrb[0].mxu0
        %v935 = vadd.f32 %v828, %v934
        %936 = vmatprep.mubr.bf16.mxu0 0
        %937 = vmatmul.mubr.bf16.gmra.mrb[0].mxu0 %v865
        %v938 = vpop.f32.mrb[0].mxu0
        %v939 = vadd.f32 %v824, %v938
        %v940 = vpop.f32.mrb[0].mxu0
        %v941 = vadd.f32 %v828, %v940
        %v942 = vpop.f32.mrb[0].mxu0
        %v943 = vpop.f32.mrb[0].mxu0
        %944 = vdwg.mxu0
        %v945 = vld [vmem:[%s11] sm:$0xff]
        %v946 = vld [vmem:[%s11 + $0x8] sm:$0xff]
        %v947 = vld [vmem:[%s11 + $0x10] sm:$0xff]
        %v948 = vld [vmem:[%s11 + $0x18] sm:$0xff]
        %v949 = vld [vmem:[%s11 + $0x20] sm:$0xff]
        %v950 = vld [vmem:[%s11 + $0x28] sm:$0xff]
        %v951 = vld [vmem:[%s11 + $0x30] sm:$0xff]
        %v952 = vld [vmem:[%s11 + $0x38] sm:$0xff]
        %v995 = vunpack.c.l.b16 %v672
        %v996 = vunpack.c.l.b16 %v673
        %v997 = vunpack.c.l.b16 %v674
        %v998 = vunpack.c.l.b16 %v675
        %v999 = vunpack.c.l.b16 %v676
        %v1000 = vunpack.c.l.b16 %v677
        %v1001 = vunpack.c.l.b16 %v678
        %v1002 = vunpack.c.l.b16 %v679
        %v1003 = vunpack.c.l.b16 %v680
        %v1004 = vunpack.c.l.b16 %v681
        %v1005 = vunpack.c.l.b16 %v682
        %v1006 = vunpack.c.l.b16 %v683
        %v1007 = vunpack.c.l.b16 %v684
        %v1008 = vunpack.c.l.b16 %v685
        %v1009 = vunpack.c.l.b16 %v686
        %v1010 = vunpack.c.l.b16 %v687
        %v1011 = vunpack.c.l.b16 %v688
        %v1012 = vunpack.c.l.b16 %v689
        %v1013 = vunpack.c.l.b16 %v690
        %v1014 = vunpack.c.l.b16 %v691
        %v1015 = vunpack.c.l.b16 %v692
        %v1016 = vunpack.c.l.b16 %v693
        %v1017 = vunpack.c.l.b16 %v694
        %v1018 = vunpack.c.l.b16 %v695
        %v1019 = vunpack.c.l.b16 %v696
        %v1020 = vunpack.c.l.b16 %v697
        %v1021 = vunpack.c.l.b16 %v698
        %v1022 = vunpack.c.l.b16 %v699
        %v1023 = vunpack.c.l.b16 %v700
        %v1024 = vunpack.c.l.b16 %v701
        %v1025 = vunpack.c.l.b16 %v702
        %v1026 = vunpack.c.l.b16 %v703
        %v1027 = vunpack.c.l.b16 %v704
        %v1028 = vunpack.c.l.b16 %v705
        %v1029 = vunpack.c.l.b16 %v706
        %v1030 = vunpack.c.l.b16 %v707
        %v1031 = vunpack.c.l.b16 %v708
        %v1032 = vunpack.c.l.b16 %v709
        %v1033 = vunpack.c.l.b16 %v710
        %v1034 = vunpack.c.l.b16 %v711
        %v1035 = vunpack.c.l.b16 %v712
        %v1036 = vunpack.c.l.b16 %v713
        %v1037 = vpack.c.b16 %v996, %v995
        %v1038 = vpack.c.b16 %v998, %v997
        %v1039 = vpack.c.b16 %v1000, %v999
        %v1040 = vpack.c.b16 %v1002, %v1001
        %v1041 = vpack.c.b16 %v1004, %v1003
        %v1042 = vpack.c.b16 %v1006, %v1005
        %v1043 = vpack.c.b16 %v1008, %v1007
        %v1044 = vpack.c.b16 %v1010, %v1009
        %v1045 = vpack.c.b16 %v1012, %v1011
        %v1046 = vpack.c.b16 %v1014, %v1013
        %v1047 = vpack.c.b16 %v1016, %v1015
        %v1048 = vpack.c.b16 %v1018, %v1017
        %v1049 = vpack.c.b16 %v1020, %v1019
        %v1050 = vpack.c.b16 %v1022, %v1021
        %v1051 = vpack.c.b16 %v1024, %v1023
        %v1052 = vpack.c.b16 %v1026, %v1025
        %v1053 = vpack.c.b16 %v1028, %v1027
        %v1054 = vpack.c.b16 %v1030, %v1029
        %v1055 = vpack.c.b16 %v1032, %v1031
        %v1056 = vpack.c.b16 %v1034, %v1033
        %v1057 = vpack.c.b16 %v1036, %v1035
        %v1066 = vunpack.c.l.b16 %v945
        %v1067 = vunpack.c.h.b16 %v945
        %v1068 = vunpack.c.l.b16 %v946
        %v1069 = vunpack.c.h.b16 %v946
        %v1070 = vunpack.c.l.b16 %v947
        %v1071 = vunpack.c.h.b16 %v947
        %v1072 = vunpack.c.l.b16 %v948
        %v1073 = vunpack.c.h.b16 %v948
        %v1074 = vunpack.c.l.b16 %v949
        %v1075 = vunpack.c.h.b16 %v949
        %v1076 = vunpack.c.l.b16 %v950
        %v1077 = vunpack.c.h.b16 %v950
        %v1078 = vunpack.c.l.b16 %v951
        %v1079 = vunpack.c.h.b16 %v951
        %v1080 = vunpack.c.l.b16 %v952
        %v1081 = vunpack.c.h.b16 %v952
        %v1082 = vpack.c.b16 %v1070, %v1066
        %v1083 = vpack.c.b16 %v1071, %v1067
        %v1084 = vpack.c.b16 %v1072, %v1068
        %v1085 = vpack.c.b16 %v1073, %v1069
        %v1086 = vpack.c.b16 %v1078, %v1074
        %v1087 = vpack.c.b16 %v1079, %v1075
        %v1088 = vpack.c.b16 %v1080, %v1076
        %v1089 = vpack.c.b16 %v1081, %v1077
        %vm1098 = vcmask 261120
        %v1100 = vsel %vm1098, %v1037, 0
        %v1103 = vsel %vm1098, %v1038, 0
        %v1106 = vsel %vm1098, %v1039, 0
        %v1109 = vsel %vm1098, %v1040, 0
        %v1112 = vsel %vm1098, %v1041, 0
        %v1115 = vsel %vm1098, %v1042, 0
        %v1118 = vsel %vm1098, %v1043, 0
        %v1121 = vsel %vm1098, %v1044, 0
        %v1124 = vsel %vm1098, %v1045, 0
        %v1127 = vsel %vm1098, %v1046, 0
        %v1130 = vsel %vm1098, %v1047, 0
        %v1133 = vsel %vm1098, %v1048, 0
        %v1136 = vsel %vm1098, %v1049, 0
        %v1139 = vsel %vm1098, %v1050, 0
        %v1142 = vsel %vm1098, %v1051, 0
        %v1145 = vsel %vm1098, %v1052, 0
        %v1148 = vsel %vm1098, %v1053, 0
        %v1151 = vsel %vm1098, %v1054, 0
        %v1154 = vsel %vm1098, %v1055, 0
        %v1157 = vsel %vm1098, %v1056, 0
        %v1160 = vsel %vm1098, %v1057, 0
        %1162 = vmatprep.subr.bf16.mxu0 %v1083
        %1163 = vmatpush1.bf16.msra.mxu0 %v1082
        %1164 = vmatprep.subr.bf16.mxu0 %v1087
        %1165 = vmatpush1.bf16.msra.mxu0 %v1086
        %1166 = vmatprep.subr.bf16.mxu0 0
        %1167 = vmatpush1.bf16.msra.mxu0 0
        %1168 = vmatprep.subr.bf16.mxu0 0
        %1169 = vmatpush1.bf16.msra.mxu0 0
        %1170 = vmatprep.subr.bf16.mxu0 0
        %1171 = vmatpush1.bf16.msra.mxu0 0
        %1172 = vmatprep.subr.bf16.mxu0 0
        %1173 = vmatpush1.bf16.msra.mxu0 0
        %1174 = vmatprep.subr.bf16.mxu0 0
        %1175 = vmatpush1.bf16.msra.mxu0 0
        %1176 = vmatprep.subr.bf16.mxu0 0
        %1177 = vmatpush1.bf16.msra.mxu0 0
        %1178 = vmatprep.subr.bf16.mxu0 0
        %1179 = vmatpush1.bf16.msra.mxu0 0
        %1180 = vmatprep.subr.bf16.mxu0 0
        %1181 = vmatpush1.bf16.msra.mxu0 0
        %1182 = vmatprep.subr.bf16.mxu0 0
        %1183 = vmatpush1.bf16.msra.mxu0 0
        %1184 = vmatprep.subr.bf16.mxu0 0
        %1185 = vmatpush1.bf16.msra.mxu0 0
        %1186 = vmatprep.subr.bf16.mxu0 0
        %1187 = vmatpush1.bf16.msra.mxu0 0
        %1188 = vmatprep.subr.bf16.mxu0 0
        %1189 = vmatpush1.bf16.msra.mxu0 0
        %1190 = vmatprep.subr.bf16.mxu0 0
        %1191 = vmatpush1.bf16.msra.mxu0 0
        %1192 = vmatprep.subr.bf16.mxu0 0
        %1193 = vmatpush1.bf16.msra.mxu0 0
        %1194 = vmatprep.mubr.bf16.mxu0 0
        %1195 = vmatmul.mubr.bf16.gmra.mrb[0].mxu0 %v1100
        %v1196 = vpop.f32.mrb[0].mxu0
        %v1197 = vadd.f32 0.0, %v1196
        %v1198 = vpop.f32.mrb[0].mxu0
        %v1199 = vadd.f32 0.0, %v1198
        %v1200 = vpop.f32.mrb[0].mxu0
        %v1201 = vadd.f32 0.0, %v1200
        %v1202 = vpop.f32.mrb[0].mxu0
        %v1203 = vadd.f32 0.0, %v1202
        %1204 = vmatprep.mubr.bf16.mxu0 0
        %1205 = vmatmul.mubr.bf16.gmra.mrb[0].mxu0 %v1103
        %v1206 = vpop.f32.mrb[0].mxu0
        %v1207 = vadd.f32 0.0, %v1206
        %v1208 = vpop.f32.mrb[0].mxu0
        %v1209 = vadd.f32 0.0, %v1208
        %v1210 = vpop.f32.mrb[0].mxu0
        %v1211 = vadd.f32 0.0, %v1210
        %v1212 = vpop.f32.mrb[0].mxu0
        %v1213 = vadd.f32 0.0, %v1212
        %1214 = vmatprep.mubr.bf16.mxu0 0
        %1215 = vmatmul.mubr.bf16.gmra.mrb[0].mxu0 %v1106
        %v1216 = vpop.f32.mrb[0].mxu0
        %v1217 = vadd.f32 0.0, %v1216
        %v1218 = vpop.f32.mrb[0].mxu0
        %v1219 = vadd.f32 0.0, %v1218
        %v1220 = vpop.f32.mrb[0].mxu0
        %v1221 = vadd.f32 0.0, %v1220
        %v1222 = vpop.f32.mrb[0].mxu0
        %v1223 = vadd.f32 0.0, %v1222
        %1224 = vmatprep.mubr.bf16.mxu0 0
        %1225 = vmatmul.mubr.bf16.gmra.mrb[0].mxu0 %v1109
        %v1226 = vpop.f32.mrb[0].mxu0
        %v1227 = vadd.f32 0.0, %v1226
        %v1228 = vpop.f32.mrb[0].mxu0
        %v1229 = vadd.f32 0.0, %v1228
        %v1230 = vpop.f32.mrb[0].mxu0
        %v1231 = vadd.f32 0.0, %v1230
        %v1232 = vpop.f32.mrb[0].mxu0
        %v1233 = vadd.f32 0.0, %v1232
        %1234 = vmatprep.mubr.bf16.mxu0 0
        %1235 = vmatmul.mubr.bf16.gmra.mrb[0].mxu0 %v1112
        %v1236 = vpop.f32.mrb[0].mxu0
        %v1237 = vadd.f32 0.0, %v1236
        %v1238 = vpop.f32.mrb[0].mxu0
        %v1239 = vadd.f32 0.0, %v1238
        %v1240 = vpop.f32.mrb[0].mxu0
        %v1241 = vadd.f32 0.0, %v1240
        %v1242 = vpop.f32.mrb[0].mxu0
        %v1243 = vadd.f32 0.0, %v1242
        %1244 = vmatprep.mubr.bf16.mxu0 0
        %1245 = vmatmul.mubr.bf16.gmra.mrb[0].mxu0 %v1115
        %v1246 = vpop.f32.mrb[0].mxu0
        %v1247 = vadd.f32 0.0, %v1246
        %v1248 = vpop.f32.mrb[0].mxu0
        %v1249 = vadd.f32 0.0, %v1248
        %v1250 = vpop.f32.mrb[0].mxu0
        %v1251 = vadd.f32 0.0, %v1250
        %v1252 = vpop.f32.mrb[0].mxu0
        %v1253 = vadd.f32 0.0, %v1252
        %1254 = vmatprep.mubr.bf16.mxu0 0
        %1255 = vmatmul.mubr.bf16.gmra.mrb[0].mxu0 %v1118
        %v1256 = vpop.f32.mrb[0].mxu0
        %v1257 = vadd.f32 0.0, %v1256
        %v1258 = vpop.f32.mrb[0].mxu0
        %v1259 = vadd.f32 0.0, %v1258
        %v1260 = vpop.f32.mrb[0].mxu0
        %v1261 = vadd.f32 0.0, %v1260
        %v1262 = vpop.f32.mrb[0].mxu0
        %v1263 = vadd.f32 0.0, %v1262
        %1264 = vmatprep.mubr.bf16.mxu0 0
        %1265 = vmatmul.mubr.bf16.gmra.mrb[0].mxu0 %v1121
        %v1266 = vpop.f32.mrb[0].mxu0
        %v1267 = vadd.f32 0.0, %v1266
        %v1268 = vpop.f32.mrb[0].mxu0
        %v1269 = vadd.f32 0.0, %v1268
        %v1270 = vpop.f32.mrb[0].mxu0
        %v1271 = vadd.f32 0.0, %v1270
        %v1272 = vpop.f32.mrb[0].mxu0
        %v1273 = vadd.f32 0.0, %v1272
        %1274 = vmatprep.mubr.bf16.mxu0 0
        %1275 = vmatmul.mubr.bf16.gmra.mrb[0].mxu0 %v1124
        %v1276 = vpop.f32.mrb[0].mxu0
        %v1277 = vadd.f32 0.0, %v1276
        %v1278 = vpop.f32.mrb[0].mxu0
        %v1279 = vadd.f32 0.0, %v1278
        %v1280 = vpop.f32.mrb[0].mxu0
        %v1281 = vadd.f32 0.0, %v1280
        %v1282 = vpop.f32.mrb[0].mxu0
        %v1283 = vadd.f32 0.0, %v1282
        %1284 = vmatprep.mubr.bf16.mxu0 0
        %1285 = vmatmul.mubr.bf16.gmra.mrb[0].mxu0 %v1127
        %v1286 = vpop.f32.mrb[0].mxu0
        %v1287 = vadd.f32 0.0, %v1286
        %v1288 = vpop.f32.mrb[0].mxu0
        %v1289 = vadd.f32 0.0, %v1288
        %v1290 = vpop.f32.mrb[0].mxu0
        %v1291 = vadd.f32 0.0, %v1290
        %v1292 = vpop.f32.mrb[0].mxu0
        %v1293 = vadd.f32 0.0, %v1292
        %1294 = vmatprep.mubr.bf16.mxu0 0
        %1295 = vmatmul.mubr.bf16.gmra.mrb[0].mxu0 %v1130
        %v1296 = vpop.f32.mrb[0].mxu0
        %v1297 = vadd.f32 0.0, %v1296
        %v1298 = vpop.f32.mrb[0].mxu0
        %v1299 = vadd.f32 0.0, %v1298
        %v1300 = vpop.f32.mrb[0].mxu0
        %v1301 = vadd.f32 0.0, %v1300
        %v1302 = vpop.f32.mrb[0].mxu0
        %v1303 = vadd.f32 0.0, %v1302
        %1304 = vmatprep.mubr.bf16.mxu0 0
        %1305 = vmatmul.mubr.bf16.gmra.mrb[0].mxu0 %v1133
        %v1306 = vpop.f32.mrb[0].mxu0
        %v1307 = vadd.f32 0.0, %v1306
        %v1308 = vpop.f32.mrb[0].mxu0
        %v1309 = vadd.f32 0.0, %v1308
        %v1310 = vpop.f32.mrb[0].mxu0
        %v1311 = vadd.f32 0.0, %v1310
        %v1312 = vpop.f32.mrb[0].mxu0
        %v1313 = vadd.f32 0.0, %v1312
        %1314 = vmatprep.mubr.bf16.mxu0 0
        %1315 = vmatmul.mubr.bf16.gmra.mrb[0].mxu0 %v1136
        %v1316 = vpop.f32.mrb[0].mxu0
        %v1317 = vadd.f32 0.0, %v1316
        %v1318 = vpop.f32.mrb[0].mxu0
        %v1319 = vadd.f32 0.0, %v1318
        %v1320 = vpop.f32.mrb[0].mxu0
        %v1321 = vadd.f32 0.0, %v1320
        %v1322 = vpop.f32.mrb[0].mxu0
        %v1323 = vadd.f32 0.0, %v1322
        %1324 = vmatprep.mubr.bf16.mxu0 0
        %1325 = vmatmul.mubr.bf16.gmra.mrb[0].mxu0 %v1139
        %v1326 = vpop.f32.mrb[0].mxu0
        %v1327 = vadd.f32 0.0, %v1326
        %v1328 = vpop.f32.mrb[0].mxu0
        %v1329 = vadd.f32 0.0, %v1328
        %v1330 = vpop.f32.mrb[0].mxu0
        %v1331 = vadd.f32 0.0, %v1330
        %v1332 = vpop.f32.mrb[0].mxu0
        %v1333 = vadd.f32 0.0, %v1332
        %1334 = vmatprep.mubr.bf16.mxu0 0
        %1335 = vmatmul.mubr.bf16.gmra.mrb[0].mxu0 %v1142
        %v1336 = vpop.f32.mrb[0].mxu0
        %v1337 = vadd.f32 0.0, %v1336
        %v1338 = vpop.f32.mrb[0].mxu0
        %v1339 = vadd.f32 0.0, %v1338
        %v1340 = vpop.f32.mrb[0].mxu0
        %v1341 = vadd.f32 0.0, %v1340
        %v1342 = vpop.f32.mrb[0].mxu0
        %v1343 = vadd.f32 0.0, %v1342
        %1344 = vmatprep.mubr.bf16.mxu0 0
        %1345 = vmatmul.mubr.bf16.gmra.mrb[0].mxu0 %v1145
        %v1346 = vpop.f32.mrb[0].mxu0
        %v1347 = vadd.f32 0.0, %v1346
        %v1348 = vpop.f32.mrb[0].mxu0
        %v1349 = vadd.f32 0.0, %v1348
        %v1350 = vpop.f32.mrb[0].mxu0
        %v1351 = vadd.f32 0.0, %v1350
        %v1352 = vpop.f32.mrb[0].mxu0
        %v1353 = vadd.f32 0.0, %v1352
        %1354 = vmatprep.mubr.bf16.mxu0 0
        %1355 = vmatmul.mubr.bf16.gmra.mrb[0].mxu0 %v1148
        %v1356 = vpop.f32.mrb[0].mxu0
        %v1357 = vadd.f32 0.0, %v1356
        %v1358 = vpop.f32.mrb[0].mxu0
        %v1359 = vadd.f32 0.0, %v1358
        %v1360 = vpop.f32.mrb[0].mxu0
        %v1361 = vadd.f32 0.0, %v1360
        %v1362 = vpop.f32.mrb[0].mxu0
        %v1363 = vadd.f32 0.0, %v1362
        %1364 = vmatprep.mubr.bf16.mxu0 0
        %1365 = vmatmul.mubr.bf16.gmra.mrb[0].mxu0 %v1151
        %v1366 = vpop.f32.mrb[0].mxu0
        %v1367 = vadd.f32 0.0, %v1366
        %v1368 = vpop.f32.mrb[0].mxu0
        %v1369 = vadd.f32 0.0, %v1368
        %v1370 = vpop.f32.mrb[0].mxu0
        %v1371 = vadd.f32 0.0, %v1370
        %v1372 = vpop.f32.mrb[0].mxu0
        %v1373 = vadd.f32 0.0, %v1372
        %1374 = vmatprep.mubr.bf16.mxu0 0
        %1375 = vmatmul.mubr.bf16.gmra.mrb[0].mxu0 %v1154
        %v1376 = vpop.f32.mrb[0].mxu0
        %v1377 = vadd.f32 0.0, %v1376
        %v1378 = vpop.f32.mrb[0].mxu0
        %v1379 = vadd.f32 0.0, %v1378
        %v1380 = vpop.f32.mrb[0].mxu0
        %v1381 = vadd.f32 0.0, %v1380
        %v1382 = vpop.f32.mrb[0].mxu0
        %v1383 = vadd.f32 0.0, %v1382
        %1384 = vmatprep.mubr.bf16.mxu0 0
        %1385 = vmatmul.mubr.bf16.gmra.mrb[0].mxu0 %v1157
        %v1386 = vpop.f32.mrb[0].mxu0
        %v1387 = vadd.f32 0.0, %v1386
        %v1388 = vpop.f32.mrb[0].mxu0
        %v1389 = vadd.f32 0.0, %v1388
        %v1390 = vpop.f32.mrb[0].mxu0
        %v1391 = vadd.f32 0.0, %v1390
        %v1392 = vpop.f32.mrb[0].mxu0
        %v1393 = vadd.f32 0.0, %v1392
        %1394 = vmatprep.mubr.bf16.mxu0 0
        %1395 = vmatmul.mubr.bf16.gmra.mrb[0].mxu0 %v1160
        %v1396 = vpop.f32.mrb[0].mxu0
        %v1397 = vadd.f32 0.0, %v1396
        %v1398 = vpop.f32.mrb[0].mxu0
        %v1399 = vadd.f32 0.0, %v1398
        %v1400 = vpop.f32.mrb[0].mxu0
        %v1401 = vadd.f32 0.0, %v1400
        %v1402 = vpop.f32.mrb[0].mxu0
        %v1403 = vadd.f32 0.0, %v1402
        %1404 = vdwg.mxu0
        %1405 = vmatprep.subr.bf16.mxu0 %v1085
        %1406 = vmatpush1.bf16.msra.mxu0 %v1084
        %1407 = vmatprep.subr.bf16.mxu0 %v1089
        %1408 = vmatpush1.bf16.msra.mxu0 %v1088
        %1409 = vmatprep.subr.bf16.mxu0 0
        %1410 = vmatpush1.bf16.msra.mxu0 0
        %1411 = vmatprep.subr.bf16.mxu0 0
        %1412 = vmatpush1.bf16.msra.mxu0 0
        %1413 = vmatprep.subr.bf16.mxu0 0
        %1414 = vmatpush1.bf16.msra.mxu0 0
        %1415 = vmatprep.subr.bf16.mxu0 0
        %1416 = vmatpush1.bf16.msra.mxu0 0
        %1417 = vmatprep.subr.bf16.mxu0 0
        %1418 = vmatpush1.bf16.msra.mxu0 0
        %1419 = vmatprep.subr.bf16.mxu0 0
        %1420 = vmatpush1.bf16.msra.mxu0 0
        %1421 = vmatprep.subr.bf16.mxu0 0
        %1422 = vmatpush1.bf16.msra.mxu0 0
        %1423 = vmatprep.subr.bf16.mxu0 0
        %1424 = vmatpush1.bf16.msra.mxu0 0
        %1425 = vmatprep.subr.bf16.mxu0 0
        %1426 = vmatpush1.bf16.msra.mxu0 0
        %1427 = vmatprep.subr.bf16.mxu0 0
        %1428 = vmatpush1.bf16.msra.mxu0 0
        %1429 = vmatprep.subr.bf16.mxu0 0
        %1430 = vmatpush1.bf16.msra.mxu0 0
        %1431 = vmatprep.subr.bf16.mxu0 0
        %1432 = vmatpush1.bf16.msra.mxu0 0
        %1433 = vmatprep.subr.bf16.mxu0 0
        %1434 = vmatpush1.bf16.msra.mxu0 0
        %1435 = vmatprep.subr.bf16.mxu0 0
        %1436 = vmatpush1.bf16.msra.mxu0 0
        %1437 = vmatprep.mubr.bf16.mxu0 0
        %1438 = vmatmul.mubr.bf16.gmra.mrb[0].mxu0 %v1100
        %v1439 = vpop.f32.mrb[0].mxu0
        %v1440 = vadd.f32 0.0, %v1439
        %v1441 = vpop.f32.mrb[0].mxu0
        %v1442 = vadd.f32 0.0, %v1441
        %v1443 = vpop.f32.mrb[0].mxu0
        %v1444 = vadd.f32 0.0, %v1443
        %v1445 = vpop.f32.mrb[0].mxu0
        %v1446 = vadd.f32 0.0, %v1445
        %1447 = vmatprep.mubr.bf16.mxu0 0
        %1448 = vmatmul.mubr.bf16.gmra.mrb[0].mxu0 %v1103
        %v1449 = vpop.f32.mrb[0].mxu0
        %v1450 = vadd.f32 0.0, %v1449
        %v1451 = vpop.f32.mrb[0].mxu0
        %v1452 = vadd.f32 0.0, %v1451
        %v1453 = vpop.f32.mrb[0].mxu0
        %v1454 = vadd.f32 0.0, %v1453
        %v1455 = vpop.f32.mrb[0].mxu0
        %v1456 = vadd.f32 0.0, %v1455
        %1457 = vmatprep.mubr.bf16.mxu0 0
        %1458 = vmatmul.mubr.bf16.gmra.mrb[0].mxu0 %v1106
        %v1459 = vpop.f32.mrb[0].mxu0
        %v1460 = vadd.f32 0.0, %v1459
        %v1461 = vpop.f32.mrb[0].mxu0
        %v1462 = vadd.f32 0.0, %v1461
        %v1463 = vpop.f32.mrb[0].mxu0
        %v1464 = vadd.f32 0.0, %v1463
        %v1465 = vpop.f32.mrb[0].mxu0
        %v1466 = vadd.f32 0.0, %v1465
        %1467 = vmatprep.mubr.bf16.mxu0 0
        %1468 = vmatmul.mubr.bf16.gmra.mrb[0].mxu0 %v1109
        %v1469 = vpop.f32.mrb[0].mxu0
        %v1470 = vadd.f32 0.0, %v1469
        %v1471 = vpop.f32.mrb[0].mxu0
        %v1472 = vadd.f32 0.0, %v1471
        %v1473 = vpop.f32.mrb[0].mxu0
        %v1474 = vadd.f32 0.0, %v1473
        %v1475 = vpop.f32.mrb[0].mxu0
        %v1476 = vadd.f32 0.0, %v1475
        %1477 = vmatprep.mubr.bf16.mxu0 0
        %1478 = vmatmul.mubr.bf16.gmra.mrb[0].mxu0 %v1112
        %v1479 = vpop.f32.mrb[0].mxu0
        %v1480 = vadd.f32 0.0, %v1479
        %v1481 = vpop.f32.mrb[0].mxu0
        %v1482 = vadd.f32 0.0, %v1481
        %v1483 = vpop.f32.mrb[0].mxu0
        %v1484 = vadd.f32 0.0, %v1483
        %v1485 = vpop.f32.mrb[0].mxu0
        %v1486 = vadd.f32 0.0, %v1485
        %1487 = vmatprep.mubr.bf16.mxu0 0
        %1488 = vmatmul.mubr.bf16.gmra.mrb[0].mxu0 %v1115
        %v1489 = vpop.f32.mrb[0].mxu0
        %v1490 = vadd.f32 0.0, %v1489
        %v1491 = vpop.f32.mrb[0].mxu0
        %v1492 = vadd.f32 0.0, %v1491
        %v1493 = vpop.f32.mrb[0].mxu0
        %v1494 = vadd.f32 0.0, %v1493
        %v1495 = vpop.f32.mrb[0].mxu0
        %v1496 = vadd.f32 0.0, %v1495
        %1497 = vmatprep.mubr.bf16.mxu0 0
        %1498 = vmatmul.mubr.bf16.gmra.mrb[0].mxu0 %v1118
        %v1499 = vpop.f32.mrb[0].mxu0
        %v1500 = vadd.f32 0.0, %v1499
        %v1501 = vpop.f32.mrb[0].mxu0
        %v1502 = vadd.f32 0.0, %v1501
        %v1503 = vpop.f32.mrb[0].mxu0
        %v1504 = vadd.f32 0.0, %v1503
        %v1505 = vpop.f32.mrb[0].mxu0
        %v1506 = vadd.f32 0.0, %v1505
        %1507 = vmatprep.mubr.bf16.mxu0 0
        %1508 = vmatmul.mubr.bf16.gmra.mrb[0].mxu0 %v1121
        %v1509 = vpop.f32.mrb[0].mxu0
        %v1510 = vadd.f32 0.0, %v1509
        %v1511 = vpop.f32.mrb[0].mxu0
        %v1512 = vadd.f32 0.0, %v1511
        %v1513 = vpop.f32.mrb[0].mxu0
        %v1514 = vadd.f32 0.0, %v1513
        %v1515 = vpop.f32.mrb[0].mxu0
        %v1516 = vadd.f32 0.0, %v1515
        %1517 = vmatprep.mubr.bf16.mxu0 0
        %1518 = vmatmul.mubr.bf16.gmra.mrb[0].mxu0 %v1124
        %v1519 = vpop.f32.mrb[0].mxu0
        %v1520 = vadd.f32 0.0, %v1519
        %v1521 = vpop.f32.mrb[0].mxu0
        %v1522 = vadd.f32 0.0, %v1521
        %v1523 = vpop.f32.mrb[0].mxu0
        %v1524 = vadd.f32 0.0, %v1523
        %v1525 = vpop.f32.mrb[0].mxu0
        %v1526 = vadd.f32 0.0, %v1525
        %1527 = vmatprep.mubr.bf16.mxu0 0
        %1528 = vmatmul.mubr.bf16.gmra.mrb[0].mxu0 %v1127
        %v1529 = vpop.f32.mrb[0].mxu0
        %v1530 = vadd.f32 0.0, %v1529
        %v1531 = vpop.f32.mrb[0].mxu0
        %v1532 = vadd.f32 0.0, %v1531
        %v1533 = vpop.f32.mrb[0].mxu0
        %v1534 = vadd.f32 0.0, %v1533
        %v1535 = vpop.f32.mrb[0].mxu0
        %v1536 = vadd.f32 0.0, %v1535
        %1537 = vmatprep.mubr.bf16.mxu0 0
        %1538 = vmatmul.mubr.bf16.gmra.mrb[0].mxu0 %v1130
        %v1539 = vpop.f32.mrb[0].mxu0
        %v1540 = vadd.f32 0.0, %v1539
        %v1541 = vpop.f32.mrb[0].mxu0
        %v1542 = vadd.f32 0.0, %v1541
        %v1543 = vpop.f32.mrb[0].mxu0
        %v1544 = vadd.f32 0.0, %v1543
        %v1545 = vpop.f32.mrb[0].mxu0
        %v1546 = vadd.f32 0.0, %v1545
        %1547 = vmatprep.mubr.bf16.mxu0 0
        %1548 = vmatmul.mubr.bf16.gmra.mrb[0].mxu0 %v1133
        %v1549 = vpop.f32.mrb[0].mxu0
        %v1550 = vadd.f32 0.0, %v1549
        %v1551 = vpop.f32.mrb[0].mxu0
        %v1552 = vadd.f32 0.0, %v1551
        %v1553 = vpop.f32.mrb[0].mxu0
        %v1554 = vadd.f32 0.0, %v1553
        %v1555 = vpop.f32.mrb[0].mxu0
        %v1556 = vadd.f32 0.0, %v1555
        %1557 = vmatprep.mubr.bf16.mxu0 0
        %1558 = vmatmul.mubr.bf16.gmra.mrb[0].mxu0 %v1136
        %v1559 = vpop.f32.mrb[0].mxu0
        %v1560 = vadd.f32 0.0, %v1559
        %v1561 = vpop.f32.mrb[0].mxu0
        %v1562 = vadd.f32 0.0, %v1561
        %v1563 = vpop.f32.mrb[0].mxu0
        %v1564 = vadd.f32 0.0, %v1563
        %v1565 = vpop.f32.mrb[0].mxu0
        %v1566 = vadd.f32 0.0, %v1565
        %1567 = vmatprep.mubr.bf16.mxu0 0
        %1568 = vmatmul.mubr.bf16.gmra.mrb[0].mxu0 %v1139
        %v1569 = vpop.f32.mrb[0].mxu0
        %v1570 = vadd.f32 0.0, %v1569
        %v1571 = vpop.f32.mrb[0].mxu0
        %v1572 = vadd.f32 0.0, %v1571
        %v1573 = vpop.f32.mrb[0].mxu0
        %v1574 = vadd.f32 0.0, %v1573
        %v1575 = vpop.f32.mrb[0].mxu0
        %v1576 = vadd.f32 0.0, %v1575
        %1577 = vmatprep.mubr.bf16.mxu0 0
        %1578 = vmatmul.mubr.bf16.gmra.mrb[0].mxu0 %v1142
        %v1579 = vpop.f32.mrb[0].mxu0
        %v1580 = vadd.f32 0.0, %v1579
        %v1581 = vpop.f32.mrb[0].mxu0
        %v1582 = vadd.f32 0.0, %v1581
        %v1583 = vpop.f32.mrb[0].mxu0
        %v1584 = vadd.f32 0.0, %v1583
        %v1585 = vpop.f32.mrb[0].mxu0
        %v1586 = vadd.f32 0.0, %v1585
        %1587 = vmatprep.mubr.bf16.mxu0 0
        %1588 = vmatmul.mubr.bf16.gmra.mrb[0].mxu0 %v1145
        %v1589 = vpop.f32.mrb[0].mxu0
        %v1590 = vadd.f32 0.0, %v1589
        %v1591 = vpop.f32.mrb[0].mxu0
        %v1592 = vadd.f32 0.0, %v1591
        %v1593 = vpop.f32.mrb[0].mxu0
        %v1594 = vadd.f32 0.0, %v1593
        %v1595 = vpop.f32.mrb[0].mxu0
        %v1596 = vadd.f32 0.0, %v1595
        %1597 = vmatprep.mubr.bf16.mxu0 0
        %1598 = vmatmul.mubr.bf16.gmra.mrb[0].mxu0 %v1148
        %v1599 = vpop.f32.mrb[0].mxu0
        %v1600 = vadd.f32 0.0, %v1599
        %v1601 = vpop.f32.mrb[0].mxu0
        %v1602 = vadd.f32 0.0, %v1601
        %v1603 = vpop.f32.mrb[0].mxu0
        %v1604 = vadd.f32 0.0, %v1603
        %v1605 = vpop.f32.mrb[0].mxu0
        %v1606 = vadd.f32 0.0, %v1605
        %1607 = vmatprep.mubr.bf16.mxu0 0
        %1608 = vmatmul.mubr.bf16.gmra.mrb[0].mxu0 %v1151
        %v1609 = vpop.f32.mrb[0].mxu0
        %v1610 = vadd.f32 0.0, %v1609
        %v1611 = vpop.f32.mrb[0].mxu0
        %v1612 = vadd.f32 0.0, %v1611
        %v1613 = vpop.f32.mrb[0].mxu0
        %v1614 = vadd.f32 0.0, %v1613
        %v1615 = vpop.f32.mrb[0].mxu0
        %v1616 = vadd.f32 0.0, %v1615
        %1617 = vmatprep.mubr.bf16.mxu0 0
        %1618 = vmatmul.mubr.bf16.gmra.mrb[0].mxu0 %v1154
        %v1619 = vpop.f32.mrb[0].mxu0
        %v1620 = vadd.f32 0.0, %v1619
        %v1621 = vpop.f32.mrb[0].mxu0
        %v1622 = vadd.f32 0.0, %v1621
        %v1623 = vpop.f32.mrb[0].mxu0
        %v1624 = vadd.f32 0.0, %v1623
        %v1625 = vpop.f32.mrb[0].mxu0
        %v1626 = vadd.f32 0.0, %v1625
        %1627 = vmatprep.mubr.bf16.mxu0 0
        %1628 = vmatmul.mubr.bf16.gmra.mrb[0].mxu0 %v1157
        %v1629 = vpop.f32.mrb[0].mxu0
        %v1630 = vadd.f32 0.0, %v1629
        %v1631 = vpop.f32.mrb[0].mxu0
        %v1632 = vadd.f32 0.0, %v1631
        %v1633 = vpop.f32.mrb[0].mxu0
        %v1634 = vadd.f32 0.0, %v1633
        %v1635 = vpop.f32.mrb[0].mxu0
        %v1636 = vadd.f32 0.0, %v1635
        %1637 = vmatprep.mubr.bf16.mxu0 0
        %1638 = vmatmul.mubr.bf16.gmra.mrb[0].mxu0 %v1160
        %v1639 = vpop.f32.mrb[0].mxu0
        %v1640 = vadd.f32 0.0, %v1639
        %v1641 = vpop.f32.mrb[0].mxu0
        %v1642 = vadd.f32 0.0, %v1641
        %v1643 = vpop.f32.mrb[0].mxu0
        %v1644 = vadd.f32 0.0, %v1643
        %v1645 = vpop.f32.mrb[0].mxu0
        %v1646 = vadd.f32 0.0, %v1645
        %1647 = vdwg.mxu0
        %v1655 = vunpack.c.l.b16 %v715
        %v1656 = vunpack.c.l.b16 %v716
        %v1657 = vunpack.c.l.b16 %v717
        %v1658 = vunpack.c.l.b16 %v718
        %v1659 = vunpack.c.l.b16 %v719
        %v1660 = vunpack.c.l.b16 %v720
        %v1661 = vunpack.c.l.b16 %v721
        %v1662 = vpack.c.b16 %v1656, %v1655
        %v1663 = vpack.c.b16 %v1658, %v1657
        %v1664 = vpack.c.b16 %v1660, %v1659
        %v1665 = vpack.c.b16 %v1661, %v1661
        %v1667 = vsel %vm854, %v1662, 0
        %v1670 = vsel %vm854, %v1663, 0
        %v1673 = vsel %vm854, %v1664, 0
        %v1676 = vsel %vm854, %v1665, 0
        %v1679 = vsel %vm867, %v714, 0
        %1681 = vmatprep.subr.bf16.mxu0 0
        %1682 = vmatpush1.bf16.msra.mxu0 %v1679
        %1683 = vmatprep.subr.bf16.mxu0 0
        %1684 = vmatpush1.bf16.msra.mxu0 0
        %1685 = vmatprep.subr.bf16.mxu0 0
        %1686 = vmatpush1.bf16.msra.mxu0 0
        %1687 = vmatprep.subr.bf16.mxu0 0
        %1688 = vmatpush1.bf16.msra.mxu0 0
        %1689 = vmatprep.subr.bf16.mxu0 0
        %1690 = vmatpush1.bf16.msra.mxu0 0
        %1691 = vmatprep.subr.bf16.mxu0 0
        %1692 = vmatpush1.bf16.msra.mxu0 0
        %1693 = vmatprep.subr.bf16.mxu0 0
        %1694 = vmatpush1.bf16.msra.mxu0 0
        %1695 = vmatprep.subr.bf16.mxu0 0
        %1696 = vmatpush1.bf16.msra.mxu0 0
        %1697 = vmatprep.subr.bf16.mxu0 0
        %1698 = vmatpush1.bf16.msra.mxu0 0
        %1699 = vmatprep.subr.bf16.mxu0 0
        %1700 = vmatpush1.bf16.msra.mxu0 0
        %1701 = vmatprep.subr.bf16.mxu0 0
        %1702 = vmatpush1.bf16.msra.mxu0 0
        %1703 = vmatprep.subr.bf16.mxu0 0
        %1704 = vmatpush1.bf16.msra.mxu0 0
        %1705 = vmatprep.subr.bf16.mxu0 0
        %1706 = vmatpush1.bf16.msra.mxu0 0
        %1707 = vmatprep.subr.bf16.mxu0 0
        %1708 = vmatpush1.bf16.msra.mxu0 0
        %1709 = vmatprep.subr.bf16.mxu0 0
        %1710 = vmatpush1.bf16.msra.mxu0 0
        %1711 = vmatprep.subr.bf16.mxu0 0
        %1712 = vmatpush1.bf16.msra.mxu0 0
        %1713 = vmatprep.mubr.bf16.mxu0 0
        %1714 = vmatmul.mubr.bf16.gmra.mrb[0].mxu0 %v1667
        %v1715 = vpop.f32.mrb[0].mxu0
        %v1716 = vadd.f32 0.0, %v1715
        %v1717 = vpop.f32.mrb[0].mxu0
        %v1718 = vpop.f32.mrb[0].mxu0
        %v1719 = vadd.f32 0.0, %v1718
        %v1720 = vpop.f32.mrb[0].mxu0
        %1721 = vmatprep.mubr.bf16.mxu0 0
        %1722 = vmatmul.mubr.bf16.gmra.mrb[0].mxu0 %v1670
        %v1723 = vpop.f32.mrb[0].mxu0
        %v1724 = vadd.f32 0.0, %v1723
        %v1725 = vpop.f32.mrb[0].mxu0
        %v1726 = vpop.f32.mrb[0].mxu0
        %v1727 = vadd.f32 0.0, %v1726
        %v1728 = vpop.f32.mrb[0].mxu0
        %1729 = vmatprep.mubr.bf16.mxu0 0
        %1730 = vmatmul.mubr.bf16.gmra.mrb[0].mxu0 %v1673
        %v1731 = vpop.f32.mrb[0].mxu0
        %v1732 = vadd.f32 0.0, %v1731
        %v1733 = vpop.f32.mrb[0].mxu0
        %v1734 = vpop.f32.mrb[0].mxu0
        %v1735 = vadd.f32 0.0, %v1734
        %v1736 = vpop.f32.mrb[0].mxu0
        %1737 = vmatprep.mubr.bf16.mxu0 0
        %1738 = vmatmul.mubr.bf16.gmra.mrb[0].mxu0 %v1676
        %v1739 = vpop.f32.mrb[0].mxu0
        %v1740 = vadd.f32 0.0, %v1739
        %v1741 = vpop.f32.mrb[0].mxu0
        %v1742 = vpop.f32.mrb[0].mxu0
        %v1743 = vpop.f32.mrb[0].mxu0
        %1744 = vdwg.mxu0
        %v1752 = vunpack.c.l.b16 %v722
        %v1753 = vunpack.c.l.b16 %v723
        %v1754 = vunpack.c.l.b16 %v724
        %v1755 = vunpack.c.l.b16 %v725
        %v1756 = vunpack.c.l.b16 %v726
        %v1757 = vunpack.c.l.b16 %v727
        %v1758 = vunpack.c.l.b16 %v728
        %v1759 = vpack.c.b16 %v1753, %v1752
        %v1760 = vpack.c.b16 %v1755, %v1754
        %v1761 = vpack.c.b16 %v1757, %v1756
        %v1762 = vpack.c.b16 %v1758, %v1758
        %v1764 = vsel %vm854, %v1759, 0
        %v1767 = vsel %vm854, %v1760, 0
        %v1770 = vsel %vm854, %v1761, 0
        %v1773 = vsel %vm854, %v1762, 0
        %1775 = vmatprep.subr.bf16.mxu0 0
        %1776 = vmatpush1.bf16.msra.mxu0 %v1679
        %1777 = vmatprep.subr.bf16.mxu0 0
        %1778 = vmatpush1.bf16.msra.mxu0 0
        %1779 = vmatprep.subr.bf16.mxu0 0
        %1780 = vmatpush1.bf16.msra.mxu0 0
        %1781 = vmatprep.subr.bf16.mxu0 0
        %1782 = vmatpush1.bf16.msra.mxu0 0
        %1783 = vmatprep.subr.bf16.mxu0 0
        %1784 = vmatpush1.bf16.msra.mxu0 0
        %1785 = vmatprep.subr.bf16.mxu0 0
        %1786 = vmatpush1.bf16.msra.mxu0 0
        %1787 = vmatprep.subr.bf16.mxu0 0
        %1788 = vmatpush1.bf16.msra.mxu0 0
        %1789 = vmatprep.subr.bf16.mxu0 0
        %1790 = vmatpush1.bf16.msra.mxu0 0
        %1791 = vmatprep.subr.bf16.mxu0 0
        %1792 = vmatpush1.bf16.msra.mxu0 0
        %1793 = vmatprep.subr.bf16.mxu0 0
        %1794 = vmatpush1.bf16.msra.mxu0 0
        %1795 = vmatprep.subr.bf16.mxu0 0
        %1796 = vmatpush1.bf16.msra.mxu0 0
        %1797 = vmatprep.subr.bf16.mxu0 0
        %1798 = vmatpush1.bf16.msra.mxu0 0
        %1799 = vmatprep.subr.bf16.mxu0 0
        %1800 = vmatpush1.bf16.msra.mxu0 0
        %1801 = vmatprep.subr.bf16.mxu0 0
        %1802 = vmatpush1.bf16.msra.mxu0 0
        %1803 = vmatprep.subr.bf16.mxu0 0
        %1804 = vmatpush1.bf16.msra.mxu0 0
        %1805 = vmatprep.subr.bf16.mxu0 0
        %1806 = vmatpush1.bf16.msra.mxu0 0
        %1807 = vmatprep.mubr.bf16.mxu0 0
        %1808 = vmatmul.mubr.bf16.gmra.mrb[0].mxu0 %v1764
        %v1809 = vpop.f32.mrb[0].mxu0
        %v1810 = vadd.f32 0.0, %v1809
        %v1811 = vpop.f32.mrb[0].mxu0
        %v1812 = vpop.f32.mrb[0].mxu0
        %v1813 = vadd.f32 0.0, %v1812
        %v1814 = vpop.f32.mrb[0].mxu0
        %1815 = vmatprep.mubr.bf16.mxu0 0
        %1816 = vmatmul.mubr.bf16.gmra.mrb[0].mxu0 %v1767
        %v1817 = vpop.f32.mrb[0].mxu0
        %v1818 = vadd.f32 0.0, %v1817
        %v1819 = vpop.f32.mrb[0].mxu0
        %v1820 = vpop.f32.mrb[0].mxu0
        %v1821 = vadd.f32 0.0, %v1820
        %v1822 = vpop.f32.mrb[0].mxu0
        %1823 = vmatprep.mubr.bf16.mxu0 0
        %1824 = vmatmul.mubr.bf16.gmra.mrb[0].mxu0 %v1770
        %v1825 = vpop.f32.mrb[0].mxu0
        %v1826 = vadd.f32 0.0, %v1825
        %v1827 = vpop.f32.mrb[0].mxu0
        %v1828 = vpop.f32.mrb[0].mxu0
        %v1829 = vadd.f32 0.0, %v1828
        %v1830 = vpop.f32.mrb[0].mxu0
        %1831 = vmatprep.mubr.bf16.mxu0 0
        %1832 = vmatmul.mubr.bf16.gmra.mrb[0].mxu0 %v1773
        %v1833 = vpop.f32.mrb[0].mxu0
        %v1834 = vadd.f32 0.0, %v1833
        %v1835 = vpop.f32.mrb[0].mxu0
        %v1836 = vpop.f32.mrb[0].mxu0
        %v1837 = vpop.f32.mrb[0].mxu0
        %1838 = vdwg.mxu0
        %v1839 = vld [vmem:[%s12] sm:$0xf]
        %v1840 = vld [vmem:[%s12 + $0x4] sm:$0xf]
        %v1841 = vld [vmem:[%s12 + $0x8] sm:$0xf]
        %v1842 = vld [vmem:[%s12 + $0xc] sm:$0xf]
        %v1843 = vpack.c.bf16 %v1719, %v1716
        %v1844 = vpack.c.bf16 %v1727, %v1724
        %v1845 = vpack.c.bf16 %v1735, %v1732
        %v1846 = vpack.c.bf16 %v1740, %v1740
        %v1847 = vld [vmem:[%s12 + $0x10] sm:$0xf]
        %v1848 = vld [vmem:[%s12 + $0x14] sm:$0xf]
        %v1849 = vld [vmem:[%s12 + $0x18] sm:$0xf]
        %v1850 = vld [vmem:[%s12 + $0x1c] sm:$0xf]
        %v1851 = vpack.c.bf16 %v1813, %v1810
        %v1852 = vpack.c.bf16 %v1821, %v1818
        %v1853 = vpack.c.bf16 %v1829, %v1826
        %v1854 = vpack.c.bf16 %v1834, %v1834
        %v1859 = vunpack.c.l.b16 %v1847
        %v1860 = vunpack.c.l.b16 %v1848
        %v1861 = vunpack.c.l.b16 %v1849
        %v1862 = vunpack.c.l.b16 %v1850
        %v1863 = vpack.c.b16 %v1860, %v1859
        %v1864 = vpack.c.b16 %v1862, %v1861
        %v1868 = vsel %vm1098, %v1851, 0
        %v1871 = vsel %vm1098, %v1852, 0
        %v1874 = vsel %vm1098, %v1853, 0
        %v1877 = vsel %vm1098, %v1854, 0
        %1879 = vmatprep.subr.bf16.mxu0 0
        %1880 = vmatpush1.bf16.msra.mxu0 %v1863
        %1881 = vmatprep.subr.bf16.mxu0 0
        %1882 = vmatpush1.bf16.msra.mxu0 %v1864
        %1883 = vmatprep.subr.bf16.mxu0 0
        %1884 = vmatpush1.bf16.msra.mxu0 0
        %1885 = vmatprep.subr.bf16.mxu0 0
        %1886 = vmatpush1.bf16.msra.mxu0 0
        %1887 = vmatprep.subr.bf16.mxu0 0
        %1888 = vmatpush1.bf16.msra.mxu0 0
        %1889 = vmatprep.subr.bf16.mxu0 0
        %1890 = vmatpush1.bf16.msra.mxu0 0
        %1891 = vmatprep.subr.bf16.mxu0 0
        %1892 = vmatpush1.bf16.msra.mxu0 0
        %1893 = vmatprep.subr.bf16.mxu0 0
        %1894 = vmatpush1.bf16.msra.mxu0 0
        %1895 = vmatprep.subr.bf16.mxu0 0
        %1896 = vmatpush1.bf16.msra.mxu0 0
        %1897 = vmatprep.subr.bf16.mxu0 0
        %1898 = vmatpush1.bf16.msra.mxu0 0
        %1899 = vmatprep.subr.bf16.mxu0 0
        %1900 = vmatpush1.bf16.msra.mxu0 0
        %1901 = vmatprep.subr.bf16.mxu0 0
        %1902 = vmatpush1.bf16.msra.mxu0 0
        %1903 = vmatprep.subr.bf16.mxu0 0
        %1904 = vmatpush1.bf16.msra.mxu0 0
        %1905 = vmatprep.subr.bf16.mxu0 0
        %1906 = vmatpush1.bf16.msra.mxu0 0
        %1907 = vmatprep.subr.bf16.mxu0 0
        %1908 = vmatpush1.bf16.msra.mxu0 0
        %1909 = vmatprep.subr.bf16.mxu0 0
        %1910 = vmatpush1.bf16.msra.mxu0 0
        %1911 = vmatprep.mubr.bf16.mxu0 0
        %1912 = vmatmul.mubr.bf16.gmra.mrb[0].mxu0 %v1868
        %v1913 = vpop.f32.mrb[0].mxu0
        %v1914 = vadd.f32 0.0, %v1913
        %v1915 = vpop.f32.mrb[0].mxu0
        %v1916 = vpop.f32.mrb[0].mxu0
        %v1917 = vadd.f32 0.0, %v1916
        %v1918 = vpop.f32.mrb[0].mxu0
        %1919 = vmatprep.mubr.bf16.mxu0 0
        %1920 = vmatmul.mubr.bf16.gmra.mrb[0].mxu0 %v1871
        %v1921 = vpop.f32.mrb[0].mxu0
        %v1922 = vadd.f32 0.0, %v1921
        %v1923 = vpop.f32.mrb[0].mxu0
        %v1924 = vpop.f32.mrb[0].mxu0
        %v1925 = vadd.f32 0.0, %v1924
        %v1926 = vpop.f32.mrb[0].mxu0
        %1927 = vmatprep.mubr.bf16.mxu0 0
        %1928 = vmatmul.mubr.bf16.gmra.mrb[0].mxu0 %v1874
        %v1929 = vpop.f32.mrb[0].mxu0
        %v1930 = vadd.f32 0.0, %v1929
        %v1931 = vpop.f32.mrb[0].mxu0
        %v1932 = vpop.f32.mrb[0].mxu0
        %v1933 = vadd.f32 0.0, %v1932
        %v1934 = vpop.f32.mrb[0].mxu0
        %1935 = vmatprep.mubr.bf16.mxu0 0
        %1936 = vmatmul.mubr.bf16.gmra.mrb[0].mxu0 %v1877
        %v1937 = vpop.f32.mrb[0].mxu0
        %v1938 = vadd.f32 0.0, %v1937
        %v1939 = vpop.f32.mrb[0].mxu0
        %v1940 = vpop.f32.mrb[0].mxu0
        %v1941 = vpop.f32.mrb[0].mxu0
        %1942 = vdwg.mxu0
        %v1947 = vunpack.c.l.b16 %v1839
        %v1948 = vunpack.c.l.b16 %v1840
        %v1949 = vunpack.c.l.b16 %v1841
        %v1950 = vunpack.c.l.b16 %v1842
        %v1951 = vpack.c.b16 %v1948, %v1947
        %v1952 = vpack.c.b16 %v1950, %v1949
        %v1956 = vsel %vm1098, %v1843, 0
        %v1959 = vsel %vm1098, %v1844, 0
        %v1962 = vsel %vm1098, %v1845, 0
        %v1965 = vsel %vm1098, %v1846, 0
        %1967 = vmatprep.subr.bf16.mxu0 0
        %1968 = vmatpush1.bf16.msra.mxu0 %v1951
        %1969 = vmatprep.subr.bf16.mxu0 0
        %1970 = vmatpush1.bf16.msra.mxu0 %v1952
        %1971 = vmatprep.subr.bf16.mxu0 0
        %1972 = vmatpush1.bf16.msra.mxu0 0
        %1973 = vmatprep.subr.bf16.mxu0 0
        %1974 = vmatpush1.bf16.msra.mxu0 0
        %1975 = vmatprep.subr.bf16.mxu0 0
        %1976 = vmatpush1.bf16.msra.mxu0 0
        %1977 = vmatprep.subr.bf16.mxu0 0
        %1978 = vmatpush1.bf16.msra.mxu0 0
        %1979 = vmatprep.subr.bf16.mxu0 0
        %1980 = vmatpush1.bf16.msra.mxu0 0
        %1981 = vmatprep.subr.bf16.mxu0 0
        %1982 = vmatpush1.bf16.msra.mxu0 0
        %1983 = vmatprep.subr.bf16.mxu0 0
        %1984 = vmatpush1.bf16.msra.mxu0 0
        %1985 = vmatprep.subr.bf16.mxu0 0
        %1986 = vmatpush1.bf16.msra.mxu0 0
        %1987 = vmatprep.subr.bf16.mxu0 0
        %1988 = vmatpush1.bf16.msra.mxu0 0
        %1989 = vmatprep.subr.bf16.mxu0 0
        %1990 = vmatpush1.bf16.msra.mxu0 0
        %1991 = vmatprep.subr.bf16.mxu0 0
        %1992 = vmatpush1.bf16.msra.mxu0 0
        %1993 = vmatprep.subr.bf16.mxu0 0
        %1994 = vmatpush1.bf16.msra.mxu0 0
        %1995 = vmatprep.subr.bf16.mxu0 0
        %1996 = vmatpush1.bf16.msra.mxu0 0
        %1997 = vmatprep.subr.bf16.mxu0 0
        %1998 = vmatpush1.bf16.msra.mxu0 0
        %1999 = vmatprep.mubr.bf16.mxu0 0
        %2000 = vmatmul.mubr.bf16.gmra.mrb[0].mxu0 %v1956
        %v2001 = vpop.f32.mrb[0].mxu0
        %v2002 = vadd.f32 %v1914, %v2001
        %v2003 = vpop.f32.mrb[0].mxu0
        %v2004 = vpop.f32.mrb[0].mxu0
        %v2005 = vadd.f32 %v1917, %v2004
        %v2006 = vpop.f32.mrb[0].mxu0
        %2007 = vmatprep.mubr.bf16.mxu0 0
        %2008 = vmatmul.mubr.bf16.gmra.mrb[0].mxu0 %v1959
        %v2009 = vpop.f32.mrb[0].mxu0
        %v2010 = vadd.f32 %v1922, %v2009
        %v2011 = vpop.f32.mrb[0].mxu0
        %v2012 = vpop.f32.mrb[0].mxu0
        %v2013 = vadd.f32 %v1925, %v2012
        %v2014 = vpop.f32.mrb[0].mxu0
        %2015 = vmatprep.mubr.bf16.mxu0 0
        %2016 = vmatmul.mubr.bf16.gmra.mrb[0].mxu0 %v1962
        %v2017 = vpop.f32.mrb[0].mxu0
        %v2018 = vadd.f32 %v1930, %v2017
        %v2019 = vpop.f32.mrb[0].mxu0
        %v2020 = vpop.f32.mrb[0].mxu0
        %v2021 = vadd.f32 %v1933, %v2020
        %v2022 = vpop.f32.mrb[0].mxu0
        %2023 = vmatprep.mubr.bf16.mxu0 0
        %2024 = vmatmul.mubr.bf16.gmra.mrb[0].mxu0 %v1965
        %v2025 = vpop.f32.mrb[0].mxu0
        %v2026 = vadd.f32 %v1938, %v2025
        %v2027 = vpop.f32.mrb[0].mxu0
        %v2028 = vpop.f32.mrb[0].mxu0
        %v2029 = vpop.f32.mrb[0].mxu0
        %2030 = vdwg.mxu0
        %v2031 = vld [vmem:[%s12 + $0x20] sm:$0xf]
        %v2032 = vld [vmem:[%s12 + $0x24] sm:$0xf]
        %v2033 = vld [vmem:[%s12 + $0x28] sm:$0xf]
        %v2034 = vld [vmem:[%s12 + $0x2c] sm:$0xf]
        %v2035 = vpack.c.bf16 %v913, %v909
        %v2036 = vpack.c.bf16 %v923, %v919
        %v2037 = vpack.c.bf16 %v933, %v929
        %v2038 = vpack.c.bf16 %v939, %v939
        %v2043 = vunpack.c.l.b16 %v2031
        %v2044 = vunpack.c.l.b16 %v2032
        %v2045 = vunpack.c.l.b16 %v2033
        %v2046 = vunpack.c.l.b16 %v2034
        %v2047 = vpack.c.b16 %v2044, %v2043
        %v2048 = vpack.c.b16 %v2046, %v2045
        %v2052 = vsel %vm1098, %v2035, 0
        %v2055 = vsel %vm1098, %v2036, 0
        %v2058 = vsel %vm1098, %v2037, 0
        %v2061 = vsel %vm1098, %v2038, 0
        %2063 = vmatprep.subr.bf16.mxu0 0
        %2064 = vmatpush1.bf16.msra.mxu0 %v2047
        %2065 = vmatprep.subr.bf16.mxu0 0
        %2066 = vmatpush1.bf16.msra.mxu0 %v2048
        %2067 = vmatprep.subr.bf16.mxu0 0
        %2068 = vmatpush1.bf16.msra.mxu0 0
        %2069 = vmatprep.subr.bf16.mxu0 0
        %2070 = vmatpush1.bf16.msra.mxu0 0
        %2071 = vmatprep.subr.bf16.mxu0 0
        %2072 = vmatpush1.bf16.msra.mxu0 0
        %2073 = vmatprep.subr.bf16.mxu0 0
        %2074 = vmatpush1.bf16.msra.mxu0 0
        %2075 = vmatprep.subr.bf16.mxu0 0
        %2076 = vmatpush1.bf16.msra.mxu0 0
        %2077 = vmatprep.subr.bf16.mxu0 0
        %2078 = vmatpush1.bf16.msra.mxu0 0
        %2079 = vmatprep.subr.bf16.mxu0 0
        %2080 = vmatpush1.bf16.msra.mxu0 0
        %2081 = vmatprep.subr.bf16.mxu0 0
        %2082 = vmatpush1.bf16.msra.mxu0 0
        %2083 = vmatprep.subr.bf16.mxu0 0
        %2084 = vmatpush1.bf16.msra.mxu0 0
        %2085 = vmatprep.subr.bf16.mxu0 0
        %2086 = vmatpush1.bf16.msra.mxu0 0
        %2087 = vmatprep.subr.bf16.mxu0 0
        %2088 = vmatpush1.bf16.msra.mxu0 0
        %2089 = vmatprep.subr.bf16.mxu0 0
        %2090 = vmatpush1.bf16.msra.mxu0 0
        %2091 = vmatprep.subr.bf16.mxu0 0
        %2092 = vmatpush1.bf16.msra.mxu0 0
        %2093 = vmatprep.subr.bf16.mxu0 0
        %2094 = vmatpush1.bf16.msra.mxu0 0
        %2095 = vmatprep.mubr.bf16.mxu0 0
        %2096 = vmatmul.mubr.bf16.gmra.mrb[0].mxu0 %v2052
        %v2097 = vpop.f32.mrb[0].mxu0
        %v2098 = vadd.f32 0.0, %v2097
        %v2099 = vpop.f32.mrb[0].mxu0
        %v2100 = vpop.f32.mrb[0].mxu0
        %v2101 = vadd.f32 0.0, %v2100
        %v2102 = vpop.f32.mrb[0].mxu0
        %2103 = vmatprep.mubr.bf16.mxu0 0
        %2104 = vmatmul.mubr.bf16.gmra.mrb[0].mxu0 %v2055
        %v2105 = vpop.f32.mrb[0].mxu0
        %v2106 = vadd.f32 0.0, %v2105
        %v2107 = vpop.f32.mrb[0].mxu0
        %v2108 = vpop.f32.mrb[0].mxu0
        %v2109 = vadd.f32 0.0, %v2108
        %v2110 = vpop.f32.mrb[0].mxu0
        %2111 = vmatprep.mubr.bf16.mxu0 0
        %2112 = vmatmul.mubr.bf16.gmra.mrb[0].mxu0 %v2058
        %v2113 = vpop.f32.mrb[0].mxu0
        %v2114 = vadd.f32 0.0, %v2113
        %v2115 = vpop.f32.mrb[0].mxu0
        %v2116 = vpop.f32.mrb[0].mxu0
        %v2117 = vadd.f32 0.0, %v2116
        %v2118 = vpop.f32.mrb[0].mxu0
        %2119 = vmatprep.mubr.bf16.mxu0 0
        %2120 = vmatmul.mubr.bf16.gmra.mrb[0].mxu0 %v2061
        %v2121 = vpop.f32.mrb[0].mxu0
        %v2122 = vadd.f32 0.0, %v2121
        %v2123 = vpop.f32.mrb[0].mxu0
        %v2124 = vpop.f32.mrb[0].mxu0
        %v2125 = vpop.f32.mrb[0].mxu0
        %2126 = vdwg.mxu0
        %v2127 = vadd.f32 %v2002, %v2098
        %v2128 = vadd.f32 %v2005, %v2101
        %v2129 = vadd.f32 %v2010, %v2106
        %v2130 = vadd.f32 %v2013, %v2109
        %v2131 = vadd.f32 %v2018, %v2114
        %v2132 = vadd.f32 %v2021, %v2117
        %v2133 = vadd.f32 %v2026, %v2122
        %v2134 = vld [vmem:[%s13] sm:$0x1]
        %v2136 = vlaneseq
        %v2137 = vshrl.u32 %v2136, 7
        %v2138 = vsub.s32 0, %v2137
        %v2139 = vrot.slane %v2134, %v2138
        %v2141 = vadd.f32 %v2127, %v2139
        %v2142 = vadd.f32 %v2128, %v2139
        %v2143 = vadd.f32 %v2129, %v2139
        %v2144 = vadd.f32 %v2130, %v2139
        %v2145 = vadd.f32 %v2131, %v2139
        %v2146 = vadd.f32 %v2132, %v2139
        %v2147 = vadd.f32 %v2133, %v2139
        %v2148 = vxor.u32 %v2141, 2147483648
        %v2149 = vxor.u32 %v2142, 2147483648
        %v2150 = vxor.u32 %v2143, 2147483648
        %v2151 = vxor.u32 %v2144, 2147483648
        %v2152 = vxor.u32 %v2145, 2147483648
        %v2153 = vxor.u32 %v2146, 2147483648
        %v2154 = vxor.u32 %v2147, 2147483648
        %v2155 = vmul.f32 %v2148, 1.442695
        %v2156 = vpow.pop %v2155
        %v2157 = vmul.f32 %v2149, 1.442695
        %v2158 = vpow.pop %v2157
        %v2159 = vmul.f32 %v2150, 1.442695
        %v2160 = vpow.pop %v2159
        %v2161 = vmul.f32 %v2151, 1.442695
        %v2162 = vpow.pop %v2161
        %v2163 = vmul.f32 %v2152, 1.442695
        %v2164 = vpow.pop %v2163
        %v2165 = vmul.f32 %v2153, 1.442695
        %v2166 = vpow.pop %v2165
        %v2167 = vmul.f32 %v2154, 1.442695
        %v2168 = vpow.pop %v2167
        %v2169 = vadd.f32 %v2156, 1.0
        %v2170 = vadd.f32 %v2158, 1.0
        %v2171 = vadd.f32 %v2160, 1.0
        %v2172 = vadd.f32 %v2162, 1.0
        %v2173 = vadd.f32 %v2164, 1.0
        %v2174 = vadd.f32 %v2166, 1.0
        %v2175 = vadd.f32 %v2168, 1.0
        %v2176 = vrcp.pop %v2169
        %v2177 = vmul.f32 1.0, %v2176
        %v2178 = vrcp.pop %v2170
        %v2179 = vmul.f32 1.0, %v2178
        %v2180 = vrcp.pop %v2171
        %v2181 = vmul.f32 1.0, %v2180
        %v2182 = vrcp.pop %v2172
        %v2183 = vmul.f32 1.0, %v2182
        %v2184 = vrcp.pop %v2173
        %v2185 = vmul.f32 1.0, %v2184
        %v2186 = vrcp.pop %v2174
        %v2187 = vmul.f32 1.0, %v2186
        %v2188 = vrcp.pop %v2175
        %v2189 = vmul.f32 1.0, %v2188
        %v2190 = vmul.f32 %v2141, %v2177
        %v2191 = vmul.f32 %v2142, %v2179
        %v2192 = vmul.f32 %v2143, %v2181
        %v2193 = vmul.f32 %v2144, %v2183
        %v2194 = vmul.f32 %v2145, %v2185
        %v2195 = vmul.f32 %v2146, %v2187
        %v2196 = vmul.f32 %v2147, %v2189
        %2204 = vrot.lane.b32.xlu0 %v909, 96
        %v2205 = vpop.permute.xlu0 %2204
        %2206 = vrot.lane.b32.xlu0 %v913, 96
        %v2207 = vpop.permute.xlu0 %2206
        %2208 = vrot.lane.b32.xlu0 %v919, 96
        %v2209 = vpop.permute.xlu0 %2208
        %2210 = vrot.lane.b32.xlu0 %v923, 96
        %v2211 = vpop.permute.xlu0 %2210
        %2212 = vrot.lane.b32.xlu0 %v929, 96
        %v2213 = vpop.permute.xlu0 %2212
        %2214 = vrot.lane.b32.xlu0 %v933, 96
        %v2215 = vpop.permute.xlu0 %2214
        %2216 = vrot.lane.b32.xlu0 %v939, 96
        %v2217 = vpop.permute.xlu0 %2216
        %v2225 = vmul.f32 %v2190, %v2205
        %v2226 = vmul.f32 %v2191, %v2207
        %v2227 = vmul.f32 %v2192, %v2209
        %v2228 = vmul.f32 %v2193, %v2211
        %v2229 = vmul.f32 %v2194, %v2213
        %v2230 = vmul.f32 %v2195, %v2215
        %v2231 = vmul.f32 %v2196, %v2217
        %v2232 = vpack.c.bf16 %v2226, %v2225
        %v2233 = vpack.c.bf16 %v2228, %v2227
        %v2234 = vpack.c.bf16 %v2230, %v2229
        %v2235 = vpack.c.bf16 %v2231, %v2231
        %vm2236 = vcmask 457728
        %v2238 = vsel %vm2236, %v729, 0
        %v2241 = vsel %vm867, %v2235, 0
        %2243 = vmatprep.subr.bf16.mxu0 0
        %2244 = vmatpush1.bf16.msra.mxu0 %v2232
        %2245 = vmatprep.subr.bf16.mxu0 0
        %2246 = vmatpush1.bf16.msra.mxu0 %v2233
        %2247 = vmatprep.subr.bf16.mxu0 0
        %2248 = vmatpush1.bf16.msra.mxu0 %v2234
        %2249 = vmatprep.subr.bf16.mxu0 0
        %2250 = vmatpush1.bf16.msra.mxu0 %v2241
        %2251 = vmatprep.subr.bf16.mxu0 0
        %2252 = vmatpush1.bf16.msra.mxu0 0
        %2253 = vmatprep.subr.bf16.mxu0 0
        %2254 = vmatpush1.bf16.msra.mxu0 0
        %2255 = vmatprep.subr.bf16.mxu0 0
        %2256 = vmatpush1.bf16.msra.mxu0 0
        %2257 = vmatprep.subr.bf16.mxu0 0
        %2258 = vmatpush1.bf16.msra.mxu0 0
        %2259 = vmatprep.subr.bf16.mxu0 0
        %2260 = vmatpush1.bf16.msra.mxu0 0
        %2261 = vmatprep.subr.bf16.mxu0 0
        %2262 = vmatpush1.bf16.msra.mxu0 0
        %2263 = vmatprep.subr.bf16.mxu0 0
        %2264 = vmatpush1.bf16.msra.mxu0 0
        %2265 = vmatprep.subr.bf16.mxu0 0
        %2266 = vmatpush1.bf16.msra.mxu0 0
        %2267 = vmatprep.subr.bf16.mxu0 0
        %2268 = vmatpush1.bf16.msra.mxu0 0
        %2269 = vmatprep.subr.bf16.mxu0 0
        %2270 = vmatpush1.bf16.msra.mxu0 0
        %2271 = vmatprep.subr.bf16.mxu0 0
        %2272 = vmatpush1.bf16.msra.mxu0 0
        %2273 = vmatprep.subr.bf16.mxu0 0
        %2274 = vmatpush1.bf16.msra.mxu0 0
        %2275 = vmatprep.mubr.bf16.mxu0 0
        %2276 = vmatmul.mubr.bf16.gmra.mrb[0].mxu0 %v2238
        %v2277 = vpop.f32.mrb[0].mxu0
        %v2278 = vadd.f32 0.0, %v2277
        %v2279 = vpop.f32.mrb[0].mxu0
        %v2280 = vpop.f32.mrb[0].mxu0
        %v2281 = vpop.f32.mrb[0].mxu0
        %2282 = vdwg.mxu0
        %v2283 = vld [vmem:[%s14] sm:$0xf]
        %v2284 = vld [vmem:[%s14 + $0x4] sm:$0xf]
        %v2285 = vld [vmem:[%s14 + $0x8] sm:$0xf]
        %v2286 = vld [vmem:[%s14 + $0xc] sm:$0xf]
        %v2287 = vld [vmem:[%s15] sm:$0x1]
        %v2288 = vpack.c.bf16 %v2278, %v2278
        %v2290 = vlaneseq
        %v2291 = vshrl.u32 %v2290, 7
        %v2292 = vsub.s32 0, %v2291
        %v2293 = vrot.slane %v2287, %v2292
        %v2299 = vunpack.c.l.b16 %v2283
        %v2300 = vunpack.c.l.b16 %v2284
        %v2301 = vunpack.c.l.b16 %v2285
        %v2302 = vunpack.c.l.b16 %v2286
        %v2303 = vpack.c.b16 %v2300, %v2299
        %v2304 = vpack.c.b16 %v2302, %v2301
        %v2308 = vsel %vm1098, %v2288, 0
        %2310 = vmatprep.subr.bf16.mxu0 0
        %2311 = vmatpush1.bf16.msra.mxu0 %v2303
        %2312 = vmatprep.subr.bf16.mxu0 0
        %2313 = vmatpush1.bf16.msra.mxu0 %v2304
        %2314 = vmatprep.subr.bf16.mxu0 0
        %2315 = vmatpush1.bf16.msra.mxu0 0
        %2316 = vmatprep.subr.bf16.mxu0 0
        %2317 = vmatpush1.bf16.msra.mxu0 0
        %2318 = vmatprep.subr.bf16.mxu0 0
        %2319 = vmatpush1.bf16.msra.mxu0 0
        %2320 = vmatprep.subr.bf16.mxu0 0
        %2321 = vmatpush1.bf16.msra.mxu0 0
        %2322 = vmatprep.subr.bf16.mxu0 0
        %2323 = vmatpush1.bf16.msra.mxu0 0
        %2324 = vmatprep.subr.bf16.mxu0 0
        %2325 = vmatpush1.bf16.msra.mxu0 0
        %2326 = vmatprep.subr.bf16.mxu0 0
        %2327 = vmatpush1.bf16.msra.mxu0 0
        %2328 = vmatprep.subr.bf16.mxu0 0
        %2329 = vmatpush1.bf16.msra.mxu0 0
        %2330 = vmatprep.subr.bf16.mxu0 0
        %2331 = vmatpush1.bf16.msra.mxu0 0
        %2332 = vmatprep.subr.bf16.mxu0 0
        %2333 = vmatpush1.bf16.msra.mxu0 0
        %2334 = vmatprep.subr.bf16.mxu0 0
        %2335 = vmatpush1.bf16.msra.mxu0 0
        %2336 = vmatprep.subr.bf16.mxu0 0
        %2337 = vmatpush1.bf16.msra.mxu0 0
        %2338 = vmatprep.subr.bf16.mxu0 0
        %2339 = vmatpush1.bf16.msra.mxu0 0
        %2340 = vmatprep.subr.bf16.mxu0 0
        %2341 = vmatpush1.bf16.msra.mxu0 0
        %2342 = vmatprep.mubr.bf16.mxu0 0
        %2343 = vmatmul.mubr.bf16.gmra.mrb[0].mxu0 %v2308
        %v2344 = vpop.f32.mrb[0].mxu0
        %v2345 = vadd.f32 %v2293, %v2344
        %v2346 = vpop.f32.mrb[0].mxu0
        %v2347 = vpop.f32.mrb[0].mxu0
        %v2348 = vpop.f32.mrb[0].mxu0
        %2349 = vdwg.mxu0
        %v2350 = vxor.u32 %v2345, 2147483648
        %v2351 = vmul.f32 %v2350, 1.442695
        %v2352 = vpow.pop %v2351
        %v2353 = vadd.f32 %v2352, 1.0
        %v2354 = vrcp.pop %v2353
        %v2355 = vmul.f32 1.0, %v2354
        %v2356 = vmul.f32 %v2345, %v2355
        %s2357 = scalar_lea.vmem %s14, 16
        %v2358 = vld [vmem:[%s2357] sm:$0xf]
        %v2359 = vld [vmem:[%s2357 + $0x4] sm:$0xf]
        %v2360 = vld [vmem:[%s2357 + $0x8] sm:$0xf]
        %v2361 = vld [vmem:[%s2357 + $0xc] sm:$0xf]
        %s2362 = scalar_lea.vmem %s15, 1
        %v2363 = vld [vmem:[%s2362] sm:$0x1]
        %v2364 = vpack.c.bf16 %v2356, %v2356
        %v2366 = vlaneseq
        %v2367 = vshrl.u32 %v2366, 7
        %v2368 = vsub.s32 0, %v2367
        %v2369 = vrot.slane %v2363, %v2368
        %v2375 = vunpack.c.l.b16 %v2358
        %v2376 = vunpack.c.l.b16 %v2359
        %v2377 = vunpack.c.l.b16 %v2360
        %v2378 = vunpack.c.l.b16 %v2361
        %v2379 = vpack.c.b16 %v2376, %v2375
        %v2380 = vpack.c.b16 %v2378, %v2377
        %v2384 = vsel %vm1098, %v2364, 0
        %2386 = vmatprep.subr.bf16.mxu0 0
        %2387 = vmatpush1.bf16.msra.mxu0 %v2379
        %2388 = vmatprep.subr.bf16.mxu0 0
        %2389 = vmatpush1.bf16.msra.mxu0 %v2380
        %2390 = vmatprep.subr.bf16.mxu0 0
        %2391 = vmatpush1.bf16.msra.mxu0 0
        %2392 = vmatprep.subr.bf16.mxu0 0
        %2393 = vmatpush1.bf16.msra.mxu0 0
        %2394 = vmatprep.subr.bf16.mxu0 0
        %2395 = vmatpush1.bf16.msra.mxu0 0
        %2396 = vmatprep.subr.bf16.mxu0 0
        %2397 = vmatpush1.bf16.msra.mxu0 0
        %2398 = vmatprep.subr.bf16.mxu0 0
        %2399 = vmatpush1.bf16.msra.mxu0 0
        %2400 = vmatprep.subr.bf16.mxu0 0
        %2401 = vmatpush1.bf16.msra.mxu0 0
        %2402 = vmatprep.subr.bf16.mxu0 0
        %2403 = vmatpush1.bf16.msra.mxu0 0
        %2404 = vmatprep.subr.bf16.mxu0 0
        %2405 = vmatpush1.bf16.msra.mxu0 0
        %2406 = vmatprep.subr.bf16.mxu0 0
        %2407 = vmatpush1.bf16.msra.mxu0 0
        %2408 = vmatprep.subr.bf16.mxu0 0
        %2409 = vmatpush1.bf16.msra.mxu0 0
        %2410 = vmatprep.subr.bf16.mxu0 0
        %2411 = vmatpush1.bf16.msra.mxu0 0
        %2412 = vmatprep.subr.bf16.mxu0 0
        %2413 = vmatpush1.bf16.msra.mxu0 0
        %2414 = vmatprep.subr.bf16.mxu0 0
        %2415 = vmatpush1.bf16.msra.mxu0 0
        %2416 = vmatprep.subr.bf16.mxu0 0
        %2417 = vmatpush1.bf16.msra.mxu0 0
        %2418 = vmatprep.mubr.bf16.mxu0 0
        %2419 = vmatmul.mubr.bf16.gmra.mrb[0].mxu0 %v2384
        %v2420 = vpop.f32.mrb[0].mxu0
        %v2421 = vadd.f32 %v2369, %v2420
        %v2422 = vpop.f32.mrb[0].mxu0
        %v2423 = vpop.f32.mrb[0].mxu0
        %v2424 = vpop.f32.mrb[0].mxu0
        %2425 = vdwg.mxu0
        %v2426 = vxor.u32 %v2421, 2147483648
        %v2427 = vmul.f32 %v2426, 1.442695
        %v2428 = vpow.pop %v2427
        %v2429 = vadd.f32 %v2428, 1.0
        %v2430 = vrcp.pop %v2429
        %v2431 = vmul.f32 1.0, %v2430
        %v2432 = vmul.f32 %v2421, %v2431
        %s2433 = scalar_lea.vmem %s14, 32
        %v2434 = vld [vmem:[%s2433] sm:$0xf]
        %v2435 = vld [vmem:[%s2433 + $0x4] sm:$0xf]
        %v2436 = vld [vmem:[%s2433 + $0x8] sm:$0xf]
        %v2437 = vld [vmem:[%s2433 + $0xc] sm:$0xf]
        %s2438 = scalar_lea.vmem %s15, 2
        %v2439 = vld [vmem:[%s2438] sm:$0x1]
        %v2440 = vpack.c.bf16 %v2432, %v2432
        %v2442 = vlaneseq
        %v2443 = vshrl.u32 %v2442, 7
        %v2444 = vsub.s32 0, %v2443
        %v2445 = vrot.slane %v2439, %v2444
        %v2451 = vunpack.c.l.b16 %v2434
        %v2452 = vunpack.c.l.b16 %v2435
        %v2453 = vunpack.c.l.b16 %v2436
        %v2454 = vunpack.c.l.b16 %v2437
        %v2455 = vpack.c.b16 %v2452, %v2451
        %v2456 = vpack.c.b16 %v2454, %v2453
        %v2460 = vsel %vm1098, %v2440, 0
        %2462 = vmatprep.subr.bf16.mxu0 0
        %2463 = vmatpush1.bf16.msra.mxu0 %v2455
        %2464 = vmatprep.subr.bf16.mxu0 0
        %2465 = vmatpush1.bf16.msra.mxu0 %v2456
        %2466 = vmatprep.subr.bf16.mxu0 0
        %2467 = vmatpush1.bf16.msra.mxu0 0
        %2468 = vmatprep.subr.bf16.mxu0 0
        %2469 = vmatpush1.bf16.msra.mxu0 0
        %2470 = vmatprep.subr.bf16.mxu0 0
        %2471 = vmatpush1.bf16.msra.mxu0 0
        %2472 = vmatprep.subr.bf16.mxu0 0
        %2473 = vmatpush1.bf16.msra.mxu0 0
        %2474 = vmatprep.subr.bf16.mxu0 0
        %2475 = vmatpush1.bf16.msra.mxu0 0
        %2476 = vmatprep.subr.bf16.mxu0 0
        %2477 = vmatpush1.bf16.msra.mxu0 0
        %2478 = vmatprep.subr.bf16.mxu0 0
        %2479 = vmatpush1.bf16.msra.mxu0 0
        %2480 = vmatprep.subr.bf16.mxu0 0
        %2481 = vmatpush1.bf16.msra.mxu0 0
        %2482 = vmatprep.subr.bf16.mxu0 0
        %2483 = vmatpush1.bf16.msra.mxu0 0
        %2484 = vmatprep.subr.bf16.mxu0 0
        %2485 = vmatpush1.bf16.msra.mxu0 0
        %2486 = vmatprep.subr.bf16.mxu0 0
        %2487 = vmatpush1.bf16.msra.mxu0 0
        %2488 = vmatprep.subr.bf16.mxu0 0
        %2489 = vmatpush1.bf16.msra.mxu0 0
        %2490 = vmatprep.subr.bf16.mxu0 0
        %2491 = vmatpush1.bf16.msra.mxu0 0
        %2492 = vmatprep.subr.bf16.mxu0 0
        %2493 = vmatpush1.bf16.msra.mxu0 0
        %2494 = vmatprep.mubr.bf16.mxu0 0
        %2495 = vmatmul.mubr.bf16.gmra.mrb[0].mxu0 %v2460
        %v2496 = vpop.f32.mrb[0].mxu0
        %v2497 = vadd.f32 %v2445, %v2496
        %v2498 = vpop.f32.mrb[0].mxu0
        %v2499 = vpop.f32.mrb[0].mxu0
        %v2500 = vpop.f32.mrb[0].mxu0
        %2501 = vdwg.mxu0
        %v2502 = vxor.u32 %v2497, 2147483648
        %v2503 = vmul.f32 %v2502, 1.442695
        %v2504 = vpow.pop %v2503
        %v2505 = vadd.f32 %v2504, 1.0
        %v2506 = vrcp.pop %v2505
        %v2507 = vmul.f32 1.0, %v2506
        %v2508 = vmul.f32 %v2497, %v2507
        %v2509 = vsel %vm1098, %v2508, 0.0
        %v2510 = vrot.slane %v2509, 4
        %v2511 = vadd.f32 %v2509, %v2510
        %v2512 = vrot.slane %v2511, 2
        %v2513 = vadd.f32 %v2511, %v2512
        %v2514 = vrot.slane %v2513, 1
        %v2515 = vadd.f32 %v2513, %v2514
        %v2516 = vld [vmem:[%s16] sm:$0xf]
        %v2517 = vld [vmem:[%s16 + $0x4] sm:$0xf]
        %v2518 = vld [vmem:[%s16 + $0x8] sm:$0xf]
        %v2519 = vld [vmem:[%s16 + $0xc] sm:$0xf]
        %v2520 = vpack.c.bf16 %v2191, %v2190
        %v2521 = vpack.c.bf16 %v2193, %v2192
        %v2522 = vpack.c.bf16 %v2195, %v2194
        %v2523 = vpack.c.bf16 %v2196, %v2196
        %v2524 = vld [vmem:[%s17] sm:$0x1]
        %v2526 = vlaneseq
        %v2527 = vshrl.u32 %v2526, 7
        %v2528 = vsub.s32 0, %v2527
        %v2529 = vrot.slane %v2524, %v2528
        %v2535 = vunpack.c.l.b16 %v2516
        %v2536 = vunpack.c.l.b16 %v2517
        %v2537 = vunpack.c.l.b16 %v2518
        %v2538 = vunpack.c.l.b16 %v2519
        %v2539 = vpack.c.b16 %v2536, %v2535
        %v2540 = vpack.c.b16 %v2538, %v2537
        %v2544 = vsel %vm1098, %v2520, 0
        %v2547 = vsel %vm1098, %v2521, 0
        %v2550 = vsel %vm1098, %v2522, 0
        %v2553 = vsel %vm1098, %v2523, 0
        %2555 = vmatprep.subr.bf16.mxu0 0
        %2556 = vmatpush1.bf16.msra.mxu0 %v2539
        %2557 = vmatprep.subr.bf16.mxu0 0
        %2558 = vmatpush1.bf16.msra.mxu0 %v2540
        %2559 = vmatprep.subr.bf16.mxu0 0
        %2560 = vmatpush1.bf16.msra.mxu0 0
        %2561 = vmatprep.subr.bf16.mxu0 0
        %2562 = vmatpush1.bf16.msra.mxu0 0
        %2563 = vmatprep.subr.bf16.mxu0 0
        %2564 = vmatpush1.bf16.msra.mxu0 0
        %2565 = vmatprep.subr.bf16.mxu0 0
        %2566 = vmatpush1.bf16.msra.mxu0 0
        %2567 = vmatprep.subr.bf16.mxu0 0
        %2568 = vmatpush1.bf16.msra.mxu0 0
        %2569 = vmatprep.subr.bf16.mxu0 0
        %2570 = vmatpush1.bf16.msra.mxu0 0
        %2571 = vmatprep.subr.bf16.mxu0 0
        %2572 = vmatpush1.bf16.msra.mxu0 0
        %2573 = vmatprep.subr.bf16.mxu0 0
        %2574 = vmatpush1.bf16.msra.mxu0 0
        %2575 = vmatprep.subr.bf16.mxu0 0
        %2576 = vmatpush1.bf16.msra.mxu0 0
        %2577 = vmatprep.subr.bf16.mxu0 0
        %2578 = vmatpush1.bf16.msra.mxu0 0
        %2579 = vmatprep.subr.bf16.mxu0 0
        %2580 = vmatpush1.bf16.msra.mxu0 0
        %2581 = vmatprep.subr.bf16.mxu0 0
        %2582 = vmatpush1.bf16.msra.mxu0 0
        %2583 = vmatprep.subr.bf16.mxu0 0
        %2584 = vmatpush1.bf16.msra.mxu0 0
        %2585 = vmatprep.subr.bf16.mxu0 0
        %2586 = vmatpush1.bf16.msra.mxu0 0
        %2587 = vmatprep.mubr.bf16.mxu0 0
        %2588 = vmatmul.mubr.bf16.gmra.mrb[0].mxu0 %v2544
        %v2589 = vpop.f32.mrb[0].mxu0
        %v2590 = vadd.f32 %v2529, %v2589
        %v2591 = vpop.f32.mrb[0].mxu0
        %v2592 = vpop.f32.mrb[0].mxu0
        %v2593 = vadd.f32 %v2529, %v2592
        %v2594 = vpop.f32.mrb[0].mxu0
        %2595 = vmatprep.mubr.bf16.mxu0 0
        %2596 = vmatmul.mubr.bf16.gmra.mrb[0].mxu0 %v2547
        %v2597 = vpop.f32.mrb[0].mxu0
        %v2598 = vadd.f32 %v2529, %v2597
        %v2599 = vpop.f32.mrb[0].mxu0
        %v2600 = vpop.f32.mrb[0].mxu0
        %v2601 = vadd.f32 %v2529, %v2600
        %v2602 = vpop.f32.mrb[0].mxu0
        %2603 = vmatprep.mubr.bf16.mxu0 0
        %2604 = vmatmul.mubr.bf16.gmra.mrb[0].mxu0 %v2550
        %v2605 = vpop.f32.mrb[0].mxu0
        %v2606 = vadd.f32 %v2529, %v2605
        %v2607 = vpop.f32.mrb[0].mxu0
        %v2608 = vpop.f32.mrb[0].mxu0
        %v2609 = vadd.f32 %v2529, %v2608
        %v2610 = vpop.f32.mrb[0].mxu0
        %2611 = vmatprep.mubr.bf16.mxu0 0
        %2612 = vmatmul.mubr.bf16.gmra.mrb[0].mxu0 %v2553
        %v2613 = vpop.f32.mrb[0].mxu0
        %v2614 = vadd.f32 %v2529, %v2613
        %v2615 = vpop.f32.mrb[0].mxu0
        %v2616 = vpop.f32.mrb[0].mxu0
        %v2617 = vpop.f32.mrb[0].mxu0
        %2618 = vdwg.mxu0
        %v2619 = vxor.u32 %v2590, 2147483648
        %v2620 = vxor.u32 %v2593, 2147483648
        %v2621 = vxor.u32 %v2598, 2147483648
        %v2622 = vxor.u32 %v2601, 2147483648
        %v2623 = vxor.u32 %v2606, 2147483648
        %v2624 = vxor.u32 %v2609, 2147483648
        %v2625 = vxor.u32 %v2614, 2147483648
        %v2626 = vmul.f32 %v2619, 1.442695
        %v2627 = vpow.pop %v2626
        %v2628 = vmul.f32 %v2620, 1.442695
        %v2629 = vpow.pop %v2628
        %v2630 = vmul.f32 %v2621, 1.442695
        %v2631 = vpow.pop %v2630
        %v2632 = vmul.f32 %v2622, 1.442695
        %v2633 = vpow.pop %v2632
        %v2634 = vmul.f32 %v2623, 1.442695
        %v2635 = vpow.pop %v2634
        %v2636 = vmul.f32 %v2624, 1.442695
        %v2637 = vpow.pop %v2636
        %v2638 = vmul.f32 %v2625, 1.442695
        %v2639 = vpow.pop %v2638
        %v2640 = vadd.f32 %v2627, 1.0
        %v2641 = vadd.f32 %v2629, 1.0
        %v2642 = vadd.f32 %v2631, 1.0
        %v2643 = vadd.f32 %v2633, 1.0
        %v2644 = vadd.f32 %v2635, 1.0
        %v2645 = vadd.f32 %v2637, 1.0
        %v2646 = vadd.f32 %v2639, 1.0
        %v2647 = vrcp.pop %v2640
        %v2648 = vmul.f32 1.0, %v2647
        %v2649 = vrcp.pop %v2641
        %v2650 = vmul.f32 1.0, %v2649
        %v2651 = vrcp.pop %v2642
        %v2652 = vmul.f32 1.0, %v2651
        %v2653 = vrcp.pop %v2643
        %v2654 = vmul.f32 1.0, %v2653
        %v2655 = vrcp.pop %v2644
        %v2656 = vmul.f32 1.0, %v2655
        %v2657 = vrcp.pop %v2645
        %v2658 = vmul.f32 1.0, %v2657
        %v2659 = vrcp.pop %v2646
        %v2660 = vmul.f32 1.0, %v2659
        %v2661 = vmul.f32 %v2590, %v2648
        %v2662 = vmul.f32 %v2593, %v2650
        %v2663 = vmul.f32 %v2598, %v2652
        %v2664 = vmul.f32 %v2601, %v2654
        %v2665 = vmul.f32 %v2606, %v2656
        %v2666 = vmul.f32 %v2609, %v2658
        %v2667 = vmul.f32 %v2614, %v2660
        %2675 = vrot.lane.b32.xlu0 %v911, 32
        %v2676 = vpop.permute.xlu0 %2675
        %2677 = vrot.lane.b32.xlu0 %v915, 32
        %v2678 = vpop.permute.xlu0 %2677
        %2679 = vrot.lane.b32.xlu0 %v921, 32
        %v2680 = vpop.permute.xlu0 %2679
        %2681 = vrot.lane.b32.xlu0 %v925, 32
        %v2682 = vpop.permute.xlu0 %2681
        %2683 = vrot.lane.b32.xlu0 %v931, 32
        %v2684 = vpop.permute.xlu0 %2683
        %2685 = vrot.lane.b32.xlu0 %v935, 32
        %v2686 = vpop.permute.xlu0 %2685
        %2687 = vrot.lane.b32.xlu0 %v941, 32
        %v2688 = vpop.permute.xlu0 %2687
        %v2696 = vmul.f32 %v2661, %v2676
        %v2697 = vmul.f32 %v2662, %v2678
        %v2698 = vmul.f32 %v2663, %v2680
        %v2699 = vmul.f32 %v2664, %v2682
        %v2700 = vmul.f32 %v2665, %v2684
        %v2701 = vmul.f32 %v2666, %v2686
        %v2702 = vmul.f32 %v2667, %v2688
        %v2703 = vpack.c.bf16 %v2697, %v2696
        %v2704 = vpack.c.bf16 %v2699, %v2698
        %v2705 = vpack.c.bf16 %v2701, %v2700
        %v2706 = vpack.c.bf16 %v2702, %v2702
        %v2749 = vunpack.c.l.b16 %v730
        %v2750 = vunpack.c.l.b16 %v731
        %v2751 = vunpack.c.l.b16 %v732
        %v2752 = vunpack.c.l.b16 %v733
        %v2753 = vunpack.c.l.b16 %v734
        %v2754 = vunpack.c.l.b16 %v735
        %v2755 = vunpack.c.l.b16 %v736
        %v2756 = vunpack.c.l.b16 %v737
        %v2757 = vunpack.c.l.b16 %v738
        %v2758 = vunpack.c.l.b16 %v739
        %v2759 = vunpack.c.l.b16 %v740
        %v2760 = vunpack.c.l.b16 %v741
        %v2761 = vunpack.c.l.b16 %v742
        %v2762 = vunpack.c.l.b16 %v743
        %v2763 = vunpack.c.l.b16 %v744
        %v2764 = vunpack.c.l.b16 %v745
        %v2765 = vunpack.c.l.b16 %v746
        %v2766 = vunpack.c.l.b16 %v747
        %v2767 = vunpack.c.l.b16 %v748
        %v2768 = vunpack.c.l.b16 %v749
        %v2769 = vunpack.c.l.b16 %v750
        %v2770 = vunpack.c.l.b16 %v751
        %v2771 = vunpack.c.l.b16 %v752
        %v2772 = vunpack.c.l.b16 %v753
        %v2773 = vunpack.c.l.b16 %v754
        %v2774 = vunpack.c.l.b16 %v755
        %v2775 = vunpack.c.l.b16 %v756
        %v2776 = vunpack.c.l.b16 %v757
        %v2777 = vunpack.c.l.b16 %v758
        %v2778 = vunpack.c.l.b16 %v759
        %v2779 = vunpack.c.l.b16 %v760
        %v2780 = vunpack.c.l.b16 %v761
        %v2781 = vunpack.c.l.b16 %v762
        %v2782 = vunpack.c.l.b16 %v763
        %v2783 = vunpack.c.l.b16 %v764
        %v2784 = vunpack.c.l.b16 %v765
        %v2785 = vunpack.c.l.b16 %v766
        %v2786 = vunpack.c.l.b16 %v767
        %v2787 = vunpack.c.l.b16 %v768
        %v2788 = vunpack.c.l.b16 %v769
        %v2789 = vunpack.c.l.b16 %v770
        %v2790 = vunpack.c.l.b16 %v771
        %v2791 = vpack.c.b16 %v2750, %v2749
        %v2792 = vpack.c.b16 %v2752, %v2751
        %v2793 = vpack.c.b16 %v2754, %v2753
        %v2794 = vpack.c.b16 %v2756, %v2755
        %v2795 = vpack.c.b16 %v2758, %v2757
        %v2796 = vpack.c.b16 %v2760, %v2759
        %v2797 = vpack.c.b16 %v2762, %v2761
        %v2798 = vpack.c.b16 %v2764, %v2763
        %v2799 = vpack.c.b16 %v2766, %v2765
        %v2800 = vpack.c.b16 %v2768, %v2767
        %v2801 = vpack.c.b16 %v2770, %v2769
        %v2802 = vpack.c.b16 %v2772, %v2771
        %v2803 = vpack.c.b16 %v2774, %v2773
        %v2804 = vpack.c.b16 %v2776, %v2775
        %v2805 = vpack.c.b16 %v2778, %v2777
        %v2806 = vpack.c.b16 %v2780, %v2779
        %v2807 = vpack.c.b16 %v2782, %v2781
        %v2808 = vpack.c.b16 %v2784, %v2783
        %v2809 = vpack.c.b16 %v2786, %v2785
        %v2810 = vpack.c.b16 %v2788, %v2787
        %v2811 = vpack.c.b16 %v2790, %v2789
        %2816 = vrot.lane.b32.xlu0 %v2703, 96
        %v2817 = vpop.permute.xlu0 %2816
        %2818 = vrot.lane.b32.xlu0 %v2704, 96
        %v2819 = vpop.permute.xlu0 %2818
        %2820 = vrot.lane.b32.xlu0 %v2705, 96
        %v2821 = vpop.permute.xlu0 %2820
        %2822 = vrot.lane.b32.xlu0 %v2706, 96
        %v2823 = vpop.permute.xlu0 %2822
        %v2828 = vsel %vm2236, %v2791, 0
        %v2831 = vsel %vm2236, %v2792, 0
        %v2834 = vsel %vm2236, %v2793, 0
        %v2837 = vsel %vm2236, %v2794, 0
        %v2840 = vsel %vm2236, %v2795, 0
        %v2843 = vsel %vm2236, %v2796, 0
        %v2846 = vsel %vm2236, %v2797, 0
        %v2849 = vsel %vm2236, %v2798, 0
        %v2852 = vsel %vm2236, %v2799, 0
        %v2855 = vsel %vm2236, %v2800, 0
        %v2858 = vsel %vm2236, %v2801, 0
        %v2861 = vsel %vm2236, %v2802, 0
        %v2864 = vsel %vm2236, %v2803, 0
        %v2867 = vsel %vm2236, %v2804, 0
        %v2870 = vsel %vm2236, %v2805, 0
        %v2873 = vsel %vm2236, %v2806, 0
        %v2876 = vsel %vm2236, %v2807, 0
        %v2879 = vsel %vm2236, %v2808, 0
        %v2882 = vsel %vm2236, %v2809, 0
        %v2885 = vsel %vm2236, %v2810, 0
        %v2888 = vsel %vm2236, %v2811, 0
        %v2891 = vsel %vm867, %v2823, 0
        %2893 = vmatprep.subr.bf16.mxu0 0
        %2894 = vmatpush1.bf16.msra.mxu0 %v2817
        %2895 = vmatprep.subr.bf16.mxu0 0
        %2896 = vmatpush1.bf16.msra.mxu0 %v2819
        %2897 = vmatprep.subr.bf16.mxu0 0
        %2898 = vmatpush1.bf16.msra.mxu0 %v2821
        %2899 = vmatprep.subr.bf16.mxu0 0
        %2900 = vmatpush1.bf16.msra.mxu0 %v2891
        %2901 = vmatprep.subr.bf16.mxu0 0
        %2902 = vmatpush1.bf16.msra.mxu0 0
        %2903 = vmatprep.subr.bf16.mxu0 0
        %2904 = vmatpush1.bf16.msra.mxu0 0
        %2905 = vmatprep.subr.bf16.mxu0 0
        %2906 = vmatpush1.bf16.msra.mxu0 0
        %2907 = vmatprep.subr.bf16.mxu0 0
        %2908 = vmatpush1.bf16.msra.mxu0 0
        %2909 = vmatprep.subr.bf16.mxu0 0
        %2910 = vmatpush1.bf16.msra.mxu0 0
        %2911 = vmatprep.subr.bf16.mxu0 0
        %2912 = vmatpush1.bf16.msra.mxu0 0
        %2913 = vmatprep.subr.bf16.mxu0 0
        %2914 = vmatpush1.bf16.msra.mxu0 0
        %2915 = vmatprep.subr.bf16.mxu0 0
        %2916 = vmatpush1.bf16.msra.mxu0 0
        %2917 = vmatprep.subr.bf16.mxu0 0
        %2918 = vmatpush1.bf16.msra.mxu0 0
        %2919 = vmatprep.subr.bf16.mxu0 0
        %2920 = vmatpush1.bf16.msra.mxu0 0
        %2921 = vmatprep.subr.bf16.mxu0 0
        %2922 = vmatpush1.bf16.msra.mxu0 0
        %2923 = vmatprep.subr.bf16.mxu0 0
        %2924 = vmatpush1.bf16.msra.mxu0 0
        %2925 = vmatprep.mubr.bf16.mxu0 0
        %2926 = vmatmul.mubr.bf16.gmra.mrb[0].mxu0 %v2828
        %v2927 = vpop.f32.mrb[0].mxu0
        %v2928 = vadd.f32 0.0, %v2927
        %v2929 = vpop.f32.mrb[0].mxu0
        %v2930 = vpop.f32.mrb[0].mxu0
        %v2931 = vadd.f32 0.0, %v2930
        %v2932 = vpop.f32.mrb[0].mxu0
        %2933 = vmatprep.mubr.bf16.mxu0 0
        %2934 = vmatmul.mubr.bf16.gmra.mrb[0].mxu0 %v2831
        %v2935 = vpop.f32.mrb[0].mxu0
        %v2936 = vadd.f32 0.0, %v2935
        %v2937 = vpop.f32.mrb[0].mxu0
        %v2938 = vpop.f32.mrb[0].mxu0
        %v2939 = vadd.f32 0.0, %v2938
        %v2940 = vpop.f32.mrb[0].mxu0
        %2941 = vmatprep.mubr.bf16.mxu0 0
        %2942 = vmatmul.mubr.bf16.gmra.mrb[0].mxu0 %v2834
        %v2943 = vpop.f32.mrb[0].mxu0
        %v2944 = vadd.f32 0.0, %v2943
        %v2945 = vpop.f32.mrb[0].mxu0
        %v2946 = vpop.f32.mrb[0].mxu0
        %v2947 = vadd.f32 0.0, %v2946
        %v2948 = vpop.f32.mrb[0].mxu0
        %2949 = vmatprep.mubr.bf16.mxu0 0
        %2950 = vmatmul.mubr.bf16.gmra.mrb[0].mxu0 %v2837
        %v2951 = vpop.f32.mrb[0].mxu0
        %v2952 = vadd.f32 0.0, %v2951
        %v2953 = vpop.f32.mrb[0].mxu0
        %v2954 = vpop.f32.mrb[0].mxu0
        %v2955 = vadd.f32 0.0, %v2954
        %v2956 = vpop.f32.mrb[0].mxu0
        %2957 = vmatprep.mubr.bf16.mxu0 0
        %2958 = vmatmul.mubr.bf16.gmra.mrb[0].mxu0 %v2840
        %v2959 = vpop.f32.mrb[0].mxu0
        %v2960 = vadd.f32 0.0, %v2959
        %v2961 = vpop.f32.mrb[0].mxu0
        %v2962 = vpop.f32.mrb[0].mxu0
        %v2963 = vadd.f32 0.0, %v2962
        %v2964 = vpop.f32.mrb[0].mxu0
        %2965 = vmatprep.mubr.bf16.mxu0 0
        %2966 = vmatmul.mubr.bf16.gmra.mrb[0].mxu0 %v2843
        %v2967 = vpop.f32.mrb[0].mxu0
        %v2968 = vadd.f32 0.0, %v2967
        %v2969 = vpop.f32.mrb[0].mxu0
        %v2970 = vpop.f32.mrb[0].mxu0
        %v2971 = vadd.f32 0.0, %v2970
        %v2972 = vpop.f32.mrb[0].mxu0
        %2973 = vmatprep.mubr.bf16.mxu0 0
        %2974 = vmatmul.mubr.bf16.gmra.mrb[0].mxu0 %v2846
        %v2975 = vpop.f32.mrb[0].mxu0
        %v2976 = vadd.f32 0.0, %v2975
        %v2977 = vpop.f32.mrb[0].mxu0
        %v2978 = vpop.f32.mrb[0].mxu0
        %v2979 = vadd.f32 0.0, %v2978
        %v2980 = vpop.f32.mrb[0].mxu0
        %2981 = vmatprep.mubr.bf16.mxu0 0
        %2982 = vmatmul.mubr.bf16.gmra.mrb[0].mxu0 %v2849
        %v2983 = vpop.f32.mrb[0].mxu0
        %v2984 = vadd.f32 0.0, %v2983
        %v2985 = vpop.f32.mrb[0].mxu0
        %v2986 = vpop.f32.mrb[0].mxu0
        %v2987 = vadd.f32 0.0, %v2986
        %v2988 = vpop.f32.mrb[0].mxu0
        %2989 = vmatprep.mubr.bf16.mxu0 0
        %2990 = vmatmul.mubr.bf16.gmra.mrb[0].mxu0 %v2852
        %v2991 = vpop.f32.mrb[0].mxu0
        %v2992 = vadd.f32 0.0, %v2991
        %v2993 = vpop.f32.mrb[0].mxu0
        %v2994 = vpop.f32.mrb[0].mxu0
        %v2995 = vadd.f32 0.0, %v2994
        %v2996 = vpop.f32.mrb[0].mxu0
        %2997 = vmatprep.mubr.bf16.mxu0 0
        %2998 = vmatmul.mubr.bf16.gmra.mrb[0].mxu0 %v2855
        %v2999 = vpop.f32.mrb[0].mxu0
        %v3000 = vadd.f32 0.0, %v2999
        %v3001 = vpop.f32.mrb[0].mxu0
        %v3002 = vpop.f32.mrb[0].mxu0
        %v3003 = vadd.f32 0.0, %v3002
        %v3004 = vpop.f32.mrb[0].mxu0
        %3005 = vmatprep.mubr.bf16.mxu0 0
        %3006 = vmatmul.mubr.bf16.gmra.mrb[0].mxu0 %v2858
        %v3007 = vpop.f32.mrb[0].mxu0
        %v3008 = vadd.f32 0.0, %v3007
        %v3009 = vpop.f32.mrb[0].mxu0
        %v3010 = vpop.f32.mrb[0].mxu0
        %v3011 = vadd.f32 0.0, %v3010
        %v3012 = vpop.f32.mrb[0].mxu0
        %3013 = vmatprep.mubr.bf16.mxu0 0
        %3014 = vmatmul.mubr.bf16.gmra.mrb[0].mxu0 %v2861
        %v3015 = vpop.f32.mrb[0].mxu0
        %v3016 = vadd.f32 0.0, %v3015
        %v3017 = vpop.f32.mrb[0].mxu0
        %v3018 = vpop.f32.mrb[0].mxu0
        %v3019 = vadd.f32 0.0, %v3018
        %v3020 = vpop.f32.mrb[0].mxu0
        %3021 = vmatprep.mubr.bf16.mxu0 0
        %3022 = vmatmul.mubr.bf16.gmra.mrb[0].mxu0 %v2864
        %v3023 = vpop.f32.mrb[0].mxu0
        %v3024 = vadd.f32 0.0, %v3023
        %v3025 = vpop.f32.mrb[0].mxu0
        %v3026 = vpop.f32.mrb[0].mxu0
        %v3027 = vadd.f32 0.0, %v3026
        %v3028 = vpop.f32.mrb[0].mxu0
        %3029 = vmatprep.mubr.bf16.mxu0 0
        %3030 = vmatmul.mubr.bf16.gmra.mrb[0].mxu0 %v2867
        %v3031 = vpop.f32.mrb[0].mxu0
        %v3032 = vadd.f32 0.0, %v3031
        %v3033 = vpop.f32.mrb[0].mxu0
        %v3034 = vpop.f32.mrb[0].mxu0
        %v3035 = vadd.f32 0.0, %v3034
        %v3036 = vpop.f32.mrb[0].mxu0
        %3037 = vmatprep.mubr.bf16.mxu0 0
        %3038 = vmatmul.mubr.bf16.gmra.mrb[0].mxu0 %v2870
        %v3039 = vpop.f32.mrb[0].mxu0
        %v3040 = vadd.f32 0.0, %v3039
        %v3041 = vpop.f32.mrb[0].mxu0
        %v3042 = vpop.f32.mrb[0].mxu0
        %v3043 = vadd.f32 0.0, %v3042
        %v3044 = vpop.f32.mrb[0].mxu0
        %3045 = vmatprep.mubr.bf16.mxu0 0
        %3046 = vmatmul.mubr.bf16.gmra.mrb[0].mxu0 %v2873
        %v3047 = vpop.f32.mrb[0].mxu0
        %v3048 = vadd.f32 0.0, %v3047
        %v3049 = vpop.f32.mrb[0].mxu0
        %v3050 = vpop.f32.mrb[0].mxu0
        %v3051 = vadd.f32 0.0, %v3050
        %v3052 = vpop.f32.mrb[0].mxu0
        %3053 = vmatprep.mubr.bf16.mxu0 0
        %3054 = vmatmul.mubr.bf16.gmra.mrb[0].mxu0 %v2876
        %v3055 = vpop.f32.mrb[0].mxu0
        %v3056 = vadd.f32 0.0, %v3055
        %v3057 = vpop.f32.mrb[0].mxu0
        %v3058 = vpop.f32.mrb[0].mxu0
        %v3059 = vadd.f32 0.0, %v3058
        %v3060 = vpop.f32.mrb[0].mxu0
        %3061 = vmatprep.mubr.bf16.mxu0 0
        %3062 = vmatmul.mubr.bf16.gmra.mrb[0].mxu0 %v2879
        %v3063 = vpop.f32.mrb[0].mxu0
        %v3064 = vadd.f32 0.0, %v3063
        %v3065 = vpop.f32.mrb[0].mxu0
        %v3066 = vpop.f32.mrb[0].mxu0
        %v3067 = vadd.f32 0.0, %v3066
        %v3068 = vpop.f32.mrb[0].mxu0
        %3069 = vmatprep.mubr.bf16.mxu0 0
        %3070 = vmatmul.mubr.bf16.gmra.mrb[0].mxu0 %v2882
        %v3071 = vpop.f32.mrb[0].mxu0
        %v3072 = vadd.f32 0.0, %v3071
        %v3073 = vpop.f32.mrb[0].mxu0
        %v3074 = vpop.f32.mrb[0].mxu0
        %v3075 = vadd.f32 0.0, %v3074
        %v3076 = vpop.f32.mrb[0].mxu0
        %3077 = vmatprep.mubr.bf16.mxu0 0
        %3078 = vmatmul.mubr.bf16.gmra.mrb[0].mxu0 %v2885
        %v3079 = vpop.f32.mrb[0].mxu0
        %v3080 = vadd.f32 0.0, %v3079
        %v3081 = vpop.f32.mrb[0].mxu0
        %v3082 = vpop.f32.mrb[0].mxu0
        %v3083 = vadd.f32 0.0, %v3082
        %v3084 = vpop.f32.mrb[0].mxu0
        %3085 = vmatprep.mubr.bf16.mxu0 0
        %3086 = vmatmul.mubr.bf16.gmra.mrb[0].mxu0 %v2888
        %v3087 = vpop.f32.mrb[0].mxu0
        %v3088 = vadd.f32 0.0, %v3087
        %v3089 = vpop.f32.mrb[0].mxu0
        %v3090 = vpop.f32.mrb[0].mxu0
        %v3091 = vadd.f32 0.0, %v3090
        %v3092 = vpop.f32.mrb[0].mxu0
        %3093 = vdwg.mxu0
        %v3094 = vld [vmem:[%s18] sm:$0xff]
        %v3095 = vld [vmem:[%s18 + $0x8] sm:$0xff]
        %v3096 = vld [vmem:[%s18 + $0x10] sm:$0xff]
        %v3097 = vld [vmem:[%s18 + $0x18] sm:$0xff]
        %v3098 = vpack.c.bf16 %v2931, %v2928
        %v3099 = vpack.c.bf16 %v2939, %v2936
        %v3100 = vpack.c.bf16 %v2947, %v2944
        %v3101 = vpack.c.bf16 %v2955, %v2952
        %v3102 = vpack.c.bf16 %v2963, %v2960
        %v3103 = vpack.c.bf16 %v2971, %v2968
        %v3104 = vpack.c.bf16 %v2979, %v2976
        %v3105 = vpack.c.bf16 %v2987, %v2984
        %v3106 = vpack.c.bf16 %v2995, %v2992
        %v3107 = vpack.c.bf16 %v3003, %v3000
        %v3108 = vpack.c.bf16 %v3011, %v3008
        %v3109 = vpack.c.bf16 %v3019, %v3016
        %v3110 = vpack.c.bf16 %v3027, %v3024
        %v3111 = vpack.c.bf16 %v3035, %v3032
        %v3112 = vpack.c.bf16 %v3043, %v3040
        %v3113 = vpack.c.bf16 %v3051, %v3048
        %v3114 = vpack.c.bf16 %v3059, %v3056
        %v3115 = vpack.c.bf16 %v3067, %v3064
        %v3116 = vpack.c.bf16 %v3075, %v3072
        %v3117 = vpack.c.bf16 %v3083, %v3080
        %v3118 = vpack.c.bf16 %v3091, %v3088
        %v3123 = vunpack.c.l.b16 %v3094
        %v3124 = vunpack.c.h.b16 %v3094
        %v3125 = vunpack.c.l.b16 %v3095
        %v3126 = vunpack.c.h.b16 %v3095
        %v3127 = vunpack.c.l.b16 %v3096
        %v3128 = vunpack.c.h.b16 %v3096
        %v3129 = vunpack.c.l.b16 %v3097
        %v3130 = vunpack.c.h.b16 %v3097
        %v3131 = vpack.c.b16 %v3125, %v3123
        %v3132 = vpack.c.b16 %v3126, %v3124
        %v3133 = vpack.c.b16 %v3129, %v3127
        %v3134 = vpack.c.b16 %v3130, %v3128
        %v3140 = vsel %vm1098, %v3098, 0
        %v3143 = vsel %vm1098, %v3099, 0
        %v3146 = vsel %vm1098, %v3100, 0
        %v3149 = vsel %vm1098, %v3101, 0
        %v3152 = vsel %vm1098, %v3102, 0
        %v3155 = vsel %vm1098, %v3103, 0
        %v3158 = vsel %vm1098, %v3104, 0
        %v3161 = vsel %vm1098, %v3105, 0
        %v3164 = vsel %vm1098, %v3106, 0
        %v3167 = vsel %vm1098, %v3107, 0
        %v3170 = vsel %vm1098, %v3108, 0
        %v3173 = vsel %vm1098, %v3109, 0
        %v3176 = vsel %vm1098, %v3110, 0
        %v3179 = vsel %vm1098, %v3111, 0
        %v3182 = vsel %vm1098, %v3112, 0
        %v3185 = vsel %vm1098, %v3113, 0
        %v3188 = vsel %vm1098, %v3114, 0
        %v3191 = vsel %vm1098, %v3115, 0
        %v3194 = vsel %vm1098, %v3116, 0
        %v3197 = vsel %vm1098, %v3117, 0
        %v3200 = vsel %vm1098, %v3118, 0
        %3202 = vmatprep.subr.bf16.mxu0 %v3132
        %3203 = vmatpush1.bf16.msra.mxu0 %v3131
        %3204 = vmatprep.subr.bf16.mxu0 %v3134
        %3205 = vmatpush1.bf16.msra.mxu0 %v3133
        %3206 = vmatprep.subr.bf16.mxu0 0
        %3207 = vmatpush1.bf16.msra.mxu0 0
        %3208 = vmatprep.subr.bf16.mxu0 0
        %3209 = vmatpush1.bf16.msra.mxu0 0
        %3210 = vmatprep.subr.bf16.mxu0 0
        %3211 = vmatpush1.bf16.msra.mxu0 0
        %3212 = vmatprep.subr.bf16.mxu0 0
        %3213 = vmatpush1.bf16.msra.mxu0 0
        %3214 = vmatprep.subr.bf16.mxu0 0
        %3215 = vmatpush1.bf16.msra.mxu0 0
        %3216 = vmatprep.subr.bf16.mxu0 0
        %3217 = vmatpush1.bf16.msra.mxu0 0
        %3218 = vmatprep.subr.bf16.mxu0 0
        %3219 = vmatpush1.bf16.msra.mxu0 0
        %3220 = vmatprep.subr.bf16.mxu0 0
        %3221 = vmatpush1.bf16.msra.mxu0 0
        %3222 = vmatprep.subr.bf16.mxu0 0
        %3223 = vmatpush1.bf16.msra.mxu0 0
        %3224 = vmatprep.subr.bf16.mxu0 0
        %3225 = vmatpush1.bf16.msra.mxu0 0
        %3226 = vmatprep.subr.bf16.mxu0 0
        %3227 = vmatpush1.bf16.msra.mxu0 0
        %3228 = vmatprep.subr.bf16.mxu0 0
        %3229 = vmatpush1.bf16.msra.mxu0 0
        %3230 = vmatprep.subr.bf16.mxu0 0
        %3231 = vmatpush1.bf16.msra.mxu0 0
        %3232 = vmatprep.subr.bf16.mxu0 0
        %3233 = vmatpush1.bf16.msra.mxu0 0
        %3234 = vmatprep.mubr.bf16.mxu0 0
        %3235 = vmatmul.mubr.bf16.gmra.mrb[0].mxu0 %v3140
        %v3236 = vpop.f32.mrb[0].mxu0
        %v3237 = vadd.f32 0.0, %v3236
        %v3238 = vpop.f32.mrb[0].mxu0
        %v3239 = vadd.f32 0.0, %v3238
        %v3240 = vpop.f32.mrb[0].mxu0
        %v3241 = vadd.f32 0.0, %v3240
        %v3242 = vpop.f32.mrb[0].mxu0
        %v3243 = vadd.f32 0.0, %v3242
        %3244 = vmatprep.mubr.bf16.mxu0 0
        %3245 = vmatmul.mubr.bf16.gmra.mrb[0].mxu0 %v3143
        %v3246 = vpop.f32.mrb[0].mxu0
        %v3247 = vadd.f32 0.0, %v3246
        %v3248 = vpop.f32.mrb[0].mxu0
        %v3249 = vadd.f32 0.0, %v3248
        %v3250 = vpop.f32.mrb[0].mxu0
        %v3251 = vadd.f32 0.0, %v3250
        %v3252 = vpop.f32.mrb[0].mxu0
        %v3253 = vadd.f32 0.0, %v3252
        %3254 = vmatprep.mubr.bf16.mxu0 0
        %3255 = vmatmul.mubr.bf16.gmra.mrb[0].mxu0 %v3146
        %v3256 = vpop.f32.mrb[0].mxu0
        %v3257 = vadd.f32 0.0, %v3256
        %v3258 = vpop.f32.mrb[0].mxu0
        %v3259 = vadd.f32 0.0, %v3258
        %v3260 = vpop.f32.mrb[0].mxu0
        %v3261 = vadd.f32 0.0, %v3260
        %v3262 = vpop.f32.mrb[0].mxu0
        %v3263 = vadd.f32 0.0, %v3262
        %3264 = vmatprep.mubr.bf16.mxu0 0
        %3265 = vmatmul.mubr.bf16.gmra.mrb[0].mxu0 %v3149
        %v3266 = vpop.f32.mrb[0].mxu0
        %v3267 = vadd.f32 0.0, %v3266
        %v3268 = vpop.f32.mrb[0].mxu0
        %v3269 = vadd.f32 0.0, %v3268
        %v3270 = vpop.f32.mrb[0].mxu0
        %v3271 = vadd.f32 0.0, %v3270
        %v3272 = vpop.f32.mrb[0].mxu0
        %v3273 = vadd.f32 0.0, %v3272
        %3274 = vmatprep.mubr.bf16.mxu0 0
        %3275 = vmatmul.mubr.bf16.gmra.mrb[0].mxu0 %v3152
        %v3276 = vpop.f32.mrb[0].mxu0
        %v3277 = vadd.f32 0.0, %v3276
        %v3278 = vpop.f32.mrb[0].mxu0
        %v3279 = vadd.f32 0.0, %v3278
        %v3280 = vpop.f32.mrb[0].mxu0
        %v3281 = vadd.f32 0.0, %v3280
        %v3282 = vpop.f32.mrb[0].mxu0
        %v3283 = vadd.f32 0.0, %v3282
        %3284 = vmatprep.mubr.bf16.mxu0 0
        %3285 = vmatmul.mubr.bf16.gmra.mrb[0].mxu0 %v3155
        %v3286 = vpop.f32.mrb[0].mxu0
        %v3287 = vadd.f32 0.0, %v3286
        %v3288 = vpop.f32.mrb[0].mxu0
        %v3289 = vadd.f32 0.0, %v3288
        %v3290 = vpop.f32.mrb[0].mxu0
        %v3291 = vadd.f32 0.0, %v3290
        %v3292 = vpop.f32.mrb[0].mxu0
        %v3293 = vadd.f32 0.0, %v3292
        %3294 = vmatprep.mubr.bf16.mxu0 0
        %3295 = vmatmul.mubr.bf16.gmra.mrb[0].mxu0 %v3158
        %v3296 = vpop.f32.mrb[0].mxu0
        %v3297 = vadd.f32 0.0, %v3296
        %v3298 = vpop.f32.mrb[0].mxu0
        %v3299 = vadd.f32 0.0, %v3298
        %v3300 = vpop.f32.mrb[0].mxu0
        %v3301 = vadd.f32 0.0, %v3300
        %v3302 = vpop.f32.mrb[0].mxu0
        %v3303 = vadd.f32 0.0, %v3302
        %3304 = vmatprep.mubr.bf16.mxu0 0
        %3305 = vmatmul.mubr.bf16.gmra.mrb[0].mxu0 %v3161
        %v3306 = vpop.f32.mrb[0].mxu0
        %v3307 = vadd.f32 0.0, %v3306
        %v3308 = vpop.f32.mrb[0].mxu0
        %v3309 = vadd.f32 0.0, %v3308
        %v3310 = vpop.f32.mrb[0].mxu0
        %v3311 = vadd.f32 0.0, %v3310
        %v3312 = vpop.f32.mrb[0].mxu0
        %v3313 = vadd.f32 0.0, %v3312
        %3314 = vmatprep.mubr.bf16.mxu0 0
        %3315 = vmatmul.mubr.bf16.gmra.mrb[0].mxu0 %v3164
        %v3316 = vpop.f32.mrb[0].mxu0
        %v3317 = vadd.f32 0.0, %v3316
        %v3318 = vpop.f32.mrb[0].mxu0
        %v3319 = vadd.f32 0.0, %v3318
        %v3320 = vpop.f32.mrb[0].mxu0
        %v3321 = vadd.f32 0.0, %v3320
        %v3322 = vpop.f32.mrb[0].mxu0
        %v3323 = vadd.f32 0.0, %v3322
        %3324 = vmatprep.mubr.bf16.mxu0 0
        %3325 = vmatmul.mubr.bf16.gmra.mrb[0].mxu0 %v3167
        %v3326 = vpop.f32.mrb[0].mxu0
        %v3327 = vadd.f32 0.0, %v3326
        %v3328 = vpop.f32.mrb[0].mxu0
        %v3329 = vadd.f32 0.0, %v3328
        %v3330 = vpop.f32.mrb[0].mxu0
        %v3331 = vadd.f32 0.0, %v3330
        %v3332 = vpop.f32.mrb[0].mxu0
        %v3333 = vadd.f32 0.0, %v3332
        %3334 = vmatprep.mubr.bf16.mxu0 0
        %3335 = vmatmul.mubr.bf16.gmra.mrb[0].mxu0 %v3170
        %v3336 = vpop.f32.mrb[0].mxu0
        %v3337 = vadd.f32 0.0, %v3336
        %v3338 = vpop.f32.mrb[0].mxu0
        %v3339 = vadd.f32 0.0, %v3338
        %v3340 = vpop.f32.mrb[0].mxu0
        %v3341 = vadd.f32 0.0, %v3340
        %v3342 = vpop.f32.mrb[0].mxu0
        %v3343 = vadd.f32 0.0, %v3342
        %3344 = vmatprep.mubr.bf16.mxu0 0
        %3345 = vmatmul.mubr.bf16.gmra.mrb[0].mxu0 %v3173
        %v3346 = vpop.f32.mrb[0].mxu0
        %v3347 = vadd.f32 0.0, %v3346
        %v3348 = vpop.f32.mrb[0].mxu0
        %v3349 = vadd.f32 0.0, %v3348
        %v3350 = vpop.f32.mrb[0].mxu0
        %v3351 = vadd.f32 0.0, %v3350
        %v3352 = vpop.f32.mrb[0].mxu0
        %v3353 = vadd.f32 0.0, %v3352
        %3354 = vmatprep.mubr.bf16.mxu0 0
        %3355 = vmatmul.mubr.bf16.gmra.mrb[0].mxu0 %v3176
        %v3356 = vpop.f32.mrb[0].mxu0
        %v3357 = vadd.f32 0.0, %v3356
        %v3358 = vpop.f32.mrb[0].mxu0
        %v3359 = vadd.f32 0.0, %v3358
        %v3360 = vpop.f32.mrb[0].mxu0
        %v3361 = vadd.f32 0.0, %v3360
        %v3362 = vpop.f32.mrb[0].mxu0
        %v3363 = vadd.f32 0.0, %v3362
        %3364 = vmatprep.mubr.bf16.mxu0 0
        %3365 = vmatmul.mubr.bf16.gmra.mrb[0].mxu0 %v3179
        %v3366 = vpop.f32.mrb[0].mxu0
        %v3367 = vadd.f32 0.0, %v3366
        %v3368 = vpop.f32.mrb[0].mxu0
        %v3369 = vadd.f32 0.0, %v3368
        %v3370 = vpop.f32.mrb[0].mxu0
        %v3371 = vadd.f32 0.0, %v3370
        %v3372 = vpop.f32.mrb[0].mxu0
        %v3373 = vadd.f32 0.0, %v3372
        %3374 = vmatprep.mubr.bf16.mxu0 0
        %3375 = vmatmul.mubr.bf16.gmra.mrb[0].mxu0 %v3182
        %v3376 = vpop.f32.mrb[0].mxu0
        %v3377 = vadd.f32 0.0, %v3376
        %v3378 = vpop.f32.mrb[0].mxu0
        %v3379 = vadd.f32 0.0, %v3378
        %v3380 = vpop.f32.mrb[0].mxu0
        %v3381 = vadd.f32 0.0, %v3380
        %v3382 = vpop.f32.mrb[0].mxu0
        %v3383 = vadd.f32 0.0, %v3382
        %3384 = vmatprep.mubr.bf16.mxu0 0
        %3385 = vmatmul.mubr.bf16.gmra.mrb[0].mxu0 %v3185
        %v3386 = vpop.f32.mrb[0].mxu0
        %v3387 = vadd.f32 0.0, %v3386
        %v3388 = vpop.f32.mrb[0].mxu0
        %v3389 = vadd.f32 0.0, %v3388
        %v3390 = vpop.f32.mrb[0].mxu0
        %v3391 = vadd.f32 0.0, %v3390
        %v3392 = vpop.f32.mrb[0].mxu0
        %v3393 = vadd.f32 0.0, %v3392
        %3394 = vmatprep.mubr.bf16.mxu0 0
        %3395 = vmatmul.mubr.bf16.gmra.mrb[0].mxu0 %v3188
        %v3396 = vpop.f32.mrb[0].mxu0
        %v3397 = vadd.f32 0.0, %v3396
        %v3398 = vpop.f32.mrb[0].mxu0
        %v3399 = vadd.f32 0.0, %v3398
        %v3400 = vpop.f32.mrb[0].mxu0
        %v3401 = vadd.f32 0.0, %v3400
        %v3402 = vpop.f32.mrb[0].mxu0
        %v3403 = vadd.f32 0.0, %v3402
        %3404 = vmatprep.mubr.bf16.mxu0 0
        %3405 = vmatmul.mubr.bf16.gmra.mrb[0].mxu0 %v3191
        %v3406 = vpop.f32.mrb[0].mxu0
        %v3407 = vadd.f32 0.0, %v3406
        %v3408 = vpop.f32.mrb[0].mxu0
        %v3409 = vadd.f32 0.0, %v3408
        %v3410 = vpop.f32.mrb[0].mxu0
        %v3411 = vadd.f32 0.0, %v3410
        %v3412 = vpop.f32.mrb[0].mxu0
        %v3413 = vadd.f32 0.0, %v3412
        %3414 = vmatprep.mubr.bf16.mxu0 0
        %3415 = vmatmul.mubr.bf16.gmra.mrb[0].mxu0 %v3194
        %v3416 = vpop.f32.mrb[0].mxu0
        %v3417 = vadd.f32 0.0, %v3416
        %v3418 = vpop.f32.mrb[0].mxu0
        %v3419 = vadd.f32 0.0, %v3418
        %v3420 = vpop.f32.mrb[0].mxu0
        %v3421 = vadd.f32 0.0, %v3420
        %v3422 = vpop.f32.mrb[0].mxu0
        %v3423 = vadd.f32 0.0, %v3422
        %3424 = vmatprep.mubr.bf16.mxu0 0
        %3425 = vmatmul.mubr.bf16.gmra.mrb[0].mxu0 %v3197
        %v3426 = vpop.f32.mrb[0].mxu0
        %v3427 = vadd.f32 0.0, %v3426
        %v3428 = vpop.f32.mrb[0].mxu0
        %v3429 = vadd.f32 0.0, %v3428
        %v3430 = vpop.f32.mrb[0].mxu0
        %v3431 = vadd.f32 0.0, %v3430
        %v3432 = vpop.f32.mrb[0].mxu0
        %v3433 = vadd.f32 0.0, %v3432
        %3434 = vmatprep.mubr.bf16.mxu0 0
        %3435 = vmatmul.mubr.bf16.gmra.mrb[0].mxu0 %v3200
        %v3436 = vpop.f32.mrb[0].mxu0
        %v3437 = vadd.f32 0.0, %v3436
        %v3438 = vpop.f32.mrb[0].mxu0
        %v3439 = vadd.f32 0.0, %v3438
        %v3440 = vpop.f32.mrb[0].mxu0
        %v3441 = vadd.f32 0.0, %v3440
        %v3442 = vpop.f32.mrb[0].mxu0
        %v3443 = vadd.f32 0.0, %v3442
        %3444 = vdwg.mxu0
        %v3445 = vmul.f32 %v3237, %v1197
        %v3446 = vmul.f32 %v3239, %v1199
        %v3447 = vmul.f32 %v3241, %v1201
        %v3448 = vmul.f32 %v3243, %v1203
        %v3449 = vmul.f32 %v3247, %v1207
        %v3450 = vmul.f32 %v3249, %v1209
        %v3451 = vmul.f32 %v3251, %v1211
        %v3452 = vmul.f32 %v3253, %v1213
        %v3453 = vmul.f32 %v3257, %v1217
        %v3454 = vmul.f32 %v3259, %v1219
        %v3455 = vmul.f32 %v3261, %v1221
        %v3456 = vmul.f32 %v3263, %v1223
        %v3457 = vmul.f32 %v3267, %v1227
        %v3458 = vmul.f32 %v3269, %v1229
        %v3459 = vmul.f32 %v3271, %v1231
        %v3460 = vmul.f32 %v3273, %v1233
        %v3461 = vmul.f32 %v3277, %v1237
        %v3462 = vmul.f32 %v3279, %v1239
        %v3463 = vmul.f32 %v3281, %v1241
        %v3464 = vmul.f32 %v3283, %v1243
        %v3465 = vmul.f32 %v3287, %v1247
        %v3466 = vmul.f32 %v3289, %v1249
        %v3467 = vmul.f32 %v3291, %v1251
        %v3468 = vmul.f32 %v3293, %v1253
        %v3469 = vmul.f32 %v3297, %v1257
        %v3470 = vmul.f32 %v3299, %v1259
        %v3471 = vmul.f32 %v3301, %v1261
        %v3472 = vmul.f32 %v3303, %v1263
        %v3473 = vmul.f32 %v3307, %v1267
        %v3474 = vmul.f32 %v3309, %v1269
        %v3475 = vmul.f32 %v3311, %v1271
        %v3476 = vmul.f32 %v3313, %v1273
        %v3477 = vmul.f32 %v3317, %v1277
        %v3478 = vmul.f32 %v3319, %v1279
        %v3479 = vmul.f32 %v3321, %v1281
        %v3480 = vmul.f32 %v3323, %v1283
        %v3481 = vmul.f32 %v3327, %v1287
        %v3482 = vmul.f32 %v3329, %v1289
        %v3483 = vmul.f32 %v3331, %v1291
        %v3484 = vmul.f32 %v3333, %v1293
        %v3485 = vmul.f32 %v3337, %v1297
        %v3486 = vmul.f32 %v3339, %v1299
        %v3487 = vmul.f32 %v3341, %v1301
        %v3488 = vmul.f32 %v3343, %v1303
        %v3489 = vmul.f32 %v3347, %v1307
        %v3490 = vmul.f32 %v3349, %v1309
        %v3491 = vmul.f32 %v3351, %v1311
        %v3492 = vmul.f32 %v3353, %v1313
        %v3493 = vmul.f32 %v3357, %v1317
        %v3494 = vmul.f32 %v3359, %v1319
        %v3495 = vmul.f32 %v3361, %v1321
        %v3496 = vmul.f32 %v3363, %v1323
        %v3497 = vmul.f32 %v3367, %v1327
        %v3498 = vmul.f32 %v3369, %v1329
        %v3499 = vmul.f32 %v3371, %v1331
        %v3500 = vmul.f32 %v3373, %v1333
        %v3501 = vmul.f32 %v3377, %v1337
        %v3502 = vmul.f32 %v3379, %v1339
        %v3503 = vmul.f32 %v3381, %v1341
        %v3504 = vmul.f32 %v3383, %v1343
        %v3505 = vmul.f32 %v3387, %v1347
        %v3506 = vmul.f32 %v3389, %v1349
        %v3507 = vmul.f32 %v3391, %v1351
        %v3508 = vmul.f32 %v3393, %v1353
        %v3509 = vmul.f32 %v3397, %v1357
        %v3510 = vmul.f32 %v3399, %v1359
        %v3511 = vmul.f32 %v3401, %v1361
        %v3512 = vmul.f32 %v3403, %v1363
        %v3513 = vmul.f32 %v3407, %v1367
        %v3514 = vmul.f32 %v3409, %v1369
        %v3515 = vmul.f32 %v3411, %v1371
        %v3516 = vmul.f32 %v3413, %v1373
        %v3517 = vmul.f32 %v3417, %v1377
        %v3518 = vmul.f32 %v3419, %v1379
        %v3519 = vmul.f32 %v3421, %v1381
        %v3520 = vmul.f32 %v3423, %v1383
        %v3521 = vmul.f32 %v3427, %v1387
        %v3522 = vmul.f32 %v3429, %v1389
        %v3523 = vmul.f32 %v3431, %v1391
        %v3524 = vmul.f32 %v3433, %v1393
        %v3525 = vmul.f32 %v3437, %v1397
        %v3526 = vmul.f32 %v3439, %v1399
        %v3527 = vmul.f32 %v3441, %v1401
        %v3528 = vmul.f32 %v3443, %v1403
        %v3529 = vpack.c.bf16 %v3447, %v3445
        %v3530 = vpack.c.bf16 %v3448, %v3446
        %v3531 = vpack.c.bf16 %v3451, %v3449
        %v3532 = vpack.c.bf16 %v3452, %v3450
        %v3533 = vpack.c.bf16 %v3455, %v3453
        %v3534 = vpack.c.bf16 %v3456, %v3454
        %v3535 = vpack.c.bf16 %v3459, %v3457
        %v3536 = vpack.c.bf16 %v3460, %v3458
        %v3537 = vpack.c.bf16 %v3463, %v3461
        %v3538 = vpack.c.bf16 %v3464, %v3462
        %v3539 = vpack.c.bf16 %v3467, %v3465
        %v3540 = vpack.c.bf16 %v3468, %v3466
        %v3541 = vpack.c.bf16 %v3471, %v3469
        %v3542 = vpack.c.bf16 %v3472, %v3470
        %v3543 = vpack.c.bf16 %v3475, %v3473
        %v3544 = vpack.c.bf16 %v3476, %v3474
        %v3545 = vpack.c.bf16 %v3479, %v3477
        %v3546 = vpack.c.bf16 %v3480, %v3478
        %v3547 = vpack.c.bf16 %v3483, %v3481
        %v3548 = vpack.c.bf16 %v3484, %v3482
        %v3549 = vpack.c.bf16 %v3487, %v3485
        %v3550 = vpack.c.bf16 %v3488, %v3486
        %v3551 = vpack.c.bf16 %v3491, %v3489
        %v3552 = vpack.c.bf16 %v3492, %v3490
        %v3553 = vpack.c.bf16 %v3495, %v3493
        %v3554 = vpack.c.bf16 %v3496, %v3494
        %v3555 = vpack.c.bf16 %v3499, %v3497
        %v3556 = vpack.c.bf16 %v3500, %v3498
        %v3557 = vpack.c.bf16 %v3503, %v3501
        %v3558 = vpack.c.bf16 %v3504, %v3502
        %v3559 = vpack.c.bf16 %v3507, %v3505
        %v3560 = vpack.c.bf16 %v3508, %v3506
        %v3561 = vpack.c.bf16 %v3511, %v3509
        %v3562 = vpack.c.bf16 %v3512, %v3510
        %v3563 = vpack.c.bf16 %v3515, %v3513
        %v3564 = vpack.c.bf16 %v3516, %v3514
        %v3565 = vpack.c.bf16 %v3519, %v3517
        %v3566 = vpack.c.bf16 %v3520, %v3518
        %v3567 = vpack.c.bf16 %v3523, %v3521
        %v3568 = vpack.c.bf16 %v3524, %v3522
        %v3569 = vpack.c.bf16 %v3527, %v3525
        %v3570 = vpack.c.bf16 %v3528, %v3526
        %v3603 = vunpack.c.l.b16 %v786
        %v3604 = vunpack.c.l.b16 %v787
        %v3605 = vunpack.c.l.b16 %v788
        %v3606 = vunpack.c.l.b16 %v789
        %v3607 = vunpack.c.l.b16 %v790
        %v3608 = vunpack.c.l.b16 %v791
        %v3609 = vunpack.c.l.b16 %v792
        %v3610 = vunpack.c.l.b16 %v793
        %v3611 = vunpack.c.l.b16 %v794
        %v3612 = vunpack.c.l.b16 %v795
        %v3613 = vunpack.c.l.b16 %v796
        %v3614 = vunpack.c.l.b16 %v797
        %v3615 = vunpack.c.l.b16 %v798
        %v3616 = vunpack.c.l.b16 %v799
        %v3617 = vunpack.c.l.b16 %v800
        %v3618 = vunpack.c.l.b16 %v801
        %v3619 = vunpack.c.l.b16 %v802
        %v3620 = vunpack.c.l.b16 %v803
        %v3621 = vunpack.c.l.b16 %v804
        %v3622 = vunpack.c.l.b16 %v805
        %v3623 = vunpack.c.l.b16 %v806
        %v3624 = vunpack.c.l.b16 %v807
        %v3625 = vunpack.c.l.b16 %v808
        %v3626 = vunpack.c.l.b16 %v809
        %v3627 = vunpack.c.l.b16 %v810
        %v3628 = vunpack.c.l.b16 %v811
        %v3629 = vunpack.c.l.b16 %v812
        %v3630 = vunpack.c.l.b16 %v813
        %v3631 = vunpack.c.l.b16 %v814
        %v3632 = vunpack.c.l.b16 %v815
        %v3633 = vunpack.c.l.b16 %v816
        %v3634 = vunpack.c.l.b16 %v817
        %v3635 = vpack.c.b16 %v3604, %v3603
        %v3636 = vpack.c.b16 %v3606, %v3605
        %v3637 = vpack.c.b16 %v3608, %v3607
        %v3638 = vpack.c.b16 %v3610, %v3609
        %v3639 = vpack.c.b16 %v3612, %v3611
        %v3640 = vpack.c.b16 %v3614, %v3613
        %v3641 = vpack.c.b16 %v3616, %v3615
        %v3642 = vpack.c.b16 %v3618, %v3617
        %v3643 = vpack.c.b16 %v3620, %v3619
        %v3644 = vpack.c.b16 %v3622, %v3621
        %v3645 = vpack.c.b16 %v3624, %v3623
        %v3646 = vpack.c.b16 %v3626, %v3625
        %v3647 = vpack.c.b16 %v3628, %v3627
        %v3648 = vpack.c.b16 %v3630, %v3629
        %v3649 = vpack.c.b16 %v3632, %v3631
        %v3650 = vpack.c.b16 %v3634, %v3633
        %3667 = vmatprep.subr.bf16.mxu0 0
        %3668 = vmatpush1.bf16.msra.mxu0 %v3635
        %3669 = vmatprep.subr.bf16.mxu0 0
        %3670 = vmatpush1.bf16.msra.mxu0 %v3636
        %3671 = vmatprep.subr.bf16.mxu0 0
        %3672 = vmatpush1.bf16.msra.mxu0 %v3637
        %3673 = vmatprep.subr.bf16.mxu0 0
        %3674 = vmatpush1.bf16.msra.mxu0 %v3638
        %3675 = vmatprep.subr.bf16.mxu0 0
        %3676 = vmatpush1.bf16.msra.mxu0 %v3639
        %3677 = vmatprep.subr.bf16.mxu0 0
        %3678 = vmatpush1.bf16.msra.mxu0 %v3640
        %3679 = vmatprep.subr.bf16.mxu0 0
        %3680 = vmatpush1.bf16.msra.mxu0 %v3641
        %3681 = vmatprep.subr.bf16.mxu0 0
        %3682 = vmatpush1.bf16.msra.mxu0 %v3642
        %3683 = vmatprep.subr.bf16.mxu0 0
        %3684 = vmatpush1.bf16.msra.mxu0 %v3643
        %3685 = vmatprep.subr.bf16.mxu0 0
        %3686 = vmatpush1.bf16.msra.mxu0 %v3644
        %3687 = vmatprep.subr.bf16.mxu0 0
        %3688 = vmatpush1.bf16.msra.mxu0 %v3645
        %3689 = vmatprep.subr.bf16.mxu0 0
        %3690 = vmatpush1.bf16.msra.mxu0 %v3646
        %3691 = vmatprep.subr.bf16.mxu0 0
        %3692 = vmatpush1.bf16.msra.mxu0 %v3647
        %3693 = vmatprep.subr.bf16.mxu0 0
        %3694 = vmatpush1.bf16.msra.mxu0 %v3648
        %3695 = vmatprep.subr.bf16.mxu0 0
        %3696 = vmatpush1.bf16.msra.mxu0 %v3649
        %3697 = vmatprep.subr.bf16.mxu0 0
        %3698 = vmatpush1.bf16.msra.mxu0 %v3650
        %3699 = vmatprep.mubr.bf16.mxu0 %v3530
        %3700 = vmatmul.mubr.bf16.gmra.mrb[0].mxu0 %v3529
        %v3701 = vpop.f32.mrb[0].mxu0
        %v3702 = vadd.f32 0.0, %v3701
        %v3703 = vpop.f32.mrb[0].mxu0
        %v3704 = vpop.f32.mrb[0].mxu0
        %v3705 = vadd.f32 0.0, %v3704
        %v3706 = vpop.f32.mrb[0].mxu0
        %3707 = vmatprep.mubr.bf16.mxu0 %v3532
        %3708 = vmatmul.mubr.bf16.gmra.mrb[0].mxu0 %v3531
        %v3709 = vpop.f32.mrb[0].mxu0
        %v3710 = vadd.f32 0.0, %v3709
        %v3711 = vpop.f32.mrb[0].mxu0
        %v3712 = vpop.f32.mrb[0].mxu0
        %v3713 = vadd.f32 0.0, %v3712
        %v3714 = vpop.f32.mrb[0].mxu0
        %3715 = vmatprep.mubr.bf16.mxu0 %v3534
        %3716 = vmatmul.mubr.bf16.gmra.mrb[0].mxu0 %v3533
        %v3717 = vpop.f32.mrb[0].mxu0
        %v3718 = vadd.f32 0.0, %v3717
        %v3719 = vpop.f32.mrb[0].mxu0
        %v3720 = vpop.f32.mrb[0].mxu0
        %v3721 = vadd.f32 0.0, %v3720
        %v3722 = vpop.f32.mrb[0].mxu0
        %3723 = vmatprep.mubr.bf16.mxu0 %v3536
        %3724 = vmatmul.mubr.bf16.gmra.mrb[0].mxu0 %v3535
        %v3725 = vpop.f32.mrb[0].mxu0
        %v3726 = vadd.f32 0.0, %v3725
        %v3727 = vpop.f32.mrb[0].mxu0
        %v3728 = vpop.f32.mrb[0].mxu0
        %v3729 = vadd.f32 0.0, %v3728
        %v3730 = vpop.f32.mrb[0].mxu0
        %3731 = vmatprep.mubr.bf16.mxu0 %v3538
        %3732 = vmatmul.mubr.bf16.gmra.mrb[0].mxu0 %v3537
        %v3733 = vpop.f32.mrb[0].mxu0
        %v3734 = vadd.f32 0.0, %v3733
        %v3735 = vpop.f32.mrb[0].mxu0
        %v3736 = vpop.f32.mrb[0].mxu0
        %v3737 = vadd.f32 0.0, %v3736
        %v3738 = vpop.f32.mrb[0].mxu0
        %3739 = vmatprep.mubr.bf16.mxu0 %v3540
        %3740 = vmatmul.mubr.bf16.gmra.mrb[0].mxu0 %v3539
        %v3741 = vpop.f32.mrb[0].mxu0
        %v3742 = vadd.f32 0.0, %v3741
        %v3743 = vpop.f32.mrb[0].mxu0
        %v3744 = vpop.f32.mrb[0].mxu0
        %v3745 = vadd.f32 0.0, %v3744
        %v3746 = vpop.f32.mrb[0].mxu0
        %3747 = vmatprep.mubr.bf16.mxu0 %v3542
        %3748 = vmatmul.mubr.bf16.gmra.mrb[0].mxu0 %v3541
        %v3749 = vpop.f32.mrb[0].mxu0
        %v3750 = vadd.f32 0.0, %v3749
        %v3751 = vpop.f32.mrb[0].mxu0
        %v3752 = vpop.f32.mrb[0].mxu0
        %v3753 = vadd.f32 0.0, %v3752
        %v3754 = vpop.f32.mrb[0].mxu0
        %3755 = vmatprep.mubr.bf16.mxu0 %v3544
        %3756 = vmatmul.mubr.bf16.gmra.mrb[0].mxu0 %v3543
        %v3757 = vpop.f32.mrb[0].mxu0
        %v3758 = vadd.f32 0.0, %v3757
        %v3759 = vpop.f32.mrb[0].mxu0
        %v3760 = vpop.f32.mrb[0].mxu0
        %v3761 = vadd.f32 0.0, %v3760
        %v3762 = vpop.f32.mrb[0].mxu0
        %3763 = vmatprep.mubr.bf16.mxu0 %v3546
        %3764 = vmatmul.mubr.bf16.gmra.mrb[0].mxu0 %v3545
        %v3765 = vpop.f32.mrb[0].mxu0
        %v3766 = vadd.f32 0.0, %v3765
        %v3767 = vpop.f32.mrb[0].mxu0
        %v3768 = vpop.f32.mrb[0].mxu0
        %v3769 = vadd.f32 0.0, %v3768
        %v3770 = vpop.f32.mrb[0].mxu0
        %3771 = vmatprep.mubr.bf16.mxu0 %v3548
        %3772 = vmatmul.mubr.bf16.gmra.mrb[0].mxu0 %v3547
        %v3773 = vpop.f32.mrb[0].mxu0
        %v3774 = vadd.f32 0.0, %v3773
        %v3775 = vpop.f32.mrb[0].mxu0
        %v3776 = vpop.f32.mrb[0].mxu0
        %v3777 = vadd.f32 0.0, %v3776
        %v3778 = vpop.f32.mrb[0].mxu0
        %3779 = vmatprep.mubr.bf16.mxu0 %v3550
        %3780 = vmatmul.mubr.bf16.gmra.mrb[0].mxu0 %v3549
        %v3781 = vpop.f32.mrb[0].mxu0
        %v3782 = vadd.f32 0.0, %v3781
        %v3783 = vpop.f32.mrb[0].mxu0
        %v3784 = vpop.f32.mrb[0].mxu0
        %v3785 = vadd.f32 0.0, %v3784
        %v3786 = vpop.f32.mrb[0].mxu0
        %3787 = vmatprep.mubr.bf16.mxu0 %v3552
        %3788 = vmatmul.mubr.bf16.gmra.mrb[0].mxu0 %v3551
        %v3789 = vpop.f32.mrb[0].mxu0
        %v3790 = vadd.f32 0.0, %v3789
        %v3791 = vpop.f32.mrb[0].mxu0
        %v3792 = vpop.f32.mrb[0].mxu0
        %v3793 = vadd.f32 0.0, %v3792
        %v3794 = vpop.f32.mrb[0].mxu0
        %3795 = vmatprep.mubr.bf16.mxu0 %v3554
        %3796 = vmatmul.mubr.bf16.gmra.mrb[0].mxu0 %v3553
        %v3797 = vpop.f32.mrb[0].mxu0
        %v3798 = vadd.f32 0.0, %v3797
        %v3799 = vpop.f32.mrb[0].mxu0
        %v3800 = vpop.f32.mrb[0].mxu0
        %v3801 = vadd.f32 0.0, %v3800
        %v3802 = vpop.f32.mrb[0].mxu0
        %3803 = vmatprep.mubr.bf16.mxu0 %v3556
        %3804 = vmatmul.mubr.bf16.gmra.mrb[0].mxu0 %v3555
        %v3805 = vpop.f32.mrb[0].mxu0
        %v3806 = vadd.f32 0.0, %v3805
        %v3807 = vpop.f32.mrb[0].mxu0
        %v3808 = vpop.f32.mrb[0].mxu0
        %v3809 = vadd.f32 0.0, %v3808
        %v3810 = vpop.f32.mrb[0].mxu0
        %3811 = vmatprep.mubr.bf16.mxu0 %v3558
        %3812 = vmatmul.mubr.bf16.gmra.mrb[0].mxu0 %v3557
        %v3813 = vpop.f32.mrb[0].mxu0
        %v3814 = vadd.f32 0.0, %v3813
        %v3815 = vpop.f32.mrb[0].mxu0
        %v3816 = vpop.f32.mrb[0].mxu0
        %v3817 = vadd.f32 0.0, %v3816
        %v3818 = vpop.f32.mrb[0].mxu0
        %3819 = vmatprep.mubr.bf16.mxu0 %v3560
        %3820 = vmatmul.mubr.bf16.gmra.mrb[0].mxu0 %v3559
        %v3821 = vpop.f32.mrb[0].mxu0
        %v3822 = vadd.f32 0.0, %v3821
        %v3823 = vpop.f32.mrb[0].mxu0
        %v3824 = vpop.f32.mrb[0].mxu0
        %v3825 = vadd.f32 0.0, %v3824
        %v3826 = vpop.f32.mrb[0].mxu0
        %3827 = vmatprep.mubr.bf16.mxu0 %v3562
        %3828 = vmatmul.mubr.bf16.gmra.mrb[0].mxu0 %v3561
        %v3829 = vpop.f32.mrb[0].mxu0
        %v3830 = vadd.f32 0.0, %v3829
        %v3831 = vpop.f32.mrb[0].mxu0
        %v3832 = vpop.f32.mrb[0].mxu0
        %v3833 = vadd.f32 0.0, %v3832
        %v3834 = vpop.f32.mrb[0].mxu0
        %3835 = vmatprep.mubr.bf16.mxu0 %v3564
        %3836 = vmatmul.mubr.bf16.gmra.mrb[0].mxu0 %v3563
        %v3837 = vpop.f32.mrb[0].mxu0
        %v3838 = vadd.f32 0.0, %v3837
        %v3839 = vpop.f32.mrb[0].mxu0
        %v3840 = vpop.f32.mrb[0].mxu0
        %v3841 = vadd.f32 0.0, %v3840
        %v3842 = vpop.f32.mrb[0].mxu0
        %3843 = vmatprep.mubr.bf16.mxu0 %v3566
        %3844 = vmatmul.mubr.bf16.gmra.mrb[0].mxu0 %v3565
        %v3845 = vpop.f32.mrb[0].mxu0
        %v3846 = vadd.f32 0.0, %v3845
        %v3847 = vpop.f32.mrb[0].mxu0
        %v3848 = vpop.f32.mrb[0].mxu0
        %v3849 = vadd.f32 0.0, %v3848
        %v3850 = vpop.f32.mrb[0].mxu0
        %3851 = vmatprep.mubr.bf16.mxu0 %v3568
        %3852 = vmatmul.mubr.bf16.gmra.mrb[0].mxu0 %v3567
        %v3853 = vpop.f32.mrb[0].mxu0
        %v3854 = vadd.f32 0.0, %v3853
        %v3855 = vpop.f32.mrb[0].mxu0
        %v3856 = vpop.f32.mrb[0].mxu0
        %v3857 = vadd.f32 0.0, %v3856
        %v3858 = vpop.f32.mrb[0].mxu0
        %3859 = vmatprep.mubr.bf16.mxu0 %v3570
        %3860 = vmatmul.mubr.bf16.gmra.mrb[0].mxu0 %v3569
        %v3861 = vpop.f32.mrb[0].mxu0
        %v3862 = vadd.f32 0.0, %v3861
        %v3863 = vpop.f32.mrb[0].mxu0
        %v3864 = vpop.f32.mrb[0].mxu0
        %v3865 = vadd.f32 0.0, %v3864
        %v3866 = vpop.f32.mrb[0].mxu0
        %3867 = vdwg.mxu0
        %v3868 = vpack.c.bf16 %v3705, %v3702
        %v3869 = vpack.c.bf16 %v3713, %v3710
        %v3870 = vpack.c.bf16 %v3721, %v3718
        %v3871 = vpack.c.bf16 %v3729, %v3726
        %v3872 = vpack.c.bf16 %v3737, %v3734
        %v3873 = vpack.c.bf16 %v3745, %v3742
        %v3874 = vpack.c.bf16 %v3753, %v3750
        %v3875 = vpack.c.bf16 %v3761, %v3758
        %v3876 = vpack.c.bf16 %v3769, %v3766
        %v3877 = vpack.c.bf16 %v3777, %v3774
        %v3878 = vpack.c.bf16 %v3785, %v3782
        %v3879 = vpack.c.bf16 %v3793, %v3790
        %v3880 = vpack.c.bf16 %v3801, %v3798
        %v3881 = vpack.c.bf16 %v3809, %v3806
        %v3882 = vpack.c.bf16 %v3817, %v3814
        %v3883 = vpack.c.bf16 %v3825, %v3822
        %v3884 = vpack.c.bf16 %v3833, %v3830
        %v3885 = vpack.c.bf16 %v3841, %v3838
        %v3886 = vpack.c.bf16 %v3849, %v3846
        %v3887 = vpack.c.bf16 %v3857, %v3854
        %v3888 = vpack.c.bf16 %v3865, %v3862
        %v3903 = vunpack.c.l.b16 %v772
        %v3904 = vunpack.c.h.b16 %v772
        %v3905 = vunpack.c.l.b16 %v773
        %v3906 = vunpack.c.l.b16 %v774
        %v3907 = vunpack.c.h.b16 %v774
        %v3908 = vunpack.c.l.b16 %v775
        %v3909 = vunpack.c.l.b16 %v776
        %v3910 = vunpack.c.h.b16 %v776
        %v3911 = vunpack.c.l.b16 %v777
        %v3912 = vunpack.c.l.b16 %v778
        %v3913 = vunpack.c.h.b16 %v778
        %v3914 = vunpack.c.l.b16 %v779
        %v3915 = vunpack.c.l.b16 %v780
        %v3916 = vunpack.c.h.b16 %v780
        %v3917 = vunpack.c.l.b16 %v781
        %v3918 = vunpack.c.l.b16 %v782
        %v3919 = vunpack.c.h.b16 %v782
        %v3920 = vunpack.c.l.b16 %v783
        %v3921 = vunpack.c.l.b16 %v784
        %v3922 = vunpack.c.h.b16 %v784
        %v3923 = vunpack.c.l.b16 %v785
        %v3924 = vpack.c.b16 %v3906, %v3903
        %v3925 = vpack.c.b16 %v3907, %v3904
        %v3926 = vpack.c.b16 %v3908, %v3905
        %v3927 = vpack.c.b16 %v3912, %v3909
        %v3928 = vpack.c.b16 %v3913, %v3910
        %v3929 = vpack.c.b16 %v3914, %v3911
        %v3930 = vpack.c.b16 %v3918, %v3915
        %v3931 = vpack.c.b16 %v3919, %v3916
        %v3932 = vpack.c.b16 %v3920, %v3917
        %v3933 = vpack.c.b16 %v3921, %v3921
        %v3934 = vpack.c.b16 %v3922, %v3922
        %v3935 = vpack.c.b16 %v3923, %v3923
        %vm3944 = vcmask 654336
        %v3946 = vsel %vm3944, %v3926, 0
        %v3949 = vsel %vm3944, %v3929, 0
        %v3952 = vsel %vm3944, %v3932, 0
        %v3955 = vsel %vm3944, %v3935, 0
        %3957 = vmatprep.subr.bf16.mxu0 0
        %3958 = vmatpush1.bf16.msra.mxu0 %v3868
        %3959 = vmatprep.subr.bf16.mxu0 0
        %3960 = vmatpush1.bf16.msra.mxu0 %v3869
        %3961 = vmatprep.subr.bf16.mxu0 0
        %3962 = vmatpush1.bf16.msra.mxu0 %v3870
        %3963 = vmatprep.subr.bf16.mxu0 0
        %3964 = vmatpush1.bf16.msra.mxu0 %v3871
        %3965 = vmatprep.subr.bf16.mxu0 0
        %3966 = vmatpush1.bf16.msra.mxu0 %v3872
        %3967 = vmatprep.subr.bf16.mxu0 0
        %3968 = vmatpush1.bf16.msra.mxu0 %v3873
        %3969 = vmatprep.subr.bf16.mxu0 0
        %3970 = vmatpush1.bf16.msra.mxu0 %v3874
        %3971 = vmatprep.subr.bf16.mxu0 0
        %3972 = vmatpush1.bf16.msra.mxu0 %v3875
        %3973 = vmatprep.subr.bf16.mxu0 0
        %3974 = vmatpush1.bf16.msra.mxu0 %v3876
        %3975 = vmatprep.subr.bf16.mxu0 0
        %3976 = vmatpush1.bf16.msra.mxu0 %v3877
        %3977 = vmatprep.subr.bf16.mxu0 0
        %3978 = vmatpush1.bf16.msra.mxu0 %v3878
        %3979 = vmatprep.subr.bf16.mxu0 0
        %3980 = vmatpush1.bf16.msra.mxu0 %v3879
        %3981 = vmatprep.subr.bf16.mxu0 0
        %3982 = vmatpush1.bf16.msra.mxu0 %v3880
        %3983 = vmatprep.subr.bf16.mxu0 0
        %3984 = vmatpush1.bf16.msra.mxu0 %v3881
        %3985 = vmatprep.subr.bf16.mxu0 0
        %3986 = vmatpush1.bf16.msra.mxu0 %v3882
        %3987 = vmatprep.subr.bf16.mxu0 0
        %3988 = vmatpush1.bf16.msra.mxu0 %v3883
        %3989 = vmatprep.mubr.bf16.mxu0 %v3925
        %3990 = vmatmul.mubr.bf16.gmra.mrb[0].mxu0 %v3924
        %v3991 = vpop.f32.mrb[0].mxu0
        %v3992 = vadd.f32 %v2661, %v3991
        %v3993 = vpop.f32.mrb[0].mxu0
        %v3994 = vpop.f32.mrb[0].mxu0
        %v3995 = vadd.f32 %v2662, %v3994
        %v3996 = vpop.f32.mrb[0].mxu0
        %3997 = vmatprep.mubr.bf16.mxu0 %v3928
        %3998 = vmatmul.mubr.bf16.gmra.mrb[0].mxu0 %v3927
        %v3999 = vpop.f32.mrb[0].mxu0
        %v4000 = vadd.f32 %v2663, %v3999
        %v4001 = vpop.f32.mrb[0].mxu0
        %v4002 = vpop.f32.mrb[0].mxu0
        %v4003 = vadd.f32 %v2664, %v4002
        %v4004 = vpop.f32.mrb[0].mxu0
        %4005 = vmatprep.mubr.bf16.mxu0 %v3931
        %4006 = vmatmul.mubr.bf16.gmra.mrb[0].mxu0 %v3930
        %v4007 = vpop.f32.mrb[0].mxu0
        %v4008 = vadd.f32 %v2665, %v4007
        %v4009 = vpop.f32.mrb[0].mxu0
        %v4010 = vpop.f32.mrb[0].mxu0
        %v4011 = vadd.f32 %v2666, %v4010
        %v4012 = vpop.f32.mrb[0].mxu0
        %4013 = vmatprep.mubr.bf16.mxu0 %v3934
        %4014 = vmatmul.mubr.bf16.gmra.mrb[0].mxu0 %v3933
        %v4015 = vpop.f32.mrb[0].mxu0
        %v4016 = vadd.f32 %v2667, %v4015
        %v4017 = vpop.f32.mrb[0].mxu0
        %v4018 = vpop.f32.mrb[0].mxu0
        %v4019 = vpop.f32.mrb[0].mxu0
        %4020 = vdwg.mxu0
        %4021 = vmatprep.subr.bf16.mxu0 0
        %4022 = vmatpush1.bf16.msra.mxu0 %v3884
        %4023 = vmatprep.subr.bf16.mxu0 0
        %4024 = vmatpush1.bf16.msra.mxu0 %v3885
        %4025 = vmatprep.subr.bf16.mxu0 0
        %4026 = vmatpush1.bf16.msra.mxu0 %v3886
        %4027 = vmatprep.subr.bf16.mxu0 0
        %4028 = vmatpush1.bf16.msra.mxu0 %v3887
        %4029 = vmatprep.subr.bf16.mxu0 0
        %4030 = vmatpush1.bf16.msra.mxu0 %v3888
        %4031 = vmatprep.subr.bf16.mxu0 0
        %4032 = vmatpush1.bf16.msra.mxu0 0
        %4033 = vmatprep.subr.bf16.mxu0 0
        %4034 = vmatpush1.bf16.msra.mxu0 0
        %4035 = vmatprep.subr.bf16.mxu0 0
        %4036 = vmatpush1.bf16.msra.mxu0 0
        %4037 = vmatprep.subr.bf16.mxu0 0
        %4038 = vmatpush1.bf16.msra.mxu0 0
        %4039 = vmatprep.subr.bf16.mxu0 0
        %4040 = vmatpush1.bf16.msra.mxu0 0
        %4041 = vmatprep.subr.bf16.mxu0 0
        %4042 = vmatpush1.bf16.msra.mxu0 0
        %4043 = vmatprep.subr.bf16.mxu0 0
        %4044 = vmatpush1.bf16.msra.mxu0 0
        %4045 = vmatprep.subr.bf16.mxu0 0
        %4046 = vmatpush1.bf16.msra.mxu0 0
        %4047 = vmatprep.subr.bf16.mxu0 0
        %4048 = vmatpush1.bf16.msra.mxu0 0
        %4049 = vmatprep.subr.bf16.mxu0 0
        %4050 = vmatpush1.bf16.msra.mxu0 0
        %4051 = vmatprep.subr.bf16.mxu0 0
        %4052 = vmatpush1.bf16.msra.mxu0 0
        %4053 = vmatprep.mubr.bf16.mxu0 0
        %4054 = vmatmul.mubr.bf16.gmra.mrb[0].mxu0 %v3946
        %v4055 = vpop.f32.mrb[0].mxu0
        %v4056 = vadd.f32 %v3992, %v4055
        %v4057 = vpop.f32.mrb[0].mxu0
        %v4058 = vpop.f32.mrb[0].mxu0
        %v4059 = vadd.f32 %v3995, %v4058
        %v4060 = vpop.f32.mrb[0].mxu0
        %4061 = vmatprep.mubr.bf16.mxu0 0
        %4062 = vmatmul.mubr.bf16.gmra.mrb[0].mxu0 %v3949
        %v4063 = vpop.f32.mrb[0].mxu0
        %v4064 = vadd.f32 %v4000, %v4063
        %v4065 = vpop.f32.mrb[0].mxu0
        %v4066 = vpop.f32.mrb[0].mxu0
        %v4067 = vadd.f32 %v4003, %v4066
        %v4068 = vpop.f32.mrb[0].mxu0
        %4069 = vmatprep.mubr.bf16.mxu0 0
        %4070 = vmatmul.mubr.bf16.gmra.mrb[0].mxu0 %v3952
        %v4071 = vpop.f32.mrb[0].mxu0
        %v4072 = vadd.f32 %v4008, %v4071
        %v4073 = vpop.f32.mrb[0].mxu0
        %v4074 = vpop.f32.mrb[0].mxu0
        %v4075 = vadd.f32 %v4011, %v4074
        %v4076 = vpop.f32.mrb[0].mxu0
        %4077 = vmatprep.mubr.bf16.mxu0 0
        %4078 = vmatmul.mubr.bf16.gmra.mrb[0].mxu0 %v3955
        %v4079 = vpop.f32.mrb[0].mxu0
        %v4080 = vadd.f32 %v4016, %v4079
        %v4081 = vpop.f32.mrb[0].mxu0
        %v4082 = vpop.f32.mrb[0].mxu0
        %v4083 = vpop.f32.mrb[0].mxu0
        %4084 = vdwg.mxu0
        %s4085 = scalar_lea.vmem %s14, 48
        %v4086 = vld [vmem:[%s4085] sm:$0xf]
        %v4087 = vld [vmem:[%s4085 + $0x4] sm:$0xf]
        %v4088 = vld [vmem:[%s4085 + $0x8] sm:$0xf]
        %v4089 = vld [vmem:[%s4085 + $0xc] sm:$0xf]
        %s4090 = scalar_lea.vmem %s15, 3
        %v4091 = vld [vmem:[%s4090] sm:$0x1]
        %s4092 = scalar_lea.vmem %s14, 64
        %v4093 = vld [vmem:[%s4092] sm:$0xf]
        %v4094 = vld [vmem:[%s4092 + $0x4] sm:$0xf]
        %v4095 = vld [vmem:[%s4092 + $0x8] sm:$0xf]
        %v4096 = vld [vmem:[%s4092 + $0xc] sm:$0xf]
        %s4097 = scalar_lea.vmem %s15, 4
        %v4098 = vld [vmem:[%s4097] sm:$0x1]
        %v4099 = vpack.c.bf16 %v4059, %v4056
        %v4100 = vpack.c.bf16 %v4067, %v4064
        %v4101 = vpack.c.bf16 %v4075, %v4072
        %v4102 = vpack.c.bf16 %v4080, %v4080
        %v4104 = vlaneseq
        %v4105 = vshrl.u32 %v4104, 7
        %v4106 = vsub.s32 0, %v4105
        %v4107 = vrot.slane %v4091, %v4106
        %v4113 = vunpack.c.l.b16 %v4086
        %v4114 = vunpack.c.l.b16 %v4087
        %v4115 = vunpack.c.l.b16 %v4088
        %v4116 = vunpack.c.l.b16 %v4089
        %v4117 = vpack.c.b16 %v4114, %v4113
        %v4118 = vpack.c.b16 %v4116, %v4115
        %v4122 = vsel %vm1098, %v4099, 0
        %v4125 = vsel %vm1098, %v4100, 0
        %v4128 = vsel %vm1098, %v4101, 0
        %v4131 = vsel %vm1098, %v4102, 0
        %4133 = vmatprep.subr.bf16.mxu0 0
        %4134 = vmatpush1.bf16.msra.mxu0 %v4117
        %4135 = vmatprep.subr.bf16.mxu0 0
        %4136 = vmatpush1.bf16.msra.mxu0 %v4118
        %4137 = vmatprep.subr.bf16.mxu0 0
        %4138 = vmatpush1.bf16.msra.mxu0 0
        %4139 = vmatprep.subr.bf16.mxu0 0
        %4140 = vmatpush1.bf16.msra.mxu0 0
        %4141 = vmatprep.subr.bf16.mxu0 0
        %4142 = vmatpush1.bf16.msra.mxu0 0
        %4143 = vmatprep.subr.bf16.mxu0 0
        %4144 = vmatpush1.bf16.msra.mxu0 0
        %4145 = vmatprep.subr.bf16.mxu0 0
        %4146 = vmatpush1.bf16.msra.mxu0 0
        %4147 = vmatprep.subr.bf16.mxu0 0
        %4148 = vmatpush1.bf16.msra.mxu0 0
        %4149 = vmatprep.subr.bf16.mxu0 0
        %4150 = vmatpush1.bf16.msra.mxu0 0
        %4151 = vmatprep.subr.bf16.mxu0 0
        %4152 = vmatpush1.bf16.msra.mxu0 0
        %4153 = vmatprep.subr.bf16.mxu0 0
        %4154 = vmatpush1.bf16.msra.mxu0 0
        %4155 = vmatprep.subr.bf16.mxu0 0
        %4156 = vmatpush1.bf16.msra.mxu0 0
        %4157 = vmatprep.subr.bf16.mxu0 0
        %4158 = vmatpush1.bf16.msra.mxu0 0
        %4159 = vmatprep.subr.bf16.mxu0 0
        %4160 = vmatpush1.bf16.msra.mxu0 0
        %4161 = vmatprep.subr.bf16.mxu0 0
        %4162 = vmatpush1.bf16.msra.mxu0 0
        %4163 = vmatprep.subr.bf16.mxu0 0
        %4164 = vmatpush1.bf16.msra.mxu0 0
        %4165 = vmatprep.mubr.bf16.mxu0 0
        %4166 = vmatmul.mubr.bf16.gmra.mrb[0].mxu0 %v4122
        %v4167 = vpop.f32.mrb[0].mxu0
        %v4168 = vadd.f32 %v4107, %v4167
        %v4169 = vpop.f32.mrb[0].mxu0
        %v4170 = vpop.f32.mrb[0].mxu0
        %v4171 = vadd.f32 %v4107, %v4170
        %v4172 = vpop.f32.mrb[0].mxu0
        %4173 = vmatprep.mubr.bf16.mxu0 0
        %4174 = vmatmul.mubr.bf16.gmra.mrb[0].mxu0 %v4125
        %v4175 = vpop.f32.mrb[0].mxu0
        %v4176 = vadd.f32 %v4107, %v4175
        %v4177 = vpop.f32.mrb[0].mxu0
        %v4178 = vpop.f32.mrb[0].mxu0
        %v4179 = vadd.f32 %v4107, %v4178
        %v4180 = vpop.f32.mrb[0].mxu0
        %4181 = vmatprep.mubr.bf16.mxu0 0
        %4182 = vmatmul.mubr.bf16.gmra.mrb[0].mxu0 %v4128
        %v4183 = vpop.f32.mrb[0].mxu0
        %v4184 = vadd.f32 %v4107, %v4183
        %v4185 = vpop.f32.mrb[0].mxu0
        %v4186 = vpop.f32.mrb[0].mxu0
        %v4187 = vadd.f32 %v4107, %v4186
        %v4188 = vpop.f32.mrb[0].mxu0
        %4189 = vmatprep.mubr.bf16.mxu0 0
        %4190 = vmatmul.mubr.bf16.gmra.mrb[0].mxu0 %v4131
        %v4191 = vpop.f32.mrb[0].mxu0
        %v4192 = vadd.f32 %v4107, %v4191
        %v4193 = vpop.f32.mrb[0].mxu0
        %v4194 = vpop.f32.mrb[0].mxu0
        %v4195 = vpop.f32.mrb[0].mxu0
        %4196 = vdwg.mxu0
        %v4197 = vxor.u32 %v4168, 2147483648
        %v4198 = vxor.u32 %v4171, 2147483648
        %v4199 = vxor.u32 %v4176, 2147483648
        %v4200 = vxor.u32 %v4179, 2147483648
        %v4201 = vxor.u32 %v4184, 2147483648
        %v4202 = vxor.u32 %v4187, 2147483648
        %v4203 = vxor.u32 %v4192, 2147483648
        %v4204 = vmul.f32 %v4197, 1.442695
        %v4205 = vpow.pop %v4204
        %v4206 = vmul.f32 %v4198, 1.442695
        %v4207 = vpow.pop %v4206
        %v4208 = vmul.f32 %v4199, 1.442695
        %v4209 = vpow.pop %v4208
        %v4210 = vmul.f32 %v4200, 1.442695
        %v4211 = vpow.pop %v4210
        %v4212 = vmul.f32 %v4201, 1.442695
        %v4213 = vpow.pop %v4212
        %v4214 = vmul.f32 %v4202, 1.442695
        %v4215 = vpow.pop %v4214
        %v4216 = vmul.f32 %v4203, 1.442695
        %v4217 = vpow.pop %v4216
        %v4218 = vadd.f32 %v4205, 1.0
        %v4219 = vadd.f32 %v4207, 1.0
        %v4220 = vadd.f32 %v4209, 1.0
        %v4221 = vadd.f32 %v4211, 1.0
        %v4222 = vadd.f32 %v4213, 1.0
        %v4223 = vadd.f32 %v4215, 1.0
        %v4224 = vadd.f32 %v4217, 1.0
        %v4225 = vrcp.pop %v4218
        %v4226 = vmul.f32 1.0, %v4225
        %v4227 = vrcp.pop %v4219
        %v4228 = vmul.f32 1.0, %v4227
        %v4229 = vrcp.pop %v4220
        %v4230 = vmul.f32 1.0, %v4229
        %v4231 = vrcp.pop %v4221
        %v4232 = vmul.f32 1.0, %v4231
        %v4233 = vrcp.pop %v4222
        %v4234 = vmul.f32 1.0, %v4233
        %v4235 = vrcp.pop %v4223
        %v4236 = vmul.f32 1.0, %v4235
        %v4237 = vrcp.pop %v4224
        %v4238 = vmul.f32 1.0, %v4237
        %v4239 = vmul.f32 %v4168, %v4226
        %v4240 = vmul.f32 %v4171, %v4228
        %v4241 = vmul.f32 %v4176, %v4230
        %v4242 = vmul.f32 %v4179, %v4232
        %v4243 = vmul.f32 %v4184, %v4234
        %v4244 = vmul.f32 %v4187, %v4236
        %v4245 = vmul.f32 %v4192, %v4238
        %v4246 = vpack.c.bf16 %v4240, %v4239
        %v4247 = vpack.c.bf16 %v4242, %v4241
        %v4248 = vpack.c.bf16 %v4244, %v4243
        %v4249 = vpack.c.bf16 %v4245, %v4245
        %v4251 = vlaneseq
        %v4252 = vshrl.u32 %v4251, 7
        %v4253 = vsub.s32 0, %v4252
        %v4254 = vrot.slane %v4098, %v4253
        %v4260 = vunpack.c.l.b16 %v4093
        %v4261 = vunpack.c.l.b16 %v4094
        %v4262 = vunpack.c.l.b16 %v4095
        %v4263 = vunpack.c.l.b16 %v4096
        %v4264 = vpack.c.b16 %v4261, %v4260
        %v4265 = vpack.c.b16 %v4263, %v4262
        %v4269 = vsel %vm1098, %v4246, 0
        %v4272 = vsel %vm1098, %v4247, 0
        %v4275 = vsel %vm1098, %v4248, 0
        %v4278 = vsel %vm1098, %v4249, 0
        %4280 = vmatprep.subr.bf16.mxu0 0
        %4281 = vmatpush1.bf16.msra.mxu0 %v4264
        %4282 = vmatprep.subr.bf16.mxu0 0
        %4283 = vmatpush1.bf16.msra.mxu0 %v4265
        %4284 = vmatprep.subr.bf16.mxu0 0
        %4285 = vmatpush1.bf16.msra.mxu0 0
        %4286 = vmatprep.subr.bf16.mxu0 0
        %4287 = vmatpush1.bf16.msra.mxu0 0
        %4288 = vmatprep.subr.bf16.mxu0 0
        %4289 = vmatpush1.bf16.msra.mxu0 0
        %4290 = vmatprep.subr.bf16.mxu0 0
        %4291 = vmatpush1.bf16.msra.mxu0 0
        %4292 = vmatprep.subr.bf16.mxu0 0
        %4293 = vmatpush1.bf16.msra.mxu0 0
        %4294 = vmatprep.subr.bf16.mxu0 0
        %4295 = vmatpush1.bf16.msra.mxu0 0
        %4296 = vmatprep.subr.bf16.mxu0 0
        %4297 = vmatpush1.bf16.msra.mxu0 0
        %4298 = vmatprep.subr.bf16.mxu0 0
        %4299 = vmatpush1.bf16.msra.mxu0 0
        %4300 = vmatprep.subr.bf16.mxu0 0
        %4301 = vmatpush1.bf16.msra.mxu0 0
        %4302 = vmatprep.subr.bf16.mxu0 0
        %4303 = vmatpush1.bf16.msra.mxu0 0
        %4304 = vmatprep.subr.bf16.mxu0 0
        %4305 = vmatpush1.bf16.msra.mxu0 0
        %4306 = vmatprep.subr.bf16.mxu0 0
        %4307 = vmatpush1.bf16.msra.mxu0 0
        %4308 = vmatprep.subr.bf16.mxu0 0
        %4309 = vmatpush1.bf16.msra.mxu0 0
        %4310 = vmatprep.subr.bf16.mxu0 0
        %4311 = vmatpush1.bf16.msra.mxu0 0
        %4312 = vmatprep.mubr.bf16.mxu0 0
        %4313 = vmatmul.mubr.bf16.gmra.mrb[0].mxu0 %v4269
        %v4314 = vpop.f32.mrb[0].mxu0
        %v4315 = vadd.f32 %v4254, %v4314
        %v4316 = vpop.f32.mrb[0].mxu0
        %v4317 = vpop.f32.mrb[0].mxu0
        %v4318 = vadd.f32 %v4254, %v4317
        %v4319 = vpop.f32.mrb[0].mxu0
        %4320 = vmatprep.mubr.bf16.mxu0 0
        %4321 = vmatmul.mubr.bf16.gmra.mrb[0].mxu0 %v4272
        %v4322 = vpop.f32.mrb[0].mxu0
        %v4323 = vadd.f32 %v4254, %v4322
        %v4324 = vpop.f32.mrb[0].mxu0
        %v4325 = vpop.f32.mrb[0].mxu0
        %v4326 = vadd.f32 %v4254, %v4325
        %v4327 = vpop.f32.mrb[0].mxu0
        %4328 = vmatprep.mubr.bf16.mxu0 0
        %4329 = vmatmul.mubr.bf16.gmra.mrb[0].mxu0 %v4275
        %v4330 = vpop.f32.mrb[0].mxu0
        %v4331 = vadd.f32 %v4254, %v4330
        %v4332 = vpop.f32.mrb[0].mxu0
        %v4333 = vpop.f32.mrb[0].mxu0
        %v4334 = vadd.f32 %v4254, %v4333
        %v4335 = vpop.f32.mrb[0].mxu0
        %4336 = vmatprep.mubr.bf16.mxu0 0
        %4337 = vmatmul.mubr.bf16.gmra.mrb[0].mxu0 %v4278
        %v4338 = vpop.f32.mrb[0].mxu0
        %v4339 = vadd.f32 %v4254, %v4338
        %v4340 = vpop.f32.mrb[0].mxu0
        %v4341 = vpop.f32.mrb[0].mxu0
        %v4342 = vpop.f32.mrb[0].mxu0
        %4343 = vdwg.mxu0
        %v4344 = vxor.u32 %v4315, 2147483648
        %v4345 = vxor.u32 %v4318, 2147483648
        %v4346 = vxor.u32 %v4323, 2147483648
        %v4347 = vxor.u32 %v4326, 2147483648
        %v4348 = vxor.u32 %v4331, 2147483648
        %v4349 = vxor.u32 %v4334, 2147483648
        %v4350 = vxor.u32 %v4339, 2147483648
        %v4351 = vmul.f32 %v4344, 1.442695
        %v4352 = vpow.pop %v4351
        %v4353 = vmul.f32 %v4345, 1.442695
        %v4354 = vpow.pop %v4353
        %v4355 = vmul.f32 %v4346, 1.442695
        %v4356 = vpow.pop %v4355
        %v4357 = vmul.f32 %v4347, 1.442695
        %v4358 = vpow.pop %v4357
        %v4359 = vmul.f32 %v4348, 1.442695
        %v4360 = vpow.pop %v4359
        %v4361 = vmul.f32 %v4349, 1.442695
        %v4362 = vpow.pop %v4361
        %v4363 = vmul.f32 %v4350, 1.442695
        %v4364 = vpow.pop %v4363
        %v4365 = vadd.f32 %v4352, 1.0
        %v4366 = vadd.f32 %v4354, 1.0
        %v4367 = vadd.f32 %v4356, 1.0
        %v4368 = vadd.f32 %v4358, 1.0
        %v4369 = vadd.f32 %v4360, 1.0
        %v4370 = vadd.f32 %v4362, 1.0
        %v4371 = vadd.f32 %v4364, 1.0
        %v4372 = vrcp.pop %v4365
        %v4373 = vmul.f32 1.0, %v4372
        %v4374 = vrcp.pop %v4366
        %v4375 = vmul.f32 1.0, %v4374
        %v4376 = vrcp.pop %v4367
        %v4377 = vmul.f32 1.0, %v4376
        %v4378 = vrcp.pop %v4368
        %v4379 = vmul.f32 1.0, %v4378
        %v4380 = vrcp.pop %v4369
        %v4381 = vmul.f32 1.0, %v4380
        %v4382 = vrcp.pop %v4370
        %v4383 = vmul.f32 1.0, %v4382
        %v4384 = vrcp.pop %v4371
        %v4385 = vmul.f32 1.0, %v4384
        %v4386 = vmul.f32 %v4315, %v4373
        %v4387 = vmul.f32 %v4318, %v4375
        %v4388 = vmul.f32 %v4323, %v4377
        %v4389 = vmul.f32 %v4326, %v4379
        %v4390 = vmul.f32 %v4331, %v4381
        %v4391 = vmul.f32 %v4334, %v4383
        %v4392 = vmul.f32 %v4339, %v4385
        %v4393 = vadd.f32 %v4056, %v4386
        %v4394 = vadd.f32 %v4059, %v4387
        %v4395 = vadd.f32 %v4064, %v4388
        %v4396 = vadd.f32 %v4067, %v4389
        %v4397 = vadd.f32 %v4072, %v4390
        %v4398 = vadd.f32 %v4075, %v4391
        %v4399 = vadd.f32 %v4080, %v4392
        %s4400 = scalar_lea.vmem %s14, 80
        %v4401 = vld [vmem:[%s4400] sm:$0xf]
        %v4402 = vld [vmem:[%s4400 + $0x4] sm:$0xf]
        %v4403 = vld [vmem:[%s4400 + $0x8] sm:$0xf]
        %v4404 = vld [vmem:[%s4400 + $0xc] sm:$0xf]
        %s4405 = scalar_lea.vmem %s15, 5
        %v4406 = vld [vmem:[%s4405] sm:$0x1]
        %v4407 = vpack.c.bf16 %v4394, %v4393
        %v4408 = vpack.c.bf16 %v4396, %v4395
        %v4409 = vpack.c.bf16 %v4398, %v4397
        %v4410 = vpack.c.bf16 %v4399, %v4399
        %v4412 = vlaneseq
        %v4413 = vshrl.u32 %v4412, 7
        %v4414 = vsub.s32 0, %v4413
        %v4415 = vrot.slane %v4406, %v4414
        %v4421 = vunpack.c.l.b16 %v4401
        %v4422 = vunpack.c.l.b16 %v4402
        %v4423 = vunpack.c.l.b16 %v4403
        %v4424 = vunpack.c.l.b16 %v4404
        %v4425 = vpack.c.b16 %v4422, %v4421
        %v4426 = vpack.c.b16 %v4424, %v4423
        %v4430 = vsel %vm1098, %v4407, 0
        %v4433 = vsel %vm1098, %v4408, 0
        %v4436 = vsel %vm1098, %v4409, 0
        %v4439 = vsel %vm1098, %v4410, 0
        %4441 = vmatprep.subr.bf16.mxu0 0
        %4442 = vmatpush1.bf16.msra.mxu0 %v4425
        %4443 = vmatprep.subr.bf16.mxu0 0
        %4444 = vmatpush1.bf16.msra.mxu0 %v4426
        %4445 = vmatprep.subr.bf16.mxu0 0
        %4446 = vmatpush1.bf16.msra.mxu0 0
        %4447 = vmatprep.subr.bf16.mxu0 0
        %4448 = vmatpush1.bf16.msra.mxu0 0
        %4449 = vmatprep.subr.bf16.mxu0 0
        %4450 = vmatpush1.bf16.msra.mxu0 0
        %4451 = vmatprep.subr.bf16.mxu0 0
        %4452 = vmatpush1.bf16.msra.mxu0 0
        %4453 = vmatprep.subr.bf16.mxu0 0
        %4454 = vmatpush1.bf16.msra.mxu0 0
        %4455 = vmatprep.subr.bf16.mxu0 0
        %4456 = vmatpush1.bf16.msra.mxu0 0
        %4457 = vmatprep.subr.bf16.mxu0 0
        %4458 = vmatpush1.bf16.msra.mxu0 0
        %4459 = vmatprep.subr.bf16.mxu0 0
        %4460 = vmatpush1.bf16.msra.mxu0 0
        %4461 = vmatprep.subr.bf16.mxu0 0
        %4462 = vmatpush1.bf16.msra.mxu0 0
        %4463 = vmatprep.subr.bf16.mxu0 0
        %4464 = vmatpush1.bf16.msra.mxu0 0
        %4465 = vmatprep.subr.bf16.mxu0 0
        %4466 = vmatpush1.bf16.msra.mxu0 0
        %4467 = vmatprep.subr.bf16.mxu0 0
        %4468 = vmatpush1.bf16.msra.mxu0 0
        %4469 = vmatprep.subr.bf16.mxu0 0
        %4470 = vmatpush1.bf16.msra.mxu0 0
        %4471 = vmatprep.subr.bf16.mxu0 0
        %4472 = vmatpush1.bf16.msra.mxu0 0
        %4473 = vmatprep.mubr.bf16.mxu0 0
        %4474 = vmatmul.mubr.bf16.gmra.mrb[0].mxu0 %v4430
        %v4475 = vpop.f32.mrb[0].mxu0
        %v4476 = vadd.f32 %v4415, %v4475
        %v4477 = vpop.f32.mrb[0].mxu0
        %v4478 = vpop.f32.mrb[0].mxu0
        %v4479 = vadd.f32 %v4415, %v4478
        %v4480 = vpop.f32.mrb[0].mxu0
        %4481 = vmatprep.mubr.bf16.mxu0 0
        %4482 = vmatmul.mubr.bf16.gmra.mrb[0].mxu0 %v4433
        %v4483 = vpop.f32.mrb[0].mxu0
        %v4484 = vadd.f32 %v4415, %v4483
        %v4485 = vpop.f32.mrb[0].mxu0
        %v4486 = vpop.f32.mrb[0].mxu0
        %v4487 = vadd.f32 %v4415, %v4486
        %v4488 = vpop.f32.mrb[0].mxu0
        %4489 = vmatprep.mubr.bf16.mxu0 0
        %4490 = vmatmul.mubr.bf16.gmra.mrb[0].mxu0 %v4436
        %v4491 = vpop.f32.mrb[0].mxu0
        %v4492 = vadd.f32 %v4415, %v4491
        %v4493 = vpop.f32.mrb[0].mxu0
        %v4494 = vpop.f32.mrb[0].mxu0
        %v4495 = vadd.f32 %v4415, %v4494
        %v4496 = vpop.f32.mrb[0].mxu0
        %4497 = vmatprep.mubr.bf16.mxu0 0
        %4498 = vmatmul.mubr.bf16.gmra.mrb[0].mxu0 %v4439
        %v4499 = vpop.f32.mrb[0].mxu0
        %v4500 = vadd.f32 %v4415, %v4499
        %v4501 = vpop.f32.mrb[0].mxu0
        %v4502 = vpop.f32.mrb[0].mxu0
        %v4503 = vpop.f32.mrb[0].mxu0
        %4504 = vdwg.mxu0
        %v4505 = vxor.u32 %v4476, 2147483648
        %v4506 = vxor.u32 %v4479, 2147483648
        %v4507 = vxor.u32 %v4484, 2147483648
        %v4508 = vxor.u32 %v4487, 2147483648
        %v4509 = vxor.u32 %v4492, 2147483648
        %v4510 = vxor.u32 %v4495, 2147483648
        %v4511 = vxor.u32 %v4500, 2147483648
        %v4512 = vmul.f32 %v4505, 1.442695
        %v4513 = vpow.pop %v4512
        %v4514 = vmul.f32 %v4506, 1.442695
        %v4515 = vpow.pop %v4514
        %v4516 = vmul.f32 %v4507, 1.442695
        %v4517 = vpow.pop %v4516
        %v4518 = vmul.f32 %v4508, 1.442695
        %v4519 = vpow.pop %v4518
        %v4520 = vmul.f32 %v4509, 1.442695
        %v4521 = vpow.pop %v4520
        %v4522 = vmul.f32 %v4510, 1.442695
        %v4523 = vpow.pop %v4522
        %v4524 = vmul.f32 %v4511, 1.442695
        %v4525 = vpow.pop %v4524
        %v4526 = vadd.f32 %v4513, 1.0
        %v4527 = vadd.f32 %v4515, 1.0
        %v4528 = vadd.f32 %v4517, 1.0
        %v4529 = vadd.f32 %v4519, 1.0
        %v4530 = vadd.f32 %v4521, 1.0
        %v4531 = vadd.f32 %v4523, 1.0
        %v4532 = vadd.f32 %v4525, 1.0
        %v4533 = vrcp.pop %v4526
        %v4534 = vmul.f32 1.0, %v4533
        %v4535 = vrcp.pop %v4527
        %v4536 = vmul.f32 1.0, %v4535
        %v4537 = vrcp.pop %v4528
        %v4538 = vmul.f32 1.0, %v4537
        %v4539 = vrcp.pop %v4529
        %v4540 = vmul.f32 1.0, %v4539
        %v4541 = vrcp.pop %v4530
        %v4542 = vmul.f32 1.0, %v4541
        %v4543 = vrcp.pop %v4531
        %v4544 = vmul.f32 1.0, %v4543
        %v4545 = vrcp.pop %v4532
        %v4546 = vmul.f32 1.0, %v4545
        %v4547 = vmul.f32 %v4476, %v4534
        %v4548 = vmul.f32 %v4479, %v4536
        %v4549 = vmul.f32 %v4484, %v4538
        %v4550 = vmul.f32 %v4487, %v4540
        %v4551 = vmul.f32 %v4492, %v4542
        %v4552 = vmul.f32 %v4495, %v4544
        %v4553 = vmul.f32 %v4500, %v4546
        %v4554 = vadd.f32 %v2190, %v4547
        %v4555 = vadd.f32 %v2191, %v4548
        %v4556 = vadd.f32 %v2192, %v4549
        %v4557 = vadd.f32 %v2193, %v4550
        %v4558 = vadd.f32 %v2194, %v4551
        %v4559 = vadd.f32 %v2195, %v4552
        %v4560 = vadd.f32 %v2196, %v4553
        %s4561 = scalar_lea.vmem %s14, 96
        %v4562 = vld [vmem:[%s4561] sm:$0xf]
        %v4563 = vld [vmem:[%s4561 + $0x4] sm:$0xf]
        %v4564 = vld [vmem:[%s4561 + $0x8] sm:$0xf]
        %v4565 = vld [vmem:[%s4561 + $0xc] sm:$0xf]
        %s4566 = scalar_lea.vmem %s15, 6
        %v4567 = vld [vmem:[%s4566] sm:$0x1]
        %s4568 = scalar_lea.vmem %s14, 112
        %v4569 = vld [vmem:[%s4568] sm:$0xf]
        %v4570 = vld [vmem:[%s4568 + $0x4] sm:$0xf]
        %v4571 = vld [vmem:[%s4568 + $0x8] sm:$0xf]
        %v4572 = vld [vmem:[%s4568 + $0xc] sm:$0xf]
        %s4573 = scalar_lea.vmem %s15, 7
        %v4574 = vld [vmem:[%s4573] sm:$0x1]
        %v4575 = vpack.c.bf16 %v4555, %v4554
        %v4576 = vpack.c.bf16 %v4557, %v4556
        %v4577 = vpack.c.bf16 %v4559, %v4558
        %v4578 = vpack.c.bf16 %v4560, %v4560
        %v4580 = vlaneseq
        %v4581 = vshrl.u32 %v4580, 7
        %v4582 = vsub.s32 0, %v4581
        %v4583 = vrot.slane %v4567, %v4582
        %v4589 = vunpack.c.l.b16 %v4562
        %v4590 = vunpack.c.l.b16 %v4563
        %v4591 = vunpack.c.l.b16 %v4564
        %v4592 = vunpack.c.l.b16 %v4565
        %v4593 = vpack.c.b16 %v4590, %v4589
        %v4594 = vpack.c.b16 %v4592, %v4591
        %v4598 = vsel %vm1098, %v4575, 0
        %v4601 = vsel %vm1098, %v4576, 0
        %v4604 = vsel %vm1098, %v4577, 0
        %v4607 = vsel %vm1098, %v4578, 0
        %4609 = vmatprep.subr.bf16.mxu0 0
        %4610 = vmatpush1.bf16.msra.mxu0 %v4593
        %4611 = vmatprep.subr.bf16.mxu0 0
        %4612 = vmatpush1.bf16.msra.mxu0 %v4594
        %4613 = vmatprep.subr.bf16.mxu0 0
        %4614 = vmatpush1.bf16.msra.mxu0 0
        %4615 = vmatprep.subr.bf16.mxu0 0
        %4616 = vmatpush1.bf16.msra.mxu0 0
        %4617 = vmatprep.subr.bf16.mxu0 0
        %4618 = vmatpush1.bf16.msra.mxu0 0
        %4619 = vmatprep.subr.bf16.mxu0 0
        %4620 = vmatpush1.bf16.msra.mxu0 0
        %4621 = vmatprep.subr.bf16.mxu0 0
        %4622 = vmatpush1.bf16.msra.mxu0 0
        %4623 = vmatprep.subr.bf16.mxu0 0
        %4624 = vmatpush1.bf16.msra.mxu0 0
        %4625 = vmatprep.subr.bf16.mxu0 0
        %4626 = vmatpush1.bf16.msra.mxu0 0
        %4627 = vmatprep.subr.bf16.mxu0 0
        %4628 = vmatpush1.bf16.msra.mxu0 0
        %4629 = vmatprep.subr.bf16.mxu0 0
        %4630 = vmatpush1.bf16.msra.mxu0 0
        %4631 = vmatprep.subr.bf16.mxu0 0
        %4632 = vmatpush1.bf16.msra.mxu0 0
        %4633 = vmatprep.subr.bf16.mxu0 0
        %4634 = vmatpush1.bf16.msra.mxu0 0
        %4635 = vmatprep.subr.bf16.mxu0 0
        %4636 = vmatpush1.bf16.msra.mxu0 0
        %4637 = vmatprep.subr.bf16.mxu0 0
        %4638 = vmatpush1.bf16.msra.mxu0 0
        %4639 = vmatprep.subr.bf16.mxu0 0
        %4640 = vmatpush1.bf16.msra.mxu0 0
        %4641 = vmatprep.mubr.bf16.mxu0 0
        %4642 = vmatmul.mubr.bf16.gmra.mrb[0].mxu0 %v4598
        %v4643 = vpop.f32.mrb[0].mxu0
        %v4644 = vadd.f32 %v4583, %v4643
        %v4645 = vpop.f32.mrb[0].mxu0
        %v4646 = vpop.f32.mrb[0].mxu0
        %v4647 = vadd.f32 %v4583, %v4646
        %v4648 = vpop.f32.mrb[0].mxu0
        %4649 = vmatprep.mubr.bf16.mxu0 0
        %4650 = vmatmul.mubr.bf16.gmra.mrb[0].mxu0 %v4601
        %v4651 = vpop.f32.mrb[0].mxu0
        %v4652 = vadd.f32 %v4583, %v4651
        %v4653 = vpop.f32.mrb[0].mxu0
        %v4654 = vpop.f32.mrb[0].mxu0
        %v4655 = vadd.f32 %v4583, %v4654
        %v4656 = vpop.f32.mrb[0].mxu0
        %4657 = vmatprep.mubr.bf16.mxu0 0
        %4658 = vmatmul.mubr.bf16.gmra.mrb[0].mxu0 %v4604
        %v4659 = vpop.f32.mrb[0].mxu0
        %v4660 = vadd.f32 %v4583, %v4659
        %v4661 = vpop.f32.mrb[0].mxu0
        %v4662 = vpop.f32.mrb[0].mxu0
        %v4663 = vadd.f32 %v4583, %v4662
        %v4664 = vpop.f32.mrb[0].mxu0
        %4665 = vmatprep.mubr.bf16.mxu0 0
        %4666 = vmatmul.mubr.bf16.gmra.mrb[0].mxu0 %v4607
        %v4667 = vpop.f32.mrb[0].mxu0
        %v4668 = vadd.f32 %v4583, %v4667
        %v4669 = vpop.f32.mrb[0].mxu0
        %v4670 = vpop.f32.mrb[0].mxu0
        %v4671 = vpop.f32.mrb[0].mxu0
        %4672 = vdwg.mxu0
        %v4673 = vxor.u32 %v4644, 2147483648
        %v4674 = vxor.u32 %v4647, 2147483648
        %v4675 = vxor.u32 %v4652, 2147483648
        %v4676 = vxor.u32 %v4655, 2147483648
        %v4677 = vxor.u32 %v4660, 2147483648
        %v4678 = vxor.u32 %v4663, 2147483648
        %v4679 = vxor.u32 %v4668, 2147483648
        %v4680 = vmul.f32 %v4673, 1.442695
        %v4681 = vpow.pop %v4680
        %v4682 = vmul.f32 %v4674, 1.442695
        %v4683 = vpow.pop %v4682
        %v4684 = vmul.f32 %v4675, 1.442695
        %v4685 = vpow.pop %v4684
        %v4686 = vmul.f32 %v4676, 1.442695
        %v4687 = vpow.pop %v4686
        %v4688 = vmul.f32 %v4677, 1.442695
        %v4689 = vpow.pop %v4688
        %v4690 = vmul.f32 %v4678, 1.442695
        %v4691 = vpow.pop %v4690
        %v4692 = vmul.f32 %v4679, 1.442695
        %v4693 = vpow.pop %v4692
        %v4694 = vadd.f32 %v4681, 1.0
        %v4695 = vadd.f32 %v4683, 1.0
        %v4696 = vadd.f32 %v4685, 1.0
        %v4697 = vadd.f32 %v4687, 1.0
        %v4698 = vadd.f32 %v4689, 1.0
        %v4699 = vadd.f32 %v4691, 1.0
        %v4700 = vadd.f32 %v4693, 1.0
        %v4701 = vrcp.pop %v4694
        %v4702 = vmul.f32 1.0, %v4701
        %v4703 = vrcp.pop %v4695
        %v4704 = vmul.f32 1.0, %v4703
        %v4705 = vrcp.pop %v4696
        %v4706 = vmul.f32 1.0, %v4705
        %v4707 = vrcp.pop %v4697
        %v4708 = vmul.f32 1.0, %v4707
        %v4709 = vrcp.pop %v4698
        %v4710 = vmul.f32 1.0, %v4709
        %v4711 = vrcp.pop %v4699
        %v4712 = vmul.f32 1.0, %v4711
        %v4713 = vrcp.pop %v4700
        %v4714 = vmul.f32 1.0, %v4713
        %v4715 = vmul.f32 %v4644, %v4702
        %v4716 = vmul.f32 %v4647, %v4704
        %v4717 = vmul.f32 %v4652, %v4706
        %v4718 = vmul.f32 %v4655, %v4708
        %v4719 = vmul.f32 %v4660, %v4710
        %v4720 = vmul.f32 %v4663, %v4712
        %v4721 = vmul.f32 %v4668, %v4714
        %v4722 = vpack.c.bf16 %v4716, %v4715
        %v4723 = vpack.c.bf16 %v4718, %v4717
        %v4724 = vpack.c.bf16 %v4720, %v4719
        %v4725 = vpack.c.bf16 %v4721, %v4721
        %v4727 = vlaneseq
        %v4728 = vshrl.u32 %v4727, 7
        %v4729 = vsub.s32 0, %v4728
        %v4730 = vrot.slane %v4574, %v4729
        %v4736 = vunpack.c.l.b16 %v4569
        %v4737 = vunpack.c.l.b16 %v4570
        %v4738 = vunpack.c.l.b16 %v4571
        %v4739 = vunpack.c.l.b16 %v4572
        %v4740 = vpack.c.b16 %v4737, %v4736
        %v4741 = vpack.c.b16 %v4739, %v4738
        %v4745 = vsel %vm1098, %v4722, 0
        %v4748 = vsel %vm1098, %v4723, 0
        %v4751 = vsel %vm1098, %v4724, 0
        %v4754 = vsel %vm1098, %v4725, 0
        %4756 = vmatprep.subr.bf16.mxu0 0
        %4757 = vmatpush1.bf16.msra.mxu0 %v4740
        %4758 = vmatprep.subr.bf16.mxu0 0
        %4759 = vmatpush1.bf16.msra.mxu0 %v4741
        %4760 = vmatprep.subr.bf16.mxu0 0
        %4761 = vmatpush1.bf16.msra.mxu0 0
        %4762 = vmatprep.subr.bf16.mxu0 0
        %4763 = vmatpush1.bf16.msra.mxu0 0
        %4764 = vmatprep.subr.bf16.mxu0 0
        %4765 = vmatpush1.bf16.msra.mxu0 0
        %4766 = vmatprep.subr.bf16.mxu0 0
        %4767 = vmatpush1.bf16.msra.mxu0 0
        %4768 = vmatprep.subr.bf16.mxu0 0
        %4769 = vmatpush1.bf16.msra.mxu0 0
        %4770 = vmatprep.subr.bf16.mxu0 0
        %4771 = vmatpush1.bf16.msra.mxu0 0
        %4772 = vmatprep.subr.bf16.mxu0 0
        %4773 = vmatpush1.bf16.msra.mxu0 0
        %4774 = vmatprep.subr.bf16.mxu0 0
        %4775 = vmatpush1.bf16.msra.mxu0 0
        %4776 = vmatprep.subr.bf16.mxu0 0
        %4777 = vmatpush1.bf16.msra.mxu0 0
        %4778 = vmatprep.subr.bf16.mxu0 0
        %4779 = vmatpush1.bf16.msra.mxu0 0
        %4780 = vmatprep.subr.bf16.mxu0 0
        %4781 = vmatpush1.bf16.msra.mxu0 0
        %4782 = vmatprep.subr.bf16.mxu0 0
        %4783 = vmatpush1.bf16.msra.mxu0 0
        %4784 = vmatprep.subr.bf16.mxu0 0
        %4785 = vmatpush1.bf16.msra.mxu0 0
        %4786 = vmatprep.subr.bf16.mxu0 0
        %4787 = vmatpush1.bf16.msra.mxu0 0
        %4788 = vmatprep.mubr.bf16.mxu0 0
        %4789 = vmatmul.mubr.bf16.gmra.mrb[0].mxu0 %v4745
        %v4790 = vpop.f32.mrb[0].mxu0
        %v4791 = vadd.f32 %v4730, %v4790
        %v4792 = vpop.f32.mrb[0].mxu0
        %v4793 = vpop.f32.mrb[0].mxu0
        %v4794 = vadd.f32 %v4730, %v4793
        %v4795 = vpop.f32.mrb[0].mxu0
        %4796 = vmatprep.mubr.bf16.mxu0 0
        %4797 = vmatmul.mubr.bf16.gmra.mrb[0].mxu0 %v4748
        %v4798 = vpop.f32.mrb[0].mxu0
        %v4799 = vadd.f32 %v4730, %v4798
        %v4800 = vpop.f32.mrb[0].mxu0
        %v4801 = vpop.f32.mrb[0].mxu0
        %v4802 = vadd.f32 %v4730, %v4801
        %v4803 = vpop.f32.mrb[0].mxu0
        %4804 = vmatprep.mubr.bf16.mxu0 0
        %4805 = vmatmul.mubr.bf16.gmra.mrb[0].mxu0 %v4751
        %v4806 = vpop.f32.mrb[0].mxu0
        %v4807 = vadd.f32 %v4730, %v4806
        %v4808 = vpop.f32.mrb[0].mxu0
        %v4809 = vpop.f32.mrb[0].mxu0
        %v4810 = vadd.f32 %v4730, %v4809
        %v4811 = vpop.f32.mrb[0].mxu0
        %4812 = vmatprep.mubr.bf16.mxu0 0
        %4813 = vmatmul.mubr.bf16.gmra.mrb[0].mxu0 %v4754
        %v4814 = vpop.f32.mrb[0].mxu0
        %v4815 = vadd.f32 %v4730, %v4814
        %v4816 = vpop.f32.mrb[0].mxu0
        %v4817 = vpop.f32.mrb[0].mxu0
        %v4818 = vpop.f32.mrb[0].mxu0
        %4819 = vdwg.mxu0
        %v4820 = vxor.u32 %v4791, 2147483648
        %v4821 = vxor.u32 %v4794, 2147483648
        %v4822 = vxor.u32 %v4799, 2147483648
        %v4823 = vxor.u32 %v4802, 2147483648
        %v4824 = vxor.u32 %v4807, 2147483648
        %v4825 = vxor.u32 %v4810, 2147483648
        %v4826 = vxor.u32 %v4815, 2147483648
        %v4827 = vmul.f32 %v4820, 1.442695
        %v4828 = vpow.pop %v4827
        %v4829 = vmul.f32 %v4821, 1.442695
        %v4830 = vpow.pop %v4829
        %v4831 = vmul.f32 %v4822, 1.442695
        %v4832 = vpow.pop %v4831
        %v4833 = vmul.f32 %v4823, 1.442695
        %v4834 = vpow.pop %v4833
        %v4835 = vmul.f32 %v4824, 1.442695
        %v4836 = vpow.pop %v4835
        %v4837 = vmul.f32 %v4825, 1.442695
        %v4838 = vpow.pop %v4837
        %v4839 = vmul.f32 %v4826, 1.442695
        %v4840 = vpow.pop %v4839
        %v4841 = vadd.f32 %v4828, 1.0
        %v4842 = vadd.f32 %v4830, 1.0
        %v4843 = vadd.f32 %v4832, 1.0
        %v4844 = vadd.f32 %v4834, 1.0
        %v4845 = vadd.f32 %v4836, 1.0
        %v4846 = vadd.f32 %v4838, 1.0
        %v4847 = vadd.f32 %v4840, 1.0
        %v4848 = vrcp.pop %v4841
        %v4849 = vmul.f32 1.0, %v4848
        %v4850 = vrcp.pop %v4842
        %v4851 = vmul.f32 1.0, %v4850
        %v4852 = vrcp.pop %v4843
        %v4853 = vmul.f32 1.0, %v4852
        %v4854 = vrcp.pop %v4844
        %v4855 = vmul.f32 1.0, %v4854
        %v4856 = vrcp.pop %v4845
        %v4857 = vmul.f32 1.0, %v4856
        %v4858 = vrcp.pop %v4846
        %v4859 = vmul.f32 1.0, %v4858
        %v4860 = vrcp.pop %v4847
        %v4861 = vmul.f32 1.0, %v4860
        %v4862 = vmul.f32 %v4791, %v4849
        %v4863 = vmul.f32 %v4794, %v4851
        %v4864 = vmul.f32 %v4799, %v4853
        %v4865 = vmul.f32 %v4802, %v4855
        %v4866 = vmul.f32 %v4807, %v4857
        %v4867 = vmul.f32 %v4810, %v4859
        %v4868 = vmul.f32 %v4815, %v4861
        %v4869 = vadd.f32 %v4554, %v4862
        %v4870 = vadd.f32 %v4555, %v4863
        %v4871 = vadd.f32 %v4556, %v4864
        %v4872 = vadd.f32 %v4557, %v4865
        %v4873 = vadd.f32 %v4558, %v4866
        %v4874 = vadd.f32 %v4559, %v4867
        %v4875 = vadd.f32 %v4560, %v4868
        %s4876 = scalar_lea.vmem %s14, 128
        %v4877 = vld [vmem:[%s4876] sm:$0xf]
        %v4878 = vld [vmem:[%s4876 + $0x4] sm:$0xf]
        %v4879 = vld [vmem:[%s4876 + $0x8] sm:$0xf]
        %v4880 = vld [vmem:[%s4876 + $0xc] sm:$0xf]
        %s4881 = scalar_lea.vmem %s15, 8
        %v4882 = vld [vmem:[%s4881] sm:$0x1]
        %s4883 = scalar_lea.vmem %s14, 144
        %v4884 = vld [vmem:[%s4883] sm:$0xf]
        %v4885 = vld [vmem:[%s4883 + $0x4] sm:$0xf]
        %v4886 = vld [vmem:[%s4883 + $0x8] sm:$0xf]
        %v4887 = vld [vmem:[%s4883 + $0xc] sm:$0xf]
        %s4888 = scalar_lea.vmem %s15, 9
        %v4889 = vld [vmem:[%s4888] sm:$0x1]
        %v4890 = vpack.c.bf16 %v4870, %v4869
        %v4891 = vpack.c.bf16 %v4872, %v4871
        %v4892 = vpack.c.bf16 %v4874, %v4873
        %v4893 = vpack.c.bf16 %v4875, %v4875
        %v4895 = vlaneseq
        %v4896 = vshrl.u32 %v4895, 7
        %v4897 = vsub.s32 0, %v4896
        %v4898 = vrot.slane %v4882, %v4897
        %v4904 = vunpack.c.l.b16 %v4877
        %v4905 = vunpack.c.l.b16 %v4878
        %v4906 = vunpack.c.l.b16 %v4879
        %v4907 = vunpack.c.l.b16 %v4880
        %v4908 = vpack.c.b16 %v4905, %v4904
        %v4909 = vpack.c.b16 %v4907, %v4906
        %v4913 = vsel %vm1098, %v4890, 0
        %v4916 = vsel %vm1098, %v4891, 0
        %v4919 = vsel %vm1098, %v4892, 0
        %v4922 = vsel %vm1098, %v4893, 0
        %4924 = vmatprep.subr.bf16.mxu0 0
        %4925 = vmatpush1.bf16.msra.mxu0 %v4908
        %4926 = vmatprep.subr.bf16.mxu0 0
        %4927 = vmatpush1.bf16.msra.mxu0 %v4909
        %4928 = vmatprep.subr.bf16.mxu0 0
        %4929 = vmatpush1.bf16.msra.mxu0 0
        %4930 = vmatprep.subr.bf16.mxu0 0
        %4931 = vmatpush1.bf16.msra.mxu0 0
        %4932 = vmatprep.subr.bf16.mxu0 0
        %4933 = vmatpush1.bf16.msra.mxu0 0
        %4934 = vmatprep.subr.bf16.mxu0 0
        %4935 = vmatpush1.bf16.msra.mxu0 0
        %4936 = vmatprep.subr.bf16.mxu0 0
        %4937 = vmatpush1.bf16.msra.mxu0 0
        %4938 = vmatprep.subr.bf16.mxu0 0
        %4939 = vmatpush1.bf16.msra.mxu0 0
        %4940 = vmatprep.subr.bf16.mxu0 0
        %4941 = vmatpush1.bf16.msra.mxu0 0
        %4942 = vmatprep.subr.bf16.mxu0 0
        %4943 = vmatpush1.bf16.msra.mxu0 0
        %4944 = vmatprep.subr.bf16.mxu0 0
        %4945 = vmatpush1.bf16.msra.mxu0 0
        %4946 = vmatprep.subr.bf16.mxu0 0
        %4947 = vmatpush1.bf16.msra.mxu0 0
        %4948 = vmatprep.subr.bf16.mxu0 0
        %4949 = vmatpush1.bf16.msra.mxu0 0
        %4950 = vmatprep.subr.bf16.mxu0 0
        %4951 = vmatpush1.bf16.msra.mxu0 0
        %4952 = vmatprep.subr.bf16.mxu0 0
        %4953 = vmatpush1.bf16.msra.mxu0 0
        %4954 = vmatprep.subr.bf16.mxu0 0
        %4955 = vmatpush1.bf16.msra.mxu0 0
        %4956 = vmatprep.mubr.bf16.mxu0 0
        %4957 = vmatmul.mubr.bf16.gmra.mrb[0].mxu0 %v4913
        %v4958 = vpop.f32.mrb[0].mxu0
        %v4959 = vadd.f32 %v4898, %v4958
        %v4960 = vpop.f32.mrb[0].mxu0
        %v4961 = vpop.f32.mrb[0].mxu0
        %v4962 = vadd.f32 %v4898, %v4961
        %v4963 = vpop.f32.mrb[0].mxu0
        %4964 = vmatprep.mubr.bf16.mxu0 0
        %4965 = vmatmul.mubr.bf16.gmra.mrb[0].mxu0 %v4916
        %v4966 = vpop.f32.mrb[0].mxu0
        %v4967 = vadd.f32 %v4898, %v4966
        %v4968 = vpop.f32.mrb[0].mxu0
        %v4969 = vpop.f32.mrb[0].mxu0
        %v4970 = vadd.f32 %v4898, %v4969
        %v4971 = vpop.f32.mrb[0].mxu0
        %4972 = vmatprep.mubr.bf16.mxu0 0
        %4973 = vmatmul.mubr.bf16.gmra.mrb[0].mxu0 %v4919
        %v4974 = vpop.f32.mrb[0].mxu0
        %v4975 = vadd.f32 %v4898, %v4974
        %v4976 = vpop.f32.mrb[0].mxu0
        %v4977 = vpop.f32.mrb[0].mxu0
        %v4978 = vadd.f32 %v4898, %v4977
        %v4979 = vpop.f32.mrb[0].mxu0
        %4980 = vmatprep.mubr.bf16.mxu0 0
        %4981 = vmatmul.mubr.bf16.gmra.mrb[0].mxu0 %v4922
        %v4982 = vpop.f32.mrb[0].mxu0
        %v4983 = vadd.f32 %v4898, %v4982
        %v4984 = vpop.f32.mrb[0].mxu0
        %v4985 = vpop.f32.mrb[0].mxu0
        %v4986 = vpop.f32.mrb[0].mxu0
        %4987 = vdwg.mxu0
        %v4988 = vxor.u32 %v4959, 2147483648
        %v4989 = vxor.u32 %v4962, 2147483648
        %v4990 = vxor.u32 %v4967, 2147483648
        %v4991 = vxor.u32 %v4970, 2147483648
        %v4992 = vxor.u32 %v4975, 2147483648
        %v4993 = vxor.u32 %v4978, 2147483648
        %v4994 = vxor.u32 %v4983, 2147483648
        %v4995 = vmul.f32 %v4988, 1.442695
        %v4996 = vpow.pop %v4995
        %v4997 = vmul.f32 %v4989, 1.442695
        %v4998 = vpow.pop %v4997
        %v4999 = vmul.f32 %v4990, 1.442695
        %v5000 = vpow.pop %v4999
        %v5001 = vmul.f32 %v4991, 1.442695
        %v5002 = vpow.pop %v5001
        %v5003 = vmul.f32 %v4992, 1.442695
        %v5004 = vpow.pop %v5003
        %v5005 = vmul.f32 %v4993, 1.442695
        %v5006 = vpow.pop %v5005
        %v5007 = vmul.f32 %v4994, 1.442695
        %v5008 = vpow.pop %v5007
        %v5009 = vadd.f32 %v4996, 1.0
        %v5010 = vadd.f32 %v4998, 1.0
        %v5011 = vadd.f32 %v5000, 1.0
        %v5012 = vadd.f32 %v5002, 1.0
        %v5013 = vadd.f32 %v5004, 1.0
        %v5014 = vadd.f32 %v5006, 1.0
        %v5015 = vadd.f32 %v5008, 1.0
        %v5016 = vrcp.pop %v5009
        %v5017 = vmul.f32 1.0, %v5016
        %v5018 = vrcp.pop %v5010
        %v5019 = vmul.f32 1.0, %v5018
        %v5020 = vrcp.pop %v5011
        %v5021 = vmul.f32 1.0, %v5020
        %v5022 = vrcp.pop %v5012
        %v5023 = vmul.f32 1.0, %v5022
        %v5024 = vrcp.pop %v5013
        %v5025 = vmul.f32 1.0, %v5024
        %v5026 = vrcp.pop %v5014
        %v5027 = vmul.f32 1.0, %v5026
        %v5028 = vrcp.pop %v5015
        %v5029 = vmul.f32 1.0, %v5028
        %v5030 = vmul.f32 %v4959, %v5017
        %v5031 = vmul.f32 %v4962, %v5019
        %v5032 = vmul.f32 %v4967, %v5021
        %v5033 = vmul.f32 %v4970, %v5023
        %v5034 = vmul.f32 %v4975, %v5025
        %v5035 = vmul.f32 %v4978, %v5027
        %v5036 = vmul.f32 %v4983, %v5029
        %v5037 = vpack.c.bf16 %v5031, %v5030
        %v5038 = vpack.c.bf16 %v5033, %v5032
        %v5039 = vpack.c.bf16 %v5035, %v5034
        %v5040 = vpack.c.bf16 %v5036, %v5036
        %v5042 = vlaneseq
        %v5043 = vshrl.u32 %v5042, 7
        %v5044 = vsub.s32 0, %v5043
        %v5045 = vrot.slane %v4889, %v5044
        %v5051 = vunpack.c.l.b16 %v4884
        %v5052 = vunpack.c.l.b16 %v4885
        %v5053 = vunpack.c.l.b16 %v4886
        %v5054 = vunpack.c.l.b16 %v4887
        %v5055 = vpack.c.b16 %v5052, %v5051
        %v5056 = vpack.c.b16 %v5054, %v5053
        %v5060 = vsel %vm1098, %v5037, 0
        %v5063 = vsel %vm1098, %v5038, 0
        %v5066 = vsel %vm1098, %v5039, 0
        %v5069 = vsel %vm1098, %v5040, 0
        %5071 = vmatprep.subr.bf16.mxu0 0
        %5072 = vmatpush1.bf16.msra.mxu0 %v5055
        %5073 = vmatprep.subr.bf16.mxu0 0
        %5074 = vmatpush1.bf16.msra.mxu0 %v5056
        %5075 = vmatprep.subr.bf16.mxu0 0
        %5076 = vmatpush1.bf16.msra.mxu0 0
        %5077 = vmatprep.subr.bf16.mxu0 0
        %5078 = vmatpush1.bf16.msra.mxu0 0
        %5079 = vmatprep.subr.bf16.mxu0 0
        %5080 = vmatpush1.bf16.msra.mxu0 0
        %5081 = vmatprep.subr.bf16.mxu0 0
        %5082 = vmatpush1.bf16.msra.mxu0 0
        %5083 = vmatprep.subr.bf16.mxu0 0
        %5084 = vmatpush1.bf16.msra.mxu0 0
        %5085 = vmatprep.subr.bf16.mxu0 0
        %5086 = vmatpush1.bf16.msra.mxu0 0
        %5087 = vmatprep.subr.bf16.mxu0 0
        %5088 = vmatpush1.bf16.msra.mxu0 0
        %5089 = vmatprep.subr.bf16.mxu0 0
        %5090 = vmatpush1.bf16.msra.mxu0 0
        %5091 = vmatprep.subr.bf16.mxu0 0
        %5092 = vmatpush1.bf16.msra.mxu0 0
        %5093 = vmatprep.subr.bf16.mxu0 0
        %5094 = vmatpush1.bf16.msra.mxu0 0
        %5095 = vmatprep.subr.bf16.mxu0 0
        %5096 = vmatpush1.bf16.msra.mxu0 0
        %5097 = vmatprep.subr.bf16.mxu0 0
        %5098 = vmatpush1.bf16.msra.mxu0 0
        %5099 = vmatprep.subr.bf16.mxu0 0
        %5100 = vmatpush1.bf16.msra.mxu0 0
        %5101 = vmatprep.subr.bf16.mxu0 0
        %5102 = vmatpush1.bf16.msra.mxu0 0
        %5103 = vmatprep.mubr.bf16.mxu0 0
        %5104 = vmatmul.mubr.bf16.gmra.mrb[0].mxu0 %v5060
        %v5105 = vpop.f32.mrb[0].mxu0
        %v5106 = vadd.f32 %v5045, %v5105
        %v5107 = vpop.f32.mrb[0].mxu0
        %v5108 = vpop.f32.mrb[0].mxu0
        %v5109 = vadd.f32 %v5045, %v5108
        %v5110 = vpop.f32.mrb[0].mxu0
        %5111 = vmatprep.mubr.bf16.mxu0 0
        %5112 = vmatmul.mubr.bf16.gmra.mrb[0].mxu0 %v5063
        %v5113 = vpop.f32.mrb[0].mxu0
        %v5114 = vadd.f32 %v5045, %v5113
        %v5115 = vpop.f32.mrb[0].mxu0
        %v5116 = vpop.f32.mrb[0].mxu0
        %v5117 = vadd.f32 %v5045, %v5116
        %v5118 = vpop.f32.mrb[0].mxu0
        %5119 = vmatprep.mubr.bf16.mxu0 0
        %5120 = vmatmul.mubr.bf16.gmra.mrb[0].mxu0 %v5066
        %v5121 = vpop.f32.mrb[0].mxu0
        %v5122 = vadd.f32 %v5045, %v5121
        %v5123 = vpop.f32.mrb[0].mxu0
        %v5124 = vpop.f32.mrb[0].mxu0
        %v5125 = vadd.f32 %v5045, %v5124
        %v5126 = vpop.f32.mrb[0].mxu0
        %5127 = vmatprep.mubr.bf16.mxu0 0
        %5128 = vmatmul.mubr.bf16.gmra.mrb[0].mxu0 %v5069
        %v5129 = vpop.f32.mrb[0].mxu0
        %v5130 = vadd.f32 %v5045, %v5129
        %v5131 = vpop.f32.mrb[0].mxu0
        %v5132 = vpop.f32.mrb[0].mxu0
        %v5133 = vpop.f32.mrb[0].mxu0
        %5134 = vdwg.mxu0
        %v5135 = vxor.u32 %v5106, 2147483648
        %v5136 = vxor.u32 %v5109, 2147483648
        %v5137 = vxor.u32 %v5114, 2147483648
        %v5138 = vxor.u32 %v5117, 2147483648
        %v5139 = vxor.u32 %v5122, 2147483648
        %v5140 = vxor.u32 %v5125, 2147483648
        %v5141 = vxor.u32 %v5130, 2147483648
        %v5142 = vmul.f32 %v5135, 1.442695
        %v5143 = vpow.pop %v5142
        %v5144 = vmul.f32 %v5136, 1.442695
        %v5145 = vpow.pop %v5144
        %v5146 = vmul.f32 %v5137, 1.442695
        %v5147 = vpow.pop %v5146
        %v5148 = vmul.f32 %v5138, 1.442695
        %v5149 = vpow.pop %v5148
        %v5150 = vmul.f32 %v5139, 1.442695
        %v5151 = vpow.pop %v5150
        %v5152 = vmul.f32 %v5140, 1.442695
        %v5153 = vpow.pop %v5152
        %v5154 = vmul.f32 %v5141, 1.442695
        %v5155 = vpow.pop %v5154
        %v5156 = vadd.f32 %v5143, 1.0
        %v5157 = vadd.f32 %v5145, 1.0
        %v5158 = vadd.f32 %v5147, 1.0
        %v5159 = vadd.f32 %v5149, 1.0
        %v5160 = vadd.f32 %v5151, 1.0
        %v5161 = vadd.f32 %v5153, 1.0
        %v5162 = vadd.f32 %v5155, 1.0
        %v5163 = vrcp.pop %v5156
        %v5164 = vmul.f32 1.0, %v5163
        %v5165 = vrcp.pop %v5157
        %v5166 = vmul.f32 1.0, %v5165
        %v5167 = vrcp.pop %v5158
        %v5168 = vmul.f32 1.0, %v5167
        %v5169 = vrcp.pop %v5159
        %v5170 = vmul.f32 1.0, %v5169
        %v5171 = vrcp.pop %v5160
        %v5172 = vmul.f32 1.0, %v5171
        %v5173 = vrcp.pop %v5161
        %v5174 = vmul.f32 1.0, %v5173
        %v5175 = vrcp.pop %v5162
        %v5176 = vmul.f32 1.0, %v5175
        %v5177 = vmul.f32 %v5106, %v5164
        %v5178 = vmul.f32 %v5109, %v5166
        %v5179 = vmul.f32 %v5114, %v5168
        %v5180 = vmul.f32 %v5117, %v5170
        %v5181 = vmul.f32 %v5122, %v5172
        %v5182 = vmul.f32 %v5125, %v5174
        %v5183 = vmul.f32 %v5130, %v5176
        %v5184 = vadd.f32 %v4869, %v5177
        %v5185 = vadd.f32 %v4870, %v5178
        %v5186 = vadd.f32 %v4871, %v5179
        %v5187 = vadd.f32 %v4872, %v5180
        %v5188 = vadd.f32 %v4873, %v5181
        %v5189 = vadd.f32 %v4874, %v5182
        %v5190 = vadd.f32 %v4875, %v5183
        %5191 = vrot.lane.b32.xlu0 %v909, 64
        %v5192 = vpop.permute.xlu0 %5191
        %5193 = vrot.lane.b32.xlu0 %v913, 64
        %v5194 = vpop.permute.xlu0 %5193
        %5195 = vrot.lane.b32.xlu0 %v919, 64
        %v5196 = vpop.permute.xlu0 %5195
        %5197 = vrot.lane.b32.xlu0 %v923, 64
        %v5198 = vpop.permute.xlu0 %5197
        %5199 = vrot.lane.b32.xlu0 %v929, 64
        %v5200 = vpop.permute.xlu0 %5199
        %5201 = vrot.lane.b32.xlu0 %v933, 64
        %v5202 = vpop.permute.xlu0 %5201
        %5203 = vrot.lane.b32.xlu0 %v939, 64
        %v5204 = vpop.permute.xlu0 %5203
        %v5212 = vmul.f32 %v5184, %v5192
        %v5213 = vmul.f32 %v5185, %v5194
        %v5214 = vmul.f32 %v5186, %v5196
        %v5215 = vmul.f32 %v5187, %v5198
        %v5216 = vmul.f32 %v5188, %v5200
        %v5217 = vmul.f32 %v5189, %v5202
        %v5218 = vmul.f32 %v5190, %v5204
        %v5219 = vpack.c.bf16 %v5213, %v5212
        %v5220 = vpack.c.bf16 %v5215, %v5214
        %v5221 = vpack.c.bf16 %v5217, %v5216
        %v5222 = vpack.c.bf16 %v5218, %v5218
        %v5224 = vsel %vm867, %v5222, 0
        %5226 = vmatprep.subr.bf16.mxu0 0
        %5227 = vmatpush1.bf16.msra.mxu0 %v5219
        %5228 = vmatprep.subr.bf16.mxu0 0
        %5229 = vmatpush1.bf16.msra.mxu0 %v5220
        %5230 = vmatprep.subr.bf16.mxu0 0
        %5231 = vmatpush1.bf16.msra.mxu0 %v5221
        %5232 = vmatprep.subr.bf16.mxu0 0
        %5233 = vmatpush1.bf16.msra.mxu0 %v5224
        %5234 = vmatprep.subr.bf16.mxu0 0
        %5235 = vmatpush1.bf16.msra.mxu0 0
        %5236 = vmatprep.subr.bf16.mxu0 0
        %5237 = vmatpush1.bf16.msra.mxu0 0
        %5238 = vmatprep.subr.bf16.mxu0 0
        %5239 = vmatpush1.bf16.msra.mxu0 0
        %5240 = vmatprep.subr.bf16.mxu0 0
        %5241 = vmatpush1.bf16.msra.mxu0 0
        %5242 = vmatprep.subr.bf16.mxu0 0
        %5243 = vmatpush1.bf16.msra.mxu0 0
        %5244 = vmatprep.subr.bf16.mxu0 0
        %5245 = vmatpush1.bf16.msra.mxu0 0
        %5246 = vmatprep.subr.bf16.mxu0 0
        %5247 = vmatpush1.bf16.msra.mxu0 0
        %5248 = vmatprep.subr.bf16.mxu0 0
        %5249 = vmatpush1.bf16.msra.mxu0 0
        %5250 = vmatprep.subr.bf16.mxu0 0
        %5251 = vmatpush1.bf16.msra.mxu0 0
        %5252 = vmatprep.subr.bf16.mxu0 0
        %5253 = vmatpush1.bf16.msra.mxu0 0
        %5254 = vmatprep.subr.bf16.mxu0 0
        %5255 = vmatpush1.bf16.msra.mxu0 0
        %5256 = vmatprep.subr.bf16.mxu0 0
        %5257 = vmatpush1.bf16.msra.mxu0 0
        %5258 = vmatprep.mubr.bf16.mxu0 0
        %5259 = vmatmul.mubr.bf16.gmra.mrb[0].mxu0 %v2238
        %v5260 = vpop.f32.mrb[0].mxu0
        %v5261 = vadd.f32 0.0, %v5260
        %v5262 = vpop.f32.mrb[0].mxu0
        %v5263 = vpop.f32.mrb[0].mxu0
        %v5264 = vpop.f32.mrb[0].mxu0
        %5265 = vdwg.mxu0
        %s5266 = scalar_lea.vmem %s14, 160
        %v5267 = vld [vmem:[%s5266] sm:$0xf]
        %v5268 = vld [vmem:[%s5266 + $0x4] sm:$0xf]
        %v5269 = vld [vmem:[%s5266 + $0x8] sm:$0xf]
        %v5270 = vld [vmem:[%s5266 + $0xc] sm:$0xf]
        %s5271 = scalar_lea.vmem %s15, 10
        %v5272 = vld [vmem:[%s5271] sm:$0x1]
        %v5273 = vpack.c.bf16 %v5261, %v5261
        %v5275 = vlaneseq
        %v5276 = vshrl.u32 %v5275, 7
        %v5277 = vsub.s32 0, %v5276
        %v5278 = vrot.slane %v5272, %v5277
        %v5284 = vunpack.c.l.b16 %v5267
        %v5285 = vunpack.c.l.b16 %v5268
        %v5286 = vunpack.c.l.b16 %v5269
        %v5287 = vunpack.c.l.b16 %v5270
        %v5288 = vpack.c.b16 %v5285, %v5284
        %v5289 = vpack.c.b16 %v5287, %v5286
        %v5293 = vsel %vm1098, %v5273, 0
        %5295 = vmatprep.subr.bf16.mxu0 0
        %5296 = vmatpush1.bf16.msra.mxu0 %v5288
        %5297 = vmatprep.subr.bf16.mxu0 0
        %5298 = vmatpush1.bf16.msra.mxu0 %v5289
        %5299 = vmatprep.subr.bf16.mxu0 0
        %5300 = vmatpush1.bf16.msra.mxu0 0
        %5301 = vmatprep.subr.bf16.mxu0 0
        %5302 = vmatpush1.bf16.msra.mxu0 0
        %5303 = vmatprep.subr.bf16.mxu0 0
        %5304 = vmatpush1.bf16.msra.mxu0 0
        %5305 = vmatprep.subr.bf16.mxu0 0
        %5306 = vmatpush1.bf16.msra.mxu0 0
        %5307 = vmatprep.subr.bf16.mxu0 0
        %5308 = vmatpush1.bf16.msra.mxu0 0
        %5309 = vmatprep.subr.bf16.mxu0 0
        %5310 = vmatpush1.bf16.msra.mxu0 0
        %5311 = vmatprep.subr.bf16.mxu0 0
        %5312 = vmatpush1.bf16.msra.mxu0 0
        %5313 = vmatprep.subr.bf16.mxu0 0
        %5314 = vmatpush1.bf16.msra.mxu0 0
        %5315 = vmatprep.subr.bf16.mxu0 0
        %5316 = vmatpush1.bf16.msra.mxu0 0
        %5317 = vmatprep.subr.bf16.mxu0 0
        %5318 = vmatpush1.bf16.msra.mxu0 0
        %5319 = vmatprep.subr.bf16.mxu0 0
        %5320 = vmatpush1.bf16.msra.mxu0 0
        %5321 = vmatprep.subr.bf16.mxu0 0
        %5322 = vmatpush1.bf16.msra.mxu0 0
        %5323 = vmatprep.subr.bf16.mxu0 0
        %5324 = vmatpush1.bf16.msra.mxu0 0
        %5325 = vmatprep.subr.bf16.mxu0 0
        %5326 = vmatpush1.bf16.msra.mxu0 0
        %5327 = vmatprep.mubr.bf16.mxu0 0
        %5328 = vmatmul.mubr.bf16.gmra.mrb[0].mxu0 %v5293
        %v5329 = vpop.f32.mrb[0].mxu0
        %v5330 = vadd.f32 %v5278, %v5329
        %v5331 = vpop.f32.mrb[0].mxu0
        %v5332 = vpop.f32.mrb[0].mxu0
        %v5333 = vpop.f32.mrb[0].mxu0
        %5334 = vdwg.mxu0
        %v5335 = vxor.u32 %v5330, 2147483648
        %v5336 = vmul.f32 %v5335, 1.442695
        %v5337 = vpow.pop %v5336
        %v5338 = vadd.f32 %v5337, 1.0
        %v5339 = vrcp.pop %v5338
        %v5340 = vmul.f32 1.0, %v5339
        %v5341 = vmul.f32 %v5330, %v5340
        %s5342 = scalar_lea.vmem %s14, 176
        %v5343 = vld [vmem:[%s5342] sm:$0xf]
        %v5344 = vld [vmem:[%s5342 + $0x4] sm:$0xf]
        %v5345 = vld [vmem:[%s5342 + $0x8] sm:$0xf]
        %v5346 = vld [vmem:[%s5342 + $0xc] sm:$0xf]
        %s5347 = scalar_lea.vmem %s15, 11
        %v5348 = vld [vmem:[%s5347] sm:$0x1]
        %v5349 = vpack.c.bf16 %v5341, %v5341
        %v5351 = vlaneseq
        %v5352 = vshrl.u32 %v5351, 7
        %v5353 = vsub.s32 0, %v5352
        %v5354 = vrot.slane %v5348, %v5353
        %v5360 = vunpack.c.l.b16 %v5343
        %v5361 = vunpack.c.l.b16 %v5344
        %v5362 = vunpack.c.l.b16 %v5345
        %v5363 = vunpack.c.l.b16 %v5346
        %v5364 = vpack.c.b16 %v5361, %v5360
        %v5365 = vpack.c.b16 %v5363, %v5362
        %v5369 = vsel %vm1098, %v5349, 0
        %5371 = vmatprep.subr.bf16.mxu0 0
        %5372 = vmatpush1.bf16.msra.mxu0 %v5364
        %5373 = vmatprep.subr.bf16.mxu0 0
        %5374 = vmatpush1.bf16.msra.mxu0 %v5365
        %5375 = vmatprep.subr.bf16.mxu0 0
        %5376 = vmatpush1.bf16.msra.mxu0 0
        %5377 = vmatprep.subr.bf16.mxu0 0
        %5378 = vmatpush1.bf16.msra.mxu0 0
        %5379 = vmatprep.subr.bf16.mxu0 0
        %5380 = vmatpush1.bf16.msra.mxu0 0
        %5381 = vmatprep.subr.bf16.mxu0 0
        %5382 = vmatpush1.bf16.msra.mxu0 0
        %5383 = vmatprep.subr.bf16.mxu0 0
        %5384 = vmatpush1.bf16.msra.mxu0 0
        %5385 = vmatprep.subr.bf16.mxu0 0
        %5386 = vmatpush1.bf16.msra.mxu0 0
        %5387 = vmatprep.subr.bf16.mxu0 0
        %5388 = vmatpush1.bf16.msra.mxu0 0
        %5389 = vmatprep.subr.bf16.mxu0 0
        %5390 = vmatpush1.bf16.msra.mxu0 0
        %5391 = vmatprep.subr.bf16.mxu0 0
        %5392 = vmatpush1.bf16.msra.mxu0 0
        %5393 = vmatprep.subr.bf16.mxu0 0
        %5394 = vmatpush1.bf16.msra.mxu0 0
        %5395 = vmatprep.subr.bf16.mxu0 0
        %5396 = vmatpush1.bf16.msra.mxu0 0
        %5397 = vmatprep.subr.bf16.mxu0 0
        %5398 = vmatpush1.bf16.msra.mxu0 0
        %5399 = vmatprep.subr.bf16.mxu0 0
        %5400 = vmatpush1.bf16.msra.mxu0 0
        %5401 = vmatprep.subr.bf16.mxu0 0
        %5402 = vmatpush1.bf16.msra.mxu0 0
        %5403 = vmatprep.mubr.bf16.mxu0 0
        %5404 = vmatmul.mubr.bf16.gmra.mrb[0].mxu0 %v5369
        %v5405 = vpop.f32.mrb[0].mxu0
        %v5406 = vadd.f32 %v5354, %v5405
        %v5407 = vpop.f32.mrb[0].mxu0
        %v5408 = vpop.f32.mrb[0].mxu0
        %v5409 = vpop.f32.mrb[0].mxu0
        %5410 = vdwg.mxu0
        %v5411 = vxor.u32 %v5406, 2147483648
        %v5412 = vmul.f32 %v5411, 1.442695
        %v5413 = vpow.pop %v5412
        %v5414 = vadd.f32 %v5413, 1.0
        %v5415 = vrcp.pop %v5414
        %v5416 = vmul.f32 1.0, %v5415
        %v5417 = vmul.f32 %v5406, %v5416
        %s5418 = scalar_lea.vmem %s14, 192
        %v5419 = vld [vmem:[%s5418] sm:$0xf]
        %v5420 = vld [vmem:[%s5418 + $0x4] sm:$0xf]
        %v5421 = vld [vmem:[%s5418 + $0x8] sm:$0xf]
        %v5422 = vld [vmem:[%s5418 + $0xc] sm:$0xf]
        %s5423 = scalar_lea.vmem %s15, 12
        %v5424 = vld [vmem:[%s5423] sm:$0x1]
        %v5425 = vpack.c.bf16 %v5417, %v5417
        %v5427 = vlaneseq
        %v5428 = vshrl.u32 %v5427, 7
        %v5429 = vsub.s32 0, %v5428
        %v5430 = vrot.slane %v5424, %v5429
        %v5436 = vunpack.c.l.b16 %v5419
        %v5437 = vunpack.c.l.b16 %v5420
        %v5438 = vunpack.c.l.b16 %v5421
        %v5439 = vunpack.c.l.b16 %v5422
        %v5440 = vpack.c.b16 %v5437, %v5436
        %v5441 = vpack.c.b16 %v5439, %v5438
        %v5445 = vsel %vm1098, %v5425, 0
        %5447 = vmatprep.subr.bf16.mxu0 0
        %5448 = vmatpush1.bf16.msra.mxu0 %v5440
        %5449 = vmatprep.subr.bf16.mxu0 0
        %5450 = vmatpush1.bf16.msra.mxu0 %v5441
        %5451 = vmatprep.subr.bf16.mxu0 0
        %5452 = vmatpush1.bf16.msra.mxu0 0
        %5453 = vmatprep.subr.bf16.mxu0 0
        %5454 = vmatpush1.bf16.msra.mxu0 0
        %5455 = vmatprep.subr.bf16.mxu0 0
        %5456 = vmatpush1.bf16.msra.mxu0 0
        %5457 = vmatprep.subr.bf16.mxu0 0
        %5458 = vmatpush1.bf16.msra.mxu0 0
        %5459 = vmatprep.subr.bf16.mxu0 0
        %5460 = vmatpush1.bf16.msra.mxu0 0
        %5461 = vmatprep.subr.bf16.mxu0 0
        %5462 = vmatpush1.bf16.msra.mxu0 0
        %5463 = vmatprep.subr.bf16.mxu0 0
        %5464 = vmatpush1.bf16.msra.mxu0 0
        %5465 = vmatprep.subr.bf16.mxu0 0
        %5466 = vmatpush1.bf16.msra.mxu0 0
        %5467 = vmatprep.subr.bf16.mxu0 0
        %5468 = vmatpush1.bf16.msra.mxu0 0
        %5469 = vmatprep.subr.bf16.mxu0 0
        %5470 = vmatpush1.bf16.msra.mxu0 0
        %5471 = vmatprep.subr.bf16.mxu0 0
        %5472 = vmatpush1.bf16.msra.mxu0 0
        %5473 = vmatprep.subr.bf16.mxu0 0
        %5474 = vmatpush1.bf16.msra.mxu0 0
        %5475 = vmatprep.subr.bf16.mxu0 0
        %5476 = vmatpush1.bf16.msra.mxu0 0
        %5477 = vmatprep.subr.bf16.mxu0 0
        %5478 = vmatpush1.bf16.msra.mxu0 0
        %5479 = vmatprep.mubr.bf16.mxu0 0
        %5480 = vmatmul.mubr.bf16.gmra.mrb[0].mxu0 %v5445
        %v5481 = vpop.f32.mrb[0].mxu0
        %v5482 = vadd.f32 %v5430, %v5481
        %v5483 = vpop.f32.mrb[0].mxu0
        %v5484 = vpop.f32.mrb[0].mxu0
        %v5485 = vpop.f32.mrb[0].mxu0
        %5486 = vdwg.mxu0
        %v5487 = vxor.u32 %v5482, 2147483648
        %v5488 = vmul.f32 %v5487, 1.442695
        %v5489 = vpow.pop %v5488
        %v5490 = vadd.f32 %v5489, 1.0
        %v5491 = vrcp.pop %v5490
        %v5492 = vmul.f32 1.0, %v5491
        %v5493 = vmul.f32 %v5482, %v5492
        %v5494 = vsel %vm1098, %v5493, 0.0
        %v5495 = vrot.slane %v5494, 4
        %v5496 = vadd.f32 %v5494, %v5495
        %v5497 = vrot.slane %v5496, 2
        %v5498 = vadd.f32 %v5496, %v5497
        %v5499 = vrot.slane %v5498, 1
        %v5500 = vadd.f32 %v5498, %v5499
        %s5501 = scalar_lea.vmem %s16, 16
        %v5502 = vld [vmem:[%s5501] sm:$0xf]
        %v5503 = vld [vmem:[%s5501 + $0x4] sm:$0xf]
        %v5504 = vld [vmem:[%s5501 + $0x8] sm:$0xf]
        %v5505 = vld [vmem:[%s5501 + $0xc] sm:$0xf]
        %v5506 = vpack.c.bf16 %v5185, %v5184
        %v5507 = vpack.c.bf16 %v5187, %v5186
        %v5508 = vpack.c.bf16 %v5189, %v5188
        %v5509 = vpack.c.bf16 %v5190, %v5190
        %s5510 = scalar_lea.vmem %s17, 1
        %v5511 = vld [vmem:[%s5510] sm:$0x1]
        %v5513 = vlaneseq
        %v5514 = vshrl.u32 %v5513, 7
        %v5515 = vsub.s32 0, %v5514
        %v5516 = vrot.slane %v5511, %v5515
        %v5522 = vunpack.c.l.b16 %v5502
        %v5523 = vunpack.c.l.b16 %v5503
        %v5524 = vunpack.c.l.b16 %v5504
        %v5525 = vunpack.c.l.b16 %v5505
        %v5526 = vpack.c.b16 %v5523, %v5522
        %v5527 = vpack.c.b16 %v5525, %v5524
        %v5531 = vsel %vm1098, %v5506, 0
        %v5534 = vsel %vm1098, %v5507, 0
        %v5537 = vsel %vm1098, %v5508, 0
        %v5540 = vsel %vm1098, %v5509, 0
        %5542 = vmatprep.subr.bf16.mxu0 0
        %5543 = vmatpush1.bf16.msra.mxu0 %v5526
        %5544 = vmatprep.subr.bf16.mxu0 0
        %5545 = vmatpush1.bf16.msra.mxu0 %v5527
        %5546 = vmatprep.subr.bf16.mxu0 0
        %5547 = vmatpush1.bf16.msra.mxu0 0
        %5548 = vmatprep.subr.bf16.mxu0 0
        %5549 = vmatpush1.bf16.msra.mxu0 0
        %5550 = vmatprep.subr.bf16.mxu0 0
        %5551 = vmatpush1.bf16.msra.mxu0 0
        %5552 = vmatprep.subr.bf16.mxu0 0
        %5553 = vmatpush1.bf16.msra.mxu0 0
        %5554 = vmatprep.subr.bf16.mxu0 0
        %5555 = vmatpush1.bf16.msra.mxu0 0
        %5556 = vmatprep.subr.bf16.mxu0 0
        %5557 = vmatpush1.bf16.msra.mxu0 0
        %5558 = vmatprep.subr.bf16.mxu0 0
        %5559 = vmatpush1.bf16.msra.mxu0 0
        %5560 = vmatprep.subr.bf16.mxu0 0
        %5561 = vmatpush1.bf16.msra.mxu0 0
        %5562 = vmatprep.subr.bf16.mxu0 0
        %5563 = vmatpush1.bf16.msra.mxu0 0
        %5564 = vmatprep.subr.bf16.mxu0 0
        %5565 = vmatpush1.bf16.msra.mxu0 0
        %5566 = vmatprep.subr.bf16.mxu0 0
        %5567 = vmatpush1.bf16.msra.mxu0 0
        %5568 = vmatprep.subr.bf16.mxu0 0
        %5569 = vmatpush1.bf16.msra.mxu0 0
        %5570 = vmatprep.subr.bf16.mxu0 0
        %5571 = vmatpush1.bf16.msra.mxu0 0
        %5572 = vmatprep.subr.bf16.mxu0 0
        %5573 = vmatpush1.bf16.msra.mxu0 0
        %5574 = vmatprep.mubr.bf16.mxu0 0
        %5575 = vmatmul.mubr.bf16.gmra.mrb[0].mxu0 %v5531
        %v5576 = vpop.f32.mrb[0].mxu0
        %v5577 = vadd.f32 %v5516, %v5576
        %v5578 = vpop.f32.mrb[0].mxu0
        %v5579 = vpop.f32.mrb[0].mxu0
        %v5580 = vadd.f32 %v5516, %v5579
        %v5581 = vpop.f32.mrb[0].mxu0
        %5582 = vmatprep.mubr.bf16.mxu0 0
        %5583 = vmatmul.mubr.bf16.gmra.mrb[0].mxu0 %v5534
        %v5584 = vpop.f32.mrb[0].mxu0
        %v5585 = vadd.f32 %v5516, %v5584
        %v5586 = vpop.f32.mrb[0].mxu0
        %v5587 = vpop.f32.mrb[0].mxu0
        %v5588 = vadd.f32 %v5516, %v5587
        %v5589 = vpop.f32.mrb[0].mxu0
        %5590 = vmatprep.mubr.bf16.mxu0 0
        %5591 = vmatmul.mubr.bf16.gmra.mrb[0].mxu0 %v5537
        %v5592 = vpop.f32.mrb[0].mxu0
        %v5593 = vadd.f32 %v5516, %v5592
        %v5594 = vpop.f32.mrb[0].mxu0
        %v5595 = vpop.f32.mrb[0].mxu0
        %v5596 = vadd.f32 %v5516, %v5595
        %v5597 = vpop.f32.mrb[0].mxu0
        %5598 = vmatprep.mubr.bf16.mxu0 0
        %5599 = vmatmul.mubr.bf16.gmra.mrb[0].mxu0 %v5540
        %v5600 = vpop.f32.mrb[0].mxu0
        %v5601 = vadd.f32 %v5516, %v5600
        %v5602 = vpop.f32.mrb[0].mxu0
        %v5603 = vpop.f32.mrb[0].mxu0
        %v5604 = vpop.f32.mrb[0].mxu0
        %5605 = vdwg.mxu0
        %v5606 = vxor.u32 %v5577, 2147483648
        %v5607 = vxor.u32 %v5580, 2147483648
        %v5608 = vxor.u32 %v5585, 2147483648
        %v5609 = vxor.u32 %v5588, 2147483648
        %v5610 = vxor.u32 %v5593, 2147483648
        %v5611 = vxor.u32 %v5596, 2147483648
        %v5612 = vxor.u32 %v5601, 2147483648
        %v5613 = vmul.f32 %v5606, 1.442695
        %v5614 = vpow.pop %v5613
        %v5615 = vmul.f32 %v5607, 1.442695
        %v5616 = vpow.pop %v5615
        %v5617 = vmul.f32 %v5608, 1.442695
        %v5618 = vpow.pop %v5617
        %v5619 = vmul.f32 %v5609, 1.442695
        %v5620 = vpow.pop %v5619
        %v5621 = vmul.f32 %v5610, 1.442695
        %v5622 = vpow.pop %v5621
        %v5623 = vmul.f32 %v5611, 1.442695
        %v5624 = vpow.pop %v5623
        %v5625 = vmul.f32 %v5612, 1.442695
        %v5626 = vpow.pop %v5625
        %v5627 = vadd.f32 %v5614, 1.0
        %v5628 = vadd.f32 %v5616, 1.0
        %v5629 = vadd.f32 %v5618, 1.0
        %v5630 = vadd.f32 %v5620, 1.0
        %v5631 = vadd.f32 %v5622, 1.0
        %v5632 = vadd.f32 %v5624, 1.0
        %v5633 = vadd.f32 %v5626, 1.0
        %v5634 = vrcp.pop %v5627
        %v5635 = vmul.f32 1.0, %v5634
        %v5636 = vrcp.pop %v5628
        %v5637 = vmul.f32 1.0, %v5636
        %v5638 = vrcp.pop %v5629
        %v5639 = vmul.f32 1.0, %v5638
        %v5640 = vrcp.pop %v5630
        %v5641 = vmul.f32 1.0, %v5640
        %v5642 = vrcp.pop %v5631
        %v5643 = vmul.f32 1.0, %v5642
        %v5644 = vrcp.pop %v5632
        %v5645 = vmul.f32 1.0, %v5644
        %v5646 = vrcp.pop %v5633
        %v5647 = vmul.f32 1.0, %v5646
        %v5648 = vmul.f32 %v5577, %v5635
        %v5649 = vmul.f32 %v5580, %v5637
        %v5650 = vmul.f32 %v5585, %v5639
        %v5651 = vmul.f32 %v5588, %v5641
        %v5652 = vmul.f32 %v5593, %v5643
        %v5653 = vmul.f32 %v5596, %v5645
        %v5654 = vmul.f32 %v5601, %v5647
        %v5655 = vmul.f32 %v5648, %v911
        %v5656 = vmul.f32 %v5649, %v915
        %v5657 = vmul.f32 %v5650, %v921
        %v5658 = vmul.f32 %v5651, %v925
        %v5659 = vmul.f32 %v5652, %v931
        %v5660 = vmul.f32 %v5653, %v935
        %v5661 = vmul.f32 %v5654, %v941
        %v5662 = vpack.c.bf16 %v5656, %v5655
        %v5663 = vpack.c.bf16 %v5658, %v5657
        %v5664 = vpack.c.bf16 %v5660, %v5659
        %v5665 = vpack.c.bf16 %v5661, %v5661
        %5670 = vrot.lane.b32.xlu0 %v5662, 96
        %v5671 = vpop.permute.xlu0 %5670
        %5672 = vrot.lane.b32.xlu0 %v5663, 96
        %v5673 = vpop.permute.xlu0 %5672
        %5674 = vrot.lane.b32.xlu0 %v5664, 96
        %v5675 = vpop.permute.xlu0 %5674
        %5676 = vrot.lane.b32.xlu0 %v5665, 96
        %v5677 = vpop.permute.xlu0 %5676
        %v5682 = vsel %vm867, %v5677, 0
        %5684 = vmatprep.subr.bf16.mxu0 0
        %5685 = vmatpush1.bf16.msra.mxu0 %v5671
        %5686 = vmatprep.subr.bf16.mxu0 0
        %5687 = vmatpush1.bf16.msra.mxu0 %v5673
        %5688 = vmatprep.subr.bf16.mxu0 0
        %5689 = vmatpush1.bf16.msra.mxu0 %v5675
        %5690 = vmatprep.subr.bf16.mxu0 0
        %5691 = vmatpush1.bf16.msra.mxu0 %v5682
        %5692 = vmatprep.subr.bf16.mxu0 0
        %5693 = vmatpush1.bf16.msra.mxu0 0
        %5694 = vmatprep.subr.bf16.mxu0 0
        %5695 = vmatpush1.bf16.msra.mxu0 0
        %5696 = vmatprep.subr.bf16.mxu0 0
        %5697 = vmatpush1.bf16.msra.mxu0 0
        %5698 = vmatprep.subr.bf16.mxu0 0
        %5699 = vmatpush1.bf16.msra.mxu0 0
        %5700 = vmatprep.subr.bf16.mxu0 0
        %5701 = vmatpush1.bf16.msra.mxu0 0
        %5702 = vmatprep.subr.bf16.mxu0 0
        %5703 = vmatpush1.bf16.msra.mxu0 0
        %5704 = vmatprep.subr.bf16.mxu0 0
        %5705 = vmatpush1.bf16.msra.mxu0 0
        %5706 = vmatprep.subr.bf16.mxu0 0
        %5707 = vmatpush1.bf16.msra.mxu0 0
        %5708 = vmatprep.subr.bf16.mxu0 0
        %5709 = vmatpush1.bf16.msra.mxu0 0
        %5710 = vmatprep.subr.bf16.mxu0 0
        %5711 = vmatpush1.bf16.msra.mxu0 0
        %5712 = vmatprep.subr.bf16.mxu0 0
        %5713 = vmatpush1.bf16.msra.mxu0 0
        %5714 = vmatprep.subr.bf16.mxu0 0
        %5715 = vmatpush1.bf16.msra.mxu0 0
        %5716 = vmatprep.mubr.bf16.mxu0 0
        %5717 = vmatmul.mubr.bf16.gmra.mrb[0].mxu0 %v2828
        %v5718 = vpop.f32.mrb[0].mxu0
        %v5719 = vadd.f32 0.0, %v5718
        %v5720 = vpop.f32.mrb[0].mxu0
        %v5721 = vpop.f32.mrb[0].mxu0
        %v5722 = vadd.f32 0.0, %v5721
        %v5723 = vpop.f32.mrb[0].mxu0
        %5724 = vmatprep.mubr.bf16.mxu0 0
        %5725 = vmatmul.mubr.bf16.gmra.mrb[0].mxu0 %v2831
        %v5726 = vpop.f32.mrb[0].mxu0
        %v5727 = vadd.f32 0.0, %v5726
        %v5728 = vpop.f32.mrb[0].mxu0
        %v5729 = vpop.f32.mrb[0].mxu0
        %v5730 = vadd.f32 0.0, %v5729
        %v5731 = vpop.f32.mrb[0].mxu0
        %5732 = vmatprep.mubr.bf16.mxu0 0
        %5733 = vmatmul.mubr.bf16.gmra.mrb[0].mxu0 %v2834
        %v5734 = vpop.f32.mrb[0].mxu0
        %v5735 = vadd.f32 0.0, %v5734
        %v5736 = vpop.f32.mrb[0].mxu0
        %v5737 = vpop.f32.mrb[0].mxu0
        %v5738 = vadd.f32 0.0, %v5737
        %v5739 = vpop.f32.mrb[0].mxu0
        %5740 = vmatprep.mubr.bf16.mxu0 0
        %5741 = vmatmul.mubr.bf16.gmra.mrb[0].mxu0 %v2837
        %v5742 = vpop.f32.mrb[0].mxu0
        %v5743 = vadd.f32 0.0, %v5742
        %v5744 = vpop.f32.mrb[0].mxu0
        %v5745 = vpop.f32.mrb[0].mxu0
        %v5746 = vadd.f32 0.0, %v5745
        %v5747 = vpop.f32.mrb[0].mxu0
        %5748 = vmatprep.mubr.bf16.mxu0 0
        %5749 = vmatmul.mubr.bf16.gmra.mrb[0].mxu0 %v2840
        %v5750 = vpop.f32.mrb[0].mxu0
        %v5751 = vadd.f32 0.0, %v5750
        %v5752 = vpop.f32.mrb[0].mxu0
        %v5753 = vpop.f32.mrb[0].mxu0
        %v5754 = vadd.f32 0.0, %v5753
        %v5755 = vpop.f32.mrb[0].mxu0
        %5756 = vmatprep.mubr.bf16.mxu0 0
        %5757 = vmatmul.mubr.bf16.gmra.mrb[0].mxu0 %v2843
        %v5758 = vpop.f32.mrb[0].mxu0
        %v5759 = vadd.f32 0.0, %v5758
        %v5760 = vpop.f32.mrb[0].mxu0
        %v5761 = vpop.f32.mrb[0].mxu0
        %v5762 = vadd.f32 0.0, %v5761
        %v5763 = vpop.f32.mrb[0].mxu0
        %5764 = vmatprep.mubr.bf16.mxu0 0
        %5765 = vmatmul.mubr.bf16.gmra.mrb[0].mxu0 %v2846
        %v5766 = vpop.f32.mrb[0].mxu0
        %v5767 = vadd.f32 0.0, %v5766
        %v5768 = vpop.f32.mrb[0].mxu0
        %v5769 = vpop.f32.mrb[0].mxu0
        %v5770 = vadd.f32 0.0, %v5769
        %v5771 = vpop.f32.mrb[0].mxu0
        %5772 = vmatprep.mubr.bf16.mxu0 0
        %5773 = vmatmul.mubr.bf16.gmra.mrb[0].mxu0 %v2849
        %v5774 = vpop.f32.mrb[0].mxu0
        %v5775 = vadd.f32 0.0, %v5774
        %v5776 = vpop.f32.mrb[0].mxu0
        %v5777 = vpop.f32.mrb[0].mxu0
        %v5778 = vadd.f32 0.0, %v5777
        %v5779 = vpop.f32.mrb[0].mxu0
        %5780 = vmatprep.mubr.bf16.mxu0 0
        %5781 = vmatmul.mubr.bf16.gmra.mrb[0].mxu0 %v2852
        %v5782 = vpop.f32.mrb[0].mxu0
        %v5783 = vadd.f32 0.0, %v5782
        %v5784 = vpop.f32.mrb[0].mxu0
        %v5785 = vpop.f32.mrb[0].mxu0
        %v5786 = vadd.f32 0.0, %v5785
        %v5787 = vpop.f32.mrb[0].mxu0
        %5788 = vmatprep.mubr.bf16.mxu0 0
        %5789 = vmatmul.mubr.bf16.gmra.mrb[0].mxu0 %v2855
        %v5790 = vpop.f32.mrb[0].mxu0
        %v5791 = vadd.f32 0.0, %v5790
        %v5792 = vpop.f32.mrb[0].mxu0
        %v5793 = vpop.f32.mrb[0].mxu0
        %v5794 = vadd.f32 0.0, %v5793
        %v5795 = vpop.f32.mrb[0].mxu0
        %5796 = vmatprep.mubr.bf16.mxu0 0
        %5797 = vmatmul.mubr.bf16.gmra.mrb[0].mxu0 %v2858
        %v5798 = vpop.f32.mrb[0].mxu0
        %v5799 = vadd.f32 0.0, %v5798
        %v5800 = vpop.f32.mrb[0].mxu0
        %v5801 = vpop.f32.mrb[0].mxu0
        %v5802 = vadd.f32 0.0, %v5801
        %v5803 = vpop.f32.mrb[0].mxu0
        %5804 = vmatprep.mubr.bf16.mxu0 0
        %5805 = vmatmul.mubr.bf16.gmra.mrb[0].mxu0 %v2861
        %v5806 = vpop.f32.mrb[0].mxu0
        %v5807 = vadd.f32 0.0, %v5806
        %v5808 = vpop.f32.mrb[0].mxu0
        %v5809 = vpop.f32.mrb[0].mxu0
        %v5810 = vadd.f32 0.0, %v5809
        %v5811 = vpop.f32.mrb[0].mxu0
        %5812 = vmatprep.mubr.bf16.mxu0 0
        %5813 = vmatmul.mubr.bf16.gmra.mrb[0].mxu0 %v2864
        %v5814 = vpop.f32.mrb[0].mxu0
        %v5815 = vadd.f32 0.0, %v5814
        %v5816 = vpop.f32.mrb[0].mxu0
        %v5817 = vpop.f32.mrb[0].mxu0
        %v5818 = vadd.f32 0.0, %v5817
        %v5819 = vpop.f32.mrb[0].mxu0
        %5820 = vmatprep.mubr.bf16.mxu0 0
        %5821 = vmatmul.mubr.bf16.gmra.mrb[0].mxu0 %v2867
        %v5822 = vpop.f32.mrb[0].mxu0
        %v5823 = vadd.f32 0.0, %v5822
        %v5824 = vpop.f32.mrb[0].mxu0
        %v5825 = vpop.f32.mrb[0].mxu0
        %v5826 = vadd.f32 0.0, %v5825
        %v5827 = vpop.f32.mrb[0].mxu0
        %5828 = vmatprep.mubr.bf16.mxu0 0
        %5829 = vmatmul.mubr.bf16.gmra.mrb[0].mxu0 %v2870
        %v5830 = vpop.f32.mrb[0].mxu0
        %v5831 = vadd.f32 0.0, %v5830
        %v5832 = vpop.f32.mrb[0].mxu0
        %v5833 = vpop.f32.mrb[0].mxu0
        %v5834 = vadd.f32 0.0, %v5833
        %v5835 = vpop.f32.mrb[0].mxu0
        %5836 = vmatprep.mubr.bf16.mxu0 0
        %5837 = vmatmul.mubr.bf16.gmra.mrb[0].mxu0 %v2873
        %v5838 = vpop.f32.mrb[0].mxu0
        %v5839 = vadd.f32 0.0, %v5838
        %v5840 = vpop.f32.mrb[0].mxu0
        %v5841 = vpop.f32.mrb[0].mxu0
        %v5842 = vadd.f32 0.0, %v5841
        %v5843 = vpop.f32.mrb[0].mxu0
        %5844 = vmatprep.mubr.bf16.mxu0 0
        %5845 = vmatmul.mubr.bf16.gmra.mrb[0].mxu0 %v2876
        %v5846 = vpop.f32.mrb[0].mxu0
        %v5847 = vadd.f32 0.0, %v5846
        %v5848 = vpop.f32.mrb[0].mxu0
        %v5849 = vpop.f32.mrb[0].mxu0
        %v5850 = vadd.f32 0.0, %v5849
        %v5851 = vpop.f32.mrb[0].mxu0
        %5852 = vmatprep.mubr.bf16.mxu0 0
        %5853 = vmatmul.mubr.bf16.gmra.mrb[0].mxu0 %v2879
        %v5854 = vpop.f32.mrb[0].mxu0
        %v5855 = vadd.f32 0.0, %v5854
        %v5856 = vpop.f32.mrb[0].mxu0
        %v5857 = vpop.f32.mrb[0].mxu0
        %v5858 = vadd.f32 0.0, %v5857
        %v5859 = vpop.f32.mrb[0].mxu0
        %5860 = vmatprep.mubr.bf16.mxu0 0
        %5861 = vmatmul.mubr.bf16.gmra.mrb[0].mxu0 %v2882
        %v5862 = vpop.f32.mrb[0].mxu0
        %v5863 = vadd.f32 0.0, %v5862
        %v5864 = vpop.f32.mrb[0].mxu0
        %v5865 = vpop.f32.mrb[0].mxu0
        %v5866 = vadd.f32 0.0, %v5865
        %v5867 = vpop.f32.mrb[0].mxu0
        %5868 = vmatprep.mubr.bf16.mxu0 0
        %5869 = vmatmul.mubr.bf16.gmra.mrb[0].mxu0 %v2885
        %v5870 = vpop.f32.mrb[0].mxu0
        %v5871 = vadd.f32 0.0, %v5870
        %v5872 = vpop.f32.mrb[0].mxu0
        %v5873 = vpop.f32.mrb[0].mxu0
        %v5874 = vadd.f32 0.0, %v5873
        %v5875 = vpop.f32.mrb[0].mxu0
        %5876 = vmatprep.mubr.bf16.mxu0 0
        %5877 = vmatmul.mubr.bf16.gmra.mrb[0].mxu0 %v2888
        %v5878 = vpop.f32.mrb[0].mxu0
        %v5879 = vadd.f32 0.0, %v5878
        %v5880 = vpop.f32.mrb[0].mxu0
        %v5881 = vpop.f32.mrb[0].mxu0
        %v5882 = vadd.f32 0.0, %v5881
        %v5883 = vpop.f32.mrb[0].mxu0
        %5884 = vdwg.mxu0
        %s5885 = scalar_lea.vmem %s18, 32
        %v5886 = vld [vmem:[%s5885] sm:$0xff]
        %v5887 = vld [vmem:[%s5885 + $0x8] sm:$0xff]
        %v5888 = vld [vmem:[%s5885 + $0x10] sm:$0xff]
        %v5889 = vld [vmem:[%s5885 + $0x18] sm:$0xff]
        %v5890 = vpack.c.bf16 %v5722, %v5719
        %v5891 = vpack.c.bf16 %v5730, %v5727
        %v5892 = vpack.c.bf16 %v5738, %v5735
        %v5893 = vpack.c.bf16 %v5746, %v5743
        %v5894 = vpack.c.bf16 %v5754, %v5751
        %v5895 = vpack.c.bf16 %v5762, %v5759
        %v5896 = vpack.c.bf16 %v5770, %v5767
        %v5897 = vpack.c.bf16 %v5778, %v5775
        %v5898 = vpack.c.bf16 %v5786, %v5783
        %v5899 = vpack.c.bf16 %v5794, %v5791
        %v5900 = vpack.c.bf16 %v5802, %v5799
        %v5901 = vpack.c.bf16 %v5810, %v5807
        %v5902 = vpack.c.bf16 %v5818, %v5815
        %v5903 = vpack.c.bf16 %v5826, %v5823
        %v5904 = vpack.c.bf16 %v5834, %v5831
        %v5905 = vpack.c.bf16 %v5842, %v5839
        %v5906 = vpack.c.bf16 %v5850, %v5847
        %v5907 = vpack.c.bf16 %v5858, %v5855
        %v5908 = vpack.c.bf16 %v5866, %v5863
        %v5909 = vpack.c.bf16 %v5874, %v5871
        %v5910 = vpack.c.bf16 %v5882, %v5879
        %v5915 = vunpack.c.l.b16 %v5886
        %v5916 = vunpack.c.h.b16 %v5886
        %v5917 = vunpack.c.l.b16 %v5887
        %v5918 = vunpack.c.h.b16 %v5887
        %v5919 = vunpack.c.l.b16 %v5888
        %v5920 = vunpack.c.h.b16 %v5888
        %v5921 = vunpack.c.l.b16 %v5889
        %v5922 = vunpack.c.h.b16 %v5889
        %v5923 = vpack.c.b16 %v5917, %v5915
        %v5924 = vpack.c.b16 %v5918, %v5916
        %v5925 = vpack.c.b16 %v5921, %v5919
        %v5926 = vpack.c.b16 %v5922, %v5920
        %v5932 = vsel %vm1098, %v5890, 0
        %v5935 = vsel %vm1098, %v5891, 0
        %v5938 = vsel %vm1098, %v5892, 0
        %v5941 = vsel %vm1098, %v5893, 0
        %v5944 = vsel %vm1098, %v5894, 0
        %v5947 = vsel %vm1098, %v5895, 0
        %v5950 = vsel %vm1098, %v5896, 0
        %v5953 = vsel %vm1098, %v5897, 0
        %v5956 = vsel %vm1098, %v5898, 0
        %v5959 = vsel %vm1098, %v5899, 0
        %v5962 = vsel %vm1098, %v5900, 0
        %v5965 = vsel %vm1098, %v5901, 0
        %v5968 = vsel %vm1098, %v5902, 0
        %v5971 = vsel %vm1098, %v5903, 0
        %v5974 = vsel %vm1098, %v5904, 0
        %v5977 = vsel %vm1098, %v5905, 0
        %v5980 = vsel %vm1098, %v5906, 0
        %v5983 = vsel %vm1098, %v5907, 0
        %v5986 = vsel %vm1098, %v5908, 0
        %v5989 = vsel %vm1098, %v5909, 0
        %v5992 = vsel %vm1098, %v5910, 0
        %5994 = vmatprep.subr.bf16.mxu0 %v5924
        %5995 = vmatpush1.bf16.msra.mxu0 %v5923
        %5996 = vmatprep.subr.bf16.mxu0 %v5926
        %5997 = vmatpush1.bf16.msra.mxu0 %v5925
        %5998 = vmatprep.subr.bf16.mxu0 0
        %5999 = vmatpush1.bf16.msra.mxu0 0
        %6000 = vmatprep.subr.bf16.mxu0 0
        %6001 = vmatpush1.bf16.msra.mxu0 0
        %6002 = vmatprep.subr.bf16.mxu0 0
        %6003 = vmatpush1.bf16.msra.mxu0 0
        %6004 = vmatprep.subr.bf16.mxu0 0
        %6005 = vmatpush1.bf16.msra.mxu0 0
        %6006 = vmatprep.subr.bf16.mxu0 0
        %6007 = vmatpush1.bf16.msra.mxu0 0
        %6008 = vmatprep.subr.bf16.mxu0 0
        %6009 = vmatpush1.bf16.msra.mxu0 0
        %6010 = vmatprep.subr.bf16.mxu0 0
        %6011 = vmatpush1.bf16.msra.mxu0 0
        %6012 = vmatprep.subr.bf16.mxu0 0
        %6013 = vmatpush1.bf16.msra.mxu0 0
        %6014 = vmatprep.subr.bf16.mxu0 0
        %6015 = vmatpush1.bf16.msra.mxu0 0
        %6016 = vmatprep.subr.bf16.mxu0 0
        %6017 = vmatpush1.bf16.msra.mxu0 0
        %6018 = vmatprep.subr.bf16.mxu0 0
        %6019 = vmatpush1.bf16.msra.mxu0 0
        %6020 = vmatprep.subr.bf16.mxu0 0
        %6021 = vmatpush1.bf16.msra.mxu0 0
        %6022 = vmatprep.subr.bf16.mxu0 0
        %6023 = vmatpush1.bf16.msra.mxu0 0
        %6024 = vmatprep.subr.bf16.mxu0 0
        %6025 = vmatpush1.bf16.msra.mxu0 0
        %6026 = vmatprep.mubr.bf16.mxu0 0
        %6027 = vmatmul.mubr.bf16.gmra.mrb[0].mxu0 %v5932
        %v6028 = vpop.f32.mrb[0].mxu0
        %v6029 = vadd.f32 0.0, %v6028
        %v6030 = vpop.f32.mrb[0].mxu0
        %v6031 = vadd.f32 0.0, %v6030
        %v6032 = vpop.f32.mrb[0].mxu0
        %v6033 = vadd.f32 0.0, %v6032
        %v6034 = vpop.f32.mrb[0].mxu0
        %v6035 = vadd.f32 0.0, %v6034
        %6036 = vmatprep.mubr.bf16.mxu0 0
        %6037 = vmatmul.mubr.bf16.gmra.mrb[0].mxu0 %v5935
        %v6038 = vpop.f32.mrb[0].mxu0
        %v6039 = vadd.f32 0.0, %v6038
        %v6040 = vpop.f32.mrb[0].mxu0
        %v6041 = vadd.f32 0.0, %v6040
        %v6042 = vpop.f32.mrb[0].mxu0
        %v6043 = vadd.f32 0.0, %v6042
        %v6044 = vpop.f32.mrb[0].mxu0
        %v6045 = vadd.f32 0.0, %v6044
        %6046 = vmatprep.mubr.bf16.mxu0 0
        %6047 = vmatmul.mubr.bf16.gmra.mrb[0].mxu0 %v5938
        %v6048 = vpop.f32.mrb[0].mxu0
        %v6049 = vadd.f32 0.0, %v6048
        %v6050 = vpop.f32.mrb[0].mxu0
        %v6051 = vadd.f32 0.0, %v6050
        %v6052 = vpop.f32.mrb[0].mxu0
        %v6053 = vadd.f32 0.0, %v6052
        %v6054 = vpop.f32.mrb[0].mxu0
        %v6055 = vadd.f32 0.0, %v6054
        %6056 = vmatprep.mubr.bf16.mxu0 0
        %6057 = vmatmul.mubr.bf16.gmra.mrb[0].mxu0 %v5941
        %v6058 = vpop.f32.mrb[0].mxu0
        %v6059 = vadd.f32 0.0, %v6058
        %v6060 = vpop.f32.mrb[0].mxu0
        %v6061 = vadd.f32 0.0, %v6060
        %v6062 = vpop.f32.mrb[0].mxu0
        %v6063 = vadd.f32 0.0, %v6062
        %v6064 = vpop.f32.mrb[0].mxu0
        %v6065 = vadd.f32 0.0, %v6064
        %6066 = vmatprep.mubr.bf16.mxu0 0
        %6067 = vmatmul.mubr.bf16.gmra.mrb[0].mxu0 %v5944
        %v6068 = vpop.f32.mrb[0].mxu0
        %v6069 = vadd.f32 0.0, %v6068
        %v6070 = vpop.f32.mrb[0].mxu0
        %v6071 = vadd.f32 0.0, %v6070
        %v6072 = vpop.f32.mrb[0].mxu0
        %v6073 = vadd.f32 0.0, %v6072
        %v6074 = vpop.f32.mrb[0].mxu0
        %v6075 = vadd.f32 0.0, %v6074
        %6076 = vmatprep.mubr.bf16.mxu0 0
        %6077 = vmatmul.mubr.bf16.gmra.mrb[0].mxu0 %v5947
        %v6078 = vpop.f32.mrb[0].mxu0
        %v6079 = vadd.f32 0.0, %v6078
        %v6080 = vpop.f32.mrb[0].mxu0
        %v6081 = vadd.f32 0.0, %v6080
        %v6082 = vpop.f32.mrb[0].mxu0
        %v6083 = vadd.f32 0.0, %v6082
        %v6084 = vpop.f32.mrb[0].mxu0
        %v6085 = vadd.f32 0.0, %v6084
        %6086 = vmatprep.mubr.bf16.mxu0 0
        %6087 = vmatmul.mubr.bf16.gmra.mrb[0].mxu0 %v5950
        %v6088 = vpop.f32.mrb[0].mxu0
        %v6089 = vadd.f32 0.0, %v6088
        %v6090 = vpop.f32.mrb[0].mxu0
        %v6091 = vadd.f32 0.0, %v6090
        %v6092 = vpop.f32.mrb[0].mxu0
        %v6093 = vadd.f32 0.0, %v6092
        %v6094 = vpop.f32.mrb[0].mxu0
        %v6095 = vadd.f32 0.0, %v6094
        %6096 = vmatprep.mubr.bf16.mxu0 0
        %6097 = vmatmul.mubr.bf16.gmra.mrb[0].mxu0 %v5953
        %v6098 = vpop.f32.mrb[0].mxu0
        %v6099 = vadd.f32 0.0, %v6098
        %v6100 = vpop.f32.mrb[0].mxu0
        %v6101 = vadd.f32 0.0, %v6100
        %v6102 = vpop.f32.mrb[0].mxu0
        %v6103 = vadd.f32 0.0, %v6102
        %v6104 = vpop.f32.mrb[0].mxu0
        %v6105 = vadd.f32 0.0, %v6104
        %6106 = vmatprep.mubr.bf16.mxu0 0
        %6107 = vmatmul.mubr.bf16.gmra.mrb[0].mxu0 %v5956
        %v6108 = vpop.f32.mrb[0].mxu0
        %v6109 = vadd.f32 0.0, %v6108
        %v6110 = vpop.f32.mrb[0].mxu0
        %v6111 = vadd.f32 0.0, %v6110
        %v6112 = vpop.f32.mrb[0].mxu0
        %v6113 = vadd.f32 0.0, %v6112
        %v6114 = vpop.f32.mrb[0].mxu0
        %v6115 = vadd.f32 0.0, %v6114
        %6116 = vmatprep.mubr.bf16.mxu0 0
        %6117 = vmatmul.mubr.bf16.gmra.mrb[0].mxu0 %v5959
        %v6118 = vpop.f32.mrb[0].mxu0
        %v6119 = vadd.f32 0.0, %v6118
        %v6120 = vpop.f32.mrb[0].mxu0
        %v6121 = vadd.f32 0.0, %v6120
        %v6122 = vpop.f32.mrb[0].mxu0
        %v6123 = vadd.f32 0.0, %v6122
        %v6124 = vpop.f32.mrb[0].mxu0
        %v6125 = vadd.f32 0.0, %v6124
        %6126 = vmatprep.mubr.bf16.mxu0 0
        %6127 = vmatmul.mubr.bf16.gmra.mrb[0].mxu0 %v5962
        %v6128 = vpop.f32.mrb[0].mxu0
        %v6129 = vadd.f32 0.0, %v6128
        %v6130 = vpop.f32.mrb[0].mxu0
        %v6131 = vadd.f32 0.0, %v6130
        %v6132 = vpop.f32.mrb[0].mxu0
        %v6133 = vadd.f32 0.0, %v6132
        %v6134 = vpop.f32.mrb[0].mxu0
        %v6135 = vadd.f32 0.0, %v6134
        %6136 = vmatprep.mubr.bf16.mxu0 0
        %6137 = vmatmul.mubr.bf16.gmra.mrb[0].mxu0 %v5965
        %v6138 = vpop.f32.mrb[0].mxu0
        %v6139 = vadd.f32 0.0, %v6138
        %v6140 = vpop.f32.mrb[0].mxu0
        %v6141 = vadd.f32 0.0, %v6140
        %v6142 = vpop.f32.mrb[0].mxu0
        %v6143 = vadd.f32 0.0, %v6142
        %v6144 = vpop.f32.mrb[0].mxu0
        %v6145 = vadd.f32 0.0, %v6144
        %6146 = vmatprep.mubr.bf16.mxu0 0
        %6147 = vmatmul.mubr.bf16.gmra.mrb[0].mxu0 %v5968
        %v6148 = vpop.f32.mrb[0].mxu0
        %v6149 = vadd.f32 0.0, %v6148
        %v6150 = vpop.f32.mrb[0].mxu0
        %v6151 = vadd.f32 0.0, %v6150
        %v6152 = vpop.f32.mrb[0].mxu0
        %v6153 = vadd.f32 0.0, %v6152
        %v6154 = vpop.f32.mrb[0].mxu0
        %v6155 = vadd.f32 0.0, %v6154
        %6156 = vmatprep.mubr.bf16.mxu0 0
        %6157 = vmatmul.mubr.bf16.gmra.mrb[0].mxu0 %v5971
        %v6158 = vpop.f32.mrb[0].mxu0
        %v6159 = vadd.f32 0.0, %v6158
        %v6160 = vpop.f32.mrb[0].mxu0
        %v6161 = vadd.f32 0.0, %v6160
        %v6162 = vpop.f32.mrb[0].mxu0
        %v6163 = vadd.f32 0.0, %v6162
        %v6164 = vpop.f32.mrb[0].mxu0
        %v6165 = vadd.f32 0.0, %v6164
        %6166 = vmatprep.mubr.bf16.mxu0 0
        %6167 = vmatmul.mubr.bf16.gmra.mrb[0].mxu0 %v5974
        %v6168 = vpop.f32.mrb[0].mxu0
        %v6169 = vadd.f32 0.0, %v6168
        %v6170 = vpop.f32.mrb[0].mxu0
        %v6171 = vadd.f32 0.0, %v6170
        %v6172 = vpop.f32.mrb[0].mxu0
        %v6173 = vadd.f32 0.0, %v6172
        %v6174 = vpop.f32.mrb[0].mxu0
        %v6175 = vadd.f32 0.0, %v6174
        %6176 = vmatprep.mubr.bf16.mxu0 0
        %6177 = vmatmul.mubr.bf16.gmra.mrb[0].mxu0 %v5977
        %v6178 = vpop.f32.mrb[0].mxu0
        %v6179 = vadd.f32 0.0, %v6178
        %v6180 = vpop.f32.mrb[0].mxu0
        %v6181 = vadd.f32 0.0, %v6180
        %v6182 = vpop.f32.mrb[0].mxu0
        %v6183 = vadd.f32 0.0, %v6182
        %v6184 = vpop.f32.mrb[0].mxu0
        %v6185 = vadd.f32 0.0, %v6184
        %6186 = vmatprep.mubr.bf16.mxu0 0
        %6187 = vmatmul.mubr.bf16.gmra.mrb[0].mxu0 %v5980
        %v6188 = vpop.f32.mrb[0].mxu0
        %v6189 = vadd.f32 0.0, %v6188
        %v6190 = vpop.f32.mrb[0].mxu0
        %v6191 = vadd.f32 0.0, %v6190
        %v6192 = vpop.f32.mrb[0].mxu0
        %v6193 = vadd.f32 0.0, %v6192
        %v6194 = vpop.f32.mrb[0].mxu0
        %v6195 = vadd.f32 0.0, %v6194
        %6196 = vmatprep.mubr.bf16.mxu0 0
        %6197 = vmatmul.mubr.bf16.gmra.mrb[0].mxu0 %v5983
        %v6198 = vpop.f32.mrb[0].mxu0
        %v6199 = vadd.f32 0.0, %v6198
        %v6200 = vpop.f32.mrb[0].mxu0
        %v6201 = vadd.f32 0.0, %v6200
        %v6202 = vpop.f32.mrb[0].mxu0
        %v6203 = vadd.f32 0.0, %v6202
        %v6204 = vpop.f32.mrb[0].mxu0
        %v6205 = vadd.f32 0.0, %v6204
        %6206 = vmatprep.mubr.bf16.mxu0 0
        %6207 = vmatmul.mubr.bf16.gmra.mrb[0].mxu0 %v5986
        %v6208 = vpop.f32.mrb[0].mxu0
        %v6209 = vadd.f32 0.0, %v6208
        %v6210 = vpop.f32.mrb[0].mxu0
        %v6211 = vadd.f32 0.0, %v6210
        %v6212 = vpop.f32.mrb[0].mxu0
        %v6213 = vadd.f32 0.0, %v6212
        %v6214 = vpop.f32.mrb[0].mxu0
        %v6215 = vadd.f32 0.0, %v6214
        %6216 = vmatprep.mubr.bf16.mxu0 0
        %6217 = vmatmul.mubr.bf16.gmra.mrb[0].mxu0 %v5989
        %v6218 = vpop.f32.mrb[0].mxu0
        %v6219 = vadd.f32 0.0, %v6218
        %v6220 = vpop.f32.mrb[0].mxu0
        %v6221 = vadd.f32 0.0, %v6220
        %v6222 = vpop.f32.mrb[0].mxu0
        %v6223 = vadd.f32 0.0, %v6222
        %v6224 = vpop.f32.mrb[0].mxu0
        %v6225 = vadd.f32 0.0, %v6224
        %6226 = vmatprep.mubr.bf16.mxu0 0
        %6227 = vmatmul.mubr.bf16.gmra.mrb[0].mxu0 %v5992
        %v6228 = vpop.f32.mrb[0].mxu0
        %v6229 = vadd.f32 0.0, %v6228
        %v6230 = vpop.f32.mrb[0].mxu0
        %v6231 = vadd.f32 0.0, %v6230
        %v6232 = vpop.f32.mrb[0].mxu0
        %v6233 = vadd.f32 0.0, %v6232
        %v6234 = vpop.f32.mrb[0].mxu0
        %v6235 = vadd.f32 0.0, %v6234
        %6236 = vdwg.mxu0
        %v6237 = vmul.f32 %v6029, %v1440
        %v6238 = vmul.f32 %v6031, %v1442
        %v6239 = vmul.f32 %v6033, %v1444
        %v6240 = vmul.f32 %v6035, %v1446
        %v6241 = vmul.f32 %v6039, %v1450
        %v6242 = vmul.f32 %v6041, %v1452
        %v6243 = vmul.f32 %v6043, %v1454
        %v6244 = vmul.f32 %v6045, %v1456
        %v6245 = vmul.f32 %v6049, %v1460
        %v6246 = vmul.f32 %v6051, %v1462
        %v6247 = vmul.f32 %v6053, %v1464
        %v6248 = vmul.f32 %v6055, %v1466
        %v6249 = vmul.f32 %v6059, %v1470
        %v6250 = vmul.f32 %v6061, %v1472
        %v6251 = vmul.f32 %v6063, %v1474
        %v6252 = vmul.f32 %v6065, %v1476
        %v6253 = vmul.f32 %v6069, %v1480
        %v6254 = vmul.f32 %v6071, %v1482
        %v6255 = vmul.f32 %v6073, %v1484
        %v6256 = vmul.f32 %v6075, %v1486
        %v6257 = vmul.f32 %v6079, %v1490
        %v6258 = vmul.f32 %v6081, %v1492
        %v6259 = vmul.f32 %v6083, %v1494
        %v6260 = vmul.f32 %v6085, %v1496
        %v6261 = vmul.f32 %v6089, %v1500
        %v6262 = vmul.f32 %v6091, %v1502
        %v6263 = vmul.f32 %v6093, %v1504
        %v6264 = vmul.f32 %v6095, %v1506
        %v6265 = vmul.f32 %v6099, %v1510
        %v6266 = vmul.f32 %v6101, %v1512
        %v6267 = vmul.f32 %v6103, %v1514
        %v6268 = vmul.f32 %v6105, %v1516
        %v6269 = vmul.f32 %v6109, %v1520
        %v6270 = vmul.f32 %v6111, %v1522
        %v6271 = vmul.f32 %v6113, %v1524
        %v6272 = vmul.f32 %v6115, %v1526
        %v6273 = vmul.f32 %v6119, %v1530
        %v6274 = vmul.f32 %v6121, %v1532
        %v6275 = vmul.f32 %v6123, %v1534
        %v6276 = vmul.f32 %v6125, %v1536
        %v6277 = vmul.f32 %v6129, %v1540
        %v6278 = vmul.f32 %v6131, %v1542
        %v6279 = vmul.f32 %v6133, %v1544
        %v6280 = vmul.f32 %v6135, %v1546
        %v6281 = vmul.f32 %v6139, %v1550
        %v6282 = vmul.f32 %v6141, %v1552
        %v6283 = vmul.f32 %v6143, %v1554
        %v6284 = vmul.f32 %v6145, %v1556
        %v6285 = vmul.f32 %v6149, %v1560
        %v6286 = vmul.f32 %v6151, %v1562
        %v6287 = vmul.f32 %v6153, %v1564
        %v6288 = vmul.f32 %v6155, %v1566
        %v6289 = vmul.f32 %v6159, %v1570
        %v6290 = vmul.f32 %v6161, %v1572
        %v6291 = vmul.f32 %v6163, %v1574
        %v6292 = vmul.f32 %v6165, %v1576
        %v6293 = vmul.f32 %v6169, %v1580
        %v6294 = vmul.f32 %v6171, %v1582
        %v6295 = vmul.f32 %v6173, %v1584
        %v6296 = vmul.f32 %v6175, %v1586
        %v6297 = vmul.f32 %v6179, %v1590
        %v6298 = vmul.f32 %v6181, %v1592
        %v6299 = vmul.f32 %v6183, %v1594
        %v6300 = vmul.f32 %v6185, %v1596
        %v6301 = vmul.f32 %v6189, %v1600
        %v6302 = vmul.f32 %v6191, %v1602
        %v6303 = vmul.f32 %v6193, %v1604
        %v6304 = vmul.f32 %v6195, %v1606
        %v6305 = vmul.f32 %v6199, %v1610
        %v6306 = vmul.f32 %v6201, %v1612
        %v6307 = vmul.f32 %v6203, %v1614
        %v6308 = vmul.f32 %v6205, %v1616
        %v6309 = vmul.f32 %v6209, %v1620
        %v6310 = vmul.f32 %v6211, %v1622
        %v6311 = vmul.f32 %v6213, %v1624
        %v6312 = vmul.f32 %v6215, %v1626
        %v6313 = vmul.f32 %v6219, %v1630
        %v6314 = vmul.f32 %v6221, %v1632
        %v6315 = vmul.f32 %v6223, %v1634
        %v6316 = vmul.f32 %v6225, %v1636
        %v6317 = vmul.f32 %v6229, %v1640
        %v6318 = vmul.f32 %v6231, %v1642
        %v6319 = vmul.f32 %v6233, %v1644
        %v6320 = vmul.f32 %v6235, %v1646
        %v6321 = vpack.c.bf16 %v6239, %v6237
        %v6322 = vpack.c.bf16 %v6240, %v6238
        %v6323 = vpack.c.bf16 %v6243, %v6241
        %v6324 = vpack.c.bf16 %v6244, %v6242
        %v6325 = vpack.c.bf16 %v6247, %v6245
        %v6326 = vpack.c.bf16 %v6248, %v6246
        %v6327 = vpack.c.bf16 %v6251, %v6249
        %v6328 = vpack.c.bf16 %v6252, %v6250
        %v6329 = vpack.c.bf16 %v6255, %v6253
        %v6330 = vpack.c.bf16 %v6256, %v6254
        %v6331 = vpack.c.bf16 %v6259, %v6257
        %v6332 = vpack.c.bf16 %v6260, %v6258
        %v6333 = vpack.c.bf16 %v6263, %v6261
        %v6334 = vpack.c.bf16 %v6264, %v6262
        %v6335 = vpack.c.bf16 %v6267, %v6265
        %v6336 = vpack.c.bf16 %v6268, %v6266
        %v6337 = vpack.c.bf16 %v6271, %v6269
        %v6338 = vpack.c.bf16 %v6272, %v6270
        %v6339 = vpack.c.bf16 %v6275, %v6273
        %v6340 = vpack.c.bf16 %v6276, %v6274
        %v6341 = vpack.c.bf16 %v6279, %v6277
        %v6342 = vpack.c.bf16 %v6280, %v6278
        %v6343 = vpack.c.bf16 %v6283, %v6281
        %v6344 = vpack.c.bf16 %v6284, %v6282
        %v6345 = vpack.c.bf16 %v6287, %v6285
        %v6346 = vpack.c.bf16 %v6288, %v6286
        %v6347 = vpack.c.bf16 %v6291, %v6289
        %v6348 = vpack.c.bf16 %v6292, %v6290
        %v6349 = vpack.c.bf16 %v6295, %v6293
        %v6350 = vpack.c.bf16 %v6296, %v6294
        %v6351 = vpack.c.bf16 %v6299, %v6297
        %v6352 = vpack.c.bf16 %v6300, %v6298
        %v6353 = vpack.c.bf16 %v6303, %v6301
        %v6354 = vpack.c.bf16 %v6304, %v6302
        %v6355 = vpack.c.bf16 %v6307, %v6305
        %v6356 = vpack.c.bf16 %v6308, %v6306
        %v6357 = vpack.c.bf16 %v6311, %v6309
        %v6358 = vpack.c.bf16 %v6312, %v6310
        %v6359 = vpack.c.bf16 %v6315, %v6313
        %v6360 = vpack.c.bf16 %v6316, %v6314
        %v6361 = vpack.c.bf16 %v6319, %v6317
        %v6362 = vpack.c.bf16 %v6320, %v6318
        %6363 = vmatprep.subr.bf16.mxu0 0
        %6364 = vmatpush1.bf16.msra.mxu0 %v3635
        %6365 = vmatprep.subr.bf16.mxu0 0
        %6366 = vmatpush1.bf16.msra.mxu0 %v3636
        %6367 = vmatprep.subr.bf16.mxu0 0
        %6368 = vmatpush1.bf16.msra.mxu0 %v3637
        %6369 = vmatprep.subr.bf16.mxu0 0
        %6370 = vmatpush1.bf16.msra.mxu0 %v3638
        %6371 = vmatprep.subr.bf16.mxu0 0
        %6372 = vmatpush1.bf16.msra.mxu0 %v3639
        %6373 = vmatprep.subr.bf16.mxu0 0
        %6374 = vmatpush1.bf16.msra.mxu0 %v3640
        %6375 = vmatprep.subr.bf16.mxu0 0
        %6376 = vmatpush1.bf16.msra.mxu0 %v3641
        %6377 = vmatprep.subr.bf16.mxu0 0
        %6378 = vmatpush1.bf16.msra.mxu0 %v3642
        %6379 = vmatprep.subr.bf16.mxu0 0
        %6380 = vmatpush1.bf16.msra.mxu0 %v3643
        %6381 = vmatprep.subr.bf16.mxu0 0
        %6382 = vmatpush1.bf16.msra.mxu0 %v3644
        %6383 = vmatprep.subr.bf16.mxu0 0
        %6384 = vmatpush1.bf16.msra.mxu0 %v3645
        %6385 = vmatprep.subr.bf16.mxu0 0
        %6386 = vmatpush1.bf16.msra.mxu0 %v3646
        %6387 = vmatprep.subr.bf16.mxu0 0
        %6388 = vmatpush1.bf16.msra.mxu0 %v3647
        %6389 = vmatprep.subr.bf16.mxu0 0
        %6390 = vmatpush1.bf16.msra.mxu0 %v3648
        %6391 = vmatprep.subr.bf16.mxu0 0
        %6392 = vmatpush1.bf16.msra.mxu0 %v3649
        %6393 = vmatprep.subr.bf16.mxu0 0
        %6394 = vmatpush1.bf16.msra.mxu0 %v3650
        %6395 = vmatprep.mubr.bf16.mxu0 %v6322
        %6396 = vmatmul.mubr.bf16.gmra.mrb[0].mxu0 %v6321
        %v6397 = vpop.f32.mrb[0].mxu0
        %v6398 = vadd.f32 0.0, %v6397
        %v6399 = vpop.f32.mrb[0].mxu0
        %v6400 = vpop.f32.mrb[0].mxu0
        %v6401 = vadd.f32 0.0, %v6400
        %v6402 = vpop.f32.mrb[0].mxu0
        %6403 = vmatprep.mubr.bf16.mxu0 %v6324
        %6404 = vmatmul.mubr.bf16.gmra.mrb[0].mxu0 %v6323
        %v6405 = vpop.f32.mrb[0].mxu0
        %v6406 = vadd.f32 0.0, %v6405
        %v6407 = vpop.f32.mrb[0].mxu0
        %v6408 = vpop.f32.mrb[0].mxu0
        %v6409 = vadd.f32 0.0, %v6408
        %v6410 = vpop.f32.mrb[0].mxu0
        %6411 = vmatprep.mubr.bf16.mxu0 %v6326
        %6412 = vmatmul.mubr.bf16.gmra.mrb[0].mxu0 %v6325
        %v6413 = vpop.f32.mrb[0].mxu0
        %v6414 = vadd.f32 0.0, %v6413
        %v6415 = vpop.f32.mrb[0].mxu0
        %v6416 = vpop.f32.mrb[0].mxu0
        %v6417 = vadd.f32 0.0, %v6416
        %v6418 = vpop.f32.mrb[0].mxu0
        %6419 = vmatprep.mubr.bf16.mxu0 %v6328
        %6420 = vmatmul.mubr.bf16.gmra.mrb[0].mxu0 %v6327
        %v6421 = vpop.f32.mrb[0].mxu0
        %v6422 = vadd.f32 0.0, %v6421
        %v6423 = vpop.f32.mrb[0].mxu0
        %v6424 = vpop.f32.mrb[0].mxu0
        %v6425 = vadd.f32 0.0, %v6424
        %v6426 = vpop.f32.mrb[0].mxu0
        %6427 = vmatprep.mubr.bf16.mxu0 %v6330
        %6428 = vmatmul.mubr.bf16.gmra.mrb[0].mxu0 %v6329
        %v6429 = vpop.f32.mrb[0].mxu0
        %v6430 = vadd.f32 0.0, %v6429
        %v6431 = vpop.f32.mrb[0].mxu0
        %v6432 = vpop.f32.mrb[0].mxu0
        %v6433 = vadd.f32 0.0, %v6432
        %v6434 = vpop.f32.mrb[0].mxu0
        %6435 = vmatprep.mubr.bf16.mxu0 %v6332
        %6436 = vmatmul.mubr.bf16.gmra.mrb[0].mxu0 %v6331
        %v6437 = vpop.f32.mrb[0].mxu0
        %v6438 = vadd.f32 0.0, %v6437
        %v6439 = vpop.f32.mrb[0].mxu0
        %v6440 = vpop.f32.mrb[0].mxu0
        %v6441 = vadd.f32 0.0, %v6440
        %v6442 = vpop.f32.mrb[0].mxu0
        %6443 = vmatprep.mubr.bf16.mxu0 %v6334
        %6444 = vmatmul.mubr.bf16.gmra.mrb[0].mxu0 %v6333
        %v6445 = vpop.f32.mrb[0].mxu0
        %v6446 = vadd.f32 0.0, %v6445
        %v6447 = vpop.f32.mrb[0].mxu0
        %v6448 = vpop.f32.mrb[0].mxu0
        %v6449 = vadd.f32 0.0, %v6448
        %v6450 = vpop.f32.mrb[0].mxu0
        %6451 = vmatprep.mubr.bf16.mxu0 %v6336
        %6452 = vmatmul.mubr.bf16.gmra.mrb[0].mxu0 %v6335
        %v6453 = vpop.f32.mrb[0].mxu0
        %v6454 = vadd.f32 0.0, %v6453
        %v6455 = vpop.f32.mrb[0].mxu0
        %v6456 = vpop.f32.mrb[0].mxu0
        %v6457 = vadd.f32 0.0, %v6456
        %v6458 = vpop.f32.mrb[0].mxu0
        %6459 = vmatprep.mubr.bf16.mxu0 %v6338
        %6460 = vmatmul.mubr.bf16.gmra.mrb[0].mxu0 %v6337
        %v6461 = vpop.f32.mrb[0].mxu0
        %v6462 = vadd.f32 0.0, %v6461
        %v6463 = vpop.f32.mrb[0].mxu0
        %v6464 = vpop.f32.mrb[0].mxu0
        %v6465 = vadd.f32 0.0, %v6464
        %v6466 = vpop.f32.mrb[0].mxu0
        %6467 = vmatprep.mubr.bf16.mxu0 %v6340
        %6468 = vmatmul.mubr.bf16.gmra.mrb[0].mxu0 %v6339
        %v6469 = vpop.f32.mrb[0].mxu0
        %v6470 = vadd.f32 0.0, %v6469
        %v6471 = vpop.f32.mrb[0].mxu0
        %v6472 = vpop.f32.mrb[0].mxu0
        %v6473 = vadd.f32 0.0, %v6472
        %v6474 = vpop.f32.mrb[0].mxu0
        %6475 = vmatprep.mubr.bf16.mxu0 %v6342
        %6476 = vmatmul.mubr.bf16.gmra.mrb[0].mxu0 %v6341
        %v6477 = vpop.f32.mrb[0].mxu0
        %v6478 = vadd.f32 0.0, %v6477
        %v6479 = vpop.f32.mrb[0].mxu0
        %v6480 = vpop.f32.mrb[0].mxu0
        %v6481 = vadd.f32 0.0, %v6480
        %v6482 = vpop.f32.mrb[0].mxu0
        %6483 = vmatprep.mubr.bf16.mxu0 %v6344
        %6484 = vmatmul.mubr.bf16.gmra.mrb[0].mxu0 %v6343
        %v6485 = vpop.f32.mrb[0].mxu0
        %v6486 = vadd.f32 0.0, %v6485
        %v6487 = vpop.f32.mrb[0].mxu0
        %v6488 = vpop.f32.mrb[0].mxu0
        %v6489 = vadd.f32 0.0, %v6488
        %v6490 = vpop.f32.mrb[0].mxu0
        %6491 = vmatprep.mubr.bf16.mxu0 %v6346
        %6492 = vmatmul.mubr.bf16.gmra.mrb[0].mxu0 %v6345
        %v6493 = vpop.f32.mrb[0].mxu0
        %v6494 = vadd.f32 0.0, %v6493
        %v6495 = vpop.f32.mrb[0].mxu0
        %v6496 = vpop.f32.mrb[0].mxu0
        %v6497 = vadd.f32 0.0, %v6496
        %v6498 = vpop.f32.mrb[0].mxu0
        %6499 = vmatprep.mubr.bf16.mxu0 %v6348
        %6500 = vmatmul.mubr.bf16.gmra.mrb[0].mxu0 %v6347
        %v6501 = vpop.f32.mrb[0].mxu0
        %v6502 = vadd.f32 0.0, %v6501
        %v6503 = vpop.f32.mrb[0].mxu0
        %v6504 = vpop.f32.mrb[0].mxu0
        %v6505 = vadd.f32 0.0, %v6504
        %v6506 = vpop.f32.mrb[0].mxu0
        %6507 = vmatprep.mubr.bf16.mxu0 %v6350
        %6508 = vmatmul.mubr.bf16.gmra.mrb[0].mxu0 %v6349
        %v6509 = vpop.f32.mrb[0].mxu0
        %v6510 = vadd.f32 0.0, %v6509
        %v6511 = vpop.f32.mrb[0].mxu0
        %v6512 = vpop.f32.mrb[0].mxu0
        %v6513 = vadd.f32 0.0, %v6512
        %v6514 = vpop.f32.mrb[0].mxu0
        %6515 = vmatprep.mubr.bf16.mxu0 %v6352
        %6516 = vmatmul.mubr.bf16.gmra.mrb[0].mxu0 %v6351
        %v6517 = vpop.f32.mrb[0].mxu0
        %v6518 = vadd.f32 0.0, %v6517
        %v6519 = vpop.f32.mrb[0].mxu0
        %v6520 = vpop.f32.mrb[0].mxu0
        %v6521 = vadd.f32 0.0, %v6520
        %v6522 = vpop.f32.mrb[0].mxu0
        %6523 = vmatprep.mubr.bf16.mxu0 %v6354
        %6524 = vmatmul.mubr.bf16.gmra.mrb[0].mxu0 %v6353
        %v6525 = vpop.f32.mrb[0].mxu0
        %v6526 = vadd.f32 0.0, %v6525
        %v6527 = vpop.f32.mrb[0].mxu0
        %v6528 = vpop.f32.mrb[0].mxu0
        %v6529 = vadd.f32 0.0, %v6528
        %v6530 = vpop.f32.mrb[0].mxu0
        %6531 = vmatprep.mubr.bf16.mxu0 %v6356
        %6532 = vmatmul.mubr.bf16.gmra.mrb[0].mxu0 %v6355
        %v6533 = vpop.f32.mrb[0].mxu0
        %v6534 = vadd.f32 0.0, %v6533
        %v6535 = vpop.f32.mrb[0].mxu0
        %v6536 = vpop.f32.mrb[0].mxu0
        %v6537 = vadd.f32 0.0, %v6536
        %v6538 = vpop.f32.mrb[0].mxu0
        %6539 = vmatprep.mubr.bf16.mxu0 %v6358
        %6540 = vmatmul.mubr.bf16.gmra.mrb[0].mxu0 %v6357
        %v6541 = vpop.f32.mrb[0].mxu0
        %v6542 = vadd.f32 0.0, %v6541
        %v6543 = vpop.f32.mrb[0].mxu0
        %v6544 = vpop.f32.mrb[0].mxu0
        %v6545 = vadd.f32 0.0, %v6544
        %v6546 = vpop.f32.mrb[0].mxu0
        %6547 = vmatprep.mubr.bf16.mxu0 %v6360
        %6548 = vmatmul.mubr.bf16.gmra.mrb[0].mxu0 %v6359
        %v6549 = vpop.f32.mrb[0].mxu0
        %v6550 = vadd.f32 0.0, %v6549
        %v6551 = vpop.f32.mrb[0].mxu0
        %v6552 = vpop.f32.mrb[0].mxu0
        %v6553 = vadd.f32 0.0, %v6552
        %v6554 = vpop.f32.mrb[0].mxu0
        %6555 = vmatprep.mubr.bf16.mxu0 %v6362
        %6556 = vmatmul.mubr.bf16.gmra.mrb[0].mxu0 %v6361
        %v6557 = vpop.f32.mrb[0].mxu0
        %v6558 = vadd.f32 0.0, %v6557
        %v6559 = vpop.f32.mrb[0].mxu0
        %v6560 = vpop.f32.mrb[0].mxu0
        %v6561 = vadd.f32 0.0, %v6560
        %v6562 = vpop.f32.mrb[0].mxu0
        %6563 = vdwg.mxu0
        %v6564 = vpack.c.bf16 %v6401, %v6398
        %v6565 = vpack.c.bf16 %v6409, %v6406
        %v6566 = vpack.c.bf16 %v6417, %v6414
        %v6567 = vpack.c.bf16 %v6425, %v6422
        %v6568 = vpack.c.bf16 %v6433, %v6430
        %v6569 = vpack.c.bf16 %v6441, %v6438
        %v6570 = vpack.c.bf16 %v6449, %v6446
        %v6571 = vpack.c.bf16 %v6457, %v6454
        %v6572 = vpack.c.bf16 %v6465, %v6462
        %v6573 = vpack.c.bf16 %v6473, %v6470
        %v6574 = vpack.c.bf16 %v6481, %v6478
        %v6575 = vpack.c.bf16 %v6489, %v6486
        %v6576 = vpack.c.bf16 %v6497, %v6494
        %v6577 = vpack.c.bf16 %v6505, %v6502
        %v6578 = vpack.c.bf16 %v6513, %v6510
        %v6579 = vpack.c.bf16 %v6521, %v6518
        %v6580 = vpack.c.bf16 %v6529, %v6526
        %v6581 = vpack.c.bf16 %v6537, %v6534
        %v6582 = vpack.c.bf16 %v6545, %v6542
        %v6583 = vpack.c.bf16 %v6553, %v6550
        %v6584 = vpack.c.bf16 %v6561, %v6558
        %6585 = vmatprep.subr.bf16.mxu0 0
        %6586 = vmatpush1.bf16.msra.mxu0 %v6564
        %6587 = vmatprep.subr.bf16.mxu0 0
        %6588 = vmatpush1.bf16.msra.mxu0 %v6565
        %6589 = vmatprep.subr.bf16.mxu0 0
        %6590 = vmatpush1.bf16.msra.mxu0 %v6566
        %6591 = vmatprep.subr.bf16.mxu0 0
        %6592 = vmatpush1.bf16.msra.mxu0 %v6567
        %6593 = vmatprep.subr.bf16.mxu0 0
        %6594 = vmatpush1.bf16.msra.mxu0 %v6568
        %6595 = vmatprep.subr.bf16.mxu0 0
        %6596 = vmatpush1.bf16.msra.mxu0 %v6569
        %6597 = vmatprep.subr.bf16.mxu0 0
        %6598 = vmatpush1.bf16.msra.mxu0 %v6570
        %6599 = vmatprep.subr.bf16.mxu0 0
        %6600 = vmatpush1.bf16.msra.mxu0 %v6571
        %6601 = vmatprep.subr.bf16.mxu0 0
        %6602 = vmatpush1.bf16.msra.mxu0 %v6572
        %6603 = vmatprep.subr.bf16.mxu0 0
        %6604 = vmatpush1.bf16.msra.mxu0 %v6573
        %6605 = vmatprep.subr.bf16.mxu0 0
        %6606 = vmatpush1.bf16.msra.mxu0 %v6574
        %6607 = vmatprep.subr.bf16.mxu0 0
        %6608 = vmatpush1.bf16.msra.mxu0 %v6575
        %6609 = vmatprep.subr.bf16.mxu0 0
        %6610 = vmatpush1.bf16.msra.mxu0 %v6576
        %6611 = vmatprep.subr.bf16.mxu0 0
        %6612 = vmatpush1.bf16.msra.mxu0 %v6577
        %6613 = vmatprep.subr.bf16.mxu0 0
        %6614 = vmatpush1.bf16.msra.mxu0 %v6578
        %6615 = vmatprep.subr.bf16.mxu0 0
        %6616 = vmatpush1.bf16.msra.mxu0 %v6579
        %6617 = vmatprep.mubr.bf16.mxu0 %v3925
        %6618 = vmatmul.mubr.bf16.gmra.mrb[0].mxu0 %v3924
        %v6619 = vpop.f32.mrb[0].mxu0
        %v6620 = vadd.f32 %v5648, %v6619
        %v6621 = vpop.f32.mrb[0].mxu0
        %v6622 = vpop.f32.mrb[0].mxu0
        %v6623 = vadd.f32 %v5649, %v6622
        %v6624 = vpop.f32.mrb[0].mxu0
        %6625 = vmatprep.mubr.bf16.mxu0 %v3928
        %6626 = vmatmul.mubr.bf16.gmra.mrb[0].mxu0 %v3927
        %v6627 = vpop.f32.mrb[0].mxu0
        %v6628 = vadd.f32 %v5650, %v6627
        %v6629 = vpop.f32.mrb[0].mxu0
        %v6630 = vpop.f32.mrb[0].mxu0
        %v6631 = vadd.f32 %v5651, %v6630
        %v6632 = vpop.f32.mrb[0].mxu0
        %6633 = vmatprep.mubr.bf16.mxu0 %v3931
        %6634 = vmatmul.mubr.bf16.gmra.mrb[0].mxu0 %v3930
        %v6635 = vpop.f32.mrb[0].mxu0
        %v6636 = vadd.f32 %v5652, %v6635
        %v6637 = vpop.f32.mrb[0].mxu0
        %v6638 = vpop.f32.mrb[0].mxu0
        %v6639 = vadd.f32 %v5653, %v6638
        %v6640 = vpop.f32.mrb[0].mxu0
        %6641 = vmatprep.mubr.bf16.mxu0 %v3934
        %6642 = vmatmul.mubr.bf16.gmra.mrb[0].mxu0 %v3933
        %v6643 = vpop.f32.mrb[0].mxu0
        %v6644 = vadd.f32 %v5654, %v6643
        %v6645 = vpop.f32.mrb[0].mxu0
        %v6646 = vpop.f32.mrb[0].mxu0
        %v6647 = vpop.f32.mrb[0].mxu0
        %6648 = vdwg.mxu0
        %6649 = vmatprep.subr.bf16.mxu0 0
        %6650 = vmatpush1.bf16.msra.mxu0 %v6580
        %6651 = vmatprep.subr.bf16.mxu0 0
        %6652 = vmatpush1.bf16.msra.mxu0 %v6581
        %6653 = vmatprep.subr.bf16.mxu0 0
        %6654 = vmatpush1.bf16.msra.mxu0 %v6582
        %6655 = vmatprep.subr.bf16.mxu0 0
        %6656 = vmatpush1.bf16.msra.mxu0 %v6583
        %6657 = vmatprep.subr.bf16.mxu0 0
        %6658 = vmatpush1.bf16.msra.mxu0 %v6584
        %6659 = vmatprep.subr.bf16.mxu0 0
        %6660 = vmatpush1.bf16.msra.mxu0 0
        %6661 = vmatprep.subr.bf16.mxu0 0
        %6662 = vmatpush1.bf16.msra.mxu0 0
        %6663 = vmatprep.subr.bf16.mxu0 0
        %6664 = vmatpush1.bf16.msra.mxu0 0
        %6665 = vmatprep.subr.bf16.mxu0 0
        %6666 = vmatpush1.bf16.msra.mxu0 0
        %6667 = vmatprep.subr.bf16.mxu0 0
        %6668 = vmatpush1.bf16.msra.mxu0 0
        %6669 = vmatprep.subr.bf16.mxu0 0
        %6670 = vmatpush1.bf16.msra.mxu0 0
        %6671 = vmatprep.subr.bf16.mxu0 0
        %6672 = vmatpush1.bf16.msra.mxu0 0
        %6673 = vmatprep.subr.bf16.mxu0 0
        %6674 = vmatpush1.bf16.msra.mxu0 0
        %6675 = vmatprep.subr.bf16.mxu0 0
        %6676 = vmatpush1.bf16.msra.mxu0 0
        %6677 = vmatprep.subr.bf16.mxu0 0
        %6678 = vmatpush1.bf16.msra.mxu0 0
        %6679 = vmatprep.subr.bf16.mxu0 0
        %6680 = vmatpush1.bf16.msra.mxu0 0
        %6681 = vmatprep.mubr.bf16.mxu0 0
        %6682 = vmatmul.mubr.bf16.gmra.mrb[0].mxu0 %v3946
        %v6683 = vpop.f32.mrb[0].mxu0
        %v6684 = vadd.f32 %v6620, %v6683
        %v6685 = vpop.f32.mrb[0].mxu0
        %v6686 = vpop.f32.mrb[0].mxu0
        %v6687 = vadd.f32 %v6623, %v6686
        %v6688 = vpop.f32.mrb[0].mxu0
        %6689 = vmatprep.mubr.bf16.mxu0 0
        %6690 = vmatmul.mubr.bf16.gmra.mrb[0].mxu0 %v3949
        %v6691 = vpop.f32.mrb[0].mxu0
        %v6692 = vadd.f32 %v6628, %v6691
        %v6693 = vpop.f32.mrb[0].mxu0
        %v6694 = vpop.f32.mrb[0].mxu0
        %v6695 = vadd.f32 %v6631, %v6694
        %v6696 = vpop.f32.mrb[0].mxu0
        %6697 = vmatprep.mubr.bf16.mxu0 0
        %6698 = vmatmul.mubr.bf16.gmra.mrb[0].mxu0 %v3952
        %v6699 = vpop.f32.mrb[0].mxu0
        %v6700 = vadd.f32 %v6636, %v6699
        %v6701 = vpop.f32.mrb[0].mxu0
        %v6702 = vpop.f32.mrb[0].mxu0
        %v6703 = vadd.f32 %v6639, %v6702
        %v6704 = vpop.f32.mrb[0].mxu0
        %6705 = vmatprep.mubr.bf16.mxu0 0
        %6706 = vmatmul.mubr.bf16.gmra.mrb[0].mxu0 %v3955
        %v6707 = vpop.f32.mrb[0].mxu0
        %v6708 = vadd.f32 %v6644, %v6707
        %v6709 = vpop.f32.mrb[0].mxu0
        %v6710 = vpop.f32.mrb[0].mxu0
        %v6711 = vpop.f32.mrb[0].mxu0
        %6712 = vdwg.mxu0
        %s6713 = scalar_lea.vmem %s14, 208
        %v6714 = vld [vmem:[%s6713] sm:$0xf]
        %v6715 = vld [vmem:[%s6713 + $0x4] sm:$0xf]
        %v6716 = vld [vmem:[%s6713 + $0x8] sm:$0xf]
        %v6717 = vld [vmem:[%s6713 + $0xc] sm:$0xf]
        %s6718 = scalar_lea.vmem %s15, 13
        %v6719 = vld [vmem:[%s6718] sm:$0x1]
        %s6720 = scalar_lea.vmem %s14, 224
        %v6721 = vld [vmem:[%s6720] sm:$0xf]
        %v6722 = vld [vmem:[%s6720 + $0x4] sm:$0xf]
        %v6723 = vld [vmem:[%s6720 + $0x8] sm:$0xf]
        %v6724 = vld [vmem:[%s6720 + $0xc] sm:$0xf]
        %s6725 = scalar_lea.vmem %s15, 14
        %v6726 = vld [vmem:[%s6725] sm:$0x1]
        %v6727 = vpack.c.bf16 %v6687, %v6684
        %v6728 = vpack.c.bf16 %v6695, %v6692
        %v6729 = vpack.c.bf16 %v6703, %v6700
        %v6730 = vpack.c.bf16 %v6708, %v6708
        %v6732 = vlaneseq
        %v6733 = vshrl.u32 %v6732, 7
        %v6734 = vsub.s32 0, %v6733
        %v6735 = vrot.slane %v6719, %v6734
        %v6741 = vunpack.c.l.b16 %v6714
        %v6742 = vunpack.c.l.b16 %v6715
        %v6743 = vunpack.c.l.b16 %v6716
        %v6744 = vunpack.c.l.b16 %v6717
        %v6745 = vpack.c.b16 %v6742, %v6741
        %v6746 = vpack.c.b16 %v6744, %v6743
        %v6750 = vsel %vm1098, %v6727, 0
        %v6753 = vsel %vm1098, %v6728, 0
        %v6756 = vsel %vm1098, %v6729, 0
        %v6759 = vsel %vm1098, %v6730, 0
        %6761 = vmatprep.subr.bf16.mxu0 0
        %6762 = vmatpush1.bf16.msra.mxu0 %v6745
        %6763 = vmatprep.subr.bf16.mxu0 0
        %6764 = vmatpush1.bf16.msra.mxu0 %v6746
        %6765 = vmatprep.subr.bf16.mxu0 0
        %6766 = vmatpush1.bf16.msra.mxu0 0
        %6767 = vmatprep.subr.bf16.mxu0 0
        %6768 = vmatpush1.bf16.msra.mxu0 0
        %6769 = vmatprep.subr.bf16.mxu0 0
        %6770 = vmatpush1.bf16.msra.mxu0 0
        %6771 = vmatprep.subr.bf16.mxu0 0
        %6772 = vmatpush1.bf16.msra.mxu0 0
        %6773 = vmatprep.subr.bf16.mxu0 0
        %6774 = vmatpush1.bf16.msra.mxu0 0
        %6775 = vmatprep.subr.bf16.mxu0 0
        %6776 = vmatpush1.bf16.msra.mxu0 0
        %6777 = vmatprep.subr.bf16.mxu0 0
        %6778 = vmatpush1.bf16.msra.mxu0 0
        %6779 = vmatprep.subr.bf16.mxu0 0
        %6780 = vmatpush1.bf16.msra.mxu0 0
        %6781 = vmatprep.subr.bf16.mxu0 0
        %6782 = vmatpush1.bf16.msra.mxu0 0
        %6783 = vmatprep.subr.bf16.mxu0 0
        %6784 = vmatpush1.bf16.msra.mxu0 0
        %6785 = vmatprep.subr.bf16.mxu0 0
        %6786 = vmatpush1.bf16.msra.mxu0 0
        %6787 = vmatprep.subr.bf16.mxu0 0
        %6788 = vmatpush1.bf16.msra.mxu0 0
        %6789 = vmatprep.subr.bf16.mxu0 0
        %6790 = vmatpush1.bf16.msra.mxu0 0
        %6791 = vmatprep.subr.bf16.mxu0 0
        %6792 = vmatpush1.bf16.msra.mxu0 0
        %6793 = vmatprep.mubr.bf16.mxu0 0
        %6794 = vmatmul.mubr.bf16.gmra.mrb[0].mxu0 %v6750
        %v6795 = vpop.f32.mrb[0].mxu0
        %v6796 = vadd.f32 %v6735, %v6795
        %v6797 = vpop.f32.mrb[0].mxu0
        %v6798 = vpop.f32.mrb[0].mxu0
        %v6799 = vadd.f32 %v6735, %v6798
        %v6800 = vpop.f32.mrb[0].mxu0
        %6801 = vmatprep.mubr.bf16.mxu0 0
        %6802 = vmatmul.mubr.bf16.gmra.mrb[0].mxu0 %v6753
        %v6803 = vpop.f32.mrb[0].mxu0
        %v6804 = vadd.f32 %v6735, %v6803
        %v6805 = vpop.f32.mrb[0].mxu0
        %v6806 = vpop.f32.mrb[0].mxu0
        %v6807 = vadd.f32 %v6735, %v6806
        %v6808 = vpop.f32.mrb[0].mxu0
        %6809 = vmatprep.mubr.bf16.mxu0 0
        %6810 = vmatmul.mubr.bf16.gmra.mrb[0].mxu0 %v6756
        %v6811 = vpop.f32.mrb[0].mxu0
        %v6812 = vadd.f32 %v6735, %v6811
        %v6813 = vpop.f32.mrb[0].mxu0
        %v6814 = vpop.f32.mrb[0].mxu0
        %v6815 = vadd.f32 %v6735, %v6814
        %v6816 = vpop.f32.mrb[0].mxu0
        %6817 = vmatprep.mubr.bf16.mxu0 0
        %6818 = vmatmul.mubr.bf16.gmra.mrb[0].mxu0 %v6759
        %v6819 = vpop.f32.mrb[0].mxu0
        %v6820 = vadd.f32 %v6735, %v6819
        %v6821 = vpop.f32.mrb[0].mxu0
        %v6822 = vpop.f32.mrb[0].mxu0
        %v6823 = vpop.f32.mrb[0].mxu0
        %6824 = vdwg.mxu0
        %v6825 = vxor.u32 %v6796, 2147483648
        %v6826 = vxor.u32 %v6799, 2147483648
        %v6827 = vxor.u32 %v6804, 2147483648
        %v6828 = vxor.u32 %v6807, 2147483648
        %v6829 = vxor.u32 %v6812, 2147483648
        %v6830 = vxor.u32 %v6815, 2147483648
        %v6831 = vxor.u32 %v6820, 2147483648
        %v6832 = vmul.f32 %v6825, 1.442695
        %v6833 = vpow.pop %v6832
        %v6834 = vmul.f32 %v6826, 1.442695
        %v6835 = vpow.pop %v6834
        %v6836 = vmul.f32 %v6827, 1.442695
        %v6837 = vpow.pop %v6836
        %v6838 = vmul.f32 %v6828, 1.442695
        %v6839 = vpow.pop %v6838
        %v6840 = vmul.f32 %v6829, 1.442695
        %v6841 = vpow.pop %v6840
        %v6842 = vmul.f32 %v6830, 1.442695
        %v6843 = vpow.pop %v6842
        %v6844 = vmul.f32 %v6831, 1.442695
        %v6845 = vpow.pop %v6844
        %v6846 = vadd.f32 %v6833, 1.0
        %v6847 = vadd.f32 %v6835, 1.0
        %v6848 = vadd.f32 %v6837, 1.0
        %v6849 = vadd.f32 %v6839, 1.0
        %v6850 = vadd.f32 %v6841, 1.0
        %v6851 = vadd.f32 %v6843, 1.0
        %v6852 = vadd.f32 %v6845, 1.0
        %v6853 = vrcp.pop %v6846
        %v6854 = vmul.f32 1.0, %v6853
        %v6855 = vrcp.pop %v6847
        %v6856 = vmul.f32 1.0, %v6855
        %v6857 = vrcp.pop %v6848
        %v6858 = vmul.f32 1.0, %v6857
        %v6859 = vrcp.pop %v6849
        %v6860 = vmul.f32 1.0, %v6859
        %v6861 = vrcp.pop %v6850
        %v6862 = vmul.f32 1.0, %v6861
        %v6863 = vrcp.pop %v6851
        %v6864 = vmul.f32 1.0, %v6863
        %v6865 = vrcp.pop %v6852
        %v6866 = vmul.f32 1.0, %v6865
        %v6867 = vmul.f32 %v6796, %v6854
        %v6868 = vmul.f32 %v6799, %v6856
        %v6869 = vmul.f32 %v6804, %v6858
        %v6870 = vmul.f32 %v6807, %v6860
        %v6871 = vmul.f32 %v6812, %v6862
        %v6872 = vmul.f32 %v6815, %v6864
        %v6873 = vmul.f32 %v6820, %v6866
        %v6874 = vpack.c.bf16 %v6868, %v6867
        %v6875 = vpack.c.bf16 %v6870, %v6869
        %v6876 = vpack.c.bf16 %v6872, %v6871
        %v6877 = vpack.c.bf16 %v6873, %v6873
        %v6879 = vlaneseq
        %v6880 = vshrl.u32 %v6879, 7
        %v6881 = vsub.s32 0, %v6880
        %v6882 = vrot.slane %v6726, %v6881
        %v6888 = vunpack.c.l.b16 %v6721
        %v6889 = vunpack.c.l.b16 %v6722
        %v6890 = vunpack.c.l.b16 %v6723
        %v6891 = vunpack.c.l.b16 %v6724
        %v6892 = vpack.c.b16 %v6889, %v6888
        %v6893 = vpack.c.b16 %v6891, %v6890
        %v6897 = vsel %vm1098, %v6874, 0
        %v6900 = vsel %vm1098, %v6875, 0
        %v6903 = vsel %vm1098, %v6876, 0
        %v6906 = vsel %vm1098, %v6877, 0
        %6908 = vmatprep.subr.bf16.mxu0 0
        %6909 = vmatpush1.bf16.msra.mxu0 %v6892
        %6910 = vmatprep.subr.bf16.mxu0 0
        %6911 = vmatpush1.bf16.msra.mxu0 %v6893
        %6912 = vmatprep.subr.bf16.mxu0 0
        %6913 = vmatpush1.bf16.msra.mxu0 0
        %6914 = vmatprep.subr.bf16.mxu0 0
        %6915 = vmatpush1.bf16.msra.mxu0 0
        %6916 = vmatprep.subr.bf16.mxu0 0
        %6917 = vmatpush1.bf16.msra.mxu0 0
        %6918 = vmatprep.subr.bf16.mxu0 0
        %6919 = vmatpush1.bf16.msra.mxu0 0
        %6920 = vmatprep.subr.bf16.mxu0 0
        %6921 = vmatpush1.bf16.msra.mxu0 0
        %6922 = vmatprep.subr.bf16.mxu0 0
        %6923 = vmatpush1.bf16.msra.mxu0 0
        %6924 = vmatprep.subr.bf16.mxu0 0
        %6925 = vmatpush1.bf16.msra.mxu0 0
        %6926 = vmatprep.subr.bf16.mxu0 0
        %6927 = vmatpush1.bf16.msra.mxu0 0
        %6928 = vmatprep.subr.bf16.mxu0 0
        %6929 = vmatpush1.bf16.msra.mxu0 0
        %6930 = vmatprep.subr.bf16.mxu0 0
        %6931 = vmatpush1.bf16.msra.mxu0 0
        %6932 = vmatprep.subr.bf16.mxu0 0
        %6933 = vmatpush1.bf16.msra.mxu0 0
        %6934 = vmatprep.subr.bf16.mxu0 0
        %6935 = vmatpush1.bf16.msra.mxu0 0
        %6936 = vmatprep.subr.bf16.mxu0 0
        %6937 = vmatpush1.bf16.msra.mxu0 0
        %6938 = vmatprep.subr.bf16.mxu0 0
        %6939 = vmatpush1.bf16.msra.mxu0 0
        %6940 = vmatprep.mubr.bf16.mxu0 0
        %6941 = vmatmul.mubr.bf16.gmra.mrb[0].mxu0 %v6897
        %v6942 = vpop.f32.mrb[0].mxu0
        %v6943 = vadd.f32 %v6882, %v6942
        %v6944 = vpop.f32.mrb[0].mxu0
        %v6945 = vpop.f32.mrb[0].mxu0
        %v6946 = vadd.f32 %v6882, %v6945
        %v6947 = vpop.f32.mrb[0].mxu0
        %6948 = vmatprep.mubr.bf16.mxu0 0
        %6949 = vmatmul.mubr.bf16.gmra.mrb[0].mxu0 %v6900
        %v6950 = vpop.f32.mrb[0].mxu0
        %v6951 = vadd.f32 %v6882, %v6950
        %v6952 = vpop.f32.mrb[0].mxu0
        %v6953 = vpop.f32.mrb[0].mxu0
        %v6954 = vadd.f32 %v6882, %v6953
        %v6955 = vpop.f32.mrb[0].mxu0
        %6956 = vmatprep.mubr.bf16.mxu0 0
        %6957 = vmatmul.mubr.bf16.gmra.mrb[0].mxu0 %v6903
        %v6958 = vpop.f32.mrb[0].mxu0
        %v6959 = vadd.f32 %v6882, %v6958
        %v6960 = vpop.f32.mrb[0].mxu0
        %v6961 = vpop.f32.mrb[0].mxu0
        %v6962 = vadd.f32 %v6882, %v6961
        %v6963 = vpop.f32.mrb[0].mxu0
        %6964 = vmatprep.mubr.bf16.mxu0 0
        %6965 = vmatmul.mubr.bf16.gmra.mrb[0].mxu0 %v6906
        %v6966 = vpop.f32.mrb[0].mxu0
        %v6967 = vadd.f32 %v6882, %v6966
        %v6968 = vpop.f32.mrb[0].mxu0
        %v6969 = vpop.f32.mrb[0].mxu0
        %v6970 = vpop.f32.mrb[0].mxu0
        %6971 = vdwg.mxu0
        %v6972 = vxor.u32 %v6943, 2147483648
        %v6973 = vxor.u32 %v6946, 2147483648
        %v6974 = vxor.u32 %v6951, 2147483648
        %v6975 = vxor.u32 %v6954, 2147483648
        %v6976 = vxor.u32 %v6959, 2147483648
        %v6977 = vxor.u32 %v6962, 2147483648
        %v6978 = vxor.u32 %v6967, 2147483648
        %v6979 = vmul.f32 %v6972, 1.442695
        %v6980 = vpow.pop %v6979
        %v6981 = vmul.f32 %v6973, 1.442695
        %v6982 = vpow.pop %v6981
        %v6983 = vmul.f32 %v6974, 1.442695
        %v6984 = vpow.pop %v6983
        %v6985 = vmul.f32 %v6975, 1.442695
        %v6986 = vpow.pop %v6985
        %v6987 = vmul.f32 %v6976, 1.442695
        %v6988 = vpow.pop %v6987
        %v6989 = vmul.f32 %v6977, 1.442695
        %v6990 = vpow.pop %v6989
        %v6991 = vmul.f32 %v6978, 1.442695
        %v6992 = vpow.pop %v6991
        %v6993 = vadd.f32 %v6980, 1.0
        %v6994 = vadd.f32 %v6982, 1.0
        %v6995 = vadd.f32 %v6984, 1.0
        %v6996 = vadd.f32 %v6986, 1.0
        %v6997 = vadd.f32 %v6988, 1.0
        %v6998 = vadd.f32 %v6990, 1.0
        %v6999 = vadd.f32 %v6992, 1.0
        %v7000 = vrcp.pop %v6993
        %v7001 = vmul.f32 1.0, %v7000
        %v7002 = vrcp.pop %v6994
        %v7003 = vmul.f32 1.0, %v7002
        %v7004 = vrcp.pop %v6995
        %v7005 = vmul.f32 1.0, %v7004
        %v7006 = vrcp.pop %v6996
        %v7007 = vmul.f32 1.0, %v7006
        %v7008 = vrcp.pop %v6997
        %v7009 = vmul.f32 1.0, %v7008
        %v7010 = vrcp.pop %v6998
        %v7011 = vmul.f32 1.0, %v7010
        %v7012 = vrcp.pop %v6999
        %v7013 = vmul.f32 1.0, %v7012
        %v7014 = vmul.f32 %v6943, %v7001
        %v7015 = vmul.f32 %v6946, %v7003
        %v7016 = vmul.f32 %v6951, %v7005
        %v7017 = vmul.f32 %v6954, %v7007
        %v7018 = vmul.f32 %v6959, %v7009
        %v7019 = vmul.f32 %v6962, %v7011
        %v7020 = vmul.f32 %v6967, %v7013
        %v7021 = vadd.f32 %v6684, %v7014
        %v7022 = vadd.f32 %v6687, %v7015
        %v7023 = vadd.f32 %v6692, %v7016
        %v7024 = vadd.f32 %v6695, %v7017
        %v7025 = vadd.f32 %v6700, %v7018
        %v7026 = vadd.f32 %v6703, %v7019
        %v7027 = vadd.f32 %v6708, %v7020
        %s7028 = scalar_lea.vmem %s14, 240
        %v7029 = vld [vmem:[%s7028] sm:$0xf]
        %v7030 = vld [vmem:[%s7028 + $0x4] sm:$0xf]
        %v7031 = vld [vmem:[%s7028 + $0x8] sm:$0xf]
        %v7032 = vld [vmem:[%s7028 + $0xc] sm:$0xf]
        %s7033 = scalar_lea.vmem %s15, 15
        %v7034 = vld [vmem:[%s7033] sm:$0x1]
        %v7035 = vpack.c.bf16 %v7022, %v7021
        %v7036 = vpack.c.bf16 %v7024, %v7023
        %v7037 = vpack.c.bf16 %v7026, %v7025
        %v7038 = vpack.c.bf16 %v7027, %v7027
        %v7040 = vlaneseq
        %v7041 = vshrl.u32 %v7040, 7
        %v7042 = vsub.s32 0, %v7041
        %v7043 = vrot.slane %v7034, %v7042
        %v7049 = vunpack.c.l.b16 %v7029
        %v7050 = vunpack.c.l.b16 %v7030
        %v7051 = vunpack.c.l.b16 %v7031
        %v7052 = vunpack.c.l.b16 %v7032
        %v7053 = vpack.c.b16 %v7050, %v7049
        %v7054 = vpack.c.b16 %v7052, %v7051
        %v7058 = vsel %vm1098, %v7035, 0
        %v7061 = vsel %vm1098, %v7036, 0
        %v7064 = vsel %vm1098, %v7037, 0
        %v7067 = vsel %vm1098, %v7038, 0
        %7069 = vmatprep.subr.bf16.mxu0 0
        %7070 = vmatpush1.bf16.msra.mxu0 %v7053
        %7071 = vmatprep.subr.bf16.mxu0 0
        %7072 = vmatpush1.bf16.msra.mxu0 %v7054
        %7073 = vmatprep.subr.bf16.mxu0 0
        %7074 = vmatpush1.bf16.msra.mxu0 0
        %7075 = vmatprep.subr.bf16.mxu0 0
        %7076 = vmatpush1.bf16.msra.mxu0 0
        %7077 = vmatprep.subr.bf16.mxu0 0
        %7078 = vmatpush1.bf16.msra.mxu0 0
        %7079 = vmatprep.subr.bf16.mxu0 0
        %7080 = vmatpush1.bf16.msra.mxu0 0
        %7081 = vmatprep.subr.bf16.mxu0 0
        %7082 = vmatpush1.bf16.msra.mxu0 0
        %7083 = vmatprep.subr.bf16.mxu0 0
        %7084 = vmatpush1.bf16.msra.mxu0 0
        %7085 = vmatprep.subr.bf16.mxu0 0
        %7086 = vmatpush1.bf16.msra.mxu0 0
        %7087 = vmatprep.subr.bf16.mxu0 0
        %7088 = vmatpush1.bf16.msra.mxu0 0
        %7089 = vmatprep.subr.bf16.mxu0 0
        %7090 = vmatpush1.bf16.msra.mxu0 0
        %7091 = vmatprep.subr.bf16.mxu0 0
        %7092 = vmatpush1.bf16.msra.mxu0 0
        %7093 = vmatprep.subr.bf16.mxu0 0
        %7094 = vmatpush1.bf16.msra.mxu0 0
        %7095 = vmatprep.subr.bf16.mxu0 0
        %7096 = vmatpush1.bf16.msra.mxu0 0
        %7097 = vmatprep.subr.bf16.mxu0 0
        %7098 = vmatpush1.bf16.msra.mxu0 0
        %7099 = vmatprep.subr.bf16.mxu0 0
        %7100 = vmatpush1.bf16.msra.mxu0 0
        %7101 = vmatprep.mubr.bf16.mxu0 0
        %7102 = vmatmul.mubr.bf16.gmra.mrb[0].mxu0 %v7058
        %v7103 = vpop.f32.mrb[0].mxu0
        %v7104 = vadd.f32 %v7043, %v7103
        %v7105 = vpop.f32.mrb[0].mxu0
        %v7106 = vpop.f32.mrb[0].mxu0
        %v7107 = vadd.f32 %v7043, %v7106
        %v7108 = vpop.f32.mrb[0].mxu0
        %7109 = vmatprep.mubr.bf16.mxu0 0
        %7110 = vmatmul.mubr.bf16.gmra.mrb[0].mxu0 %v7061
        %v7111 = vpop.f32.mrb[0].mxu0
        %v7112 = vadd.f32 %v7043, %v7111
        %v7113 = vpop.f32.mrb[0].mxu0
        %v7114 = vpop.f32.mrb[0].mxu0
        %v7115 = vadd.f32 %v7043, %v7114
        %v7116 = vpop.f32.mrb[0].mxu0
        %7117 = vmatprep.mubr.bf16.mxu0 0
        %7118 = vmatmul.mubr.bf16.gmra.mrb[0].mxu0 %v7064
        %v7119 = vpop.f32.mrb[0].mxu0
        %v7120 = vadd.f32 %v7043, %v7119
        %v7121 = vpop.f32.mrb[0].mxu0
        %v7122 = vpop.f32.mrb[0].mxu0
        %v7123 = vadd.f32 %v7043, %v7122
        %v7124 = vpop.f32.mrb[0].mxu0
        %7125 = vmatprep.mubr.bf16.mxu0 0
        %7126 = vmatmul.mubr.bf16.gmra.mrb[0].mxu0 %v7067
        %v7127 = vpop.f32.mrb[0].mxu0
        %v7128 = vadd.f32 %v7043, %v7127
        %v7129 = vpop.f32.mrb[0].mxu0
        %v7130 = vpop.f32.mrb[0].mxu0
        %v7131 = vpop.f32.mrb[0].mxu0
        %7132 = vdwg.mxu0
        %v7133 = vxor.u32 %v7104, 2147483648
        %v7134 = vxor.u32 %v7107, 2147483648
        %v7135 = vxor.u32 %v7112, 2147483648
        %v7136 = vxor.u32 %v7115, 2147483648
        %v7137 = vxor.u32 %v7120, 2147483648
        %v7138 = vxor.u32 %v7123, 2147483648
        %v7139 = vxor.u32 %v7128, 2147483648
        %v7140 = vmul.f32 %v7133, 1.442695
        %v7141 = vpow.pop %v7140
        %v7142 = vmul.f32 %v7134, 1.442695
        %v7143 = vpow.pop %v7142
        %v7144 = vmul.f32 %v7135, 1.442695
        %v7145 = vpow.pop %v7144
        %v7146 = vmul.f32 %v7136, 1.442695
        %v7147 = vpow.pop %v7146
        %v7148 = vmul.f32 %v7137, 1.442695
        %v7149 = vpow.pop %v7148
        %v7150 = vmul.f32 %v7138, 1.442695
        %v7151 = vpow.pop %v7150
        %v7152 = vmul.f32 %v7139, 1.442695
        %v7153 = vpow.pop %v7152
        %v7154 = vadd.f32 %v7141, 1.0
        %v7155 = vadd.f32 %v7143, 1.0
        %v7156 = vadd.f32 %v7145, 1.0
        %v7157 = vadd.f32 %v7147, 1.0
        %v7158 = vadd.f32 %v7149, 1.0
        %v7159 = vadd.f32 %v7151, 1.0
        %v7160 = vadd.f32 %v7153, 1.0
        %v7161 = vrcp.pop %v7154
        %v7162 = vmul.f32 1.0, %v7161
        %v7163 = vrcp.pop %v7155
        %v7164 = vmul.f32 1.0, %v7163
        %v7165 = vrcp.pop %v7156
        %v7166 = vmul.f32 1.0, %v7165
        %v7167 = vrcp.pop %v7157
        %v7168 = vmul.f32 1.0, %v7167
        %v7169 = vrcp.pop %v7158
        %v7170 = vmul.f32 1.0, %v7169
        %v7171 = vrcp.pop %v7159
        %v7172 = vmul.f32 1.0, %v7171
        %v7173 = vrcp.pop %v7160
        %v7174 = vmul.f32 1.0, %v7173
        %v7175 = vmul.f32 %v7104, %v7162
        %v7176 = vmul.f32 %v7107, %v7164
        %v7177 = vmul.f32 %v7112, %v7166
        %v7178 = vmul.f32 %v7115, %v7168
        %v7179 = vmul.f32 %v7120, %v7170
        %v7180 = vmul.f32 %v7123, %v7172
        %v7181 = vmul.f32 %v7128, %v7174
        %v7182 = vadd.f32 %v5184, %v7175
        %v7183 = vadd.f32 %v5185, %v7176
        %v7184 = vadd.f32 %v5186, %v7177
        %v7185 = vadd.f32 %v5187, %v7178
        %v7186 = vadd.f32 %v5188, %v7179
        %v7187 = vadd.f32 %v5189, %v7180
        %v7188 = vadd.f32 %v5190, %v7181
        %s7189 = scalar_lea.vmem %s14, 256
        %v7190 = vld [vmem:[%s7189] sm:$0xf]
        %v7191 = vld [vmem:[%s7189 + $0x4] sm:$0xf]
        %v7192 = vld [vmem:[%s7189 + $0x8] sm:$0xf]
        %v7193 = vld [vmem:[%s7189 + $0xc] sm:$0xf]
        %s7194 = scalar_lea.vmem %s15, 16
        %v7195 = vld [vmem:[%s7194] sm:$0x1]
        %s7196 = scalar_lea.vmem %s14, 272
        %v7197 = vld [vmem:[%s7196] sm:$0xf]
        %v7198 = vld [vmem:[%s7196 + $0x4] sm:$0xf]
        %v7199 = vld [vmem:[%s7196 + $0x8] sm:$0xf]
        %v7200 = vld [vmem:[%s7196 + $0xc] sm:$0xf]
        %s7201 = scalar_lea.vmem %s15, 17
        %v7202 = vld [vmem:[%s7201] sm:$0x1]
        %v7203 = vpack.c.bf16 %v7183, %v7182
        %v7204 = vpack.c.bf16 %v7185, %v7184
        %v7205 = vpack.c.bf16 %v7187, %v7186
        %v7206 = vpack.c.bf16 %v7188, %v7188
        %v7208 = vlaneseq
        %v7209 = vshrl.u32 %v7208, 7
        %v7210 = vsub.s32 0, %v7209
        %v7211 = vrot.slane %v7195, %v7210
        %v7217 = vunpack.c.l.b16 %v7190
        %v7218 = vunpack.c.l.b16 %v7191
        %v7219 = vunpack.c.l.b16 %v7192
        %v7220 = vunpack.c.l.b16 %v7193
        %v7221 = vpack.c.b16 %v7218, %v7217
        %v7222 = vpack.c.b16 %v7220, %v7219
        %v7226 = vsel %vm1098, %v7203, 0
        %v7229 = vsel %vm1098, %v7204, 0
        %v7232 = vsel %vm1098, %v7205, 0
        %v7235 = vsel %vm1098, %v7206, 0
        %7237 = vmatprep.subr.bf16.mxu0 0
        %7238 = vmatpush1.bf16.msra.mxu0 %v7221
        %7239 = vmatprep.subr.bf16.mxu0 0
        %7240 = vmatpush1.bf16.msra.mxu0 %v7222
        %7241 = vmatprep.subr.bf16.mxu0 0
        %7242 = vmatpush1.bf16.msra.mxu0 0
        %7243 = vmatprep.subr.bf16.mxu0 0
        %7244 = vmatpush1.bf16.msra.mxu0 0
        %7245 = vmatprep.subr.bf16.mxu0 0
        %7246 = vmatpush1.bf16.msra.mxu0 0
        %7247 = vmatprep.subr.bf16.mxu0 0
        %7248 = vmatpush1.bf16.msra.mxu0 0
        %7249 = vmatprep.subr.bf16.mxu0 0
        %7250 = vmatpush1.bf16.msra.mxu0 0
        %7251 = vmatprep.subr.bf16.mxu0 0
        %7252 = vmatpush1.bf16.msra.mxu0 0
        %7253 = vmatprep.subr.bf16.mxu0 0
        %7254 = vmatpush1.bf16.msra.mxu0 0
        %7255 = vmatprep.subr.bf16.mxu0 0
        %7256 = vmatpush1.bf16.msra.mxu0 0
        %7257 = vmatprep.subr.bf16.mxu0 0
        %7258 = vmatpush1.bf16.msra.mxu0 0
        %7259 = vmatprep.subr.bf16.mxu0 0
        %7260 = vmatpush1.bf16.msra.mxu0 0
        %7261 = vmatprep.subr.bf16.mxu0 0
        %7262 = vmatpush1.bf16.msra.mxu0 0
        %7263 = vmatprep.subr.bf16.mxu0 0
        %7264 = vmatpush1.bf16.msra.mxu0 0
        %7265 = vmatprep.subr.bf16.mxu0 0
        %7266 = vmatpush1.bf16.msra.mxu0 0
        %7267 = vmatprep.subr.bf16.mxu0 0
        %7268 = vmatpush1.bf16.msra.mxu0 0
        %7269 = vmatprep.mubr.bf16.mxu0 0
        %7270 = vmatmul.mubr.bf16.gmra.mrb[0].mxu0 %v7226
        %v7271 = vpop.f32.mrb[0].mxu0
        %v7272 = vadd.f32 %v7211, %v7271
        %v7273 = vpop.f32.mrb[0].mxu0
        %v7274 = vpop.f32.mrb[0].mxu0
        %v7275 = vadd.f32 %v7211, %v7274
        %v7276 = vpop.f32.mrb[0].mxu0
        %7277 = vmatprep.mubr.bf16.mxu0 0
        %7278 = vmatmul.mubr.bf16.gmra.mrb[0].mxu0 %v7229
        %v7279 = vpop.f32.mrb[0].mxu0
        %v7280 = vadd.f32 %v7211, %v7279
        %v7281 = vpop.f32.mrb[0].mxu0
        %v7282 = vpop.f32.mrb[0].mxu0
        %v7283 = vadd.f32 %v7211, %v7282
        %v7284 = vpop.f32.mrb[0].mxu0
        %7285 = vmatprep.mubr.bf16.mxu0 0
        %7286 = vmatmul.mubr.bf16.gmra.mrb[0].mxu0 %v7232
        %v7287 = vpop.f32.mrb[0].mxu0
        %v7288 = vadd.f32 %v7211, %v7287
        %v7289 = vpop.f32.mrb[0].mxu0
        %v7290 = vpop.f32.mrb[0].mxu0
        %v7291 = vadd.f32 %v7211, %v7290
        %v7292 = vpop.f32.mrb[0].mxu0
        %7293 = vmatprep.mubr.bf16.mxu0 0
        %7294 = vmatmul.mubr.bf16.gmra.mrb[0].mxu0 %v7235
        %v7295 = vpop.f32.mrb[0].mxu0
        %v7296 = vadd.f32 %v7211, %v7295
        %v7297 = vpop.f32.mrb[0].mxu0
        %v7298 = vpop.f32.mrb[0].mxu0
        %v7299 = vpop.f32.mrb[0].mxu0
        %7300 = vdwg.mxu0
        %v7301 = vxor.u32 %v7272, 2147483648
        %v7302 = vxor.u32 %v7275, 2147483648
        %v7303 = vxor.u32 %v7280, 2147483648
        %v7304 = vxor.u32 %v7283, 2147483648
        %v7305 = vxor.u32 %v7288, 2147483648
        %v7306 = vxor.u32 %v7291, 2147483648
        %v7307 = vxor.u32 %v7296, 2147483648
        %v7308 = vmul.f32 %v7301, 1.442695
        %v7309 = vpow.pop %v7308
        %v7310 = vmul.f32 %v7302, 1.442695
        %v7311 = vpow.pop %v7310
        %v7312 = vmul.f32 %v7303, 1.442695
        %v7313 = vpow.pop %v7312
        %v7314 = vmul.f32 %v7304, 1.442695
        %v7315 = vpow.pop %v7314
        %v7316 = vmul.f32 %v7305, 1.442695
        %v7317 = vpow.pop %v7316
        %v7318 = vmul.f32 %v7306, 1.442695
        %v7319 = vpow.pop %v7318
        %v7320 = vmul.f32 %v7307, 1.442695
        %v7321 = vpow.pop %v7320
        %v7322 = vadd.f32 %v7309, 1.0
        %v7323 = vadd.f32 %v7311, 1.0
        %v7324 = vadd.f32 %v7313, 1.0
        %v7325 = vadd.f32 %v7315, 1.0
        %v7326 = vadd.f32 %v7317, 1.0
        %v7327 = vadd.f32 %v7319, 1.0
        %v7328 = vadd.f32 %v7321, 1.0
        %v7329 = vrcp.pop %v7322
        %v7330 = vmul.f32 1.0, %v7329
        %v7331 = vrcp.pop %v7323
        %v7332 = vmul.f32 1.0, %v7331
        %v7333 = vrcp.pop %v7324
        %v7334 = vmul.f32 1.0, %v7333
        %v7335 = vrcp.pop %v7325
        %v7336 = vmul.f32 1.0, %v7335
        %v7337 = vrcp.pop %v7326
        %v7338 = vmul.f32 1.0, %v7337
        %v7339 = vrcp.pop %v7327
        %v7340 = vmul.f32 1.0, %v7339
        %v7341 = vrcp.pop %v7328
        %v7342 = vmul.f32 1.0, %v7341
        %v7343 = vmul.f32 %v7272, %v7330
        %v7344 = vmul.f32 %v7275, %v7332
        %v7345 = vmul.f32 %v7280, %v7334
        %v7346 = vmul.f32 %v7283, %v7336
        %v7347 = vmul.f32 %v7288, %v7338
        %v7348 = vmul.f32 %v7291, %v7340
        %v7349 = vmul.f32 %v7296, %v7342
        %v7350 = vpack.c.bf16 %v7344, %v7343
        %v7351 = vpack.c.bf16 %v7346, %v7345
        %v7352 = vpack.c.bf16 %v7348, %v7347
        %v7353 = vpack.c.bf16 %v7349, %v7349
        %v7355 = vlaneseq
        %v7356 = vshrl.u32 %v7355, 7
        %v7357 = vsub.s32 0, %v7356
        %v7358 = vrot.slane %v7202, %v7357
        %v7364 = vunpack.c.l.b16 %v7197
        %v7365 = vunpack.c.l.b16 %v7198
        %v7366 = vunpack.c.l.b16 %v7199
        %v7367 = vunpack.c.l.b16 %v7200
        %v7368 = vpack.c.b16 %v7365, %v7364
        %v7369 = vpack.c.b16 %v7367, %v7366
        %v7373 = vsel %vm1098, %v7350, 0
        %v7376 = vsel %vm1098, %v7351, 0
        %v7379 = vsel %vm1098, %v7352, 0
        %v7382 = vsel %vm1098, %v7353, 0
        %7384 = vmatprep.subr.bf16.mxu0 0
        %7385 = vmatpush1.bf16.msra.mxu0 %v7368
        %7386 = vmatprep.subr.bf16.mxu0 0
        %7387 = vmatpush1.bf16.msra.mxu0 %v7369
        %7388 = vmatprep.subr.bf16.mxu0 0
        %7389 = vmatpush1.bf16.msra.mxu0 0
        %7390 = vmatprep.subr.bf16.mxu0 0
        %7391 = vmatpush1.bf16.msra.mxu0 0
        %7392 = vmatprep.subr.bf16.mxu0 0
        %7393 = vmatpush1.bf16.msra.mxu0 0
        %7394 = vmatprep.subr.bf16.mxu0 0
        %7395 = vmatpush1.bf16.msra.mxu0 0
        %7396 = vmatprep.subr.bf16.mxu0 0
        %7397 = vmatpush1.bf16.msra.mxu0 0
        %7398 = vmatprep.subr.bf16.mxu0 0
        %7399 = vmatpush1.bf16.msra.mxu0 0
        %7400 = vmatprep.subr.bf16.mxu0 0
        %7401 = vmatpush1.bf16.msra.mxu0 0
        %7402 = vmatprep.subr.bf16.mxu0 0
        %7403 = vmatpush1.bf16.msra.mxu0 0
        %7404 = vmatprep.subr.bf16.mxu0 0
        %7405 = vmatpush1.bf16.msra.mxu0 0
        %7406 = vmatprep.subr.bf16.mxu0 0
        %7407 = vmatpush1.bf16.msra.mxu0 0
        %7408 = vmatprep.subr.bf16.mxu0 0
        %7409 = vmatpush1.bf16.msra.mxu0 0
        %7410 = vmatprep.subr.bf16.mxu0 0
        %7411 = vmatpush1.bf16.msra.mxu0 0
        %7412 = vmatprep.subr.bf16.mxu0 0
        %7413 = vmatpush1.bf16.msra.mxu0 0
        %7414 = vmatprep.subr.bf16.mxu0 0
        %7415 = vmatpush1.bf16.msra.mxu0 0
        %7416 = vmatprep.mubr.bf16.mxu0 0
        %7417 = vmatmul.mubr.bf16.gmra.mrb[0].mxu0 %v7373
        %v7418 = vpop.f32.mrb[0].mxu0
        %v7419 = vadd.f32 %v7358, %v7418
        %v7420 = vpop.f32.mrb[0].mxu0
        %v7421 = vpop.f32.mrb[0].mxu0
        %v7422 = vadd.f32 %v7358, %v7421
        %v7423 = vpop.f32.mrb[0].mxu0
        %7424 = vmatprep.mubr.bf16.mxu0 0
        %7425 = vmatmul.mubr.bf16.gmra.mrb[0].mxu0 %v7376
        %v7426 = vpop.f32.mrb[0].mxu0
        %v7427 = vadd.f32 %v7358, %v7426
        %v7428 = vpop.f32.mrb[0].mxu0
        %v7429 = vpop.f32.mrb[0].mxu0
        %v7430 = vadd.f32 %v7358, %v7429
        %v7431 = vpop.f32.mrb[0].mxu0
        %7432 = vmatprep.mubr.bf16.mxu0 0
        %7433 = vmatmul.mubr.bf16.gmra.mrb[0].mxu0 %v7379
        %v7434 = vpop.f32.mrb[0].mxu0
        %v7435 = vadd.f32 %v7358, %v7434
        %v7436 = vpop.f32.mrb[0].mxu0
        %v7437 = vpop.f32.mrb[0].mxu0
        %v7438 = vadd.f32 %v7358, %v7437
        %v7439 = vpop.f32.mrb[0].mxu0
        %7440 = vmatprep.mubr.bf16.mxu0 0
        %7441 = vmatmul.mubr.bf16.gmra.mrb[0].mxu0 %v7382
        %v7442 = vpop.f32.mrb[0].mxu0
        %v7443 = vadd.f32 %v7358, %v7442
        %v7444 = vpop.f32.mrb[0].mxu0
        %v7445 = vpop.f32.mrb[0].mxu0
        %v7446 = vpop.f32.mrb[0].mxu0
        %7447 = vdwg.mxu0
        %v7448 = vxor.u32 %v7419, 2147483648
        %v7449 = vxor.u32 %v7422, 2147483648
        %v7450 = vxor.u32 %v7427, 2147483648
        %v7451 = vxor.u32 %v7430, 2147483648
        %v7452 = vxor.u32 %v7435, 2147483648
        %v7453 = vxor.u32 %v7438, 2147483648
        %v7454 = vxor.u32 %v7443, 2147483648
        %v7455 = vmul.f32 %v7448, 1.442695
        %v7456 = vpow.pop %v7455
        %v7457 = vmul.f32 %v7449, 1.442695
        %v7458 = vpow.pop %v7457
        %v7459 = vmul.f32 %v7450, 1.442695
        %v7460 = vpow.pop %v7459
        %v7461 = vmul.f32 %v7451, 1.442695
        %v7462 = vpow.pop %v7461
        %v7463 = vmul.f32 %v7452, 1.442695
        %v7464 = vpow.pop %v7463
        %v7465 = vmul.f32 %v7453, 1.442695
        %v7466 = vpow.pop %v7465
        %v7467 = vmul.f32 %v7454, 1.442695
        %v7468 = vpow.pop %v7467
        %v7469 = vadd.f32 %v7456, 1.0
        %v7470 = vadd.f32 %v7458, 1.0
        %v7471 = vadd.f32 %v7460, 1.0
        %v7472 = vadd.f32 %v7462, 1.0
        %v7473 = vadd.f32 %v7464, 1.0
        %v7474 = vadd.f32 %v7466, 1.0
        %v7475 = vadd.f32 %v7468, 1.0
        %v7476 = vrcp.pop %v7469
        %v7477 = vmul.f32 1.0, %v7476
        %v7478 = vrcp.pop %v7470
        %v7479 = vmul.f32 1.0, %v7478
        %v7480 = vrcp.pop %v7471
        %v7481 = vmul.f32 1.0, %v7480
        %v7482 = vrcp.pop %v7472
        %v7483 = vmul.f32 1.0, %v7482
        %v7484 = vrcp.pop %v7473
        %v7485 = vmul.f32 1.0, %v7484
        %v7486 = vrcp.pop %v7474
        %v7487 = vmul.f32 1.0, %v7486
        %v7488 = vrcp.pop %v7475
        %v7489 = vmul.f32 1.0, %v7488
        %v7490 = vmul.f32 %v7419, %v7477
        %v7491 = vmul.f32 %v7422, %v7479
        %v7492 = vmul.f32 %v7427, %v7481
        %v7493 = vmul.f32 %v7430, %v7483
        %v7494 = vmul.f32 %v7435, %v7485
        %v7495 = vmul.f32 %v7438, %v7487
        %v7496 = vmul.f32 %v7443, %v7489
        %v7497 = vadd.f32 %v7182, %v7490
        %v7498 = vadd.f32 %v7183, %v7491
        %v7499 = vadd.f32 %v7184, %v7492
        %v7500 = vadd.f32 %v7185, %v7493
        %v7501 = vadd.f32 %v7186, %v7494
        %v7502 = vadd.f32 %v7187, %v7495
        %v7503 = vadd.f32 %v7188, %v7496
        %s7504 = scalar_lea.vmem %s14, 288
        %v7505 = vld [vmem:[%s7504] sm:$0xf]
        %v7506 = vld [vmem:[%s7504 + $0x4] sm:$0xf]
        %v7507 = vld [vmem:[%s7504 + $0x8] sm:$0xf]
        %v7508 = vld [vmem:[%s7504 + $0xc] sm:$0xf]
        %s7509 = scalar_lea.vmem %s15, 18
        %v7510 = vld [vmem:[%s7509] sm:$0x1]
        %s7511 = scalar_lea.vmem %s14, 304
        %v7512 = vld [vmem:[%s7511] sm:$0xf]
        %v7513 = vld [vmem:[%s7511 + $0x4] sm:$0xf]
        %v7514 = vld [vmem:[%s7511 + $0x8] sm:$0xf]
        %v7515 = vld [vmem:[%s7511 + $0xc] sm:$0xf]
        %s7516 = scalar_lea.vmem %s15, 19
        %v7517 = vld [vmem:[%s7516] sm:$0x1]
        %v7518 = vpack.c.bf16 %v7498, %v7497
        %v7519 = vpack.c.bf16 %v7500, %v7499
        %v7520 = vpack.c.bf16 %v7502, %v7501
        %v7521 = vpack.c.bf16 %v7503, %v7503
        %v7523 = vlaneseq
        %v7524 = vshrl.u32 %v7523, 7
        %v7525 = vsub.s32 0, %v7524
        %v7526 = vrot.slane %v7510, %v7525
        %v7532 = vunpack.c.l.b16 %v7505
        %v7533 = vunpack.c.l.b16 %v7506
        %v7534 = vunpack.c.l.b16 %v7507
        %v7535 = vunpack.c.l.b16 %v7508
        %v7536 = vpack.c.b16 %v7533, %v7532
        %v7537 = vpack.c.b16 %v7535, %v7534
        %v7541 = vsel %vm1098, %v7518, 0
        %v7544 = vsel %vm1098, %v7519, 0
        %v7547 = vsel %vm1098, %v7520, 0
        %v7550 = vsel %vm1098, %v7521, 0
        %7552 = vmatprep.subr.bf16.mxu0 0
        %7553 = vmatpush1.bf16.msra.mxu0 %v7536
        %7554 = vmatprep.subr.bf16.mxu0 0
        %7555 = vmatpush1.bf16.msra.mxu0 %v7537
        %7556 = vmatprep.subr.bf16.mxu0 0
        %7557 = vmatpush1.bf16.msra.mxu0 0
        %7558 = vmatprep.subr.bf16.mxu0 0
        %7559 = vmatpush1.bf16.msra.mxu0 0
        %7560 = vmatprep.subr.bf16.mxu0 0
        %7561 = vmatpush1.bf16.msra.mxu0 0
        %7562 = vmatprep.subr.bf16.mxu0 0
        %7563 = vmatpush1.bf16.msra.mxu0 0
        %7564 = vmatprep.subr.bf16.mxu0 0
        %7565 = vmatpush1.bf16.msra.mxu0 0
        %7566 = vmatprep.subr.bf16.mxu0 0
        %7567 = vmatpush1.bf16.msra.mxu0 0
        %7568 = vmatprep.subr.bf16.mxu0 0
        %7569 = vmatpush1.bf16.msra.mxu0 0
        %7570 = vmatprep.subr.bf16.mxu0 0
        %7571 = vmatpush1.bf16.msra.mxu0 0
        %7572 = vmatprep.subr.bf16.mxu0 0
        %7573 = vmatpush1.bf16.msra.mxu0 0
        %7574 = vmatprep.subr.bf16.mxu0 0
        %7575 = vmatpush1.bf16.msra.mxu0 0
        %7576 = vmatprep.subr.bf16.mxu0 0
        %7577 = vmatpush1.bf16.msra.mxu0 0
        %7578 = vmatprep.subr.bf16.mxu0 0
        %7579 = vmatpush1.bf16.msra.mxu0 0
        %7580 = vmatprep.subr.bf16.mxu0 0
        %7581 = vmatpush1.bf16.msra.mxu0 0
        %7582 = vmatprep.subr.bf16.mxu0 0
        %7583 = vmatpush1.bf16.msra.mxu0 0
        %7584 = vmatprep.mubr.bf16.mxu0 0
        %7585 = vmatmul.mubr.bf16.gmra.mrb[0].mxu0 %v7541
        %v7586 = vpop.f32.mrb[0].mxu0
        %v7587 = vadd.f32 %v7526, %v7586
        %v7588 = vpop.f32.mrb[0].mxu0
        %v7589 = vpop.f32.mrb[0].mxu0
        %v7590 = vadd.f32 %v7526, %v7589
        %v7591 = vpop.f32.mrb[0].mxu0
        %7592 = vmatprep.mubr.bf16.mxu0 0
        %7593 = vmatmul.mubr.bf16.gmra.mrb[0].mxu0 %v7544
        %v7594 = vpop.f32.mrb[0].mxu0
        %v7595 = vadd.f32 %v7526, %v7594
        %v7596 = vpop.f32.mrb[0].mxu0
        %v7597 = vpop.f32.mrb[0].mxu0
        %v7598 = vadd.f32 %v7526, %v7597
        %v7599 = vpop.f32.mrb[0].mxu0
        %7600 = vmatprep.mubr.bf16.mxu0 0
        %7601 = vmatmul.mubr.bf16.gmra.mrb[0].mxu0 %v7547
        %v7602 = vpop.f32.mrb[0].mxu0
        %v7603 = vadd.f32 %v7526, %v7602
        %v7604 = vpop.f32.mrb[0].mxu0
        %v7605 = vpop.f32.mrb[0].mxu0
        %v7606 = vadd.f32 %v7526, %v7605
        %v7607 = vpop.f32.mrb[0].mxu0
        %7608 = vmatprep.mubr.bf16.mxu0 0
        %7609 = vmatmul.mubr.bf16.gmra.mrb[0].mxu0 %v7550
        %v7610 = vpop.f32.mrb[0].mxu0
        %v7611 = vadd.f32 %v7526, %v7610
        %v7612 = vpop.f32.mrb[0].mxu0
        %v7613 = vpop.f32.mrb[0].mxu0
        %v7614 = vpop.f32.mrb[0].mxu0
        %7615 = vdwg.mxu0
        %v7616 = vxor.u32 %v7587, 2147483648
        %v7617 = vxor.u32 %v7590, 2147483648
        %v7618 = vxor.u32 %v7595, 2147483648
        %v7619 = vxor.u32 %v7598, 2147483648
        %v7620 = vxor.u32 %v7603, 2147483648
        %v7621 = vxor.u32 %v7606, 2147483648
        %v7622 = vxor.u32 %v7611, 2147483648
        %v7623 = vmul.f32 %v7616, 1.442695
        %v7624 = vpow.pop %v7623
        %v7625 = vmul.f32 %v7617, 1.442695
        %v7626 = vpow.pop %v7625
        %v7627 = vmul.f32 %v7618, 1.442695
        %v7628 = vpow.pop %v7627
        %v7629 = vmul.f32 %v7619, 1.442695
        %v7630 = vpow.pop %v7629
        %v7631 = vmul.f32 %v7620, 1.442695
        %v7632 = vpow.pop %v7631
        %v7633 = vmul.f32 %v7621, 1.442695
        %v7634 = vpow.pop %v7633
        %v7635 = vmul.f32 %v7622, 1.442695
        %v7636 = vpow.pop %v7635
        %v7637 = vadd.f32 %v7624, 1.0
        %v7638 = vadd.f32 %v7626, 1.0
        %v7639 = vadd.f32 %v7628, 1.0
        %v7640 = vadd.f32 %v7630, 1.0
        %v7641 = vadd.f32 %v7632, 1.0
        %v7642 = vadd.f32 %v7634, 1.0
        %v7643 = vadd.f32 %v7636, 1.0
        %v7644 = vrcp.pop %v7637
        %v7645 = vmul.f32 1.0, %v7644
        %v7646 = vrcp.pop %v7638
        %v7647 = vmul.f32 1.0, %v7646
        %v7648 = vrcp.pop %v7639
        %v7649 = vmul.f32 1.0, %v7648
        %v7650 = vrcp.pop %v7640
        %v7651 = vmul.f32 1.0, %v7650
        %v7652 = vrcp.pop %v7641
        %v7653 = vmul.f32 1.0, %v7652
        %v7654 = vrcp.pop %v7642
        %v7655 = vmul.f32 1.0, %v7654
        %v7656 = vrcp.pop %v7643
        %v7657 = vmul.f32 1.0, %v7656
        %v7658 = vmul.f32 %v7587, %v7645
        %v7659 = vmul.f32 %v7590, %v7647
        %v7660 = vmul.f32 %v7595, %v7649
        %v7661 = vmul.f32 %v7598, %v7651
        %v7662 = vmul.f32 %v7603, %v7653
        %v7663 = vmul.f32 %v7606, %v7655
        %v7664 = vmul.f32 %v7611, %v7657
        %v7665 = vpack.c.bf16 %v7659, %v7658
        %v7666 = vpack.c.bf16 %v7661, %v7660
        %v7667 = vpack.c.bf16 %v7663, %v7662
        %v7668 = vpack.c.bf16 %v7664, %v7664
        %v7670 = vlaneseq
        %v7671 = vshrl.u32 %v7670, 7
        %v7672 = vsub.s32 0, %v7671
        %v7673 = vrot.slane %v7517, %v7672
        %v7679 = vunpack.c.l.b16 %v7512
        %v7680 = vunpack.c.l.b16 %v7513
        %v7681 = vunpack.c.l.b16 %v7514
        %v7682 = vunpack.c.l.b16 %v7515
        %v7683 = vpack.c.b16 %v7680, %v7679
        %v7684 = vpack.c.b16 %v7682, %v7681
        %v7688 = vsel %vm1098, %v7665, 0
        %v7691 = vsel %vm1098, %v7666, 0
        %v7694 = vsel %vm1098, %v7667, 0
        %v7697 = vsel %vm1098, %v7668, 0
        %7699 = vmatprep.subr.bf16.mxu0 0
        %7700 = vmatpush1.bf16.msra.mxu0 %v7683
        %7701 = vmatprep.subr.bf16.mxu0 0
        %7702 = vmatpush1.bf16.msra.mxu0 %v7684
        %7703 = vmatprep.subr.bf16.mxu0 0
        %7704 = vmatpush1.bf16.msra.mxu0 0
        %7705 = vmatprep.subr.bf16.mxu0 0
        %7706 = vmatpush1.bf16.msra.mxu0 0
        %7707 = vmatprep.subr.bf16.mxu0 0
        %7708 = vmatpush1.bf16.msra.mxu0 0
        %7709 = vmatprep.subr.bf16.mxu0 0
        %7710 = vmatpush1.bf16.msra.mxu0 0
        %7711 = vmatprep.subr.bf16.mxu0 0
        %7712 = vmatpush1.bf16.msra.mxu0 0
        %7713 = vmatprep.subr.bf16.mxu0 0
        %7714 = vmatpush1.bf16.msra.mxu0 0
        %7715 = vmatprep.subr.bf16.mxu0 0
        %7716 = vmatpush1.bf16.msra.mxu0 0
        %7717 = vmatprep.subr.bf16.mxu0 0
        %7718 = vmatpush1.bf16.msra.mxu0 0
        %7719 = vmatprep.subr.bf16.mxu0 0
        %7720 = vmatpush1.bf16.msra.mxu0 0
        %7721 = vmatprep.subr.bf16.mxu0 0
        %7722 = vmatpush1.bf16.msra.mxu0 0
        %7723 = vmatprep.subr.bf16.mxu0 0
        %7724 = vmatpush1.bf16.msra.mxu0 0
        %7725 = vmatprep.subr.bf16.mxu0 0
        %7726 = vmatpush1.bf16.msra.mxu0 0
        %7727 = vmatprep.subr.bf16.mxu0 0
        %7728 = vmatpush1.bf16.msra.mxu0 0
        %7729 = vmatprep.subr.bf16.mxu0 0
        %7730 = vmatpush1.bf16.msra.mxu0 0
        %7731 = vmatprep.mubr.bf16.mxu0 0
        %7732 = vmatmul.mubr.bf16.gmra.mrb[0].mxu0 %v7688
        %v7733 = vpop.f32.mrb[0].mxu0
        %v7734 = vadd.f32 %v7673, %v7733
        %v7735 = vpop.f32.mrb[0].mxu0
        %v7736 = vpop.f32.mrb[0].mxu0
        %v7737 = vadd.f32 %v7673, %v7736
        %v7738 = vpop.f32.mrb[0].mxu0
        %7739 = vmatprep.mubr.bf16.mxu0 0
        %7740 = vmatmul.mubr.bf16.gmra.mrb[0].mxu0 %v7691
        %v7741 = vpop.f32.mrb[0].mxu0
        %v7742 = vadd.f32 %v7673, %v7741
        %v7743 = vpop.f32.mrb[0].mxu0
        %v7744 = vpop.f32.mrb[0].mxu0
        %v7745 = vadd.f32 %v7673, %v7744
        %v7746 = vpop.f32.mrb[0].mxu0
        %7747 = vmatprep.mubr.bf16.mxu0 0
        %7748 = vmatmul.mubr.bf16.gmra.mrb[0].mxu0 %v7694
        %v7749 = vpop.f32.mrb[0].mxu0
        %v7750 = vadd.f32 %v7673, %v7749
        %v7751 = vpop.f32.mrb[0].mxu0
        %v7752 = vpop.f32.mrb[0].mxu0
        %v7753 = vadd.f32 %v7673, %v7752
        %v7754 = vpop.f32.mrb[0].mxu0
        %7755 = vmatprep.mubr.bf16.mxu0 0
        %7756 = vmatmul.mubr.bf16.gmra.mrb[0].mxu0 %v7697
        %v7757 = vpop.f32.mrb[0].mxu0
        %v7758 = vadd.f32 %v7673, %v7757
        %v7759 = vpop.f32.mrb[0].mxu0
        %v7760 = vpop.f32.mrb[0].mxu0
        %v7761 = vpop.f32.mrb[0].mxu0
        %7762 = vdwg.mxu0
        %v7763 = vxor.u32 %v7734, 2147483648
        %v7764 = vxor.u32 %v7737, 2147483648
        %v7765 = vxor.u32 %v7742, 2147483648
        %v7766 = vxor.u32 %v7745, 2147483648
        %v7767 = vxor.u32 %v7750, 2147483648
        %v7768 = vxor.u32 %v7753, 2147483648
        %v7769 = vxor.u32 %v7758, 2147483648
        %v7770 = vmul.f32 %v7763, 1.442695
        %v7771 = vpow.pop %v7770
        %v7772 = vmul.f32 %v7764, 1.442695
        %v7773 = vpow.pop %v7772
        %v7774 = vmul.f32 %v7765, 1.442695
        %v7775 = vpow.pop %v7774
        %v7776 = vmul.f32 %v7766, 1.442695
        %v7777 = vpow.pop %v7776
        %v7778 = vmul.f32 %v7767, 1.442695
        %v7779 = vpow.pop %v7778
        %v7780 = vmul.f32 %v7768, 1.442695
        %v7781 = vpow.pop %v7780
        %v7782 = vmul.f32 %v7769, 1.442695
        %v7783 = vpow.pop %v7782
        %v7784 = vadd.f32 %v7771, 1.0
        %v7785 = vadd.f32 %v7773, 1.0
        %v7786 = vadd.f32 %v7775, 1.0
        %v7787 = vadd.f32 %v7777, 1.0
        %v7788 = vadd.f32 %v7779, 1.0
        %v7789 = vadd.f32 %v7781, 1.0
        %v7790 = vadd.f32 %v7783, 1.0
        %v7791 = vrcp.pop %v7784
        %v7792 = vmul.f32 1.0, %v7791
        %v7793 = vrcp.pop %v7785
        %v7794 = vmul.f32 1.0, %v7793
        %v7795 = vrcp.pop %v7786
        %v7796 = vmul.f32 1.0, %v7795
        %v7797 = vrcp.pop %v7787
        %v7798 = vmul.f32 1.0, %v7797
        %v7799 = vrcp.pop %v7788
        %v7800 = vmul.f32 1.0, %v7799
        %v7801 = vrcp.pop %v7789
        %v7802 = vmul.f32 1.0, %v7801
        %v7803 = vrcp.pop %v7790
        %v7804 = vmul.f32 1.0, %v7803
        %v7805 = vmul.f32 %v7734, %v7792
        %v7806 = vmul.f32 %v7737, %v7794
        %v7807 = vmul.f32 %v7742, %v7796
        %v7808 = vmul.f32 %v7745, %v7798
        %v7809 = vmul.f32 %v7750, %v7800
        %v7810 = vmul.f32 %v7753, %v7802
        %v7811 = vmul.f32 %v7758, %v7804
        %v7812 = vadd.f32 %v7497, %v7805
        %v7813 = vadd.f32 %v7498, %v7806
        %v7814 = vadd.f32 %v7499, %v7807
        %v7815 = vadd.f32 %v7500, %v7808
        %v7816 = vadd.f32 %v7501, %v7809
        %v7817 = vadd.f32 %v7502, %v7810
        %v7818 = vadd.f32 %v7503, %v7811
        %7819 = vrot.lane.b32.xlu0 %v909, 32
        %v7820 = vpop.permute.xlu0 %7819
        %7821 = vrot.lane.b32.xlu0 %v913, 32
        %v7822 = vpop.permute.xlu0 %7821
        %7823 = vrot.lane.b32.xlu0 %v919, 32
        %v7824 = vpop.permute.xlu0 %7823
        %7825 = vrot.lane.b32.xlu0 %v923, 32
        %v7826 = vpop.permute.xlu0 %7825
        %7827 = vrot.lane.b32.xlu0 %v929, 32
        %v7828 = vpop.permute.xlu0 %7827
        %7829 = vrot.lane.b32.xlu0 %v933, 32
        %v7830 = vpop.permute.xlu0 %7829
        %7831 = vrot.lane.b32.xlu0 %v939, 32
        %v7832 = vpop.permute.xlu0 %7831
        %v7840 = vmul.f32 %v7812, %v7820
        %v7841 = vmul.f32 %v7813, %v7822
        %v7842 = vmul.f32 %v7814, %v7824
        %v7843 = vmul.f32 %v7815, %v7826
        %v7844 = vmul.f32 %v7816, %v7828
        %v7845 = vmul.f32 %v7817, %v7830
        %v7846 = vmul.f32 %v7818, %v7832
        %v7847 = vpack.c.bf16 %v7841, %v7840
        %v7848 = vpack.c.bf16 %v7843, %v7842
        %v7849 = vpack.c.bf16 %v7845, %v7844
        %v7850 = vpack.c.bf16 %v7846, %v7846
        %v7852 = vsel %vm867, %v7850, 0
        %7854 = vmatprep.subr.bf16.mxu0 0
        %7855 = vmatpush1.bf16.msra.mxu0 %v7847
        %7856 = vmatprep.subr.bf16.mxu0 0
        %7857 = vmatpush1.bf16.msra.mxu0 %v7848
        %7858 = vmatprep.subr.bf16.mxu0 0
        %7859 = vmatpush1.bf16.msra.mxu0 %v7849
        %7860 = vmatprep.subr.bf16.mxu0 0
        %7861 = vmatpush1.bf16.msra.mxu0 %v7852
        %7862 = vmatprep.subr.bf16.mxu0 0
        %7863 = vmatpush1.bf16.msra.mxu0 0
        %7864 = vmatprep.subr.bf16.mxu0 0
        %7865 = vmatpush1.bf16.msra.mxu0 0
        %7866 = vmatprep.subr.bf16.mxu0 0
        %7867 = vmatpush1.bf16.msra.mxu0 0
        %7868 = vmatprep.subr.bf16.mxu0 0
        %7869 = vmatpush1.bf16.msra.mxu0 0
        %7870 = vmatprep.subr.bf16.mxu0 0
        %7871 = vmatpush1.bf16.msra.mxu0 0
        %7872 = vmatprep.subr.bf16.mxu0 0
        %7873 = vmatpush1.bf16.msra.mxu0 0
        %7874 = vmatprep.subr.bf16.mxu0 0
        %7875 = vmatpush1.bf16.msra.mxu0 0
        %7876 = vmatprep.subr.bf16.mxu0 0
        %7877 = vmatpush1.bf16.msra.mxu0 0
        %7878 = vmatprep.subr.bf16.mxu0 0
        %7879 = vmatpush1.bf16.msra.mxu0 0
        %7880 = vmatprep.subr.bf16.mxu0 0
        %7881 = vmatpush1.bf16.msra.mxu0 0
        %7882 = vmatprep.subr.bf16.mxu0 0
        %7883 = vmatpush1.bf16.msra.mxu0 0
        %7884 = vmatprep.subr.bf16.mxu0 0
        %7885 = vmatpush1.bf16.msra.mxu0 0
        %7886 = vmatprep.mubr.bf16.mxu0 0
        %7887 = vmatmul.mubr.bf16.gmra.mrb[0].mxu0 %v2238
        %v7888 = vpop.f32.mrb[0].mxu0
        %v7889 = vadd.f32 0.0, %v7888
        %v7890 = vpop.f32.mrb[0].mxu0
        %v7891 = vpop.f32.mrb[0].mxu0
        %v7892 = vpop.f32.mrb[0].mxu0
        %7893 = vdwg.mxu0
        %s7894 = scalar_lea.vmem %s14, 320
        %v7895 = vld [vmem:[%s7894] sm:$0xf]
        %v7896 = vld [vmem:[%s7894 + $0x4] sm:$0xf]
        %v7897 = vld [vmem:[%s7894 + $0x8] sm:$0xf]
        %v7898 = vld [vmem:[%s7894 + $0xc] sm:$0xf]
        %s7899 = scalar_lea.vmem %s15, 20
        %v7900 = vld [vmem:[%s7899] sm:$0x1]
        %v7901 = vpack.c.bf16 %v7889, %v7889
        %v7903 = vlaneseq
        %v7904 = vshrl.u32 %v7903, 7
        %v7905 = vsub.s32 0, %v7904
        %v7906 = vrot.slane %v7900, %v7905
        %v7912 = vunpack.c.l.b16 %v7895
        %v7913 = vunpack.c.l.b16 %v7896
        %v7914 = vunpack.c.l.b16 %v7897
        %v7915 = vunpack.c.l.b16 %v7898
        %v7916 = vpack.c.b16 %v7913, %v7912
        %v7917 = vpack.c.b16 %v7915, %v7914
        %v7921 = vsel %vm1098, %v7901, 0
        %7923 = vmatprep.subr.bf16.mxu0 0
        %7924 = vmatpush1.bf16.msra.mxu0 %v7916
        %7925 = vmatprep.subr.bf16.mxu0 0
        %7926 = vmatpush1.bf16.msra.mxu0 %v7917
        %7927 = vmatprep.subr.bf16.mxu0 0
        %7928 = vmatpush1.bf16.msra.mxu0 0
        %7929 = vmatprep.subr.bf16.mxu0 0
        %7930 = vmatpush1.bf16.msra.mxu0 0
        %7931 = vmatprep.subr.bf16.mxu0 0
        %7932 = vmatpush1.bf16.msra.mxu0 0
        %7933 = vmatprep.subr.bf16.mxu0 0
        %7934 = vmatpush1.bf16.msra.mxu0 0
        %7935 = vmatprep.subr.bf16.mxu0 0
        %7936 = vmatpush1.bf16.msra.mxu0 0
        %7937 = vmatprep.subr.bf16.mxu0 0
        %7938 = vmatpush1.bf16.msra.mxu0 0
        %7939 = vmatprep.subr.bf16.mxu0 0
        %7940 = vmatpush1.bf16.msra.mxu0 0
        %7941 = vmatprep.subr.bf16.mxu0 0
        %7942 = vmatpush1.bf16.msra.mxu0 0
        %7943 = vmatprep.subr.bf16.mxu0 0
        %7944 = vmatpush1.bf16.msra.mxu0 0
        %7945 = vmatprep.subr.bf16.mxu0 0
        %7946 = vmatpush1.bf16.msra.mxu0 0
        %7947 = vmatprep.subr.bf16.mxu0 0
        %7948 = vmatpush1.bf16.msra.mxu0 0
        %7949 = vmatprep.subr.bf16.mxu0 0
        %7950 = vmatpush1.bf16.msra.mxu0 0
        %7951 = vmatprep.subr.bf16.mxu0 0
        %7952 = vmatpush1.bf16.msra.mxu0 0
        %7953 = vmatprep.subr.bf16.mxu0 0
        %7954 = vmatpush1.bf16.msra.mxu0 0
        %7955 = vmatprep.mubr.bf16.mxu0 0
        %7956 = vmatmul.mubr.bf16.gmra.mrb[0].mxu0 %v7921
        %v7957 = vpop.f32.mrb[0].mxu0
        %v7958 = vadd.f32 %v7906, %v7957
        %v7959 = vpop.f32.mrb[0].mxu0
        %v7960 = vpop.f32.mrb[0].mxu0
        %v7961 = vpop.f32.mrb[0].mxu0
        %7962 = vdwg.mxu0
        %v7963 = vxor.u32 %v7958, 2147483648
        %v7964 = vmul.f32 %v7963, 1.442695
        %v7965 = vpow.pop %v7964
        %v7966 = vadd.f32 %v7965, 1.0
        %v7967 = vrcp.pop %v7966
        %v7968 = vmul.f32 1.0, %v7967
        %v7969 = vmul.f32 %v7958, %v7968
        %s7970 = scalar_lea.vmem %s14, 336
        %v7971 = vld [vmem:[%s7970] sm:$0xf]
        %v7972 = vld [vmem:[%s7970 + $0x4] sm:$0xf]
        %v7973 = vld [vmem:[%s7970 + $0x8] sm:$0xf]
        %v7974 = vld [vmem:[%s7970 + $0xc] sm:$0xf]
        %s7975 = scalar_lea.vmem %s15, 21
        %v7976 = vld [vmem:[%s7975] sm:$0x1]
        %v7977 = vpack.c.bf16 %v7969, %v7969
        %v7979 = vlaneseq
        %v7980 = vshrl.u32 %v7979, 7
        %v7981 = vsub.s32 0, %v7980
        %v7982 = vrot.slane %v7976, %v7981
        %v7988 = vunpack.c.l.b16 %v7971
        %v7989 = vunpack.c.l.b16 %v7972
        %v7990 = vunpack.c.l.b16 %v7973
        %v7991 = vunpack.c.l.b16 %v7974
        %v7992 = vpack.c.b16 %v7989, %v7988
        %v7993 = vpack.c.b16 %v7991, %v7990
        %v7997 = vsel %vm1098, %v7977, 0
        %7999 = vmatprep.subr.bf16.mxu0 0
        %8000 = vmatpush1.bf16.msra.mxu0 %v7992
        %8001 = vmatprep.subr.bf16.mxu0 0
        %8002 = vmatpush1.bf16.msra.mxu0 %v7993
        %8003 = vmatprep.subr.bf16.mxu0 0
        %8004 = vmatpush1.bf16.msra.mxu0 0
        %8005 = vmatprep.subr.bf16.mxu0 0
        %8006 = vmatpush1.bf16.msra.mxu0 0
        %8007 = vmatprep.subr.bf16.mxu0 0
        %8008 = vmatpush1.bf16.msra.mxu0 0
        %8009 = vmatprep.subr.bf16.mxu0 0
        %8010 = vmatpush1.bf16.msra.mxu0 0
        %8011 = vmatprep.subr.bf16.mxu0 0
        %8012 = vmatpush1.bf16.msra.mxu0 0
        %8013 = vmatprep.subr.bf16.mxu0 0
        %8014 = vmatpush1.bf16.msra.mxu0 0
        %8015 = vmatprep.subr.bf16.mxu0 0
        %8016 = vmatpush1.bf16.msra.mxu0 0
        %8017 = vmatprep.subr.bf16.mxu0 0
        %8018 = vmatpush1.bf16.msra.mxu0 0
        %8019 = vmatprep.subr.bf16.mxu0 0
        %8020 = vmatpush1.bf16.msra.mxu0 0
        %8021 = vmatprep.subr.bf16.mxu0 0
        %8022 = vmatpush1.bf16.msra.mxu0 0
        %8023 = vmatprep.subr.bf16.mxu0 0
        %8024 = vmatpush1.bf16.msra.mxu0 0
        %8025 = vmatprep.subr.bf16.mxu0 0
        %8026 = vmatpush1.bf16.msra.mxu0 0
        %8027 = vmatprep.subr.bf16.mxu0 0
        %8028 = vmatpush1.bf16.msra.mxu0 0
        %8029 = vmatprep.subr.bf16.mxu0 0
        %8030 = vmatpush1.bf16.msra.mxu0 0
        %8031 = vmatprep.mubr.bf16.mxu0 0
        %8032 = vmatmul.mubr.bf16.gmra.mrb[0].mxu0 %v7997
        %v8033 = vpop.f32.mrb[0].mxu0
        %v8034 = vadd.f32 %v7982, %v8033
        %v8035 = vpop.f32.mrb[0].mxu0
        %v8036 = vpop.f32.mrb[0].mxu0
        %v8037 = vpop.f32.mrb[0].mxu0
        %8038 = vdwg.mxu0
        %v8039 = vxor.u32 %v8034, 2147483648
        %v8040 = vmul.f32 %v8039, 1.442695
        %v8041 = vpow.pop %v8040
        %v8042 = vadd.f32 %v8041, 1.0
        %v8043 = vrcp.pop %v8042
        %v8044 = vmul.f32 1.0, %v8043
        %v8045 = vmul.f32 %v8034, %v8044
        %s8046 = scalar_lea.vmem %s14, 352
        %v8047 = vld [vmem:[%s8046] sm:$0xf]
        %v8048 = vld [vmem:[%s8046 + $0x4] sm:$0xf]
        %v8049 = vld [vmem:[%s8046 + $0x8] sm:$0xf]
        %v8050 = vld [vmem:[%s8046 + $0xc] sm:$0xf]
        %s8051 = scalar_lea.vmem %s15, 22
        %v8052 = vld [vmem:[%s8051] sm:$0x1]
        %v8053 = vpack.c.bf16 %v8045, %v8045
        %v8055 = vlaneseq
        %v8056 = vshrl.u32 %v8055, 7
        %v8057 = vsub.s32 0, %v8056
        %v8058 = vrot.slane %v8052, %v8057
        %v8064 = vunpack.c.l.b16 %v8047
        %v8065 = vunpack.c.l.b16 %v8048
        %v8066 = vunpack.c.l.b16 %v8049
        %v8067 = vunpack.c.l.b16 %v8050
        %v8068 = vpack.c.b16 %v8065, %v8064
        %v8069 = vpack.c.b16 %v8067, %v8066
        %v8073 = vsel %vm1098, %v8053, 0
        %8075 = vmatprep.subr.bf16.mxu0 0
        %8076 = vmatpush1.bf16.msra.mxu0 %v8068
        %8077 = vmatprep.subr.bf16.mxu0 0
        %8078 = vmatpush1.bf16.msra.mxu0 %v8069
        %8079 = vmatprep.subr.bf16.mxu0 0
        %8080 = vmatpush1.bf16.msra.mxu0 0
        %8081 = vmatprep.subr.bf16.mxu0 0
        %8082 = vmatpush1.bf16.msra.mxu0 0
        %8083 = vmatprep.subr.bf16.mxu0 0
        %8084 = vmatpush1.bf16.msra.mxu0 0
        %8085 = vmatprep.subr.bf16.mxu0 0
        %8086 = vmatpush1.bf16.msra.mxu0 0
        %8087 = vmatprep.subr.bf16.mxu0 0
        %8088 = vmatpush1.bf16.msra.mxu0 0
        %8089 = vmatprep.subr.bf16.mxu0 0
        %8090 = vmatpush1.bf16.msra.mxu0 0
        %8091 = vmatprep.subr.bf16.mxu0 0
        %8092 = vmatpush1.bf16.msra.mxu0 0
        %8093 = vmatprep.subr.bf16.mxu0 0
        %8094 = vmatpush1.bf16.msra.mxu0 0
        %8095 = vmatprep.subr.bf16.mxu0 0
        %8096 = vmatpush1.bf16.msra.mxu0 0
        %8097 = vmatprep.subr.bf16.mxu0 0
        %8098 = vmatpush1.bf16.msra.mxu0 0
        %8099 = vmatprep.subr.bf16.mxu0 0
        %8100 = vmatpush1.bf16.msra.mxu0 0
        %8101 = vmatprep.subr.bf16.mxu0 0
        %8102 = vmatpush1.bf16.msra.mxu0 0
        %8103 = vmatprep.subr.bf16.mxu0 0
        %8104 = vmatpush1.bf16.msra.mxu0 0
        %8105 = vmatprep.subr.bf16.mxu0 0
        %8106 = vmatpush1.bf16.msra.mxu0 0
        %8107 = vmatprep.mubr.bf16.mxu0 0
        %8108 = vmatmul.mubr.bf16.gmra.mrb[0].mxu0 %v8073
        %v8109 = vpop.f32.mrb[0].mxu0
        %v8110 = vadd.f32 %v8058, %v8109
        %v8111 = vpop.f32.mrb[0].mxu0
        %v8112 = vpop.f32.mrb[0].mxu0
        %v8113 = vpop.f32.mrb[0].mxu0
        %8114 = vdwg.mxu0
        %v8115 = vxor.u32 %v8110, 2147483648
        %v8116 = vmul.f32 %v8115, 1.442695
        %v8117 = vpow.pop %v8116
        %v8118 = vadd.f32 %v8117, 1.0
        %v8119 = vrcp.pop %v8118
        %v8120 = vmul.f32 1.0, %v8119
        %v8121 = vmul.f32 %v8110, %v8120
        %v8122 = vsel %vm1098, %v8121, 0.0
        %v8123 = vrot.slane %v8122, 4
        %v8124 = vadd.f32 %v8122, %v8123
        %v8125 = vrot.slane %v8124, 2
        %v8126 = vadd.f32 %v8124, %v8125
        %v8127 = vrot.slane %v8126, 1
        %v8128 = vadd.f32 %v8126, %v8127
        %v8129 = vld [vmem:[%s19] sm:$0xff]
        %v8130 = vld [vmem:[%s19 + $0x8] sm:$0xff]
        %v8131 = vld [vmem:[%s19 + $0x10] sm:$0xff]
        %v8132 = vld [vmem:[%s19 + $0x18] sm:$0xff]
        %s8133 = scalar_lea.vmem %s19, 32
        %v8134 = vld [vmem:[%s8133] sm:$0xff]
        %v8135 = vld [vmem:[%s8133 + $0x8] sm:$0xff]
        %v8136 = vld [vmem:[%s8133 + $0x10] sm:$0xff]
        %v8137 = vld [vmem:[%s8133 + $0x18] sm:$0xff]
        %v8139 = vsel %vm1098, %v5500, 0
        %8141 = vmatprep.subr.mxu0 0.0
        %8142 = vmatpush1.msra.mxu0 %v8134
        %8143 = vmatprep.subr.mxu0 0.0
        %8144 = vmatpush1.msra.mxu0 %v8135
        %8145 = vmatprep.subr.mxu0 0.0
        %8146 = vmatpush1.msra.mxu0 %v8136
        %8147 = vmatprep.subr.mxu0 0.0
        %8148 = vmatpush1.msra.mxu0 %v8137
        %8149 = vmatprep.subr.mxu0 0.0
        %8150 = vmatpush1.msra.mxu0 0.0
        %8151 = vmatprep.subr.mxu0 0.0
        %8152 = vmatpush1.msra.mxu0 0.0
        %8153 = vmatprep.subr.mxu0 0.0
        %8154 = vmatpush1.msra.mxu0 0.0
        %8155 = vmatprep.subr.mxu0 0.0
        %8156 = vmatpush1.msra.mxu0 0.0
        %8157 = vmatprep.subr.mxu0 0.0
        %8158 = vmatpush1.msra.mxu0 0.0
        %8159 = vmatprep.subr.mxu0 0.0
        %8160 = vmatpush1.msra.mxu0 0.0
        %8161 = vmatprep.subr.mxu0 0.0
        %8162 = vmatpush1.msra.mxu0 0.0
        %8163 = vmatprep.subr.mxu0 0.0
        %8164 = vmatpush1.msra.mxu0 0.0
        %8165 = vmatprep.subr.mxu0 0.0
        %8166 = vmatpush1.msra.mxu0 0.0
        %8167 = vmatprep.subr.mxu0 0.0
        %8168 = vmatpush1.msra.mxu0 0.0
        %8169 = vmatprep.subr.mxu0 0.0
        %8170 = vmatpush1.msra.mxu0 0.0
        %8171 = vmatprep.subr.mxu0 0.0
        %8172 = vmatpush1.msra.mxu0 0.0
        %8173 = vmatprep.subr.mxu0 0.0
        %8174 = vmatpush1.msra.mxu0 0.0
        %8175 = vmatprep.subr.mxu0 0.0
        %8176 = vmatpush1.msra.mxu0 0.0
        %8177 = vmatprep.subr.mxu0 0.0
        %8178 = vmatpush1.msra.mxu0 0.0
        %8179 = vmatprep.subr.mxu0 0.0
        %8180 = vmatpush1.msra.mxu0 0.0
        %8181 = vmatprep.subr.mxu0 0.0
        %8182 = vmatpush1.msra.mxu0 0.0
        %8183 = vmatprep.subr.mxu0 0.0
        %8184 = vmatpush1.msra.mxu0 0.0
        %8185 = vmatprep.subr.mxu0 0.0
        %8186 = vmatpush1.msra.mxu0 0.0
        %8187 = vmatprep.subr.mxu0 0.0
        %8188 = vmatpush1.msra.mxu0 0.0
        %8189 = vmatprep.subr.mxu0 0.0
        %8190 = vmatpush1.msra.mxu0 0.0
        %8191 = vmatprep.subr.mxu0 0.0
        %8192 = vmatpush1.msra.mxu0 0.0
        %8193 = vmatprep.subr.mxu0 0.0
        %8194 = vmatpush1.msra.mxu0 0.0
        %8195 = vmatprep.subr.mxu0 0.0
        %8196 = vmatpush1.msra.mxu0 0.0
        %8197 = vmatprep.subr.mxu0 0.0
        %8198 = vmatpush1.msra.mxu0 0.0
        %8199 = vmatprep.subr.mxu0 0.0
        %8200 = vmatpush1.msra.mxu0 0.0
        %8201 = vmatprep.subr.mxu0 0.0
        %8202 = vmatpush1.msra.mxu0 0.0
        %8203 = vmatprep.subr.mxu0 0.0
        %8204 = vmatpush1.msra.mxu0 0.0
        %8205 = vmatprep.mubr.f32.mxu0 0.0
        %8206 = vmatmul.mubr.f32.gmra.mrb[0].mxu0 %v8139
        %v8207 = vpop.f32.mrb[0].mxu0
        %v8208 = vadd.f32 0.0, %v8207
        %v8209 = vpop.f32.mrb[0].mxu0
        %8210 = vdwg.mxu0
        %v8212 = vsel %vm1098, %v2515, 0
        %8214 = vmatprep.subr.mxu0 0.0
        %8215 = vmatpush1.msra.mxu0 %v8129
        %8216 = vmatprep.subr.mxu0 0.0
        %8217 = vmatpush1.msra.mxu0 %v8130
        %8218 = vmatprep.subr.mxu0 0.0
        %8219 = vmatpush1.msra.mxu0 %v8131
        %8220 = vmatprep.subr.mxu0 0.0
        %8221 = vmatpush1.msra.mxu0 %v8132
        %8222 = vmatprep.subr.mxu0 0.0
        %8223 = vmatpush1.msra.mxu0 0.0
        %8224 = vmatprep.subr.mxu0 0.0
        %8225 = vmatpush1.msra.mxu0 0.0
        %8226 = vmatprep.subr.mxu0 0.0
        %8227 = vmatpush1.msra.mxu0 0.0
        %8228 = vmatprep.subr.mxu0 0.0
        %8229 = vmatpush1.msra.mxu0 0.0
        %8230 = vmatprep.subr.mxu0 0.0
        %8231 = vmatpush1.msra.mxu0 0.0
        %8232 = vmatprep.subr.mxu0 0.0
        %8233 = vmatpush1.msra.mxu0 0.0
        %8234 = vmatprep.subr.mxu0 0.0
        %8235 = vmatpush1.msra.mxu0 0.0
        %8236 = vmatprep.subr.mxu0 0.0
        %8237 = vmatpush1.msra.mxu0 0.0
        %8238 = vmatprep.subr.mxu0 0.0
        %8239 = vmatpush1.msra.mxu0 0.0
        %8240 = vmatprep.subr.mxu0 0.0
        %8241 = vmatpush1.msra.mxu0 0.0
        %8242 = vmatprep.subr.mxu0 0.0
        %8243 = vmatpush1.msra.mxu0 0.0
        %8244 = vmatprep.subr.mxu0 0.0
        %8245 = vmatpush1.msra.mxu0 0.0
        %8246 = vmatprep.subr.mxu0 0.0
        %8247 = vmatpush1.msra.mxu0 0.0
        %8248 = vmatprep.subr.mxu0 0.0
        %8249 = vmatpush1.msra.mxu0 0.0
        %8250 = vmatprep.subr.mxu0 0.0
        %8251 = vmatpush1.msra.mxu0 0.0
        %8252 = vmatprep.subr.mxu0 0.0
        %8253 = vmatpush1.msra.mxu0 0.0
        %8254 = vmatprep.subr.mxu0 0.0
        %8255 = vmatpush1.msra.mxu0 0.0
        %8256 = vmatprep.subr.mxu0 0.0
        %8257 = vmatpush1.msra.mxu0 0.0
        %8258 = vmatprep.subr.mxu0 0.0
        %8259 = vmatpush1.msra.mxu0 0.0
        %8260 = vmatprep.subr.mxu0 0.0
        %8261 = vmatpush1.msra.mxu0 0.0
        %8262 = vmatprep.subr.mxu0 0.0
        %8263 = vmatpush1.msra.mxu0 0.0
        %8264 = vmatprep.subr.mxu0 0.0
        %8265 = vmatpush1.msra.mxu0 0.0
        %8266 = vmatprep.subr.mxu0 0.0
        %8267 = vmatpush1.msra.mxu0 0.0
        %8268 = vmatprep.subr.mxu0 0.0
        %8269 = vmatpush1.msra.mxu0 0.0
        %8270 = vmatprep.subr.mxu0 0.0
        %8271 = vmatpush1.msra.mxu0 0.0
        %8272 = vmatprep.subr.mxu0 0.0
        %8273 = vmatpush1.msra.mxu0 0.0
        %8274 = vmatprep.subr.mxu0 0.0
        %8275 = vmatpush1.msra.mxu0 0.0
        %8276 = vmatprep.subr.mxu0 0.0
        %8277 = vmatpush1.msra.mxu0 0.0
        %8278 = vmatprep.mubr.f32.mxu0 0.0
        %8279 = vmatmul.mubr.f32.gmra.mrb[0].mxu0 %v8212
        %v8280 = vpop.f32.mrb[0].mxu0
        %v8281 = vadd.f32 %v8208, %v8280
        %v8282 = vpop.f32.mrb[0].mxu0
        %8283 = vdwg.mxu0
        %s8284 = scalar_lea.vmem %s19, 64
        %v8285 = vld [vmem:[%s8284] sm:$0xff]
        %v8286 = vld [vmem:[%s8284 + $0x8] sm:$0xff]
        %v8287 = vld [vmem:[%s8284 + $0x10] sm:$0xff]
        %v8288 = vld [vmem:[%s8284 + $0x18] sm:$0xff]
        %v8290 = vsel %vm1098, %v8128, 0
        %8292 = vmatprep.subr.mxu0 0.0
        %8293 = vmatpush1.msra.mxu0 %v8285
        %8294 = vmatprep.subr.mxu0 0.0
        %8295 = vmatpush1.msra.mxu0 %v8286
        %8296 = vmatprep.subr.mxu0 0.0
        %8297 = vmatpush1.msra.mxu0 %v8287
        %8298 = vmatprep.subr.mxu0 0.0
        %8299 = vmatpush1.msra.mxu0 %v8288
        %8300 = vmatprep.subr.mxu0 0.0
        %8301 = vmatpush1.msra.mxu0 0.0
        %8302 = vmatprep.subr.mxu0 0.0
        %8303 = vmatpush1.msra.mxu0 0.0
        %8304 = vmatprep.subr.mxu0 0.0
        %8305 = vmatpush1.msra.mxu0 0.0
        %8306 = vmatprep.subr.mxu0 0.0
        %8307 = vmatpush1.msra.mxu0 0.0
        %8308 = vmatprep.subr.mxu0 0.0
        %8309 = vmatpush1.msra.mxu0 0.0
        %8310 = vmatprep.subr.mxu0 0.0
        %8311 = vmatpush1.msra.mxu0 0.0
        %8312 = vmatprep.subr.mxu0 0.0
        %8313 = vmatpush1.msra.mxu0 0.0
        %8314 = vmatprep.subr.mxu0 0.0
        %8315 = vmatpush1.msra.mxu0 0.0
        %8316 = vmatprep.subr.mxu0 0.0
        %8317 = vmatpush1.msra.mxu0 0.0
        %8318 = vmatprep.subr.mxu0 0.0
        %8319 = vmatpush1.msra.mxu0 0.0
        %8320 = vmatprep.subr.mxu0 0.0
        %8321 = vmatpush1.msra.mxu0 0.0
        %8322 = vmatprep.subr.mxu0 0.0
        %8323 = vmatpush1.msra.mxu0 0.0
        %8324 = vmatprep.subr.mxu0 0.0
        %8325 = vmatpush1.msra.mxu0 0.0
        %8326 = vmatprep.subr.mxu0 0.0
        %8327 = vmatpush1.msra.mxu0 0.0
        %8328 = vmatprep.subr.mxu0 0.0
        %8329 = vmatpush1.msra.mxu0 0.0
        %8330 = vmatprep.subr.mxu0 0.0
        %8331 = vmatpush1.msra.mxu0 0.0
        %8332 = vmatprep.subr.mxu0 0.0
        %8333 = vmatpush1.msra.mxu0 0.0
        %8334 = vmatprep.subr.mxu0 0.0
        %8335 = vmatpush1.msra.mxu0 0.0
        %8336 = vmatprep.subr.mxu0 0.0
        %8337 = vmatpush1.msra.mxu0 0.0
        %8338 = vmatprep.subr.mxu0 0.0
        %8339 = vmatpush1.msra.mxu0 0.0
        %8340 = vmatprep.subr.mxu0 0.0
        %8341 = vmatpush1.msra.mxu0 0.0
        %8342 = vmatprep.subr.mxu0 0.0
        %8343 = vmatpush1.msra.mxu0 0.0
        %8344 = vmatprep.subr.mxu0 0.0
        %8345 = vmatpush1.msra.mxu0 0.0
        %8346 = vmatprep.subr.mxu0 0.0
        %8347 = vmatpush1.msra.mxu0 0.0
        %8348 = vmatprep.subr.mxu0 0.0
        %8349 = vmatpush1.msra.mxu0 0.0
        %8350 = vmatprep.subr.mxu0 0.0
        %8351 = vmatpush1.msra.mxu0 0.0
        %8352 = vmatprep.subr.mxu0 0.0
        %8353 = vmatpush1.msra.mxu0 0.0
        %8354 = vmatprep.subr.mxu0 0.0
        %8355 = vmatpush1.msra.mxu0 0.0
        %8356 = vmatprep.mubr.f32.mxu0 0.0
        %8357 = vmatmul.mubr.f32.gmra.mrb[0].mxu0 %v8290
        %v8358 = vpop.f32.mrb[0].mxu0
        %v8359 = vadd.f32 0.0, %v8358
        %v8360 = vpop.f32.mrb[0].mxu0
        %8361 = vdwg.mxu0
        %v8362 = vadd.f32 %v8281, %v8359
        %vm8363 = vcmask 90112
        %8364 = vst.msk [vmem:[%s649] sm:$0x1] %vm8363, %v8362
        %s8365 = sand.u32 %s477, 1
        %s8366 = scalar_lea.sflag [#allocation3], %s8365
        %s8367 = sand.u32 %s477, 1
        %s8368 = scalar_lea.vmem [#allocation2], %s8367
        // Predicated region
        $region101: #{dime_predictor_forward.1} parent=99 // pred_check
          %p8369 = pneg %p487
        $region102: #{dime_predictor_forward.1} parent=99 // pred_check_branch
          %8371 = sbr.rel (%p8369) target = $region104
        $region103: #{dime_predictor_forward.1} parent=99 // pred_region
          %s8373 = ssub.s32 16, 16
          %8374 = vsyncadd %s8366, %s8373
          %s8375 = smul.addr %s34, 16
          %s8376 = scalar_lea.hbm %s20, %s8375
          %s8378 = sshll.u32 %s8368, 4
          %s8379 = int_to_ptr.vmem [resolvable:$true] %s8378
          %8381 = dma.vmem_to_hbm [thread:$0]  %s8379, 16, %s8376, %s8366
        $region104: #{dime_predictor_forward.1} parent=99 // pred_fallthru
          _
      $region100: #{dime_predictor_forward.1} parent=5 // pred_fallthru
        _
      %p8382 = scmp.le.s32.totalorder 2, %s29
      // Predicated region
      $region105: #{dime_predictor_forward.1} parent=5 // pred_check
        %p8383 = pneg %p8382
      $region106: #{dime_predictor_forward.1} parent=5 // pred_check_branch
        %8385 = sbr.rel (%p8383) target = $region108
      $region107: #{dime_predictor_forward.1} parent=5 // pred_region
        %s8386 = ssub.s32 %s29, 2
        // Predicated region
        $region109: #{dime_predictor_forward.1} parent=107 // pred_check
          %p8387 = pneg %p493
        $region110: #{dime_predictor_forward.1} parent=107 // pred_check_branch
          %8389 = sbr.rel (%p8387) target = $region112
        $region111: #{dime_predictor_forward.1} parent=107 // pred_region
          %s8390 = sand.u32 %s478, 1
          %s8391 = scalar_lea.sflag [#allocation3], %s8390
          %s8392 = sand.u32 %s478, 1
          %s8393 = scalar_lea.vmem [#allocation2], %s8392
          %8394 = dma.done %s8391, 16
        $region112: #{dime_predictor_forward.1} parent=107 // pred_fallthru
          _
      $region108: #{dime_predictor_forward.1} parent=5 // pred_fallthru
        _
    $region6: #{dime_predictor_forward.1} parent=1 // loop_footer
      %s33 = sadd.s32 1, %s29
    $region7: #{dime_predictor_forward.1} parent=1 // loop_footer_branch
      %28 = sbr.rel target = $region3
    $region8: #{dime_predictor_forward.1} parent=1 // loop_exit
      _
    %8395 = vsyncpa [#allocation3], 1
    %s8396 = scalar_lea.sflag [#allocation3], 1
    %8397 = vsyncpa %s8396, 1

</llo_original>
